<compile_context>
chip_gen: v6e
topology: v6e:2x2x1
jax: 0.10.0
libtpu: 0.0.40
codegen_flags: <defaults>
</compile_context>

<pallas_src>
import functools

import jax
import jax.numpy as jnp
from jax.experimental import pallas as pl
from jax.experimental.pallas import tpu as pltpu


class hparams:
    timit_n_mels = 16
    timit_n_fft = 64          # -> timit_n_fft // 2 + 1 = 33 spectral bins


# ---------------------------------------------------------------------------
# In-kernel building blocks (all static slices / static loops; time-major rows)
# ---------------------------------------------------------------------------
def _conv_same(v, w_ref, b_ref, k, pad_scr, *, B, P):
    """PyTorch Conv1d(kernel=k, padding=k//2)(x)[..., :T] on time-major rows.

    v       : (M, Cin) value, rows ordered m = t*B + b.
    w_ref   : (k*Cin, Cout) ref, row-blocks ordered by tap (time offset j - k//2).
    b_ref   : (1, Cout) ref (BN already folded in).
    pad_scr : (2P + M, >=Cin) VMEM scratch used to build zero-padded shifted
              windows with static ref reads (no HBM im2col, no dynamic indexing).
    """
    M, Cin = v.shape
    zpad = jnp.zeros((P, Cin), jnp.float32)
    pad_scr[0:P, 0:Cin] = zpad
    pad_scr[P:P + M, 0:Cin] = v
    pad_scr[P + M:P + M + P, 0:Cin] = zpad
    acc = b_ref[...]                                          # (1, Cout), broadcasts
    for j in range(k):                                        # static tap loop
        off = P + (j - k // 2) * B                            # time shift -> row shift
        win = pad_scr[off:off + M, 0:Cin]
        acc = acc + jnp.dot(win, w_ref[j * Cin:(j + 1) * Cin, :],
                            preferred_element_type=jnp.float32)
    return acc


def _maxpool2(y, pad_scr, *, B, P):
    """MaxPool1d(kernel=2, stride=1, padding=1)[:T]  ==  max(y[t-1], y[t])."""
    M, Cw = y.shape
    pad_scr[0:P, 0:Cw] = jnp.full((P, Cw), -jnp.inf, jnp.float32)
    pad_scr[P:P + M, 0:Cw] = y
    prev = pad_scr[P - B:P - B + M, 0:Cw]                     # y[t-1] (or -inf at t=0)
    return jnp.maximum(y, prev)


def _gru_cell(gx, gh, h, H):
    """PyTorch GRU cell; gx/gh are the [r|z|n] input/recurrent gate pre-activations."""
    r = jax.nn.sigmoid(gx[:, 0:H] + gh[:, 0:H])
    z = jax.nn.sigmoid(gx[:, H:2 * H] + gh[:, H:2 * H])
    n = jnp.tanh(gx[:, 2 * H:3 * H] + r * gh[:, 2 * H:3 * H])
    return (1.0 - z) * n + z * h


def _cbhg_body(x, refs, pad_scr, gx_scr, rnn_scr, *, B, T, K, L, H):
    """Full CBHG on time-major rows x: (M, C) -> bi-GRU output (M, 2H)."""
    (w_bank, b_bank, w_p1, b_p1, w_p2, b_p2,
     wc, bc, wih, bih, whh, bhh) = refs
    M, C = x.shape
    P = max(K // 2, 1) * B

    # Conv1d bank (k = 1..K, BN folded) + ReLU: one shared K-tap shifted-matmul loop.
    y = jnp.maximum(_conv_same(x, w_bank, b_bank, K, pad_scr, B=B, P=P), 0.0)
    # MaxPool1d(2, stride=1, padding=1)[:T]
    y = _maxpool2(y, pad_scr, B=B, P=P)
    # proj-1 conv (k=3) + folded BN + ReLU
    y = jnp.maximum(_conv_same(y, w_p1, b_p1, 3, pad_scr, B=B, P=P), 0.0)
    # proj-2 conv (k=3) + folded BN + residual
    z = _conv_same(y, w_p2, b_p2, 3, pad_scr, B=B, P=P) + x

    # Highway stack (H(x)*T(x) + x*(1-T(x))), fused [W_h | W_t] per layer.
    for l in range(L):                                        # static layer loop
        g = jnp.dot(z, wc[l], preferred_element_type=jnp.float32) + bc[l]
        hh = jnp.maximum(g[:, :C], 0.0)
        tt = jax.nn.sigmoid(g[:, C:])
        z = hh * tt + z * (1.0 - tt)

    # biGRU input projection for BOTH directions in one GEMM; park it in VMEM.
    gx_scr[...] = (jnp.dot(z, wih[...], preferred_element_type=jnp.float32)
                   + bih[...])

    # Bidirectional GRU: statically unrolled over T (T is small and static);
    # both directions advance per step, hidden state never leaves vregs.
    whh_f = whh[0]
    whh_b = whh[1]
    bhh_f = bhh[0]
    bhh_b = bhh[1]
    hf = jnp.zeros((B, H), jnp.float32)
    hb = jnp.zeros((B, H), jnp.float32)
    for s in range(T):                                        # static time loop
        gf = gx_scr[s * B:(s + 1) * B, :]                     # time s rows
        gb = gx_scr[(T - 1 - s) * B:(T - s) * B, :]           # time T-1-s rows
        hf = _gru_cell(gf[:, 0:3 * H],
                       jnp.dot(hf, whh_f, preferred_element_type=jnp.float32) + bhh_f,
                       hf, H)
        hb = _gru_cell(gb[:, 3 * H:6 * H],
                       jnp.dot(hb, whh_b, preferred_element_type=jnp.float32) + bhh_b,
                       hb, H)
        rnn_scr[s * B:(s + 1) * B, 0:H] = hf
        rnn_scr[(T - 1 - s) * B:(T - s) * B, H:2 * H] = hb
    return rnn_scr[...]                                       # (M, 2H) = [fwd || bwd]


# ---------------------------------------------------------------------------
# The two fused kernels
# ---------------------------------------------------------------------------
def _net2_mel_kernel(x_ref,
                     w_pre1, b_pre1, w_pre2, b_pre2,
                     w_bank, b_bank, w_p1, b_p1, w_p2, b_p2,
                     wc, bc, wih, bih, whh, bhh,
                     w_pm, b_pm, w_ps, b_ps,
                     pm_ref, si_ref,
                     pad_scr, gx_scr, rnn_scr,
                     *, B, T, K, L, H):
    # PreNet: (Linear+ReLU) x2 (dropout == identity in eval mode).
    h1 = jnp.maximum(jnp.dot(x_ref[...], w_pre1[...],
                             preferred_element_type=jnp.float32) + b_pre1[...], 0.0)
    pre = jnp.maximum(jnp.dot(h1, w_pre2[...],
                              preferred_element_type=jnp.float32) + b_pre2[...], 0.0)
    rnn = _cbhg_body(pre,
                     (w_bank, b_bank, w_p1, b_p1, w_p2, b_p2,
                      wc, bc, wih, bih, whh, bhh),
                     pad_scr, gx_scr, rnn_scr, B=B, T=T, K=K, L=L, H=H)
    # pred_mel then prepare_spec, back to back on the same rows.
    pm = jnp.dot(rnn, w_pm[...], preferred_element_type=jnp.float32) + b_pm[...]
    pm_ref[...] = pm.astype(pm_ref.dtype)
    si_ref[...] = (jnp.dot(pm, w_ps[...], preferred_element_type=jnp.float32)
                   + b_ps[...]).astype(si_ref.dtype)


def _net2_spec_kernel(x_ref,
                      w_bank, b_bank, w_p1, b_p1, w_p2, b_p2,
                      wc, bc, wih, bih, whh, bhh,
                      w_sp, b_sp,
                      ps_ref,
                      pad_scr, gx_scr, rnn_scr,
                      *, B, T, K, L, H):
    rnn = _cbhg_body(x_ref[...],
                     (w_bank, b_bank, w_p1, b_p1, w_p2, b_p2,
                      wc, bc, wih, bih, whh, bhh),
                     pad_scr, gx_scr, rnn_scr, B=B, T=T, K=K, L=L, H=H)
    ps_ref[...] = (jnp.dot(rnn, w_sp[...], preferred_element_type=jnp.float32)
                   + b_sp[...]).astype(ps_ref.dtype)


def _scratch_shapes(M, C, K, H, B):
    P = max(K // 2, 1) * B
    return [pltpu.VMEM((2 * P + M, K * C), jnp.float32),   # conv / maxpool staging
            pltpu.VMEM((M, 6 * H), jnp.float32),           # biGRU input-gate buffer
            pltpu.VMEM((M, 2 * H), jnp.float32)]           # biGRU output [fwd || bwd]


# ---------------------------------------------------------------------------
# Forward wrapper (2 pallas_calls + 3 tiny layout ops)
# ---------------------------------------------------------------------------
def net2_forward(prep, x, *, K, L):
    B, T, Din = x.shape
    C = prep["prenet_w2"].shape[1]
    H = C
    M = T * B
    n_mels = prep["pred_mel_w"].shape[1]
    n_spec = prep["pred_spec_w"].shape[1]

    # time-major rows (m = t*B + b): convs shift whole contiguous row blocks.
    x_tm = jnp.swapaxes(x, 0, 1).reshape(M, Din)

    mel = prep["cbhg_mel"]
    spec = prep["cbhg_spec"]

    pm2d, si2d = pl.pallas_call(
        functools.partial(_net2_mel_kernel, B=B, T=T, K=K, L=L, H=H),
        out_shape=(jax.ShapeDtypeStruct((M, n_mels), jnp.float32),
                   jax.ShapeDtypeStruct((M, C), jnp.float32)),
        scratch_shapes=_scratch_shapes(M, C, K, H, B),
    )(x_tm,
      prep["prenet_w1"], prep["prenet_b1"], prep["prenet_w2"], prep["prenet_b2"],
      mel["w_bank"], mel["b_bank"], mel["w_p1"], mel["b_p1"], mel["w_p2"], mel["b_p2"],
      mel["wc"], mel["bc"], mel["wih"], mel["bih"], mel["whh"], mel["bhh"],
      prep["pred_mel_w"], prep["pred_mel_b"],
      prep["prepare_spec_w"], prep["prepare_spec_b"])

    ps2d = pl.pallas_call(
        functools.partial(_net2_spec_kernel, B=B, T=T, K=K, L=L, H=H),
        out_shape=jax.ShapeDtypeStruct((M, n_spec), jnp.float32),
        scratch_shapes=_scratch_shapes(M, C, K, H, B),
    )(si2d,
      spec["w_bank"], spec["b_bank"], spec["w_p1"], spec["b_p1"],
      spec["w_p2"], spec["b_p2"],
      spec["wc"], spec["bc"], spec["wih"], spec["bih"], spec["whh"], spec["bhh"],
      prep["pred_spec_w"], prep["pred_spec_b"])

    pred_mel = jnp.swapaxes(pm2d.reshape(T, B, n_mels), 0, 1)
    pred_spec = jnp.swapaxes(ps2d.reshape(T, B, n_spec), 0, 1)
    return pred_spec, pred_mel


# ---------------------------------------------------------------------------
# One-time weight preparation (hoisted out of the jitted forward)
# ---------------------------------------------------------------------------
def fold_bn(w_ock, b_o, bn, eps=1e-5):
    """Fold eval-mode BatchNorm1d into the preceding conv weights."""
    gamma, beta, mean, var = bn
    scale = gamma / jnp.sqrt(var + eps)
    return w_ock * scale[:, None, None], (b_o - mean) * scale + beta


def conv_w_to_gemm(w):
    """(C_out, C_in, k) -> (k*C_in, C_out), row-blocks ordered by tap."""
    C_out, C_in, k = w.shape
    return w.transpose(2, 1, 0).reshape(k * C_in, C_out)


def _embed_bank_weight(w, K):
    """Embed a kernel-k bank weight into the shared K-wide tap layout."""
    C_out, C_in, k = w.shape
    slots = [jnp.zeros((C_in, C_out), w.dtype) for _ in range(K)]
    for j in range(k):
        slots[j - k // 2 + K // 2] = w[:, :, j].T
    return jnp.concatenate(slots, axis=0)                   # (K*C_in, C_out)


def _prep_cbhg(p, K, L, C):
    out = {}
    ws, bs = [], []
    for k in range(1, K + 1):
        w, b = fold_bn(*p[f"bank{k}"], p[f"bank{k}_bn"])
        ws.append(_embed_bank_weight(w, K))
        bs.append(b)
    out["w_bank"] = jnp.concatenate(ws, axis=1)              # (K*C, K*C)
    out["b_bank"] = jnp.concatenate(bs, axis=0).reshape(1, K * C)
    w1, b1 = fold_bn(*p["proj1"], p["proj1_bn"])
    out["w_p1"] = conv_w_to_gemm(w1)
    out["b_p1"] = b1.reshape(1, C)
    w2, b2 = fold_bn(*p["proj2"], p["proj2_bn"])
    out["w_p2"] = conv_w_to_gemm(w2)
    out["b_p2"] = b2.reshape(1, C)
    out["wc"] = jnp.stack([jnp.concatenate([p[f"hw{i}_h"][0], p[f"hw{i}_t"][0]], axis=1)
                           for i in range(L)], axis=0)       # (L, C, 2C)
    out["bc"] = jnp.stack([jnp.concatenate([p[f"hw{i}_h"][1], p[f"hw{i}_t"][1]], axis=0)
                           for i in range(L)], axis=0).reshape(L, 1, 2 * C)
    out["wih"] = jnp.concatenate([p["gru_f"]["wih"], p["gru_b"]["wih"]], axis=1)  # (C,6H)
    out["bih"] = jnp.concatenate([p["gru_f"]["bih"], p["gru_b"]["bih"]],
                                 axis=0).reshape(1, 6 * C)
    out["whh"] = jnp.stack([p["gru_f"]["whh"], p["gru_b"]["whh"]], axis=0)        # (2,H,3H)
    out["bhh"] = jnp.stack([p["gru_f"]["bhh"], p["gru_b"]["bhh"]],
                           axis=0).reshape(2, 1, 3 * C)
    return out


def prepare_params(params, K, L):
    w1, b1 = params["prenet_fc1"]
    w2, b2 = params["prenet_fc2"]
    C = w2.shape[1]
    return dict(
        prenet_w1=w1, prenet_b1=b1.reshape(1, -1),
        prenet_w2=w2, prenet_b2=b2.reshape(1, -1),
        cbhg_mel=_prep_cbhg(params["cbhg_mel"], K, L, C),
        cbhg_spec=_prep_cbhg(params["cbhg_spec"], K, L, C),
        pred_mel_w=params["pred_mel"][0], pred_mel_b=params["pred_mel"][1].reshape(1, -1),
        prepare_spec_w=params["prepare_spec"][0],
        prepare_spec_b=params["prepare_spec"][1].reshape(1, -1),
        pred_spec_w=params["pred_spec"][0], pred_spec_b=params["pred_spec"][1].reshape(1, -1),
    )


# ---------------------------------------------------------------------------
# Deterministic parameter initialization (matches the PyTorch module structure)
# ---------------------------------------------------------------------------
def init_params(key, in_dims, hidden_units, K, num_highway):
    C = hidden_units // 2
    ks = iter(jax.random.split(key, 256))

    def lin(din, dout):
        return (0.1 * jax.random.normal(next(ks), (din, dout), jnp.float32),
                0.01 * jax.random.normal(next(ks), (dout,), jnp.float32))

    def conv(cin, cout, k):
        return (0.1 * jax.random.normal(next(ks), (cout, cin, k), jnp.float32),
                0.01 * jax.random.normal(next(ks), (cout,), jnp.float32))

    def bn(c):
        return (jnp.ones((c,), jnp.float32), jnp.zeros((c,), jnp.float32),
                jnp.zeros((c,), jnp.float32), jnp.ones((c,), jnp.float32))

    def gru(din, h):
        return dict(
            wih=0.1 * jax.random.normal(next(ks), (din, 3 * h), jnp.float32),
            whh=0.1 * jax.random.normal(next(ks), (h, 3 * h), jnp.float32),
            bih=0.01 * jax.random.normal(next(ks), (3 * h,), jnp.float32),
            bhh=0.01 * jax.random.normal(next(ks), (3 * h,), jnp.float32),
        )

    def cbhg_p():
        p = {}
        for k in range(1, K + 1):
            p[f"bank{k}"] = conv(C, C, k)
            p[f"bank{k}_bn"] = bn(C)
        p["proj1"] = conv(K * C, C, 3)
        p["proj1_bn"] = bn(C)
        p["proj2"] = conv(C, C, 3)
        p["proj2_bn"] = bn(C)
        for i in range(num_highway):
            p[f"hw{i}_h"] = lin(C, C)
            p[f"hw{i}_t"] = lin(C, C)
        p["gru_f"] = gru(C, C)
        p["gru_b"] = gru(C, C)
        return p

    return dict(
        prenet_fc1=lin(in_dims, hidden_units),
        prenet_fc2=lin(hidden_units, C),
        cbhg_mel=cbhg_p(),
        cbhg_spec=cbhg_p(),
        pred_mel=lin(hidden_units, hparams.timit_n_mels),
        prepare_spec=lin(hparams.timit_n_mels, C),
        pred_spec=lin(hidden_units, hparams.timit_n_fft // 2 + 1),
    )


if __name__ == "__main__":
    in_dims, hidden_units = 8, 32
    num_conv1d_banks, num_highway_blocks = 4, 2
    B, T = 2, 8

    key = jax.random.PRNGKey(0)
    pkey, xkey = jax.random.split(key)
    params = init_params(pkey, in_dims, hidden_units, num_conv1d_banks, num_highway_blocks)
    # One-time weight prep (BN folding, bank fusion, layout) -- outside the jitted path.
    prep = prepare_params(params, num_conv1d_banks, num_highway_blocks)
    x = jax.random.normal(xkey, (B, T, in_dims), jnp.float32)

    fwd = jax.jit(functools.partial(net2_forward, K=num_conv1d_banks,
                                    L=num_highway_blocks))
    pred_spec, pred_mel = fwd(prep, x)
    jax.block_until_ready((pred_spec, pred_mel))

    assert pred_spec.shape == (B, T, hparams.timit_n_fft // 2 + 1)
    assert pred_mel.shape == (B, T, hparams.timit_n_mels)
    assert bool(jnp.isfinite(pred_spec).all()) and bool(jnp.isfinite(pred_mel).all())
    print("KERNEL_OK")
</pallas_src>

<mosaic_0001>
module attributes {stable_mosaic.version = 11 : i64} {
  func.func @_net2_spec_kernel(%arg0: memref<16x16xf32, #tpu.memory_space<vmem>>, %arg1: memref<64x64xf32, #tpu.memory_space<vmem>>, %arg2: memref<1x64xf32, #tpu.memory_space<vmem>>, %arg3: memref<192x16xf32, #tpu.memory_space<vmem>>, %arg4: memref<1x16xf32, #tpu.memory_space<vmem>>, %arg5: memref<48x16xf32, #tpu.memory_space<vmem>>, %arg6: memref<1x16xf32, #tpu.memory_space<vmem>>, %arg7: memref<2x16x32xf32, #tpu.memory_space<vmem>>, %arg8: memref<2x1x32xf32, #tpu.memory_space<vmem>>, %arg9: memref<16x96xf32, #tpu.memory_space<vmem>>, %arg10: memref<1x96xf32, #tpu.memory_space<vmem>>, %arg11: memref<2x16x48xf32, #tpu.memory_space<vmem>>, %arg12: memref<2x1x48xf32, #tpu.memory_space<vmem>>, %arg13: memref<32x33xf32, #tpu.memory_space<vmem>>, %arg14: memref<1x33xf32, #tpu.memory_space<vmem>>, %arg15: memref<16x33xf32, #tpu.memory_space<vmem>>, %arg16: memref<24x64xf32, #tpu.memory_space<vmem>>, %arg17: memref<16x96xf32, #tpu.memory_space<vmem>>, %arg18: memref<16x32xf32, #tpu.memory_space<vmem>>) attributes {dimension_semantics = [], scalar_prefetch = 0 : i64, scratch_operands = 3 : i64, tpu.core_type = #tpu.core_type<tc>} {
    %c0 = arith.constant 0 : index
    %c0_0 = arith.constant 0 : index
    %0 = vector.load %arg0[%c0, %c0_0] : memref<16x16xf32, #tpu.memory_space<vmem>>, vector<16x16xf32>
    %cst = arith.constant 0.000000e+00 : f32
    %1 = vector.broadcast %cst : f32 to vector<4x16xf32>
    %c0_1 = arith.constant 0 : index
    %c0_2 = arith.constant 0 : index
    %2 = vector.load %arg16[%c0_1, %c0_2] : memref<24x64xf32, #tpu.memory_space<vmem>>, vector<4x16xf32>
    tpu.vector_store %arg16[%c0_1, %c0_2], %1 {strides = array<i32>} : memref<24x64xf32, #tpu.memory_space<vmem>>, vector<4x16xf32>,
    %c4 = arith.constant 4 : index
    %c0_3 = arith.constant 0 : index
    %3 = vector.load %arg16[%c4, %c0_3] : memref<24x64xf32, #tpu.memory_space<vmem>>, vector<16x16xf32>
    tpu.vector_store %arg16[%c4, %c0_3], %0 {strides = array<i32>} : memref<24x64xf32, #tpu.memory_space<vmem>>, vector<16x16xf32>,
    %c20 = arith.constant 20 : index
    %c0_4 = arith.constant 0 : index
    %4 = vector.load %arg16[%c20, %c0_4] : memref<24x64xf32, #tpu.memory_space<vmem>>, vector<4x16xf32>
    tpu.vector_store %arg16[%c20, %c0_4], %1 {strides = array<i32>} : memref<24x64xf32, #tpu.memory_space<vmem>>, vector<4x16xf32>,
    %c0_5 = arith.constant 0 : index
    %c0_6 = arith.constant 0 : index
    %5 = vector.load %arg2[%c0_5, %c0_6] : memref<1x64xf32, #tpu.memory_space<vmem>>, vector<1x64xf32>
    %c0_7 = arith.constant 0 : index
    %c0_8 = arith.constant 0 : index
    %6 = vector.load %arg16[%c0_7, %c0_8] : memref<24x64xf32, #tpu.memory_space<vmem>>, vector<16x16xf32>
    %c0_9 = arith.constant 0 : index
    %c0_10 = arith.constant 0 : index
    %7 = vector.load %arg1[%c0_9, %c0_10] : memref<64x64xf32, #tpu.memory_space<vmem>>, vector<16x64xf32>
    %cst_11 = arith.constant dense<0.000000e+00> : vector<16x64xf32>
    %8 = tpu.matmul %6, %7, %cst_11 {dimension_numbers = #tpu.dot_dimension_numbers<[1], [0], [0], [1], [0, 0, 1, 1], [], []>} : vector<16x16xf32>, vector<16x64xf32>, vector<16x64xf32> -> vector<16x64xf32>
    %9 = vector.broadcast %5 : vector<1x64xf32> to vector<16x64xf32>
    %10 = arith.addf %9, %8 : vector<16x64xf32>
    %c2 = arith.constant 2 : index
    %c0_12 = arith.constant 0 : index
    %11 = vector.load %arg16[%c2, %c0_12] : memref<24x64xf32, #tpu.memory_space<vmem>>, vector<16x16xf32>
    %c16 = arith.constant 16 : index
    %c0_13 = arith.constant 0 : index
    %12 = vector.load %arg1[%c16, %c0_13] : memref<64x64xf32, #tpu.memory_space<vmem>>, vector<16x64xf32>
    %cst_14 = arith.constant dense<0.000000e+00> : vector<16x64xf32>
    %13 = tpu.matmul %11, %12, %cst_14 {dimension_numbers = #tpu.dot_dimension_numbers<[1], [0], [0], [1], [0, 0, 1, 1], [], []>} : vector<16x16xf32>, vector<16x64xf32>, vector<16x64xf32> -> vector<16x64xf32>
    %14 = arith.addf %10, %13 : vector<16x64xf32>
    %c4_15 = arith.constant 4 : index
    %c0_16 = arith.constant 0 : index
    %15 = vector.load %arg16[%c4_15, %c0_16] : memref<24x64xf32, #tpu.memory_space<vmem>>, vector<16x16xf32>
    %c32 = arith.constant 32 : index
    %c0_17 = arith.constant 0 : index
    %16 = vector.load %arg1[%c32, %c0_17] : memref<64x64xf32, #tpu.memory_space<vmem>>, vector<16x64xf32>
    %cst_18 = arith.constant dense<0.000000e+00> : vector<16x64xf32>
    %17 = tpu.matmul %15, %16, %cst_18 {dimension_numbers = #tpu.dot_dimension_numbers<[1], [0], [0], [1], [0, 0, 1, 1], [], []>} : vector<16x16xf32>, vector<16x64xf32>, vector<16x64xf32> -> vector<16x64xf32>
    %18 = arith.addf %14, %17 : vector<16x64xf32>
    %c6 = arith.constant 6 : index
    %c0_19 = arith.constant 0 : index
    %19 = vector.load %arg16[%c6, %c0_19] : memref<24x64xf32, #tpu.memory_space<vmem>>, vector<16x16xf32>
    %c48 = arith.constant 48 : index
    %c0_20 = arith.constant 0 : index
    %20 = vector.load %arg1[%c48, %c0_20] : memref<64x64xf32, #tpu.memory_space<vmem>>, vector<16x64xf32>
    %cst_21 = arith.constant dense<0.000000e+00> : vector<16x64xf32>
    %21 = tpu.matmul %19, %20, %cst_21 {dimension_numbers = #tpu.dot_dimension_numbers<[1], [0], [0], [1], [0, 0, 1, 1], [], []>} : vector<16x16xf32>, vector<16x64xf32>, vector<16x64xf32> -> vector<16x64xf32>
    %22 = arith.addf %18, %21 : vector<16x64xf32>
    %cst_22 = arith.constant 0.000000e+00 : f32
    %23 = vector.broadcast %cst_22 : f32 to vector<16x64xf32>
    %24 = arith.maximumf %22, %23 : vector<16x64xf32>
    %cst_23 = arith.constant 0xFF800000 : f32
    %25 = vector.broadcast %cst_23 : f32 to vector<4x64xf32>
    %c0_24 = arith.constant 0 : index
    %c0_25 = arith.constant 0 : index
    %26 = vector.load %arg16[%c0_24, %c0_25] : memref<24x64xf32, #tpu.memory_space<vmem>>, vector<4x64xf32>
    tpu.vector_store %arg16[%c0_24, %c0_25], %25 {strides = array<i32>} : memref<24x64xf32, #tpu.memory_space<vmem>>, vector<4x64xf32>,
    %c4_26 = arith.constant 4 : index
    %c0_27 = arith.constant 0 : index
    %27 = vector.load %arg16[%c4_26, %c0_27] : memref<24x64xf32, #tpu.memory_space<vmem>>, vector<16x64xf32>
    tpu.vector_store %arg16[%c4_26, %c0_27], %24 {strides = array<i32>} : memref<24x64xf32, #tpu.memory_space<vmem>>, vector<16x64xf32>,
    %c2_28 = arith.constant 2 : index
    %c0_29 = arith.constant 0 : index
    %28 = vector.load %arg16[%c2_28, %c0_29] : memref<24x64xf32, #tpu.memory_space<vmem>>, vector<16x64xf32>
    %29 = arith.maximumf %24, %28 : vector<16x64xf32>
    %cst_30 = arith.constant 0.000000e+00 : f32
    %30 = vector.broadcast %cst_30 : f32 to vector<4x64xf32>
    %c0_31 = arith.constant 0 : index
    %c0_32 = arith.constant 0 : index
    %31 = vector.load %arg16[%c0_31, %c0_32] : memref<24x64xf32, #tpu.memory_space<vmem>>, vector<4x64xf32>
    tpu.vector_store %arg16[%c0_31, %c0_32], %30 {strides = array<i32>} : memref<24x64xf32, #tpu.memory_space<vmem>>, vector<4x64xf32>,
    %c4_33 = arith.constant 4 : index
    %c0_34 = arith.constant 0 : index
    %32 = vector.load %arg16[%c4_33, %c0_34] : memref<24x64xf32, #tpu.memory_space<vmem>>, vector<16x64xf32>
    tpu.vector_store %arg16[%c4_33, %c0_34], %29 {strides = array<i32>} : memref<24x64xf32, #tpu.memory_space<vmem>>, vector<16x64xf32>,
    %c20_35 = arith.constant 20 : index
    %c0_36 = arith.constant 0 : index
    %33 = vector.load %arg16[%c20_35, %c0_36] : memref<24x64xf32, #tpu.memory_space<vmem>>, vector<4x64xf32>
    tpu.vector_store %arg16[%c20_35, %c0_36], %30 {strides = array<i32>} : memref<24x64xf32, #tpu.memory_space<vmem>>, vector<4x64xf32>,
    %c0_37 = arith.constant 0 : index
    %c0_38 = arith.constant 0 : index
    %34 = vector.load %arg4[%c0_37, %c0_38] : memref<1x16xf32, #tpu.memory_space<vmem>>, vector<1x16xf32>
    %c2_39 = arith.constant 2 : index
    %c0_40 = arith.constant 0 : index
    %35 = vector.load %arg16[%c2_39, %c0_40] : memref<24x64xf32, #tpu.memory_space<vmem>>, vector<16x64xf32>
    %c0_41 = arith.constant 0 : index
    %c0_42 = arith.constant 0 : index
    %36 = vector.load %arg3[%c0_41, %c0_42] : memref<192x16xf32, #tpu.memory_space<vmem>>, vector<64x16xf32>
    %cst_43 = arith.constant dense<0.000000e+00> : vector<16x16xf32>
    %37 = tpu.matmul %35, %36, %cst_43 {dimension_numbers = #tpu.dot_dimension_numbers<[1], [0], [0], [1], [0, 0, 1, 1], [], []>} : vector<16x64xf32>, vector<64x16xf32>, vector<16x16xf32> -> vector<16x16xf32>
    %38 = vector.broadcast %34 : vector<1x16xf32> to vector<16x16xf32>
    %39 = arith.addf %38, %37 : vector<16x16xf32>
    %c4_44 = arith.constant 4 : index
    %c0_45 = arith.constant 0 : index
    %40 = vector.load %arg16[%c4_44, %c0_45] : memref<24x64xf32, #tpu.memory_space<vmem>>, vector<16x64xf32>
    %c64 = arith.constant 64 : index
    %c0_46 = arith.constant 0 : index
    %41 = vector.load %arg3[%c64, %c0_46] : memref<192x16xf32, #tpu.memory_space<vmem>>, vector<64x16xf32>
    %cst_47 = arith.constant dense<0.000000e+00> : vector<16x16xf32>
    %42 = tpu.matmul %40, %41, %cst_47 {dimension_numbers = #tpu.dot_dimension_numbers<[1], [0], [0], [1], [0, 0, 1, 1], [], []>} : vector<16x64xf32>, vector<64x16xf32>, vector<16x16xf32> -> vector<16x16xf32>
    %43 = arith.addf %39, %42 : vector<16x16xf32>
    %c6_48 = arith.constant 6 : index
    %c0_49 = arith.constant 0 : index
    %44 = vector.load %arg16[%c6_48, %c0_49] : memref<24x64xf32, #tpu.memory_space<vmem>>, vector<16x64xf32>
    %c128 = arith.constant 128 : index
    %c0_50 = arith.constant 0 : index
    %45 = vector.load %arg3[%c128, %c0_50] : memref<192x16xf32, #tpu.memory_space<vmem>>, vector<64x16xf32>
    %cst_51 = arith.constant dense<0.000000e+00> : vector<16x16xf32>
    %46 = tpu.matmul %44, %45, %cst_51 {dimension_numbers = #tpu.dot_dimension_numbers<[1], [0], [0], [1], [0, 0, 1, 1], [], []>} : vector<16x64xf32>, vector<64x16xf32>, vector<16x16xf32> -> vector<16x16xf32>
    %47 = arith.addf %43, %46 : vector<16x16xf32>
    %cst_52 = arith.constant 0.000000e+00 : f32
    %48 = vector.broadcast %cst_52 : f32 to vector<16x16xf32>
    %49 = arith.maximumf %47, %48 : vector<16x16xf32>
    %cst_53 = arith.constant 0.000000e+00 : f32
    %50 = vector.broadcast %cst_53 : f32 to vector<4x16xf32>
    %c0_54 = arith.constant 0 : index
    %c0_55 = arith.constant 0 : index
    %51 = vector.load %arg16[%c0_54, %c0_55] : memref<24x64xf32, #tpu.memory_space<vmem>>, vector<4x16xf32>
    tpu.vector_store %arg16[%c0_54, %c0_55], %50 {strides = array<i32>} : memref<24x64xf32, #tpu.memory_space<vmem>>, vector<4x16xf32>,
    %c4_56 = arith.constant 4 : index
    %c0_57 = arith.constant 0 : index
    %52 = vector.load %arg16[%c4_56, %c0_57] : memref<24x64xf32, #tpu.memory_space<vmem>>, vector<16x16xf32>
    tpu.vector_store %arg16[%c4_56, %c0_57], %49 {strides = array<i32>} : memref<24x64xf32, #tpu.memory_space<vmem>>, vector<16x16xf32>,
    %c20_58 = arith.constant 20 : index
    %c0_59 = arith.constant 0 : index
    %53 = vector.load %arg16[%c20_58, %c0_59] : memref<24x64xf32, #tpu.memory_space<vmem>>, vector<4x16xf32>
    tpu.vector_store %arg16[%c20_58, %c0_59], %50 {strides = array<i32>} : memref<24x64xf32, #tpu.memory_space<vmem>>, vector<4x16xf32>,
    %c0_60 = arith.constant 0 : index
    %c0_61 = arith.constant 0 : index
    %54 = vector.load %arg6[%c0_60, %c0_61] : memref<1x16xf32, #tpu.memory_space<vmem>>, vector<1x16xf32>
    %c2_62 = arith.constant 2 : index
    %c0_63 = arith.constant 0 : index
    %55 = vector.load %arg16[%c2_62, %c0_63] : memref<24x64xf32, #tpu.memory_space<vmem>>, vector<16x16xf32>
    %c0_64 = arith.constant 0 : index
    %c0_65 = arith.constant 0 : index
    %56 = vector.load %arg5[%c0_64, %c0_65] : memref<48x16xf32, #tpu.memory_space<vmem>>, vector<16x16xf32>
    %cst_66 = arith.constant dense<0.000000e+00> : vector<16x16xf32>
    %57 = tpu.matmul %55, %56, %cst_66 {dimension_numbers = #tpu.dot_dimension_numbers<[1], [0], [0], [1], [0, 0, 1, 1], [], []>} : vector<16x16xf32>, vector<16x16xf32>, vector<16x16xf32> -> vector<16x16xf32>
    %58 = vector.broadcast %54 : vector<1x16xf32> to vector<16x16xf32>
    %59 = arith.addf %58, %57 : vector<16x16xf32>
    %c4_67 = arith.constant 4 : index
    %c0_68 = arith.constant 0 : index
    %60 = vector.load %arg16[%c4_67, %c0_68] : memref<24x64xf32, #tpu.memory_space<vmem>>, vector<16x16xf32>
    %c16_69 = arith.constant 16 : index
    %c0_70 = arith.constant 0 : index
    %61 = vector.load %arg5[%c16_69, %c0_70] : memref<48x16xf32, #tpu.memory_space<vmem>>, vector<16x16xf32>
    %cst_71 = arith.constant dense<0.000000e+00> : vector<16x16xf32>
    %62 = tpu.matmul %60, %61, %cst_71 {dimension_numbers = #tpu.dot_dimension_numbers<[1], [0], [0], [1], [0, 0, 1, 1], [], []>} : vector<16x16xf32>, vector<16x16xf32>, vector<16x16xf32> -> vector<16x16xf32>
    %63 = arith.addf %59, %62 : vector<16x16xf32>
    %c6_72 = arith.constant 6 : index
    %c0_73 = arith.constant 0 : index
    %64 = vector.load %arg16[%c6_72, %c0_73] : memref<24x64xf32, #tpu.memory_space<vmem>>, vector<16x16xf32>
    %c32_74 = arith.constant 32 : index
    %c0_75 = arith.constant 0 : index
    %65 = vector.load %arg5[%c32_74, %c0_75] : memref<48x16xf32, #tpu.memory_space<vmem>>, vector<16x16xf32>
    %cst_76 = arith.constant dense<0.000000e+00> : vector<16x16xf32>
    %66 = tpu.matmul %64, %65, %cst_76 {dimension_numbers = #tpu.dot_dimension_numbers<[1], [0], [0], [1], [0, 0, 1, 1], [], []>} : vector<16x16xf32>, vector<16x16xf32>, vector<16x16xf32> -> vector<16x16xf32>
    %67 = arith.addf %63, %66 : vector<16x16xf32>
    %68 = arith.addf %67, %0 : vector<16x16xf32>
    %c0_77 = arith.constant 0 : index
    %c0_78 = arith.constant 0 : index
    %c0_79 = arith.constant 0 : index
    %69 = vector.load %arg7[%c0_77, %c0_78, %c0_79] : memref<2x16x32xf32, #tpu.memory_space<vmem>>, vector<1x16x32xf32>
    %70 = vector.shape_cast %69 : vector<1x16x32xf32> to vector<16x32xf32>
    %cst_80 = arith.constant dense<0.000000e+00> : vector<16x32xf32>
    %71 = tpu.matmul %68, %70, %cst_80 {dimension_numbers = #tpu.dot_dimension_numbers<[1], [0], [0], [1], [0, 0, 1, 1], [], []>} : vector<16x16xf32>, vector<16x32xf32>, vector<16x32xf32> -> vector<16x32xf32>
    %c0_81 = arith.constant 0 : index
    %c0_82 = arith.constant 0 : index
    %c0_83 = arith.constant 0 : index
    %72 = vector.load %arg8[%c0_81, %c0_82, %c0_83] : memref<2x1x32xf32, #tpu.memory_space<vmem>>, vector<1x1x32xf32>
    %73 = vector.shape_cast %72 : vector<1x1x32xf32> to vector<1x32xf32>
    %74 = vector.broadcast %73 : vector<1x32xf32> to vector<16x32xf32>
    %75 = arith.addf %71, %74 : vector<16x32xf32>
    %76 = vector.extract_strided_slice %75 {offsets = [0, 0], sizes = [16, 16], strides = [1, 1]} : vector<16x32xf32> to vector<16x16xf32>
    %cst_84 = arith.constant 0.000000e+00 : f32
    %77 = vector.broadcast %cst_84 : f32 to vector<16x16xf32>
    %78 = arith.maximumf %76, %77 : vector<16x16xf32>
    %79 = vector.extract_strided_slice %75 {offsets = [0, 16], sizes = [16, 16], strides = [1, 1]} : vector<16x32xf32> to vector<16x16xf32>
    %80 = arith.negf %79 : vector<16x16xf32>
    %81 = math.exp %80 : vector<16x16xf32>
    %cst_85 = arith.constant 1.000000e+00 : f32
    %82 = vector.broadcast %cst_85 : f32 to vector<16x16xf32>
    %83 = arith.addf %82, %81 : vector<16x16xf32>
    %84 = arith.divf %82, %83 : vector<16x16xf32>
    %85 = arith.mulf %78, %84 : vector<16x16xf32>
    %cst_86 = arith.constant 1.000000e+00 : f32
    %86 = vector.broadcast %cst_86 : f32 to vector<16x16xf32>
    %87 = arith.subf %86, %84 : vector<16x16xf32>
    %88 = arith.mulf %68, %87 : vector<16x16xf32>
    %89 = arith.addf %85, %88 : vector<16x16xf32>
    %c1 = arith.constant 1 : index
    %c0_87 = arith.constant 0 : index
    %c0_88 = arith.constant 0 : index
    %90 = vector.load %arg7[%c1, %c0_87, %c0_88] : memref<2x16x32xf32, #tpu.memory_space<vmem>>, vector<1x16x32xf32>
    %91 = vector.shape_cast %90 : vector<1x16x32xf32> to vector<16x32xf32>
    %cst_89 = arith.constant dense<0.000000e+00> : vector<16x32xf32>
    %92 = tpu.matmul %89, %91, %cst_89 {dimension_numbers = #tpu.dot_dimension_numbers<[1], [0], [0], [1], [0, 0, 1, 1], [], []>} : vector<16x16xf32>, vector<16x32xf32>, vector<16x32xf32> -> vector<16x32xf32>
    %c1_90 = arith.constant 1 : index
    %c0_91 = arith.constant 0 : index
    %c0_92 = arith.constant 0 : index
    %93 = vector.load %arg8[%c1_90, %c0_91, %c0_92] : memref<2x1x32xf32, #tpu.memory_space<vmem>>, vector<1x1x32xf32>
    %94 = vector.shape_cast %93 : vector<1x1x32xf32> to vector<1x32xf32>
    %95 = vector.broadcast %94 : vector<1x32xf32> to vector<16x32xf32>
    %96 = arith.addf %92, %95 : vector<16x32xf32>
    %97 = vector.extract_strided_slice %96 {offsets = [0, 0], sizes = [16, 16], strides = [1, 1]} : vector<16x32xf32> to vector<16x16xf32>
    %cst_93 = arith.constant 0.000000e+00 : f32
    %98 = vector.broadcast %cst_93 : f32 to vector<16x16xf32>
    %99 = arith.maximumf %97, %98 : vector<16x16xf32>
    %100 = vector.extract_strided_slice %96 {offsets = [0, 16], sizes = [16, 16], strides = [1, 1]} : vector<16x32xf32> to vector<16x16xf32>
    %101 = arith.negf %100 : vector<16x16xf32>
    %102 = math.exp %101 : vector<16x16xf32>
    %cst_94 = arith.constant 1.000000e+00 : f32
    %103 = vector.broadcast %cst_94 : f32 to vector<16x16xf32>
    %104 = arith.addf %103, %102 : vector<16x16xf32>
    %105 = arith.divf %103, %104 : vector<16x16xf32>
    %106 = arith.mulf %99, %105 : vector<16x16xf32>
    %cst_95 = arith.constant 1.000000e+00 : f32
    %107 = vector.broadcast %cst_95 : f32 to vector<16x16xf32>
    %108 = arith.subf %107, %105 : vector<16x16xf32>
    %109 = arith.mulf %89, %108 : vector<16x16xf32>
    %110 = arith.addf %106, %109 : vector<16x16xf32>
    %c0_96 = arith.constant 0 : index
    %c0_97 = arith.constant 0 : index
    %111 = vector.load %arg9[%c0_96, %c0_97] : memref<16x96xf32, #tpu.memory_space<vmem>>, vector<16x96xf32>
    %cst_98 = arith.constant dense<0.000000e+00> : vector<16x96xf32>
    %112 = tpu.matmul %110, %111, %cst_98 {dimension_numbers = #tpu.dot_dimension_numbers<[1], [0], [0], [1], [0, 0, 1, 1], [], []>} : vector<16x16xf32>, vector<16x96xf32>, vector<16x96xf32> -> vector<16x96xf32>
    %c0_99 = arith.constant 0 : index
    %c0_100 = arith.constant 0 : index
    %113 = vector.load %arg10[%c0_99, %c0_100] : memref<1x96xf32, #tpu.memory_space<vmem>>, vector<1x96xf32>
    %114 = vector.broadcast %113 : vector<1x96xf32> to vector<16x96xf32>
    %115 = arith.addf %112, %114 : vector<16x96xf32>
    %c0_101 = arith.constant 0 : index
    %c0_102 = arith.constant 0 : index
    %116 = vector.load %arg17[%c0_101, %c0_102] : memref<16x96xf32, #tpu.memory_space<vmem>>, vector<16x96xf32>
    tpu.vector_store %arg17[%c0_101, %c0_102], %115 {strides = array<i32>} : memref<16x96xf32, #tpu.memory_space<vmem>>, vector<16x96xf32>,
    %c0_103 = arith.constant 0 : index
    %c0_104 = arith.constant 0 : index
    %c0_105 = arith.constant 0 : index
    %117 = vector.load %arg11[%c0_103, %c0_104, %c0_105] : memref<2x16x48xf32, #tpu.memory_space<vmem>>, vector<1x16x48xf32>
    %118 = vector.shape_cast %117 : vector<1x16x48xf32> to vector<16x48xf32>
    %c1_106 = arith.constant 1 : index
    %c0_107 = arith.constant 0 : index
    %c0_108 = arith.constant 0 : index
    %119 = vector.load %arg11[%c1_106, %c0_107, %c0_108] : memref<2x16x48xf32, #tpu.memory_space<vmem>>, vector<1x16x48xf32>
    %120 = vector.shape_cast %119 : vector<1x16x48xf32> to vector<16x48xf32>
    %c0_109 = arith.constant 0 : index
    %c0_110 = arith.constant 0 : index
    %c0_111 = arith.constant 0 : index
    %121 = vector.load %arg12[%c0_109, %c0_110, %c0_111] : memref<2x1x48xf32, #tpu.memory_space<vmem>>, vector<1x1x48xf32>
    %122 = vector.shape_cast %121 : vector<1x1x48xf32> to vector<1x48xf32>
    %c1_112 = arith.constant 1 : index
    %c0_113 = arith.constant 0 : index
    %c0_114 = arith.constant 0 : index
    %123 = vector.load %arg12[%c1_112, %c0_113, %c0_114] : memref<2x1x48xf32, #tpu.memory_space<vmem>>, vector<1x1x48xf32>
    %124 = vector.shape_cast %123 : vector<1x1x48xf32> to vector<1x48xf32>
    %cst_115 = arith.constant 0.000000e+00 : f32
    %125 = vector.broadcast %cst_115 : f32 to vector<2x16xf32>
    %cst_116 = arith.constant 0.000000e+00 : f32
    %126 = vector.broadcast %cst_116 : f32 to vector<2x16xf32>
    %c0_117 = arith.constant 0 : index
    %c0_118 = arith.constant 0 : index
    %127 = vector.load %arg17[%c0_117, %c0_118] : memref<16x96xf32, #tpu.memory_space<vmem>>, vector<2x96xf32>
    %c14 = arith.constant 14 : index
    %c0_119 = arith.constant 0 : index
    %128 = vector.load %arg17[%c14, %c0_119] : memref<16x96xf32, #tpu.memory_space<vmem>>, vector<2x96xf32>
    %129 = vector.extract_strided_slice %127 {offsets = [0, 0], sizes = [2, 48], strides = [1, 1]} : vector<2x96xf32> to vector<2x48xf32>
    %cst_120 = arith.constant dense<0.000000e+00> : vector<2x48xf32>
    %130 = tpu.matmul %125, %118, %cst_120 {dimension_numbers = #tpu.dot_dimension_numbers<[1], [0], [0], [1], [0, 0, 1, 1], [], []>} : vector<2x16xf32>, vector<16x48xf32>, vector<2x48xf32> -> vector<2x48xf32>
    %131 = vector.broadcast %122 : vector<1x48xf32> to vector<2x48xf32>
    %132 = arith.addf %130, %131 : vector<2x48xf32>
    %133 = vector.extract_strided_slice %129 {offsets = [0, 0], sizes = [2, 16], strides = [1, 1]} : vector<2x48xf32> to vector<2x16xf32>
    %134 = vector.extract_strided_slice %132 {offsets = [0, 0], sizes = [2, 16], strides = [1, 1]} : vector<2x48xf32> to vector<2x16xf32>
    %135 = arith.addf %133, %134 : vector<2x16xf32>
    %136 = arith.negf %135 : vector<2x16xf32>
    %137 = math.exp %136 : vector<2x16xf32>
    %cst_121 = arith.constant 1.000000e+00 : f32
    %138 = vector.broadcast %cst_121 : f32 to vector<2x16xf32>
    %139 = arith.addf %138, %137 : vector<2x16xf32>
    %140 = arith.divf %138, %139 : vector<2x16xf32>
    %141 = vector.extract_strided_slice %129 {offsets = [0, 16], sizes = [2, 16], strides = [1, 1]} : vector<2x48xf32> to vector<2x16xf32>
    %142 = vector.extract_strided_slice %132 {offsets = [0, 16], sizes = [2, 16], strides = [1, 1]} : vector<2x48xf32> to vector<2x16xf32>
    %143 = arith.addf %141, %142 : vector<2x16xf32>
    %144 = arith.negf %143 : vector<2x16xf32>
    %145 = math.exp %144 : vector<2x16xf32>
    %cst_122 = arith.constant 1.000000e+00 : f32
    %146 = vector.broadcast %cst_122 : f32 to vector<2x16xf32>
    %147 = arith.addf %146, %145 : vector<2x16xf32>
    %148 = arith.divf %146, %147 : vector<2x16xf32>
    %149 = vector.extract_strided_slice %129 {offsets = [0, 32], sizes = [2, 16], strides = [1, 1]} : vector<2x48xf32> to vector<2x16xf32>
    %150 = vector.extract_strided_slice %132 {offsets = [0, 32], sizes = [2, 16], strides = [1, 1]} : vector<2x48xf32> to vector<2x16xf32>
    %151 = arith.mulf %140, %150 : vector<2x16xf32>
    %152 = arith.addf %149, %151 : vector<2x16xf32>
    %153 = math.tanh %152 : vector<2x16xf32>
    %cst_123 = arith.constant 1.000000e+00 : f32
    %154 = vector.broadcast %cst_123 : f32 to vector<2x16xf32>
    %155 = arith.subf %154, %148 : vector<2x16xf32>
    %156 = arith.mulf %155, %153 : vector<2x16xf32>
    %157 = arith.mulf %148, %125 : vector<2x16xf32>
    %158 = arith.addf %156, %157 : vector<2x16xf32>
    %159 = vector.extract_strided_slice %128 {offsets = [0, 48], sizes = [2, 48], strides = [1, 1]} : vector<2x96xf32> to vector<2x48xf32>
    %cst_124 = arith.constant dense<0.000000e+00> : vector<2x48xf32>
    %160 = tpu.matmul %126, %120, %cst_124 {dimension_numbers = #tpu.dot_dimension_numbers<[1], [0], [0], [1], [0, 0, 1, 1], [], []>} : vector<2x16xf32>, vector<16x48xf32>, vector<2x48xf32> -> vector<2x48xf32>
    %161 = vector.broadcast %124 : vector<1x48xf32> to vector<2x48xf32>
    %162 = arith.addf %160, %161 : vector<2x48xf32>
    %163 = vector.extract_strided_slice %159 {offsets = [0, 0], sizes = [2, 16], strides = [1, 1]} : vector<2x48xf32> to vector<2x16xf32>
    %164 = vector.extract_strided_slice %162 {offsets = [0, 0], sizes = [2, 16], strides = [1, 1]} : vector<2x48xf32> to vector<2x16xf32>
    %165 = arith.addf %163, %164 : vector<2x16xf32>
    %166 = arith.negf %165 : vector<2x16xf32>
    %167 = math.exp %166 : vector<2x16xf32>
    %cst_125 = arith.constant 1.000000e+00 : f32
    %168 = vector.broadcast %cst_125 : f32 to vector<2x16xf32>
    %169 = arith.addf %168, %167 : vector<2x16xf32>
    %170 = arith.divf %168, %169 : vector<2x16xf32>
    %171 = vector.extract_strided_slice %159 {offsets = [0, 16], sizes = [2, 16], strides = [1, 1]} : vector<2x48xf32> to vector<2x16xf32>
    %172 = vector.extract_strided_slice %162 {offsets = [0, 16], sizes = [2, 16], strides = [1, 1]} : vector<2x48xf32> to vector<2x16xf32>
    %173 = arith.addf %171, %172 : vector<2x16xf32>
    %174 = arith.negf %173 : vector<2x16xf32>
    %175 = math.exp %174 : vector<2x16xf32>
    %cst_126 = arith.constant 1.000000e+00 : f32
    %176 = vector.broadcast %cst_126 : f32 to vector<2x16xf32>
    %177 = arith.addf %176, %175 : vector<2x16xf32>
    %178 = arith.divf %176, %177 : vector<2x16xf32>
    %179 = vector.extract_strided_slice %159 {offsets = [0, 32], sizes = [2, 16], strides = [1, 1]} : vector<2x48xf32> to vector<2x16xf32>
    %180 = vector.extract_strided_slice %162 {offsets = [0, 32], sizes = [2, 16], strides = [1, 1]} : vector<2x48xf32> to vector<2x16xf32>
    %181 = arith.mulf %170, %180 : vector<2x16xf32>
    %182 = arith.addf %179, %181 : vector<2x16xf32>
    %183 = math.tanh %182 : vector<2x16xf32>
    %cst_127 = arith.constant 1.000000e+00 : f32
    %184 = vector.broadcast %cst_127 : f32 to vector<2x16xf32>
    %185 = arith.subf %184, %178 : vector<2x16xf32>
    %186 = arith.mulf %185, %183 : vector<2x16xf32>
    %187 = arith.mulf %178, %126 : vector<2x16xf32>
    %188 = arith.addf %186, %187 : vector<2x16xf32>
    %c0_128 = arith.constant 0 : index
    %c0_129 = arith.constant 0 : index
    %189 = vector.load %arg18[%c0_128, %c0_129] : memref<16x32xf32, #tpu.memory_space<vmem>>, vector<2x16xf32>
    tpu.vector_store %arg18[%c0_128, %c0_129], %158 {strides = array<i32>} : memref<16x32xf32, #tpu.memory_space<vmem>>, vector<2x16xf32>,
    %c14_130 = arith.constant 14 : index
    %c16_131 = arith.constant 16 : index
    %190 = vector.load %arg18[%c14_130, %c16_131] : memref<16x32xf32, #tpu.memory_space<vmem>>, vector<2x16xf32>
    tpu.vector_store %arg18[%c14_130, %c16_131], %188 {strides = array<i32>} : memref<16x32xf32, #tpu.memory_space<vmem>>, vector<2x16xf32>,
    %c2_132 = arith.constant 2 : index
    %c0_133 = arith.constant 0 : index
    %191 = vector.load %arg17[%c2_132, %c0_133] : memref<16x96xf32, #tpu.memory_space<vmem>>, vector<2x96xf32>
    %c12 = arith.constant 12 : index
    %c0_134 = arith.constant 0 : index
    %192 = vector.load %arg17[%c12, %c0_134] : memref<16x96xf32, #tpu.memory_space<vmem>>, vector<2x96xf32>
    %193 = vector.extract_strided_slice %191 {offsets = [0, 0], sizes = [2, 48], strides = [1, 1]} : vector<2x96xf32> to vector<2x48xf32>
    %cst_135 = arith.constant dense<0.000000e+00> : vector<2x48xf32>
    %194 = tpu.matmul %158, %118, %cst_135 {dimension_numbers = #tpu.dot_dimension_numbers<[1], [0], [0], [1], [0, 0, 1, 1], [], []>} : vector<2x16xf32>, vector<16x48xf32>, vector<2x48xf32> -> vector<2x48xf32>
    %195 = vector.broadcast %122 : vector<1x48xf32> to vector<2x48xf32>
    %196 = arith.addf %194, %195 : vector<2x48xf32>
    %197 = vector.extract_strided_slice %193 {offsets = [0, 0], sizes = [2, 16], strides = [1, 1]} : vector<2x48xf32> to vector<2x16xf32>
    %198 = vector.extract_strided_slice %196 {offsets = [0, 0], sizes = [2, 16], strides = [1, 1]} : vector<2x48xf32> to vector<2x16xf32>
    %199 = arith.addf %197, %198 : vector<2x16xf32>
    %200 = arith.negf %199 : vector<2x16xf32>
    %201 = math.exp %200 : vector<2x16xf32>
    %cst_136 = arith.constant 1.000000e+00 : f32
    %202 = vector.broadcast %cst_136 : f32 to vector<2x16xf32>
    %203 = arith.addf %202, %201 : vector<2x16xf32>
    %204 = arith.divf %202, %203 : vector<2x16xf32>
    %205 = vector.extract_strided_slice %193 {offsets = [0, 16], sizes = [2, 16], strides = [1, 1]} : vector<2x48xf32> to vector<2x16xf32>
    %206 = vector.extract_strided_slice %196 {offsets = [0, 16], sizes = [2, 16], strides = [1, 1]} : vector<2x48xf32> to vector<2x16xf32>
    %207 = arith.addf %205, %206 : vector<2x16xf32>
    %208 = arith.negf %207 : vector<2x16xf32>
    %209 = math.exp %208 : vector<2x16xf32>
    %cst_137 = arith.constant 1.000000e+00 : f32
    %210 = vector.broadcast %cst_137 : f32 to vector<2x16xf32>
    %211 = arith.addf %210, %209 : vector<2x16xf32>
    %212 = arith.divf %210, %211 : vector<2x16xf32>
    %213 = vector.extract_strided_slice %193 {offsets = [0, 32], sizes = [2, 16], strides = [1, 1]} : vector<2x48xf32> to vector<2x16xf32>
    %214 = vector.extract_strided_slice %196 {offsets = [0, 32], sizes = [2, 16], strides = [1, 1]} : vector<2x48xf32> to vector<2x16xf32>
    %215 = arith.mulf %204, %214 : vector<2x16xf32>
    %216 = arith.addf %213, %215 : vector<2x16xf32>
    %217 = math.tanh %216 : vector<2x16xf32>
    %cst_138 = arith.constant 1.000000e+00 : f32
    %218 = vector.broadcast %cst_138 : f32 to vector<2x16xf32>
    %219 = arith.subf %218, %212 : vector<2x16xf32>
    %220 = arith.mulf %219, %217 : vector<2x16xf32>
    %221 = arith.mulf %212, %158 : vector<2x16xf32>
    %222 = arith.addf %220, %221 : vector<2x16xf32>
    %223 = vector.extract_strided_slice %192 {offsets = [0, 48], sizes = [2, 48], strides = [1, 1]} : vector<2x96xf32> to vector<2x48xf32>
    %cst_139 = arith.constant dense<0.000000e+00> : vector<2x48xf32>
    %224 = tpu.matmul %188, %120, %cst_139 {dimension_numbers = #tpu.dot_dimension_numbers<[1], [0], [0], [1], [0, 0, 1, 1], [], []>} : vector<2x16xf32>, vector<16x48xf32>, vector<2x48xf32> -> vector<2x48xf32>
    %225 = vector.broadcast %124 : vector<1x48xf32> to vector<2x48xf32>
    %226 = arith.addf %224, %225 : vector<2x48xf32>
    %227 = vector.extract_strided_slice %223 {offsets = [0, 0], sizes = [2, 16], strides = [1, 1]} : vector<2x48xf32> to vector<2x16xf32>
    %228 = vector.extract_strided_slice %226 {offsets = [0, 0], sizes = [2, 16], strides = [1, 1]} : vector<2x48xf32> to vector<2x16xf32>
    %229 = arith.addf %227, %228 : vector<2x16xf32>
    %230 = arith.negf %229 : vector<2x16xf32>
    %231 = math.exp %230 : vector<2x16xf32>
    %cst_140 = arith.constant 1.000000e+00 : f32
    %232 = vector.broadcast %cst_140 : f32 to vector<2x16xf32>
    %233 = arith.addf %232, %231 : vector<2x16xf32>
    %234 = arith.divf %232, %233 : vector<2x16xf32>
    %235 = vector.extract_strided_slice %223 {offsets = [0, 16], sizes = [2, 16], strides = [1, 1]} : vector<2x48xf32> to vector<2x16xf32>
    %236 = vector.extract_strided_slice %226 {offsets = [0, 16], sizes = [2, 16], strides = [1, 1]} : vector<2x48xf32> to vector<2x16xf32>
    %237 = arith.addf %235, %236 : vector<2x16xf32>
    %238 = arith.negf %237 : vector<2x16xf32>
    %239 = math.exp %238 : vector<2x16xf32>
    %cst_141 = arith.constant 1.000000e+00 : f32
    %240 = vector.broadcast %cst_141 : f32 to vector<2x16xf32>
    %241 = arith.addf %240, %239 : vector<2x16xf32>
    %242 = arith.divf %240, %241 : vector<2x16xf32>
    %243 = vector.extract_strided_slice %223 {offsets = [0, 32], sizes = [2, 16], strides = [1, 1]} : vector<2x48xf32> to vector<2x16xf32>
    %244 = vector.extract_strided_slice %226 {offsets = [0, 32], sizes = [2, 16], strides = [1, 1]} : vector<2x48xf32> to vector<2x16xf32>
    %245 = arith.mulf %234, %244 : vector<2x16xf32>
    %246 = arith.addf %243, %245 : vector<2x16xf32>
    %247 = math.tanh %246 : vector<2x16xf32>
    %cst_142 = arith.constant 1.000000e+00 : f32
    %248 = vector.broadcast %cst_142 : f32 to vector<2x16xf32>
    %249 = arith.subf %248, %242 : vector<2x16xf32>
    %250 = arith.mulf %249, %247 : vector<2x16xf32>
    %251 = arith.mulf %242, %188 : vector<2x16xf32>
    %252 = arith.addf %250, %251 : vector<2x16xf32>
    %c2_143 = arith.constant 2 : index
    %c0_144 = arith.constant 0 : index
    %253 = vector.load %arg18[%c2_143, %c0_144] : memref<16x32xf32, #tpu.memory_space<vmem>>, vector<2x16xf32>
    tpu.vector_store %arg18[%c2_143, %c0_144], %222 {strides = array<i32>} : memref<16x32xf32, #tpu.memory_space<vmem>>, vector<2x16xf32>,
    %c12_145 = arith.constant 12 : index
    %c16_146 = arith.constant 16 : index
    %254 = vector.load %arg18[%c12_145, %c16_146] : memref<16x32xf32, #tpu.memory_space<vmem>>, vector<2x16xf32>
    tpu.vector_store %arg18[%c12_145, %c16_146], %252 {strides = array<i32>} : memref<16x32xf32, #tpu.memory_space<vmem>>, vector<2x16xf32>,
    %c4_147 = arith.constant 4 : index
    %c0_148 = arith.constant 0 : index
    %255 = vector.load %arg17[%c4_147, %c0_148] : memref<16x96xf32, #tpu.memory_space<vmem>>, vector<2x96xf32>
    %c10 = arith.constant 10 : index
    %c0_149 = arith.constant 0 : index
    %256 = vector.load %arg17[%c10, %c0_149] : memref<16x96xf32, #tpu.memory_space<vmem>>, vector<2x96xf32>
    %257 = vector.extract_strided_slice %255 {offsets = [0, 0], sizes = [2, 48], strides = [1, 1]} : vector<2x96xf32> to vector<2x48xf32>
    %cst_150 = arith.constant dense<0.000000e+00> : vector<2x48xf32>
    %258 = tpu.matmul %222, %118, %cst_150 {dimension_numbers = #tpu.dot_dimension_numbers<[1], [0], [0], [1], [0, 0, 1, 1], [], []>} : vector<2x16xf32>, vector<16x48xf32>, vector<2x48xf32> -> vector<2x48xf32>
    %259 = vector.broadcast %122 : vector<1x48xf32> to vector<2x48xf32>
    %260 = arith.addf %258, %259 : vector<2x48xf32>
    %261 = vector.extract_strided_slice %257 {offsets = [0, 0], sizes = [2, 16], strides = [1, 1]} : vector<2x48xf32> to vector<2x16xf32>
    %262 = vector.extract_strided_slice %260 {offsets = [0, 0], sizes = [2, 16], strides = [1, 1]} : vector<2x48xf32> to vector<2x16xf32>
    %263 = arith.addf %261, %262 : vector<2x16xf32>
    %264 = arith.negf %263 : vector<2x16xf32>
    %265 = math.exp %264 : vector<2x16xf32>
    %cst_151 = arith.constant 1.000000e+00 : f32
    %266 = vector.broadcast %cst_151 : f32 to vector<2x16xf32>
    %267 = arith.addf %266, %265 : vector<2x16xf32>
    %268 = arith.divf %266, %267 : vector<2x16xf32>
    %269 = vector.extract_strided_slice %257 {offsets = [0, 16], sizes = [2, 16], strides = [1, 1]} : vector<2x48xf32> to vector<2x16xf32>
    %270 = vector.extract_strided_slice %260 {offsets = [0, 16], sizes = [2, 16], strides = [1, 1]} : vector<2x48xf32> to vector<2x16xf32>
    %271 = arith.addf %269, %270 : vector<2x16xf32>
    %272 = arith.negf %271 : vector<2x16xf32>
    %273 = math.exp %272 : vector<2x16xf32>
    %cst_152 = arith.constant 1.000000e+00 : f32
    %274 = vector.broadcast %cst_152 : f32 to vector<2x16xf32>
    %275 = arith.addf %274, %273 : vector<2x16xf32>
    %276 = arith.divf %274, %275 : vector<2x16xf32>
    %277 = vector.extract_strided_slice %257 {offsets = [0, 32], sizes = [2, 16], strides = [1, 1]} : vector<2x48xf32> to vector<2x16xf32>
    %278 = vector.extract_strided_slice %260 {offsets = [0, 32], sizes = [2, 16], strides = [1, 1]} : vector<2x48xf32> to vector<2x16xf32>
    %279 = arith.mulf %268, %278 : vector<2x16xf32>
    %280 = arith.addf %277, %279 : vector<2x16xf32>
    %281 = math.tanh %280 : vector<2x16xf32>
    %cst_153 = arith.constant 1.000000e+00 : f32
    %282 = vector.broadcast %cst_153 : f32 to vector<2x16xf32>
    %283 = arith.subf %282, %276 : vector<2x16xf32>
    %284 = arith.mulf %283, %281 : vector<2x16xf32>
    %285 = arith.mulf %276, %222 : vector<2x16xf32>
    %286 = arith.addf %284, %285 : vector<2x16xf32>
    %287 = vector.extract_strided_slice %256 {offsets = [0, 48], sizes = [2, 48], strides = [1, 1]} : vector<2x96xf32> to vector<2x48xf32>
    %cst_154 = arith.constant dense<0.000000e+00> : vector<2x48xf32>
    %288 = tpu.matmul %252, %120, %cst_154 {dimension_numbers = #tpu.dot_dimension_numbers<[1], [0], [0], [1], [0, 0, 1, 1], [], []>} : vector<2x16xf32>, vector<16x48xf32>, vector<2x48xf32> -> vector<2x48xf32>
    %289 = vector.broadcast %124 : vector<1x48xf32> to vector<2x48xf32>
    %290 = arith.addf %288, %289 : vector<2x48xf32>
    %291 = vector.extract_strided_slice %287 {offsets = [0, 0], sizes = [2, 16], strides = [1, 1]} : vector<2x48xf32> to vector<2x16xf32>
    %292 = vector.extract_strided_slice %290 {offsets = [0, 0], sizes = [2, 16], strides = [1, 1]} : vector<2x48xf32> to vector<2x16xf32>
    %293 = arith.addf %291, %292 : vector<2x16xf32>
    %294 = arith.negf %293 : vector<2x16xf32>
    %295 = math.exp %294 : vector<2x16xf32>
    %cst_155 = arith.constant 1.000000e+00 : f32
    %296 = vector.broadcast %cst_155 : f32 to vector<2x16xf32>
    %297 = arith.addf %296, %295 : vector<2x16xf32>
    %298 = arith.divf %296, %297 : vector<2x16xf32>
    %299 = vector.extract_strided_slice %287 {offsets = [0, 16], sizes = [2, 16], strides = [1, 1]} : vector<2x48xf32> to vector<2x16xf32>
    %300 = vector.extract_strided_slice %290 {offsets = [0, 16], sizes = [2, 16], strides = [1, 1]} : vector<2x48xf32> to vector<2x16xf32>
    %301 = arith.addf %299, %300 : vector<2x16xf32>
    %302 = arith.negf %301 : vector<2x16xf32>
    %303 = math.exp %302 : vector<2x16xf32>
    %cst_156 = arith.constant 1.000000e+00 : f32
    %304 = vector.broadcast %cst_156 : f32 to vector<2x16xf32>
    %305 = arith.addf %304, %303 : vector<2x16xf32>
    %306 = arith.divf %304, %305 : vector<2x16xf32>
    %307 = vector.extract_strided_slice %287 {offsets = [0, 32], sizes = [2, 16], strides = [1, 1]} : vector<2x48xf32> to vector<2x16xf32>
    %308 = vector.extract_strided_slice %290 {offsets = [0, 32], sizes = [2, 16], strides = [1, 1]} : vector<2x48xf32> to vector<2x16xf32>
    %309 = arith.mulf %298, %308 : vector<2x16xf32>
    %310 = arith.addf %307, %309 : vector<2x16xf32>
    %311 = math.tanh %310 : vector<2x16xf32>
    %cst_157 = arith.constant 1.000000e+00 : f32
    %312 = vector.broadcast %cst_157 : f32 to vector<2x16xf32>
    %313 = arith.subf %312, %306 : vector<2x16xf32>
    %314 = arith.mulf %313, %311 : vector<2x16xf32>
    %315 = arith.mulf %306, %252 : vector<2x16xf32>
    %316 = arith.addf %314, %315 : vector<2x16xf32>
    %c4_158 = arith.constant 4 : index
    %c0_159 = arith.constant 0 : index
    %317 = vector.load %arg18[%c4_158, %c0_159] : memref<16x32xf32, #tpu.memory_space<vmem>>, vector<2x16xf32>
    tpu.vector_store %arg18[%c4_158, %c0_159], %286 {strides = array<i32>} : memref<16x32xf32, #tpu.memory_space<vmem>>, vector<2x16xf32>,
    %c10_160 = arith.constant 10 : index
    %c16_161 = arith.constant 16 : index
    %318 = vector.load %arg18[%c10_160, %c16_161] : memref<16x32xf32, #tpu.memory_space<vmem>>, vector<2x16xf32>
    tpu.vector_store %arg18[%c10_160, %c16_161], %316 {strides = array<i32>} : memref<16x32xf32, #tpu.memory_space<vmem>>, vector<2x16xf32>,
    %c6_162 = arith.constant 6 : index
    %c0_163 = arith.constant 0 : index
    %319 = vector.load %arg17[%c6_162, %c0_163] : memref<16x96xf32, #tpu.memory_space<vmem>>, vector<2x96xf32>
    %c8 = arith.constant 8 : index
    %c0_164 = arith.constant 0 : index
    %320 = vector.load %arg17[%c8, %c0_164] : memref<16x96xf32, #tpu.memory_space<vmem>>, vector<2x96xf32>
    %321 = vector.extract_strided_slice %319 {offsets = [0, 0], sizes = [2, 48], strides = [1, 1]} : vector<2x96xf32> to vector<2x48xf32>
    %cst_165 = arith.constant dense<0.000000e+00> : vector<2x48xf32>
    %322 = tpu.matmul %286, %118, %cst_165 {dimension_numbers = #tpu.dot_dimension_numbers<[1], [0], [0], [1], [0, 0, 1, 1], [], []>} : vector<2x16xf32>, vector<16x48xf32>, vector<2x48xf32> -> vector<2x48xf32>
    %323 = vector.broadcast %122 : vector<1x48xf32> to vector<2x48xf32>
    %324 = arith.addf %322, %323 : vector<2x48xf32>
    %325 = vector.extract_strided_slice %321 {offsets = [0, 0], sizes = [2, 16], strides = [1, 1]} : vector<2x48xf32> to vector<2x16xf32>
    %326 = vector.extract_strided_slice %324 {offsets = [0, 0], sizes = [2, 16], strides = [1, 1]} : vector<2x48xf32> to vector<2x16xf32>
    %327 = arith.addf %325, %326 : vector<2x16xf32>
    %328 = arith.negf %327 : vector<2x16xf32>
    %329 = math.exp %328 : vector<2x16xf32>
    %cst_166 = arith.constant 1.000000e+00 : f32
    %330 = vector.broadcast %cst_166 : f32 to vector<2x16xf32>
    %331 = arith.addf %330, %329 : vector<2x16xf32>
    %332 = arith.divf %330, %331 : vector<2x16xf32>
    %333 = vector.extract_strided_slice %321 {offsets = [0, 16], sizes = [2, 16], strides = [1, 1]} : vector<2x48xf32> to vector<2x16xf32>
    %334 = vector.extract_strided_slice %324 {offsets = [0, 16], sizes = [2, 16], strides = [1, 1]} : vector<2x48xf32> to vector<2x16xf32>
    %335 = arith.addf %333, %334 : vector<2x16xf32>
    %336 = arith.negf %335 : vector<2x16xf32>
    %337 = math.exp %336 : vector<2x16xf32>
    %cst_167 = arith.constant 1.000000e+00 : f32
    %338 = vector.broadcast %cst_167 : f32 to vector<2x16xf32>
    %339 = arith.addf %338, %337 : vector<2x16xf32>
    %340 = arith.divf %338, %339 : vector<2x16xf32>
    %341 = vector.extract_strided_slice %321 {offsets = [0, 32], sizes = [2, 16], strides = [1, 1]} : vector<2x48xf32> to vector<2x16xf32>
    %342 = vector.extract_strided_slice %324 {offsets = [0, 32], sizes = [2, 16], strides = [1, 1]} : vector<2x48xf32> to vector<2x16xf32>
    %343 = arith.mulf %332, %342 : vector<2x16xf32>
    %344 = arith.addf %341, %343 : vector<2x16xf32>
    %345 = math.tanh %344 : vector<2x16xf32>
    %cst_168 = arith.constant 1.000000e+00 : f32
    %346 = vector.broadcast %cst_168 : f32 to vector<2x16xf32>
    %347 = arith.subf %346, %340 : vector<2x16xf32>
    %348 = arith.mulf %347, %345 : vector<2x16xf32>
    %349 = arith.mulf %340, %286 : vector<2x16xf32>
    %350 = arith.addf %348, %349 : vector<2x16xf32>
    %351 = vector.extract_strided_slice %320 {offsets = [0, 48], sizes = [2, 48], strides = [1, 1]} : vector<2x96xf32> to vector<2x48xf32>
    %cst_169 = arith.constant dense<0.000000e+00> : vector<2x48xf32>
    %352 = tpu.matmul %316, %120, %cst_169 {dimension_numbers = #tpu.dot_dimension_numbers<[1], [0], [0], [1], [0, 0, 1, 1], [], []>} : vector<2x16xf32>, vector<16x48xf32>, vector<2x48xf32> -> vector<2x48xf32>
    %353 = vector.broadcast %124 : vector<1x48xf32> to vector<2x48xf32>
    %354 = arith.addf %352, %353 : vector<2x48xf32>
    %355 = vector.extract_strided_slice %351 {offsets = [0, 0], sizes = [2, 16], strides = [1, 1]} : vector<2x48xf32> to vector<2x16xf32>
    %356 = vector.extract_strided_slice %354 {offsets = [0, 0], sizes = [2, 16], strides = [1, 1]} : vector<2x48xf32> to vector<2x16xf32>
    %357 = arith.addf %355, %356 : vector<2x16xf32>
    %358 = arith.negf %357 : vector<2x16xf32>
    %359 = math.exp %358 : vector<2x16xf32>
    %cst_170 = arith.constant 1.000000e+00 : f32
    %360 = vector.broadcast %cst_170 : f32 to vector<2x16xf32>
    %361 = arith.addf %360, %359 : vector<2x16xf32>
    %362 = arith.divf %360, %361 : vector<2x16xf32>
    %363 = vector.extract_strided_slice %351 {offsets = [0, 16], sizes = [2, 16], strides = [1, 1]} : vector<2x48xf32> to vector<2x16xf32>
    %364 = vector.extract_strided_slice %354 {offsets = [0, 16], sizes = [2, 16], strides = [1, 1]} : vector<2x48xf32> to vector<2x16xf32>
    %365 = arith.addf %363, %364 : vector<2x16xf32>
    %366 = arith.negf %365 : vector<2x16xf32>
    %367 = math.exp %366 : vector<2x16xf32>
    %cst_171 = arith.constant 1.000000e+00 : f32
    %368 = vector.broadcast %cst_171 : f32 to vector<2x16xf32>
    %369 = arith.addf %368, %367 : vector<2x16xf32>
    %370 = arith.divf %368, %369 : vector<2x16xf32>
    %371 = vector.extract_strided_slice %351 {offsets = [0, 32], sizes = [2, 16], strides = [1, 1]} : vector<2x48xf32> to vector<2x16xf32>
    %372 = vector.extract_strided_slice %354 {offsets = [0, 32], sizes = [2, 16], strides = [1, 1]} : vector<2x48xf32> to vector<2x16xf32>
    %373 = arith.mulf %362, %372 : vector<2x16xf32>
    %374 = arith.addf %371, %373 : vector<2x16xf32>
    %375 = math.tanh %374 : vector<2x16xf32>
    %cst_172 = arith.constant 1.000000e+00 : f32
    %376 = vector.broadcast %cst_172 : f32 to vector<2x16xf32>
    %377 = arith.subf %376, %370 : vector<2x16xf32>
    %378 = arith.mulf %377, %375 : vector<2x16xf32>
    %379 = arith.mulf %370, %316 : vector<2x16xf32>
    %380 = arith.addf %378, %379 : vector<2x16xf32>
    %c6_173 = arith.constant 6 : index
    %c0_174 = arith.constant 0 : index
    %381 = vector.load %arg18[%c6_173, %c0_174] : memref<16x32xf32, #tpu.memory_space<vmem>>, vector<2x16xf32>
    tpu.vector_store %arg18[%c6_173, %c0_174], %350 {strides = array<i32>} : memref<16x32xf32, #tpu.memory_space<vmem>>, vector<2x16xf32>,
    %c8_175 = arith.constant 8 : index
    %c16_176 = arith.constant 16 : index
    %382 = vector.load %arg18[%c8_175, %c16_176] : memref<16x32xf32, #tpu.memory_space<vmem>>, vector<2x16xf32>
    tpu.vector_store %arg18[%c8_175, %c16_176], %380 {strides = array<i32>} : memref<16x32xf32, #tpu.memory_space<vmem>>, vector<2x16xf32>,
    %c8_177 = arith.constant 8 : index
    %c0_178 = arith.constant 0 : index
    %383 = vector.load %arg17[%c8_177, %c0_178] : memref<16x96xf32, #tpu.memory_space<vmem>>, vector<2x96xf32>
    %c6_179 = arith.constant 6 : index
    %c0_180 = arith.constant 0 : index
    %384 = vector.load %arg17[%c6_179, %c0_180] : memref<16x96xf32, #tpu.memory_space<vmem>>, vector<2x96xf32>
    %385 = vector.extract_strided_slice %383 {offsets = [0, 0], sizes = [2, 48], strides = [1, 1]} : vector<2x96xf32> to vector<2x48xf32>
    %cst_181 = arith.constant dense<0.000000e+00> : vector<2x48xf32>
    %386 = tpu.matmul %350, %118, %cst_181 {dimension_numbers = #tpu.dot_dimension_numbers<[1], [0], [0], [1], [0, 0, 1, 1], [], []>} : vector<2x16xf32>, vector<16x48xf32>, vector<2x48xf32> -> vector<2x48xf32>
    %387 = vector.broadcast %122 : vector<1x48xf32> to vector<2x48xf32>
    %388 = arith.addf %386, %387 : vector<2x48xf32>
    %389 = vector.extract_strided_slice %385 {offsets = [0, 0], sizes = [2, 16], strides = [1, 1]} : vector<2x48xf32> to vector<2x16xf32>
    %390 = vector.extract_strided_slice %388 {offsets = [0, 0], sizes = [2, 16], strides = [1, 1]} : vector<2x48xf32> to vector<2x16xf32>
    %391 = arith.addf %389, %390 : vector<2x16xf32>
    %392 = arith.negf %391 : vector<2x16xf32>
    %393 = math.exp %392 : vector<2x16xf32>
    %cst_182 = arith.constant 1.000000e+00 : f32
    %394 = vector.broadcast %cst_182 : f32 to vector<2x16xf32>
    %395 = arith.addf %394, %393 : vector<2x16xf32>
    %396 = arith.divf %394, %395 : vector<2x16xf32>
    %397 = vector.extract_strided_slice %385 {offsets = [0, 16], sizes = [2, 16], strides = [1, 1]} : vector<2x48xf32> to vector<2x16xf32>
    %398 = vector.extract_strided_slice %388 {offsets = [0, 16], sizes = [2, 16], strides = [1, 1]} : vector<2x48xf32> to vector<2x16xf32>
    %399 = arith.addf %397, %398 : vector<2x16xf32>
    %400 = arith.negf %399 : vector<2x16xf32>
    %401 = math.exp %400 : vector<2x16xf32>
    %cst_183 = arith.constant 1.000000e+00 : f32
    %402 = vector.broadcast %cst_183 : f32 to vector<2x16xf32>
    %403 = arith.addf %402, %401 : vector<2x16xf32>
    %404 = arith.divf %402, %403 : vector<2x16xf32>
    %405 = vector.extract_strided_slice %385 {offsets = [0, 32], sizes = [2, 16], strides = [1, 1]} : vector<2x48xf32> to vector<2x16xf32>
    %406 = vector.extract_strided_slice %388 {offsets = [0, 32], sizes = [2, 16], strides = [1, 1]} : vector<2x48xf32> to vector<2x16xf32>
    %407 = arith.mulf %396, %406 : vector<2x16xf32>
    %408 = arith.addf %405, %407 : vector<2x16xf32>
    %409 = math.tanh %408 : vector<2x16xf32>
    %cst_184 = arith.constant 1.000000e+00 : f32
    %410 = vector.broadcast %cst_184 : f32 to vector<2x16xf32>
    %411 = arith.subf %410, %404 : vector<2x16xf32>
    %412 = arith.mulf %411, %409 : vector<2x16xf32>
    %413 = arith.mulf %404, %350 : vector<2x16xf32>
    %414 = arith.addf %412, %413 : vector<2x16xf32>
    %415 = vector.extract_strided_slice %384 {offsets = [0, 48], sizes = [2, 48], strides = [1, 1]} : vector<2x96xf32> to vector<2x48xf32>
    %cst_185 = arith.constant dense<0.000000e+00> : vector<2x48xf32>
    %416 = tpu.matmul %380, %120, %cst_185 {dimension_numbers = #tpu.dot_dimension_numbers<[1], [0], [0], [1], [0, 0, 1, 1], [], []>} : vector<2x16xf32>, vector<16x48xf32>, vector<2x48xf32> -> vector<2x48xf32>
    %417 = vector.broadcast %124 : vector<1x48xf32> to vector<2x48xf32>
    %418 = arith.addf %416, %417 : vector<2x48xf32>
    %419 = vector.extract_strided_slice %415 {offsets = [0, 0], sizes = [2, 16], strides = [1, 1]} : vector<2x48xf32> to vector<2x16xf32>
    %420 = vector.extract_strided_slice %418 {offsets = [0, 0], sizes = [2, 16], strides = [1, 1]} : vector<2x48xf32> to vector<2x16xf32>
    %421 = arith.addf %419, %420 : vector<2x16xf32>
    %422 = arith.negf %421 : vector<2x16xf32>
    %423 = math.exp %422 : vector<2x16xf32>
    %cst_186 = arith.constant 1.000000e+00 : f32
    %424 = vector.broadcast %cst_186 : f32 to vector<2x16xf32>
    %425 = arith.addf %424, %423 : vector<2x16xf32>
    %426 = arith.divf %424, %425 : vector<2x16xf32>
    %427 = vector.extract_strided_slice %415 {offsets = [0, 16], sizes = [2, 16], strides = [1, 1]} : vector<2x48xf32> to vector<2x16xf32>
    %428 = vector.extract_strided_slice %418 {offsets = [0, 16], sizes = [2, 16], strides = [1, 1]} : vector<2x48xf32> to vector<2x16xf32>
    %429 = arith.addf %427, %428 : vector<2x16xf32>
    %430 = arith.negf %429 : vector<2x16xf32>
    %431 = math.exp %430 : vector<2x16xf32>
    %cst_187 = arith.constant 1.000000e+00 : f32
    %432 = vector.broadcast %cst_187 : f32 to vector<2x16xf32>
    %433 = arith.addf %432, %431 : vector<2x16xf32>
    %434 = arith.divf %432, %433 : vector<2x16xf32>
    %435 = vector.extract_strided_slice %415 {offsets = [0, 32], sizes = [2, 16], strides = [1, 1]} : vector<2x48xf32> to vector<2x16xf32>
    %436 = vector.extract_strided_slice %418 {offsets = [0, 32], sizes = [2, 16], strides = [1, 1]} : vector<2x48xf32> to vector<2x16xf32>
    %437 = arith.mulf %426, %436 : vector<2x16xf32>
    %438 = arith.addf %435, %437 : vector<2x16xf32>
    %439 = math.tanh %438 : vector<2x16xf32>
    %cst_188 = arith.constant 1.000000e+00 : f32
    %440 = vector.broadcast %cst_188 : f32 to vector<2x16xf32>
    %441 = arith.subf %440, %434 : vector<2x16xf32>
    %442 = arith.mulf %441, %439 : vector<2x16xf32>
    %443 = arith.mulf %434, %380 : vector<2x16xf32>
    %444 = arith.addf %442, %443 : vector<2x16xf32>
    %c8_189 = arith.constant 8 : index
    %c0_190 = arith.constant 0 : index
    %445 = vector.load %arg18[%c8_189, %c0_190] : memref<16x32xf32, #tpu.memory_space<vmem>>, vector<2x16xf32>
    tpu.vector_store %arg18[%c8_189, %c0_190], %414 {strides = array<i32>} : memref<16x32xf32, #tpu.memory_space<vmem>>, vector<2x16xf32>,
    %c6_191 = arith.constant 6 : index
    %c16_192 = arith.constant 16 : index
    %446 = vector.load %arg18[%c6_191, %c16_192] : memref<16x32xf32, #tpu.memory_space<vmem>>, vector<2x16xf32>
    tpu.vector_store %arg18[%c6_191, %c16_192], %444 {strides = array<i32>} : memref<16x32xf32, #tpu.memory_space<vmem>>, vector<2x16xf32>,
    %c10_193 = arith.constant 10 : index
    %c0_194 = arith.constant 0 : index
    %447 = vector.load %arg17[%c10_193, %c0_194] : memref<16x96xf32, #tpu.memory_space<vmem>>, vector<2x96xf32>
    %c4_195 = arith.constant 4 : index
    %c0_196 = arith.constant 0 : index
    %448 = vector.load %arg17[%c4_195, %c0_196] : memref<16x96xf32, #tpu.memory_space<vmem>>, vector<2x96xf32>
    %449 = vector.extract_strided_slice %447 {offsets = [0, 0], sizes = [2, 48], strides = [1, 1]} : vector<2x96xf32> to vector<2x48xf32>
    %cst_197 = arith.constant dense<0.000000e+00> : vector<2x48xf32>
    %450 = tpu.matmul %414, %118, %cst_197 {dimension_numbers = #tpu.dot_dimension_numbers<[1], [0], [0], [1], [0, 0, 1, 1], [], []>} : vector<2x16xf32>, vector<16x48xf32>, vector<2x48xf32> -> vector<2x48xf32>
    %451 = vector.broadcast %122 : vector<1x48xf32> to vector<2x48xf32>
    %452 = arith.addf %450, %451 : vector<2x48xf32>
    %453 = vector.extract_strided_slice %449 {offsets = [0, 0], sizes = [2, 16], strides = [1, 1]} : vector<2x48xf32> to vector<2x16xf32>
    %454 = vector.extract_strided_slice %452 {offsets = [0, 0], sizes = [2, 16], strides = [1, 1]} : vector<2x48xf32> to vector<2x16xf32>
    %455 = arith.addf %453, %454 : vector<2x16xf32>
    %456 = arith.negf %455 : vector<2x16xf32>
    %457 = math.exp %456 : vector<2x16xf32>
    %cst_198 = arith.constant 1.000000e+00 : f32
    %458 = vector.broadcast %cst_198 : f32 to vector<2x16xf32>
    %459 = arith.addf %458, %457 : vector<2x16xf32>
    %460 = arith.divf %458, %459 : vector<2x16xf32>
    %461 = vector.extract_strided_slice %449 {offsets = [0, 16], sizes = [2, 16], strides = [1, 1]} : vector<2x48xf32> to vector<2x16xf32>
    %462 = vector.extract_strided_slice %452 {offsets = [0, 16], sizes = [2, 16], strides = [1, 1]} : vector<2x48xf32> to vector<2x16xf32>
    %463 = arith.addf %461, %462 : vector<2x16xf32>
    %464 = arith.negf %463 : vector<2x16xf32>
    %465 = math.exp %464 : vector<2x16xf32>
    %cst_199 = arith.constant 1.000000e+00 : f32
    %466 = vector.broadcast %cst_199 : f32 to vector<2x16xf32>
    %467 = arith.addf %466, %465 : vector<2x16xf32>
    %468 = arith.divf %466, %467 : vector<2x16xf32>
    %469 = vector.extract_strided_slice %449 {offsets = [0, 32], sizes = [2, 16], strides = [1, 1]} : vector<2x48xf32> to vector<2x16xf32>
    %470 = vector.extract_strided_slice %452 {offsets = [0, 32], sizes = [2, 16], strides = [1, 1]} : vector<2x48xf32> to vector<2x16xf32>
    %471 = arith.mulf %460, %470 : vector<2x16xf32>
    %472 = arith.addf %469, %471 : vector<2x16xf32>
    %473 = math.tanh %472 : vector<2x16xf32>
    %cst_200 = arith.constant 1.000000e+00 : f32
    %474 = vector.broadcast %cst_200 : f32 to vector<2x16xf32>
    %475 = arith.subf %474, %468 : vector<2x16xf32>
    %476 = arith.mulf %475, %473 : vector<2x16xf32>
    %477 = arith.mulf %468, %414 : vector<2x16xf32>
    %478 = arith.addf %476, %477 : vector<2x16xf32>
    %479 = vector.extract_strided_slice %448 {offsets = [0, 48], sizes = [2, 48], strides = [1, 1]} : vector<2x96xf32> to vector<2x48xf32>
    %cst_201 = arith.constant dense<0.000000e+00> : vector<2x48xf32>
    %480 = tpu.matmul %444, %120, %cst_201 {dimension_numbers = #tpu.dot_dimension_numbers<[1], [0], [0], [1], [0, 0, 1, 1], [], []>} : vector<2x16xf32>, vector<16x48xf32>, vector<2x48xf32> -> vector<2x48xf32>
    %481 = vector.broadcast %124 : vector<1x48xf32> to vector<2x48xf32>
    %482 = arith.addf %480, %481 : vector<2x48xf32>
    %483 = vector.extract_strided_slice %479 {offsets = [0, 0], sizes = [2, 16], strides = [1, 1]} : vector<2x48xf32> to vector<2x16xf32>
    %484 = vector.extract_strided_slice %482 {offsets = [0, 0], sizes = [2, 16], strides = [1, 1]} : vector<2x48xf32> to vector<2x16xf32>
    %485 = arith.addf %483, %484 : vector<2x16xf32>
    %486 = arith.negf %485 : vector<2x16xf32>
    %487 = math.exp %486 : vector<2x16xf32>
    %cst_202 = arith.constant 1.000000e+00 : f32
    %488 = vector.broadcast %cst_202 : f32 to vector<2x16xf32>
    %489 = arith.addf %488, %487 : vector<2x16xf32>
    %490 = arith.divf %488, %489 : vector<2x16xf32>
    %491 = vector.extract_strided_slice %479 {offsets = [0, 16], sizes = [2, 16], strides = [1, 1]} : vector<2x48xf32> to vector<2x16xf32>
    %492 = vector.extract_strided_slice %482 {offsets = [0, 16], sizes = [2, 16], strides = [1, 1]} : vector<2x48xf32> to vector<2x16xf32>
    %493 = arith.addf %491, %492 : vector<2x16xf32>
    %494 = arith.negf %493 : vector<2x16xf32>
    %495 = math.exp %494 : vector<2x16xf32>
    %cst_203 = arith.constant 1.000000e+00 : f32
    %496 = vector.broadcast %cst_203 : f32 to vector<2x16xf32>
    %497 = arith.addf %496, %495 : vector<2x16xf32>
    %498 = arith.divf %496, %497 : vector<2x16xf32>
    %499 = vector.extract_strided_slice %479 {offsets = [0, 32], sizes = [2, 16], strides = [1, 1]} : vector<2x48xf32> to vector<2x16xf32>
    %500 = vector.extract_strided_slice %482 {offsets = [0, 32], sizes = [2, 16], strides = [1, 1]} : vector<2x48xf32> to vector<2x16xf32>
    %501 = arith.mulf %490, %500 : vector<2x16xf32>
    %502 = arith.addf %499, %501 : vector<2x16xf32>
    %503 = math.tanh %502 : vector<2x16xf32>
    %cst_204 = arith.constant 1.000000e+00 : f32
    %504 = vector.broadcast %cst_204 : f32 to vector<2x16xf32>
    %505 = arith.subf %504, %498 : vector<2x16xf32>
    %506 = arith.mulf %505, %503 : vector<2x16xf32>
    %507 = arith.mulf %498, %444 : vector<2x16xf32>
    %508 = arith.addf %506, %507 : vector<2x16xf32>
    %c10_205 = arith.constant 10 : index
    %c0_206 = arith.constant 0 : index
    %509 = vector.load %arg18[%c10_205, %c0_206] : memref<16x32xf32, #tpu.memory_space<vmem>>, vector<2x16xf32>
    tpu.vector_store %arg18[%c10_205, %c0_206], %478 {strides = array<i32>} : memref<16x32xf32, #tpu.memory_space<vmem>>, vector<2x16xf32>,
    %c4_207 = arith.constant 4 : index
    %c16_208 = arith.constant 16 : index
    %510 = vector.load %arg18[%c4_207, %c16_208] : memref<16x32xf32, #tpu.memory_space<vmem>>, vector<2x16xf32>
    tpu.vector_store %arg18[%c4_207, %c16_208], %508 {strides = array<i32>} : memref<16x32xf32, #tpu.memory_space<vmem>>, vector<2x16xf32>,
    %c12_209 = arith.constant 12 : index
    %c0_210 = arith.constant 0 : index
    %511 = vector.load %arg17[%c12_209, %c0_210] : memref<16x96xf32, #tpu.memory_space<vmem>>, vector<2x96xf32>
    %c2_211 = arith.constant 2 : index
    %c0_212 = arith.constant 0 : index
    %512 = vector.load %arg17[%c2_211, %c0_212] : memref<16x96xf32, #tpu.memory_space<vmem>>, vector<2x96xf32>
    %513 = vector.extract_strided_slice %511 {offsets = [0, 0], sizes = [2, 48], strides = [1, 1]} : vector<2x96xf32> to vector<2x48xf32>
    %cst_213 = arith.constant dense<0.000000e+00> : vector<2x48xf32>
    %514 = tpu.matmul %478, %118, %cst_213 {dimension_numbers = #tpu.dot_dimension_numbers<[1], [0], [0], [1], [0, 0, 1, 1], [], []>} : vector<2x16xf32>, vector<16x48xf32>, vector<2x48xf32> -> vector<2x48xf32>
    %515 = vector.broadcast %122 : vector<1x48xf32> to vector<2x48xf32>
    %516 = arith.addf %514, %515 : vector<2x48xf32>
    %517 = vector.extract_strided_slice %513 {offsets = [0, 0], sizes = [2, 16], strides = [1, 1]} : vector<2x48xf32> to vector<2x16xf32>
    %518 = vector.extract_strided_slice %516 {offsets = [0, 0], sizes = [2, 16], strides = [1, 1]} : vector<2x48xf32> to vector<2x16xf32>
    %519 = arith.addf %517, %518 : vector<2x16xf32>
    %520 = arith.negf %519 : vector<2x16xf32>
    %521 = math.exp %520 : vector<2x16xf32>
    %cst_214 = arith.constant 1.000000e+00 : f32
    %522 = vector.broadcast %cst_214 : f32 to vector<2x16xf32>
    %523 = arith.addf %522, %521 : vector<2x16xf32>
    %524 = arith.divf %522, %523 : vector<2x16xf32>
    %525 = vector.extract_strided_slice %513 {offsets = [0, 16], sizes = [2, 16], strides = [1, 1]} : vector<2x48xf32> to vector<2x16xf32>
    %526 = vector.extract_strided_slice %516 {offsets = [0, 16], sizes = [2, 16], strides = [1, 1]} : vector<2x48xf32> to vector<2x16xf32>
    %527 = arith.addf %525, %526 : vector<2x16xf32>
    %528 = arith.negf %527 : vector<2x16xf32>
    %529 = math.exp %528 : vector<2x16xf32>
    %cst_215 = arith.constant 1.000000e+00 : f32
    %530 = vector.broadcast %cst_215 : f32 to vector<2x16xf32>
    %531 = arith.addf %530, %529 : vector<2x16xf32>
    %532 = arith.divf %530, %531 : vector<2x16xf32>
    %533 = vector.extract_strided_slice %513 {offsets = [0, 32], sizes = [2, 16], strides = [1, 1]} : vector<2x48xf32> to vector<2x16xf32>
    %534 = vector.extract_strided_slice %516 {offsets = [0, 32], sizes = [2, 16], strides = [1, 1]} : vector<2x48xf32> to vector<2x16xf32>
    %535 = arith.mulf %524, %534 : vector<2x16xf32>
    %536 = arith.addf %533, %535 : vector<2x16xf32>
    %537 = math.tanh %536 : vector<2x16xf32>
    %cst_216 = arith.constant 1.000000e+00 : f32
    %538 = vector.broadcast %cst_216 : f32 to vector<2x16xf32>
    %539 = arith.subf %538, %532 : vector<2x16xf32>
    %540 = arith.mulf %539, %537 : vector<2x16xf32>
    %541 = arith.mulf %532, %478 : vector<2x16xf32>
    %542 = arith.addf %540, %541 : vector<2x16xf32>
    %543 = vector.extract_strided_slice %512 {offsets = [0, 48], sizes = [2, 48], strides = [1, 1]} : vector<2x96xf32> to vector<2x48xf32>
    %cst_217 = arith.constant dense<0.000000e+00> : vector<2x48xf32>
    %544 = tpu.matmul %508, %120, %cst_217 {dimension_numbers = #tpu.dot_dimension_numbers<[1], [0], [0], [1], [0, 0, 1, 1], [], []>} : vector<2x16xf32>, vector<16x48xf32>, vector<2x48xf32> -> vector<2x48xf32>
    %545 = vector.broadcast %124 : vector<1x48xf32> to vector<2x48xf32>
    %546 = arith.addf %544, %545 : vector<2x48xf32>
    %547 = vector.extract_strided_slice %543 {offsets = [0, 0], sizes = [2, 16], strides = [1, 1]} : vector<2x48xf32> to vector<2x16xf32>
    %548 = vector.extract_strided_slice %546 {offsets = [0, 0], sizes = [2, 16], strides = [1, 1]} : vector<2x48xf32> to vector<2x16xf32>
    %549 = arith.addf %547, %548 : vector<2x16xf32>
    %550 = arith.negf %549 : vector<2x16xf32>
    %551 = math.exp %550 : vector<2x16xf32>
    %cst_218 = arith.constant 1.000000e+00 : f32
    %552 = vector.broadcast %cst_218 : f32 to vector<2x16xf32>
    %553 = arith.addf %552, %551 : vector<2x16xf32>
    %554 = arith.divf %552, %553 : vector<2x16xf32>
    %555 = vector.extract_strided_slice %543 {offsets = [0, 16], sizes = [2, 16], strides = [1, 1]} : vector<2x48xf32> to vector<2x16xf32>
    %556 = vector.extract_strided_slice %546 {offsets = [0, 16], sizes = [2, 16], strides = [1, 1]} : vector<2x48xf32> to vector<2x16xf32>
    %557 = arith.addf %555, %556 : vector<2x16xf32>
    %558 = arith.negf %557 : vector<2x16xf32>
    %559 = math.exp %558 : vector<2x16xf32>
    %cst_219 = arith.constant 1.000000e+00 : f32
    %560 = vector.broadcast %cst_219 : f32 to vector<2x16xf32>
    %561 = arith.addf %560, %559 : vector<2x16xf32>
    %562 = arith.divf %560, %561 : vector<2x16xf32>
    %563 = vector.extract_strided_slice %543 {offsets = [0, 32], sizes = [2, 16], strides = [1, 1]} : vector<2x48xf32> to vector<2x16xf32>
    %564 = vector.extract_strided_slice %546 {offsets = [0, 32], sizes = [2, 16], strides = [1, 1]} : vector<2x48xf32> to vector<2x16xf32>
    %565 = arith.mulf %554, %564 : vector<2x16xf32>
    %566 = arith.addf %563, %565 : vector<2x16xf32>
    %567 = math.tanh %566 : vector<2x16xf32>
    %cst_220 = arith.constant 1.000000e+00 : f32
    %568 = vector.broadcast %cst_220 : f32 to vector<2x16xf32>
    %569 = arith.subf %568, %562 : vector<2x16xf32>
    %570 = arith.mulf %569, %567 : vector<2x16xf32>
    %571 = arith.mulf %562, %508 : vector<2x16xf32>
    %572 = arith.addf %570, %571 : vector<2x16xf32>
    %c12_221 = arith.constant 12 : index
    %c0_222 = arith.constant 0 : index
    %573 = vector.load %arg18[%c12_221, %c0_222] : memref<16x32xf32, #tpu.memory_space<vmem>>, vector<2x16xf32>
    tpu.vector_store %arg18[%c12_221, %c0_222], %542 {strides = array<i32>} : memref<16x32xf32, #tpu.memory_space<vmem>>, vector<2x16xf32>,
    %c2_223 = arith.constant 2 : index
    %c16_224 = arith.constant 16 : index
    %574 = vector.load %arg18[%c2_223, %c16_224] : memref<16x32xf32, #tpu.memory_space<vmem>>, vector<2x16xf32>
    tpu.vector_store %arg18[%c2_223, %c16_224], %572 {strides = array<i32>} : memref<16x32xf32, #tpu.memory_space<vmem>>, vector<2x16xf32>,
    %c14_225 = arith.constant 14 : index
    %c0_226 = arith.constant 0 : index
    %575 = vector.load %arg17[%c14_225, %c0_226] : memref<16x96xf32, #tpu.memory_space<vmem>>, vector<2x96xf32>
    %c0_227 = arith.constant 0 : index
    %c0_228 = arith.constant 0 : index
    %576 = vector.load %arg17[%c0_227, %c0_228] : memref<16x96xf32, #tpu.memory_space<vmem>>, vector<2x96xf32>
    %577 = vector.extract_strided_slice %575 {offsets = [0, 0], sizes = [2, 48], strides = [1, 1]} : vector<2x96xf32> to vector<2x48xf32>
    %cst_229 = arith.constant dense<0.000000e+00> : vector<2x48xf32>
    %578 = tpu.matmul %542, %118, %cst_229 {dimension_numbers = #tpu.dot_dimension_numbers<[1], [0], [0], [1], [0, 0, 1, 1], [], []>} : vector<2x16xf32>, vector<16x48xf32>, vector<2x48xf32> -> vector<2x48xf32>
    %579 = vector.broadcast %122 : vector<1x48xf32> to vector<2x48xf32>
    %580 = arith.addf %578, %579 : vector<2x48xf32>
    %581 = vector.extract_strided_slice %577 {offsets = [0, 0], sizes = [2, 16], strides = [1, 1]} : vector<2x48xf32> to vector<2x16xf32>
    %582 = vector.extract_strided_slice %580 {offsets = [0, 0], sizes = [2, 16], strides = [1, 1]} : vector<2x48xf32> to vector<2x16xf32>
    %583 = arith.addf %581, %582 : vector<2x16xf32>
    %584 = arith.negf %583 : vector<2x16xf32>
    %585 = math.exp %584 : vector<2x16xf32>
    %cst_230 = arith.constant 1.000000e+00 : f32
    %586 = vector.broadcast %cst_230 : f32 to vector<2x16xf32>
    %587 = arith.addf %586, %585 : vector<2x16xf32>
    %588 = arith.divf %586, %587 : vector<2x16xf32>
    %589 = vector.extract_strided_slice %577 {offsets = [0, 16], sizes = [2, 16], strides = [1, 1]} : vector<2x48xf32> to vector<2x16xf32>
    %590 = vector.extract_strided_slice %580 {offsets = [0, 16], sizes = [2, 16], strides = [1, 1]} : vector<2x48xf32> to vector<2x16xf32>
    %591 = arith.addf %589, %590 : vector<2x16xf32>
    %592 = arith.negf %591 : vector<2x16xf32>
    %593 = math.exp %592 : vector<2x16xf32>
    %cst_231 = arith.constant 1.000000e+00 : f32
    %594 = vector.broadcast %cst_231 : f32 to vector<2x16xf32>
    %595 = arith.addf %594, %593 : vector<2x16xf32>
    %596 = arith.divf %594, %595 : vector<2x16xf32>
    %597 = vector.extract_strided_slice %577 {offsets = [0, 32], sizes = [2, 16], strides = [1, 1]} : vector<2x48xf32> to vector<2x16xf32>
    %598 = vector.extract_strided_slice %580 {offsets = [0, 32], sizes = [2, 16], strides = [1, 1]} : vector<2x48xf32> to vector<2x16xf32>
    %599 = arith.mulf %588, %598 : vector<2x16xf32>
    %600 = arith.addf %597, %599 : vector<2x16xf32>
    %601 = math.tanh %600 : vector<2x16xf32>
    %cst_232 = arith.constant 1.000000e+00 : f32
    %602 = vector.broadcast %cst_232 : f32 to vector<2x16xf32>
    %603 = arith.subf %602, %596 : vector<2x16xf32>
    %604 = arith.mulf %603, %601 : vector<2x16xf32>
    %605 = arith.mulf %596, %542 : vector<2x16xf32>
    %606 = arith.addf %604, %605 : vector<2x16xf32>
    %607 = vector.extract_strided_slice %576 {offsets = [0, 48], sizes = [2, 48], strides = [1, 1]} : vector<2x96xf32> to vector<2x48xf32>
    %cst_233 = arith.constant dense<0.000000e+00> : vector<2x48xf32>
    %608 = tpu.matmul %572, %120, %cst_233 {dimension_numbers = #tpu.dot_dimension_numbers<[1], [0], [0], [1], [0, 0, 1, 1], [], []>} : vector<2x16xf32>, vector<16x48xf32>, vector<2x48xf32> -> vector<2x48xf32>
    %609 = vector.broadcast %124 : vector<1x48xf32> to vector<2x48xf32>
    %610 = arith.addf %608, %609 : vector<2x48xf32>
    %611 = vector.extract_strided_slice %607 {offsets = [0, 0], sizes = [2, 16], strides = [1, 1]} : vector<2x48xf32> to vector<2x16xf32>
    %612 = vector.extract_strided_slice %610 {offsets = [0, 0], sizes = [2, 16], strides = [1, 1]} : vector<2x48xf32> to vector<2x16xf32>
    %613 = arith.addf %611, %612 : vector<2x16xf32>
    %614 = arith.negf %613 : vector<2x16xf32>
    %615 = math.exp %614 : vector<2x16xf32>
    %cst_234 = arith.constant 1.000000e+00 : f32
    %616 = vector.broadcast %cst_234 : f32 to vector<2x16xf32>
    %617 = arith.addf %616, %615 : vector<2x16xf32>
    %618 = arith.divf %616, %617 : vector<2x16xf32>
    %619 = vector.extract_strided_slice %607 {offsets = [0, 16], sizes = [2, 16], strides = [1, 1]} : vector<2x48xf32> to vector<2x16xf32>
    %620 = vector.extract_strided_slice %610 {offsets = [0, 16], sizes = [2, 16], strides = [1, 1]} : vector<2x48xf32> to vector<2x16xf32>
    %621 = arith.addf %619, %620 : vector<2x16xf32>
    %622 = arith.negf %621 : vector<2x16xf32>
    %623 = math.exp %622 : vector<2x16xf32>
    %cst_235 = arith.constant 1.000000e+00 : f32
    %624 = vector.broadcast %cst_235 : f32 to vector<2x16xf32>
    %625 = arith.addf %624, %623 : vector<2x16xf32>
    %626 = arith.divf %624, %625 : vector<2x16xf32>
    %627 = vector.extract_strided_slice %607 {offsets = [0, 32], sizes = [2, 16], strides = [1, 1]} : vector<2x48xf32> to vector<2x16xf32>
    %628 = vector.extract_strided_slice %610 {offsets = [0, 32], sizes = [2, 16], strides = [1, 1]} : vector<2x48xf32> to vector<2x16xf32>
    %629 = arith.mulf %618, %628 : vector<2x16xf32>
    %630 = arith.addf %627, %629 : vector<2x16xf32>
    %631 = math.tanh %630 : vector<2x16xf32>
    %cst_236 = arith.constant 1.000000e+00 : f32
    %632 = vector.broadcast %cst_236 : f32 to vector<2x16xf32>
    %633 = arith.subf %632, %626 : vector<2x16xf32>
    %634 = arith.mulf %633, %631 : vector<2x16xf32>
    %635 = arith.mulf %626, %572 : vector<2x16xf32>
    %636 = arith.addf %634, %635 : vector<2x16xf32>
    %c14_237 = arith.constant 14 : index
    %c0_238 = arith.constant 0 : index
    %637 = vector.load %arg18[%c14_237, %c0_238] : memref<16x32xf32, #tpu.memory_space<vmem>>, vector<2x16xf32>
    tpu.vector_store %arg18[%c14_237, %c0_238], %606 {strides = array<i32>} : memref<16x32xf32, #tpu.memory_space<vmem>>, vector<2x16xf32>,
    %c0_239 = arith.constant 0 : index
    %c16_240 = arith.constant 16 : index
    %638 = vector.load %arg18[%c0_239, %c16_240] : memref<16x32xf32, #tpu.memory_space<vmem>>, vector<2x16xf32>
    tpu.vector_store %arg18[%c0_239, %c16_240], %636 {strides = array<i32>} : memref<16x32xf32, #tpu.memory_space<vmem>>, vector<2x16xf32>,
    %c0_241 = arith.constant 0 : index
    %c0_242 = arith.constant 0 : index
    %639 = vector.load %arg18[%c0_241, %c0_242] : memref<16x32xf32, #tpu.memory_space<vmem>>, vector<16x32xf32>
    %c0_243 = arith.constant 0 : index
    %c0_244 = arith.constant 0 : index
    %640 = vector.load %arg13[%c0_243, %c0_244] : memref<32x33xf32, #tpu.memory_space<vmem>>, vector<32x33xf32>
    %cst_245 = arith.constant dense<0.000000e+00> : vector<16x33xf32>
    %641 = tpu.matmul %639, %640, %cst_245 {dimension_numbers = #tpu.dot_dimension_numbers<[1], [0], [0], [1], [0, 0, 1, 1], [], []>} : vector<16x32xf32>, vector<32x33xf32>, vector<16x33xf32> -> vector<16x33xf32>
    %c0_246 = arith.constant 0 : index
    %c0_247 = arith.constant 0 : index
    %642 = vector.load %arg14[%c0_246, %c0_247] : memref<1x33xf32, #tpu.memory_space<vmem>>, vector<1x33xf32>
    %643 = vector.broadcast %642 : vector<1x33xf32> to vector<16x33xf32>
    %644 = arith.addf %641, %643 : vector<16x33xf32>
    %c0_248 = arith.constant 0 : index
    %c0_249 = arith.constant 0 : index
    %645 = vector.load %arg15[%c0_248, %c0_249] : memref<16x33xf32, #tpu.memory_space<vmem>>, vector<16x33xf32>
    tpu.vector_store %arg15[%c0_248, %c0_249], %644 {strides = array<i32>} : memref<16x33xf32, #tpu.memory_space<vmem>>, vector<16x33xf32>,
    return
  }
}

module attributes {stable_mosaic.version = 11 : i64} {
  func.func @_net2_mel_kernel(%arg0: memref<16x8xf32, #tpu.memory_space<vmem>>, %arg1: memref<8x32xf32, #tpu.memory_space<vmem>>, %arg2: memref<1x32xf32, #tpu.memory_space<vmem>>, %arg3: memref<32x16xf32, #tpu.memory_space<vmem>>, %arg4: memref<1x16xf32, #tpu.memory_space<vmem>>, %arg5: memref<64x64xf32, #tpu.memory_space<vmem>>, %arg6: memref<1x64xf32, #tpu.memory_space<vmem>>, %arg7: memref<192x16xf32, #tpu.memory_space<vmem>>, %arg8: memref<1x16xf32, #tpu.memory_space<vmem>>, %arg9: memref<48x16xf32, #tpu.memory_space<vmem>>, %arg10: memref<1x16xf32, #tpu.memory_space<vmem>>, %arg11: memref<2x16x32xf32, #tpu.memory_space<vmem>>, %arg12: memref<2x1x32xf32, #tpu.memory_space<vmem>>, %arg13: memref<16x96xf32, #tpu.memory_space<vmem>>, %arg14: memref<1x96xf32, #tpu.memory_space<vmem>>, %arg15: memref<2x16x48xf32, #tpu.memory_space<vmem>>, %arg16: memref<2x1x48xf32, #tpu.memory_space<vmem>>, %arg17: memref<32x16xf32, #tpu.memory_space<vmem>>, %arg18: memref<1x16xf32, #tpu.memory_space<vmem>>, %arg19: memref<16x16xf32, #tpu.memory_space<vmem>>, %arg20: memref<1x16xf32, #tpu.memory_space<vmem>>, %arg21: memref<16x16xf32, #tpu.memory_space<vmem>>, %arg22: memref<16x16xf32, #tpu.memory_space<vmem>>, %arg23: memref<24x64xf32, #tpu.memory_space<vmem>>, %arg24: memref<16x96xf32, #tpu.memory_space<vmem>>, %arg25: memref<16x32xf32, #tpu.memory_space<vmem>>) attributes {dimension_semantics = [], scalar_prefetch = 0 : i64, scratch_operands = 3 : i64, tpu.core_type = #tpu.core_type<tc>} {
    %c0 = arith.constant 0 : index
    %c0_0 = arith.constant 0 : index
    %0 = vector.load %arg0[%c0, %c0_0] : memref<16x8xf32, #tpu.memory_space<vmem>>, vector<16x8xf32>
    %c0_1 = arith.constant 0 : index
    %c0_2 = arith.constant 0 : index
    %1 = vector.load %arg1[%c0_1, %c0_2] : memref<8x32xf32, #tpu.memory_space<vmem>>, vector<8x32xf32>
    %cst = arith.constant dense<0.000000e+00> : vector<16x32xf32>
    %2 = tpu.matmul %0, %1, %cst {dimension_numbers = #tpu.dot_dimension_numbers<[1], [0], [0], [1], [0, 0, 1, 1], [], []>} : vector<16x8xf32>, vector<8x32xf32>, vector<16x32xf32> -> vector<16x32xf32>
    %c0_3 = arith.constant 0 : index
    %c0_4 = arith.constant 0 : index
    %3 = vector.load %arg2[%c0_3, %c0_4] : memref<1x32xf32, #tpu.memory_space<vmem>>, vector<1x32xf32>
    %4 = vector.broadcast %3 : vector<1x32xf32> to vector<16x32xf32>
    %5 = arith.addf %2, %4 : vector<16x32xf32>
    %cst_5 = arith.constant 0.000000e+00 : f32
    %6 = vector.broadcast %cst_5 : f32 to vector<16x32xf32>
    %7 = arith.maximumf %5, %6 : vector<16x32xf32>
    %c0_6 = arith.constant 0 : index
    %c0_7 = arith.constant 0 : index
    %8 = vector.load %arg3[%c0_6, %c0_7] : memref<32x16xf32, #tpu.memory_space<vmem>>, vector<32x16xf32>
    %cst_8 = arith.constant dense<0.000000e+00> : vector<16x16xf32>
    %9 = tpu.matmul %7, %8, %cst_8 {dimension_numbers = #tpu.dot_dimension_numbers<[1], [0], [0], [1], [0, 0, 1, 1], [], []>} : vector<16x32xf32>, vector<32x16xf32>, vector<16x16xf32> -> vector<16x16xf32>
    %c0_9 = arith.constant 0 : index
    %c0_10 = arith.constant 0 : index
    %10 = vector.load %arg4[%c0_9, %c0_10] : memref<1x16xf32, #tpu.memory_space<vmem>>, vector<1x16xf32>
    %11 = vector.broadcast %10 : vector<1x16xf32> to vector<16x16xf32>
    %12 = arith.addf %9, %11 : vector<16x16xf32>
    %cst_11 = arith.constant 0.000000e+00 : f32
    %13 = vector.broadcast %cst_11 : f32 to vector<16x16xf32>
    %14 = arith.maximumf %12, %13 : vector<16x16xf32>
    %cst_12 = arith.constant 0.000000e+00 : f32
    %15 = vector.broadcast %cst_12 : f32 to vector<4x16xf32>
    %c0_13 = arith.constant 0 : index
    %c0_14 = arith.constant 0 : index
    %16 = vector.load %arg23[%c0_13, %c0_14] : memref<24x64xf32, #tpu.memory_space<vmem>>, vector<4x16xf32>
    tpu.vector_store %arg23[%c0_13, %c0_14], %15 {strides = array<i32>} : memref<24x64xf32, #tpu.memory_space<vmem>>, vector<4x16xf32>,
    %c4 = arith.constant 4 : index
    %c0_15 = arith.constant 0 : index
    %17 = vector.load %arg23[%c4, %c0_15] : memref<24x64xf32, #tpu.memory_space<vmem>>, vector<16x16xf32>
    tpu.vector_store %arg23[%c4, %c0_15], %14 {strides = array<i32>} : memref<24x64xf32, #tpu.memory_space<vmem>>, vector<16x16xf32>,
    %c20 = arith.constant 20 : index
    %c0_16 = arith.constant 0 : index
    %18 = vector.load %arg23[%c20, %c0_16] : memref<24x64xf32, #tpu.memory_space<vmem>>, vector<4x16xf32>
    tpu.vector_store %arg23[%c20, %c0_16], %15 {strides = array<i32>} : memref<24x64xf32, #tpu.memory_space<vmem>>, vector<4x16xf32>,
    %c0_17 = arith.constant 0 : index
    %c0_18 = arith.constant 0 : index
    %19 = vector.load %arg6[%c0_17, %c0_18] : memref<1x64xf32, #tpu.memory_space<vmem>>, vector<1x64xf32>
    %c0_19 = arith.constant 0 : index
    %c0_20 = arith.constant 0 : index
    %20 = vector.load %arg23[%c0_19, %c0_20] : memref<24x64xf32, #tpu.memory_space<vmem>>, vector<16x16xf32>
    %c0_21 = arith.constant 0 : index
    %c0_22 = arith.constant 0 : index
    %21 = vector.load %arg5[%c0_21, %c0_22] : memref<64x64xf32, #tpu.memory_space<vmem>>, vector<16x64xf32>
    %cst_23 = arith.constant dense<0.000000e+00> : vector<16x64xf32>
    %22 = tpu.matmul %20, %21, %cst_23 {dimension_numbers = #tpu.dot_dimension_numbers<[1], [0], [0], [1], [0, 0, 1, 1], [], []>} : vector<16x16xf32>, vector<16x64xf32>, vector<16x64xf32> -> vector<16x64xf32>
    %23 = vector.broadcast %19 : vector<1x64xf32> to vector<16x64xf32>
    %24 = arith.addf %23, %22 : vector<16x64xf32>
    %c2 = arith.constant 2 : index
    %c0_24 = arith.constant 0 : index
    %25 = vector.load %arg23[%c2, %c0_24] : memref<24x64xf32, #tpu.memory_space<vmem>>, vector<16x16xf32>
    %c16 = arith.constant 16 : index
    %c0_25 = arith.constant 0 : index
    %26 = vector.load %arg5[%c16, %c0_25] : memref<64x64xf32, #tpu.memory_space<vmem>>, vector<16x64xf32>
    %cst_26 = arith.constant dense<0.000000e+00> : vector<16x64xf32>
    %27 = tpu.matmul %25, %26, %cst_26 {dimension_numbers = #tpu.dot_dimension_numbers<[1], [0], [0], [1], [0, 0, 1, 1], [], []>} : vector<16x16xf32>, vector<16x64xf32>, vector<16x64xf32> -> vector<16x64xf32>
    %28 = arith.addf %24, %27 : vector<16x64xf32>
    %c4_27 = arith.constant 4 : index
    %c0_28 = arith.constant 0 : index
    %29 = vector.load %arg23[%c4_27, %c0_28] : memref<24x64xf32, #tpu.memory_space<vmem>>, vector<16x16xf32>
    %c32 = arith.constant 32 : index
    %c0_29 = arith.constant 0 : index
    %30 = vector.load %arg5[%c32, %c0_29] : memref<64x64xf32, #tpu.memory_space<vmem>>, vector<16x64xf32>
    %cst_30 = arith.constant dense<0.000000e+00> : vector<16x64xf32>
    %31 = tpu.matmul %29, %30, %cst_30 {dimension_numbers = #tpu.dot_dimension_numbers<[1], [0], [0], [1], [0, 0, 1, 1], [], []>} : vector<16x16xf32>, vector<16x64xf32>, vector<16x64xf32> -> vector<16x64xf32>
    %32 = arith.addf %28, %31 : vector<16x64xf32>
    %c6 = arith.constant 6 : index
    %c0_31 = arith.constant 0 : index
    %33 = vector.load %arg23[%c6, %c0_31] : memref<24x64xf32, #tpu.memory_space<vmem>>, vector<16x16xf32>
    %c48 = arith.constant 48 : index
    %c0_32 = arith.constant 0 : index
    %34 = vector.load %arg5[%c48, %c0_32] : memref<64x64xf32, #tpu.memory_space<vmem>>, vector<16x64xf32>
    %cst_33 = arith.constant dense<0.000000e+00> : vector<16x64xf32>
    %35 = tpu.matmul %33, %34, %cst_33 {dimension_numbers = #tpu.dot_dimension_numbers<[1], [0], [0], [1], [0, 0, 1, 1], [], []>} : vector<16x16xf32>, vector<16x64xf32>, vector<16x64xf32> -> vector<16x64xf32>
    %36 = arith.addf %32, %35 : vector<16x64xf32>
    %cst_34 = arith.constant 0.000000e+00 : f32
    %37 = vector.broadcast %cst_34 : f32 to vector<16x64xf32>
    %38 = arith.maximumf %36, %37 : vector<16x64xf32>
    %cst_35 = arith.constant 0xFF800000 : f32
    %39 = vector.broadcast %cst_35 : f32 to vector<4x64xf32>
    %c0_36 = arith.constant 0 : index
    %c0_37 = arith.constant 0 : index
    %40 = vector.load %arg23[%c0_36, %c0_37] : memref<24x64xf32, #tpu.memory_space<vmem>>, vector<4x64xf32>
    tpu.vector_store %arg23[%c0_36, %c0_37], %39 {strides = array<i32>} : memref<24x64xf32, #tpu.memory_space<vmem>>, vector<4x64xf32>,
    %c4_38 = arith.constant 4 : index
    %c0_39 = arith.constant 0 : index
    %41 = vector.load %arg23[%c4_38, %c0_39] : memref<24x64xf32, #tpu.memory_space<vmem>>, vector<16x64xf32>
    tpu.vector_store %arg23[%c4_38, %c0_39], %38 {strides = array<i32>} : memref<24x64xf32, #tpu.memory_space<vmem>>, vector<16x64xf32>,
    %c2_40 = arith.constant 2 : index
    %c0_41 = arith.constant 0 : index
    %42 = vector.load %arg23[%c2_40, %c0_41] : memref<24x64xf32, #tpu.memory_space<vmem>>, vector<16x64xf32>
    %43 = arith.maximumf %38, %42 : vector<16x64xf32>
    %cst_42 = arith.constant 0.000000e+00 : f32
    %44 = vector.broadcast %cst_42 : f32 to vector<4x64xf32>
    %c0_43 = arith.constant 0 : index
    %c0_44 = arith.constant 0 : index
    %45 = vector.load %arg23[%c0_43, %c0_44] : memref<24x64xf32, #tpu.memory_space<vmem>>, vector<4x64xf32>
    tpu.vector_store %arg23[%c0_43, %c0_44], %44 {strides = array<i32>} : memref<24x64xf32, #tpu.memory_space<vmem>>, vector<4x64xf32>,
    %c4_45 = arith.constant 4 : index
    %c0_46 = arith.constant 0 : index
    %46 = vector.load %arg23[%c4_45, %c0_46] : memref<24x64xf32, #tpu.memory_space<vmem>>, vector<16x64xf32>
    tpu.vector_store %arg23[%c4_45, %c0_46], %43 {strides = array<i32>} : memref<24x64xf32, #tpu.memory_space<vmem>>, vector<16x64xf32>,
    %c20_47 = arith.constant 20 : index
    %c0_48 = arith.constant 0 : index
    %47 = vector.load %arg23[%c20_47, %c0_48] : memref<24x64xf32, #tpu.memory_space<vmem>>, vector<4x64xf32>
    tpu.vector_store %arg23[%c20_47, %c0_48], %44 {strides = array<i32>} : memref<24x64xf32, #tpu.memory_space<vmem>>, vector<4x64xf32>,
    %c0_49 = arith.constant 0 : index
    %c0_50 = arith.constant 0 : index
    %48 = vector.load %arg8[%c0_49, %c0_50] : memref<1x16xf32, #tpu.memory_space<vmem>>, vector<1x16xf32>
    %c2_51 = arith.constant 2 : index
    %c0_52 = arith.constant 0 : index
    %49 = vector.load %arg23[%c2_51, %c0_52] : memref<24x64xf32, #tpu.memory_space<vmem>>, vector<16x64xf32>
    %c0_53 = arith.constant 0 : index
    %c0_54 = arith.constant 0 : index
    %50 = vector.load %arg7[%c0_53, %c0_54] : memref<192x16xf32, #tpu.memory_space<vmem>>, vector<64x16xf32>
    %cst_55 = arith.constant dense<0.000000e+00> : vector<16x16xf32>
    %51 = tpu.matmul %49, %50, %cst_55 {dimension_numbers = #tpu.dot_dimension_numbers<[1], [0], [0], [1], [0, 0, 1, 1], [], []>} : vector<16x64xf32>, vector<64x16xf32>, vector<16x16xf32> -> vector<16x16xf32>
    %52 = vector.broadcast %48 : vector<1x16xf32> to vector<16x16xf32>
    %53 = arith.addf %52, %51 : vector<16x16xf32>
    %c4_56 = arith.constant 4 : index
    %c0_57 = arith.constant 0 : index
    %54 = vector.load %arg23[%c4_56, %c0_57] : memref<24x64xf32, #tpu.memory_space<vmem>>, vector<16x64xf32>
    %c64 = arith.constant 64 : index
    %c0_58 = arith.constant 0 : index
    %55 = vector.load %arg7[%c64, %c0_58] : memref<192x16xf32, #tpu.memory_space<vmem>>, vector<64x16xf32>
    %cst_59 = arith.constant dense<0.000000e+00> : vector<16x16xf32>
    %56 = tpu.matmul %54, %55, %cst_59 {dimension_numbers = #tpu.dot_dimension_numbers<[1], [0], [0], [1], [0, 0, 1, 1], [], []>} : vector<16x64xf32>, vector<64x16xf32>, vector<16x16xf32> -> vector<16x16xf32>
    %57 = arith.addf %53, %56 : vector<16x16xf32>
    %c6_60 = arith.constant 6 : index
    %c0_61 = arith.constant 0 : index
    %58 = vector.load %arg23[%c6_60, %c0_61] : memref<24x64xf32, #tpu.memory_space<vmem>>, vector<16x64xf32>
    %c128 = arith.constant 128 : index
    %c0_62 = arith.constant 0 : index
    %59 = vector.load %arg7[%c128, %c0_62] : memref<192x16xf32, #tpu.memory_space<vmem>>, vector<64x16xf32>
    %cst_63 = arith.constant dense<0.000000e+00> : vector<16x16xf32>
    %60 = tpu.matmul %58, %59, %cst_63 {dimension_numbers = #tpu.dot_dimension_numbers<[1], [0], [0], [1], [0, 0, 1, 1], [], []>} : vector<16x64xf32>, vector<64x16xf32>, vector<16x16xf32> -> vector<16x16xf32>
    %61 = arith.addf %57, %60 : vector<16x16xf32>
    %cst_64 = arith.constant 0.000000e+00 : f32
    %62 = vector.broadcast %cst_64 : f32 to vector<16x16xf32>
    %63 = arith.maximumf %61, %62 : vector<16x16xf32>
    %cst_65 = arith.constant 0.000000e+00 : f32
    %64 = vector.broadcast %cst_65 : f32 to vector<4x16xf32>
    %c0_66 = arith.constant 0 : index
    %c0_67 = arith.constant 0 : index
    %65 = vector.load %arg23[%c0_66, %c0_67] : memref<24x64xf32, #tpu.memory_space<vmem>>, vector<4x16xf32>
    tpu.vector_store %arg23[%c0_66, %c0_67], %64 {strides = array<i32>} : memref<24x64xf32, #tpu.memory_space<vmem>>, vector<4x16xf32>,
    %c4_68 = arith.constant 4 : index
    %c0_69 = arith.constant 0 : index
    %66 = vector.load %arg23[%c4_68, %c0_69] : memref<24x64xf32, #tpu.memory_space<vmem>>, vector<16x16xf32>
    tpu.vector_store %arg23[%c4_68, %c0_69], %63 {strides = array<i32>} : memref<24x64xf32, #tpu.memory_space<vmem>>, vector<16x16xf32>,
    %c20_70 = arith.constant 20 : index
    %c0_71 = arith.constant 0 : index
    %67 = vector.load %arg23[%c20_70, %c0_71] : memref<24x64xf32, #tpu.memory_space<vmem>>, vector<4x16xf32>
    tpu.vector_store %arg23[%c20_70, %c0_71], %64 {strides = array<i32>} : memref<24x64xf32, #tpu.memory_space<vmem>>, vector<4x16xf32>,
    %c0_72 = arith.constant 0 : index
    %c0_73 = arith.constant 0 : index
    %68 = vector.load %arg10[%c0_72, %c0_73] : memref<1x16xf32, #tpu.memory_space<vmem>>, vector<1x16xf32>
    %c2_74 = arith.constant 2 : index
    %c0_75 = arith.constant 0 : index
    %69 = vector.load %arg23[%c2_74, %c0_75] : memref<24x64xf32, #tpu.memory_space<vmem>>, vector<16x16xf32>
    %c0_76 = arith.constant 0 : index
    %c0_77 = arith.constant 0 : index
    %70 = vector.load %arg9[%c0_76, %c0_77] : memref<48x16xf32, #tpu.memory_space<vmem>>, vector<16x16xf32>
    %cst_78 = arith.constant dense<0.000000e+00> : vector<16x16xf32>
    %71 = tpu.matmul %69, %70, %cst_78 {dimension_numbers = #tpu.dot_dimension_numbers<[1], [0], [0], [1], [0, 0, 1, 1], [], []>} : vector<16x16xf32>, vector<16x16xf32>, vector<16x16xf32> -> vector<16x16xf32>
    %72 = vector.broadcast %68 : vector<1x16xf32> to vector<16x16xf32>
    %73 = arith.addf %72, %71 : vector<16x16xf32>
    %c4_79 = arith.constant 4 : index
    %c0_80 = arith.constant 0 : index
    %74 = vector.load %arg23[%c4_79, %c0_80] : memref<24x64xf32, #tpu.memory_space<vmem>>, vector<16x16xf32>
    %c16_81 = arith.constant 16 : index
    %c0_82 = arith.constant 0 : index
    %75 = vector.load %arg9[%c16_81, %c0_82] : memref<48x16xf32, #tpu.memory_space<vmem>>, vector<16x16xf32>
    %cst_83 = arith.constant dense<0.000000e+00> : vector<16x16xf32>
    %76 = tpu.matmul %74, %75, %cst_83 {dimension_numbers = #tpu.dot_dimension_numbers<[1], [0], [0], [1], [0, 0, 1, 1], [], []>} : vector<16x16xf32>, vector<16x16xf32>, vector<16x16xf32> -> vector<16x16xf32>
    %77 = arith.addf %73, %76 : vector<16x16xf32>
    %c6_84 = arith.constant 6 : index
    %c0_85 = arith.constant 0 : index
    %78 = vector.load %arg23[%c6_84, %c0_85] : memref<24x64xf32, #tpu.memory_space<vmem>>, vector<16x16xf32>
    %c32_86 = arith.constant 32 : index
    %c0_87 = arith.constant 0 : index
    %79 = vector.load %arg9[%c32_86, %c0_87] : memref<48x16xf32, #tpu.memory_space<vmem>>, vector<16x16xf32>
    %cst_88 = arith.constant dense<0.000000e+00> : vector<16x16xf32>
    %80 = tpu.matmul %78, %79, %cst_88 {dimension_numbers = #tpu.dot_dimension_numbers<[1], [0], [0], [1], [0, 0, 1, 1], [], []>} : vector<16x16xf32>, vector<16x16xf32>, vector<16x16xf32> -> vector<16x16xf32>
    %81 = arith.addf %77, %80 : vector<16x16xf32>
    %82 = arith.addf %81, %14 : vector<16x16xf32>
    %c0_89 = arith.constant 0 : index
    %c0_90 = arith.constant 0 : index
    %c0_91 = arith.constant 0 : index
    %83 = vector.load %arg11[%c0_89, %c0_90, %c0_91] : memref<2x16x32xf32, #tpu.memory_space<vmem>>, vector<1x16x32xf32>
    %84 = vector.shape_cast %83 : vector<1x16x32xf32> to vector<16x32xf32>
    %cst_92 = arith.constant dense<0.000000e+00> : vector<16x32xf32>
    %85 = tpu.matmul %82, %84, %cst_92 {dimension_numbers = #tpu.dot_dimension_numbers<[1], [0], [0], [1], [0, 0, 1, 1], [], []>} : vector<16x16xf32>, vector<16x32xf32>, vector<16x32xf32> -> vector<16x32xf32>
    %c0_93 = arith.constant 0 : index
    %c0_94 = arith.constant 0 : index
    %c0_95 = arith.constant 0 : index
    %86 = vector.load %arg12[%c0_93, %c0_94, %c0_95] : memref<2x1x32xf32, #tpu.memory_space<vmem>>, vector<1x1x32xf32>
    %87 = vector.shape_cast %86 : vector<1x1x32xf32> to vector<1x32xf32>
    %88 = vector.broadcast %87 : vector<1x32xf32> to vector<16x32xf32>
    %89 = arith.addf %85, %88 : vector<16x32xf32>
    %90 = vector.extract_strided_slice %89 {offsets = [0, 0], sizes = [16, 16], strides = [1, 1]} : vector<16x32xf32> to vector<16x16xf32>
    %cst_96 = arith.constant 0.000000e+00 : f32
    %91 = vector.broadcast %cst_96 : f32 to vector<16x16xf32>
    %92 = arith.maximumf %90, %91 : vector<16x16xf32>
    %93 = vector.extract_strided_slice %89 {offsets = [0, 16], sizes = [16, 16], strides = [1, 1]} : vector<16x32xf32> to vector<16x16xf32>
    %94 = arith.negf %93 : vector<16x16xf32>
    %95 = math.exp %94 : vector<16x16xf32>
    %cst_97 = arith.constant 1.000000e+00 : f32
    %96 = vector.broadcast %cst_97 : f32 to vector<16x16xf32>
    %97 = arith.addf %96, %95 : vector<16x16xf32>
    %98 = arith.divf %96, %97 : vector<16x16xf32>
    %99 = arith.mulf %92, %98 : vector<16x16xf32>
    %cst_98 = arith.constant 1.000000e+00 : f32
    %100 = vector.broadcast %cst_98 : f32 to vector<16x16xf32>
    %101 = arith.subf %100, %98 : vector<16x16xf32>
    %102 = arith.mulf %82, %101 : vector<16x16xf32>
    %103 = arith.addf %99, %102 : vector<16x16xf32>
    %c1 = arith.constant 1 : index
    %c0_99 = arith.constant 0 : index
    %c0_100 = arith.constant 0 : index
    %104 = vector.load %arg11[%c1, %c0_99, %c0_100] : memref<2x16x32xf32, #tpu.memory_space<vmem>>, vector<1x16x32xf32>
    %105 = vector.shape_cast %104 : vector<1x16x32xf32> to vector<16x32xf32>
    %cst_101 = arith.constant dense<0.000000e+00> : vector<16x32xf32>
    %106 = tpu.matmul %103, %105, %cst_101 {dimension_numbers = #tpu.dot_dimension_numbers<[1], [0], [0], [1], [0, 0, 1, 1], [], []>} : vector<16x16xf32>, vector<16x32xf32>, vector<16x32xf32> -> vector<16x32xf32>
    %c1_102 = arith.constant 1 : index
    %c0_103 = arith.constant 0 : index
    %c0_104 = arith.constant 0 : index
    %107 = vector.load %arg12[%c1_102, %c0_103, %c0_104] : memref<2x1x32xf32, #tpu.memory_space<vmem>>, vector<1x1x32xf32>
    %108 = vector.shape_cast %107 : vector<1x1x32xf32> to vector<1x32xf32>
    %109 = vector.broadcast %108 : vector<1x32xf32> to vector<16x32xf32>
    %110 = arith.addf %106, %109 : vector<16x32xf32>
    %111 = vector.extract_strided_slice %110 {offsets = [0, 0], sizes = [16, 16], strides = [1, 1]} : vector<16x32xf32> to vector<16x16xf32>
    %cst_105 = arith.constant 0.000000e+00 : f32
    %112 = vector.broadcast %cst_105 : f32 to vector<16x16xf32>
    %113 = arith.maximumf %111, %112 : vector<16x16xf32>
    %114 = vector.extract_strided_slice %110 {offsets = [0, 16], sizes = [16, 16], strides = [1, 1]} : vector<16x32xf32> to vector<16x16xf32>
    %115 = arith.negf %114 : vector<16x16xf32>
    %116 = math.exp %115 : vector<16x16xf32>
    %cst_106 = arith.constant 1.000000e+00 : f32
    %117 = vector.broadcast %cst_106 : f32 to vector<16x16xf32>
    %118 = arith.addf %117, %116 : vector<16x16xf32>
    %119 = arith.divf %117, %118 : vector<16x16xf32>
    %120 = arith.mulf %113, %119 : vector<16x16xf32>
    %cst_107 = arith.constant 1.000000e+00 : f32
    %121 = vector.broadcast %cst_107 : f32 to vector<16x16xf32>
    %122 = arith.subf %121, %119 : vector<16x16xf32>
    %123 = arith.mulf %103, %122 : vector<16x16xf32>
    %124 = arith.addf %120, %123 : vector<16x16xf32>
    %c0_108 = arith.constant 0 : index
    %c0_109 = arith.constant 0 : index
    %125 = vector.load %arg13[%c0_108, %c0_109] : memref<16x96xf32, #tpu.memory_space<vmem>>, vector<16x96xf32>
    %cst_110 = arith.constant dense<0.000000e+00> : vector<16x96xf32>
    %126 = tpu.matmul %124, %125, %cst_110 {dimension_numbers = #tpu.dot_dimension_numbers<[1], [0], [0], [1], [0, 0, 1, 1], [], []>} : vector<16x16xf32>, vector<16x96xf32>, vector<16x96xf32> -> vector<16x96xf32>
    %c0_111 = arith.constant 0 : index
    %c0_112 = arith.constant 0 : index
    %127 = vector.load %arg14[%c0_111, %c0_112] : memref<1x96xf32, #tpu.memory_space<vmem>>, vector<1x96xf32>
    %128 = vector.broadcast %127 : vector<1x96xf32> to vector<16x96xf32>
    %129 = arith.addf %126, %128 : vector<16x96xf32>
    %c0_113 = arith.constant 0 : index
    %c0_114 = arith.constant 0 : index
    %130 = vector.load %arg24[%c0_113, %c0_114] : memref<16x96xf32, #tpu.memory_space<vmem>>, vector<16x96xf32>
    tpu.vector_store %arg24[%c0_113, %c0_114], %129 {strides = array<i32>} : memref<16x96xf32, #tpu.memory_space<vmem>>, vector<16x96xf32>,
    %c0_115 = arith.constant 0 : index
    %c0_116 = arith.constant 0 : index
    %c0_117 = arith.constant 0 : index
    %131 = vector.load %arg15[%c0_115, %c0_116, %c0_117] : memref<2x16x48xf32, #tpu.memory_space<vmem>>, vector<1x16x48xf32>
    %132 = vector.shape_cast %131 : vector<1x16x48xf32> to vector<16x48xf32>
    %c1_118 = arith.constant 1 : index
    %c0_119 = arith.constant 0 : index
    %c0_120 = arith.constant 0 : index
    %133 = vector.load %arg15[%c1_118, %c0_119, %c0_120] : memref<2x16x48xf32, #tpu.memory_space<vmem>>, vector<1x16x48xf32>
    %134 = vector.shape_cast %133 : vector<1x16x48xf32> to vector<16x48xf32>
    %c0_121 = arith.constant 0 : index
    %c0_122 = arith.constant 0 : index
    %c0_123 = arith.constant 0 : index
    %135 = vector.load %arg16[%c0_121, %c0_122, %c0_123] : memref<2x1x48xf32, #tpu.memory_space<vmem>>, vector<1x1x48xf32>
    %136 = vector.shape_cast %135 : vector<1x1x48xf32> to vector<1x48xf32>
    %c1_124 = arith.constant 1 : index
    %c0_125 = arith.constant 0 : index
    %c0_126 = arith.constant 0 : index
    %137 = vector.load %arg16[%c1_124, %c0_125, %c0_126] : memref<2x1x48xf32, #tpu.memory_space<vmem>>, vector<1x1x48xf32>
    %138 = vector.shape_cast %137 : vector<1x1x48xf32> to vector<1x48xf32>
    %cst_127 = arith.constant 0.000000e+00 : f32
    %139 = vector.broadcast %cst_127 : f32 to vector<2x16xf32>
    %cst_128 = arith.constant 0.000000e+00 : f32
    %140 = vector.broadcast %cst_128 : f32 to vector<2x16xf32>
    %c0_129 = arith.constant 0 : index
    %c0_130 = arith.constant 0 : index
    %141 = vector.load %arg24[%c0_129, %c0_130] : memref<16x96xf32, #tpu.memory_space<vmem>>, vector<2x96xf32>
    %c14 = arith.constant 14 : index
    %c0_131 = arith.constant 0 : index
    %142 = vector.load %arg24[%c14, %c0_131] : memref<16x96xf32, #tpu.memory_space<vmem>>, vector<2x96xf32>
    %143 = vector.extract_strided_slice %141 {offsets = [0, 0], sizes = [2, 48], strides = [1, 1]} : vector<2x96xf32> to vector<2x48xf32>
    %cst_132 = arith.constant dense<0.000000e+00> : vector<2x48xf32>
    %144 = tpu.matmul %139, %132, %cst_132 {dimension_numbers = #tpu.dot_dimension_numbers<[1], [0], [0], [1], [0, 0, 1, 1], [], []>} : vector<2x16xf32>, vector<16x48xf32>, vector<2x48xf32> -> vector<2x48xf32>
    %145 = vector.broadcast %136 : vector<1x48xf32> to vector<2x48xf32>
    %146 = arith.addf %144, %145 : vector<2x48xf32>
    %147 = vector.extract_strided_slice %143 {offsets = [0, 0], sizes = [2, 16], strides = [1, 1]} : vector<2x48xf32> to vector<2x16xf32>
    %148 = vector.extract_strided_slice %146 {offsets = [0, 0], sizes = [2, 16], strides = [1, 1]} : vector<2x48xf32> to vector<2x16xf32>
    %149 = arith.addf %147, %148 : vector<2x16xf32>
    %150 = arith.negf %149 : vector<2x16xf32>
    %151 = math.exp %150 : vector<2x16xf32>
    %cst_133 = arith.constant 1.000000e+00 : f32
    %152 = vector.broadcast %cst_133 : f32 to vector<2x16xf32>
    %153 = arith.addf %152, %151 : vector<2x16xf32>
    %154 = arith.divf %152, %153 : vector<2x16xf32>
    %155 = vector.extract_strided_slice %143 {offsets = [0, 16], sizes = [2, 16], strides = [1, 1]} : vector<2x48xf32> to vector<2x16xf32>
    %156 = vector.extract_strided_slice %146 {offsets = [0, 16], sizes = [2, 16], strides = [1, 1]} : vector<2x48xf32> to vector<2x16xf32>
    %157 = arith.addf %155, %156 : vector<2x16xf32>
    %158 = arith.negf %157 : vector<2x16xf32>
    %159 = math.exp %158 : vector<2x16xf32>
    %cst_134 = arith.constant 1.000000e+00 : f32
    %160 = vector.broadcast %cst_134 : f32 to vector<2x16xf32>
    %161 = arith.addf %160, %159 : vector<2x16xf32>
    %162 = arith.divf %160, %161 : vector<2x16xf32>
    %163 = vector.extract_strided_slice %143 {offsets = [0, 32], sizes = [2, 16], strides = [1, 1]} : vector<2x48xf32> to vector<2x16xf32>
    %164 = vector.extract_strided_slice %146 {offsets = [0, 32], sizes = [2, 16], strides = [1, 1]} : vector<2x48xf32> to vector<2x16xf32>
    %165 = arith.mulf %154, %164 : vector<2x16xf32>
    %166 = arith.addf %163, %165 : vector<2x16xf32>
    %167 = math.tanh %166 : vector<2x16xf32>
    %cst_135 = arith.constant 1.000000e+00 : f32
    %168 = vector.broadcast %cst_135 : f32 to vector<2x16xf32>
    %169 = arith.subf %168, %162 : vector<2x16xf32>
    %170 = arith.mulf %169, %167 : vector<2x16xf32>
    %171 = arith.mulf %162, %139 : vector<2x16xf32>
    %172 = arith.addf %170, %171 : vector<2x16xf32>
    %173 = vector.extract_strided_slice %142 {offsets = [0, 48], sizes = [2, 48], strides = [1, 1]} : vector<2x96xf32> to vector<2x48xf32>
    %cst_136 = arith.constant dense<0.000000e+00> : vector<2x48xf32>
    %174 = tpu.matmul %140, %134, %cst_136 {dimension_numbers = #tpu.dot_dimension_numbers<[1], [0], [0], [1], [0, 0, 1, 1], [], []>} : vector<2x16xf32>, vector<16x48xf32>, vector<2x48xf32> -> vector<2x48xf32>
    %175 = vector.broadcast %138 : vector<1x48xf32> to vector<2x48xf32>
    %176 = arith.addf %174, %175 : vector<2x48xf32>
    %177 = vector.extract_strided_slice %173 {offsets = [0, 0], sizes = [2, 16], strides = [1, 1]} : vector<2x48xf32> to vector<2x16xf32>
    %178 = vector.extract_strided_slice %176 {offsets = [0, 0], sizes = [2, 16], strides = [1, 1]} : vector<2x48xf32> to vector<2x16xf32>
    %179 = arith.addf %177, %178 : vector<2x16xf32>
    %180 = arith.negf %179 : vector<2x16xf32>
    %181 = math.exp %180 : vector<2x16xf32>
    %cst_137 = arith.constant 1.000000e+00 : f32
    %182 = vector.broadcast %cst_137 : f32 to vector<2x16xf32>
    %183 = arith.addf %182, %181 : vector<2x16xf32>
    %184 = arith.divf %182, %183 : vector<2x16xf32>
    %185 = vector.extract_strided_slice %173 {offsets = [0, 16], sizes = [2, 16], strides = [1, 1]} : vector<2x48xf32> to vector<2x16xf32>
    %186 = vector.extract_strided_slice %176 {offsets = [0, 16], sizes = [2, 16], strides = [1, 1]} : vector<2x48xf32> to vector<2x16xf32>
    %187 = arith.addf %185, %186 : vector<2x16xf32>
    %188 = arith.negf %187 : vector<2x16xf32>
    %189 = math.exp %188 : vector<2x16xf32>
    %cst_138 = arith.constant 1.000000e+00 : f32
    %190 = vector.broadcast %cst_138 : f32 to vector<2x16xf32>
    %191 = arith.addf %190, %189 : vector<2x16xf32>
    %192 = arith.divf %190, %191 : vector<2x16xf32>
    %193 = vector.extract_strided_slice %173 {offsets = [0, 32], sizes = [2, 16], strides = [1, 1]} : vector<2x48xf32> to vector<2x16xf32>
    %194 = vector.extract_strided_slice %176 {offsets = [0, 32], sizes = [2, 16], strides = [1, 1]} : vector<2x48xf32> to vector<2x16xf32>
    %195 = arith.mulf %184, %194 : vector<2x16xf32>
    %196 = arith.addf %193, %195 : vector<2x16xf32>
    %197 = math.tanh %196 : vector<2x16xf32>
    %cst_139 = arith.constant 1.000000e+00 : f32
    %198 = vector.broadcast %cst_139 : f32 to vector<2x16xf32>
    %199 = arith.subf %198, %192 : vector<2x16xf32>
    %200 = arith.mulf %199, %197 : vector<2x16xf32>
    %201 = arith.mulf %192, %140 : vector<2x16xf32>
    %202 = arith.addf %200, %201 : vector<2x16xf32>
    %c0_140 = arith.constant 0 : index
    %c0_141 = arith.constant 0 : index
    %203 = vector.load %arg25[%c0_140, %c0_141] : memref<16x32xf32, #tpu.memory_space<vmem>>, vector<2x16xf32>
    tpu.vector_store %arg25[%c0_140, %c0_141], %172 {strides = array<i32>} : memref<16x32xf32, #tpu.memory_space<vmem>>, vector<2x16xf32>,
    %c14_142 = arith.constant 14 : index
    %c16_143 = arith.constant 16 : index
    %204 = vector.load %arg25[%c14_142, %c16_143] : memref<16x32xf32, #tpu.memory_space<vmem>>, vector<2x16xf32>
    tpu.vector_store %arg25[%c14_142, %c16_143], %202 {strides = array<i32>} : memref<16x32xf32, #tpu.memory_space<vmem>>, vector<2x16xf32>,
    %c2_144 = arith.constant 2 : index
    %c0_145 = arith.constant 0 : index
    %205 = vector.load %arg24[%c2_144, %c0_145] : memref<16x96xf32, #tpu.memory_space<vmem>>, vector<2x96xf32>
    %c12 = arith.constant 12 : index
    %c0_146 = arith.constant 0 : index
    %206 = vector.load %arg24[%c12, %c0_146] : memref<16x96xf32, #tpu.memory_space<vmem>>, vector<2x96xf32>
    %207 = vector.extract_strided_slice %205 {offsets = [0, 0], sizes = [2, 48], strides = [1, 1]} : vector<2x96xf32> to vector<2x48xf32>
    %cst_147 = arith.constant dense<0.000000e+00> : vector<2x48xf32>
    %208 = tpu.matmul %172, %132, %cst_147 {dimension_numbers = #tpu.dot_dimension_numbers<[1], [0], [0], [1], [0, 0, 1, 1], [], []>} : vector<2x16xf32>, vector<16x48xf32>, vector<2x48xf32> -> vector<2x48xf32>
    %209 = vector.broadcast %136 : vector<1x48xf32> to vector<2x48xf32>
    %210 = arith.addf %208, %209 : vector<2x48xf32>
    %211 = vector.extract_strided_slice %207 {offsets = [0, 0], sizes = [2, 16], strides = [1, 1]} : vector<2x48xf32> to vector<2x16xf32>
    %212 = vector.extract_strided_slice %210 {offsets = [0, 0], sizes = [2, 16], strides = [1, 1]} : vector<2x48xf32> to vector<2x16xf32>
    %213 = arith.addf %211, %212 : vector<2x16xf32>
    %214 = arith.negf %213 : vector<2x16xf32>
    %215 = math.exp %214 : vector<2x16xf32>
    %cst_148 = arith.constant 1.000000e+00 : f32
    %216 = vector.broadcast %cst_148 : f32 to vector<2x16xf32>
    %217 = arith.addf %216, %215 : vector<2x16xf32>
    %218 = arith.divf %216, %217 : vector<2x16xf32>
    %219 = vector.extract_strided_slice %207 {offsets = [0, 16], sizes = [2, 16], strides = [1, 1]} : vector<2x48xf32> to vector<2x16xf32>
    %220 = vector.extract_strided_slice %210 {offsets = [0, 16], sizes = [2, 16], strides = [1, 1]} : vector<2x48xf32> to vector<2x16xf32>
    %221 = arith.addf %219, %220 : vector<2x16xf32>
    %222 = arith.negf %221 : vector<2x16xf32>
    %223 = math.exp %222 : vector<2x16xf32>
    %cst_149 = arith.constant 1.000000e+00 : f32
    %224 = vector.broadcast %cst_149 : f32 to vector<2x16xf32>
    %225 = arith.addf %224, %223 : vector<2x16xf32>
    %226 = arith.divf %224, %225 : vector<2x16xf32>
    %227 = vector.extract_strided_slice %207 {offsets = [0, 32], sizes = [2, 16], strides = [1, 1]} : vector<2x48xf32> to vector<2x16xf32>
    %228 = vector.extract_strided_slice %210 {offsets = [0, 32], sizes = [2, 16], strides = [1, 1]} : vector<2x48xf32> to vector<2x16xf32>
    %229 = arith.mulf %218, %228 : vector<2x16xf32>
    %230 = arith.addf %227, %229 : vector<2x16xf32>
    %231 = math.tanh %230 : vector<2x16xf32>
    %cst_150 = arith.constant 1.000000e+00 : f32
    %232 = vector.broadcast %cst_150 : f32 to vector<2x16xf32>
    %233 = arith.subf %232, %226 : vector<2x16xf32>
    %234 = arith.mulf %233, %231 : vector<2x16xf32>
    %235 = arith.mulf %226, %172 : vector<2x16xf32>
    %236 = arith.addf %234, %235 : vector<2x16xf32>
    %237 = vector.extract_strided_slice %206 {offsets = [0, 48], sizes = [2, 48], strides = [1, 1]} : vector<2x96xf32> to vector<2x48xf32>
    %cst_151 = arith.constant dense<0.000000e+00> : vector<2x48xf32>
    %238 = tpu.matmul %202, %134, %cst_151 {dimension_numbers = #tpu.dot_dimension_numbers<[1], [0], [0], [1], [0, 0, 1, 1], [], []>} : vector<2x16xf32>, vector<16x48xf32>, vector<2x48xf32> -> vector<2x48xf32>
    %239 = vector.broadcast %138 : vector<1x48xf32> to vector<2x48xf32>
    %240 = arith.addf %238, %239 : vector<2x48xf32>
    %241 = vector.extract_strided_slice %237 {offsets = [0, 0], sizes = [2, 16], strides = [1, 1]} : vector<2x48xf32> to vector<2x16xf32>
    %242 = vector.extract_strided_slice %240 {offsets = [0, 0], sizes = [2, 16], strides = [1, 1]} : vector<2x48xf32> to vector<2x16xf32>
    %243 = arith.addf %241, %242 : vector<2x16xf32>
    %244 = arith.negf %243 : vector<2x16xf32>
    %245 = math.exp %244 : vector<2x16xf32>
    %cst_152 = arith.constant 1.000000e+00 : f32
    %246 = vector.broadcast %cst_152 : f32 to vector<2x16xf32>
    %247 = arith.addf %246, %245 : vector<2x16xf32>
    %248 = arith.divf %246, %247 : vector<2x16xf32>
    %249 = vector.extract_strided_slice %237 {offsets = [0, 16], sizes = [2, 16], strides = [1, 1]} : vector<2x48xf32> to vector<2x16xf32>
    %250 = vector.extract_strided_slice %240 {offsets = [0, 16], sizes = [2, 16], strides = [1, 1]} : vector<2x48xf32> to vector<2x16xf32>
    %251 = arith.addf %249, %250 : vector<2x16xf32>
    %252 = arith.negf %251 : vector<2x16xf32>
    %253 = math.exp %252 : vector<2x16xf32>
    %cst_153 = arith.constant 1.000000e+00 : f32
    %254 = vector.broadcast %cst_153 : f32 to vector<2x16xf32>
    %255 = arith.addf %254, %253 : vector<2x16xf32>
    %256 = arith.divf %254, %255 : vector<2x16xf32>
    %257 = vector.extract_strided_slice %237 {offsets = [0, 32], sizes = [2, 16], strides = [1, 1]} : vector<2x48xf32> to vector<2x16xf32>
    %258 = vector.extract_strided_slice %240 {offsets = [0, 32], sizes = [2, 16], strides = [1, 1]} : vector<2x48xf32> to vector<2x16xf32>
    %259 = arith.mulf %248, %258 : vector<2x16xf32>
    %260 = arith.addf %257, %259 : vector<2x16xf32>
    %261 = math.tanh %260 : vector<2x16xf32>
    %cst_154 = arith.constant 1.000000e+00 : f32
    %262 = vector.broadcast %cst_154 : f32 to vector<2x16xf32>
    %263 = arith.subf %262, %256 : vector<2x16xf32>
    %264 = arith.mulf %263, %261 : vector<2x16xf32>
    %265 = arith.mulf %256, %202 : vector<2x16xf32>
    %266 = arith.addf %264, %265 : vector<2x16xf32>
    %c2_155 = arith.constant 2 : index
    %c0_156 = arith.constant 0 : index
    %267 = vector.load %arg25[%c2_155, %c0_156] : memref<16x32xf32, #tpu.memory_space<vmem>>, vector<2x16xf32>
    tpu.vector_store %arg25[%c2_155, %c0_156], %236 {strides = array<i32>} : memref<16x32xf32, #tpu.memory_space<vmem>>, vector<2x16xf32>,
    %c12_157 = arith.constant 12 : index
    %c16_158 = arith.constant 16 : index
    %268 = vector.load %arg25[%c12_157, %c16_158] : memref<16x32xf32, #tpu.memory_space<vmem>>, vector<2x16xf32>
    tpu.vector_store %arg25[%c12_157, %c16_158], %266 {strides = array<i32>} : memref<16x32xf32, #tpu.memory_space<vmem>>, vector<2x16xf32>,
    %c4_159 = arith.constant 4 : index
    %c0_160 = arith.constant 0 : index
    %269 = vector.load %arg24[%c4_159, %c0_160] : memref<16x96xf32, #tpu.memory_space<vmem>>, vector<2x96xf32>
    %c10 = arith.constant 10 : index
    %c0_161 = arith.constant 0 : index
    %270 = vector.load %arg24[%c10, %c0_161] : memref<16x96xf32, #tpu.memory_space<vmem>>, vector<2x96xf32>
    %271 = vector.extract_strided_slice %269 {offsets = [0, 0], sizes = [2, 48], strides = [1, 1]} : vector<2x96xf32> to vector<2x48xf32>
    %cst_162 = arith.constant dense<0.000000e+00> : vector<2x48xf32>
    %272 = tpu.matmul %236, %132, %cst_162 {dimension_numbers = #tpu.dot_dimension_numbers<[1], [0], [0], [1], [0, 0, 1, 1], [], []>} : vector<2x16xf32>, vector<16x48xf32>, vector<2x48xf32> -> vector<2x48xf32>
    %273 = vector.broadcast %136 : vector<1x48xf32> to vector<2x48xf32>
    %274 = arith.addf %272, %273 : vector<2x48xf32>
    %275 = vector.extract_strided_slice %271 {offsets = [0, 0], sizes = [2, 16], strides = [1, 1]} : vector<2x48xf32> to vector<2x16xf32>
    %276 = vector.extract_strided_slice %274 {offsets = [0, 0], sizes = [2, 16], strides = [1, 1]} : vector<2x48xf32> to vector<2x16xf32>
    %277 = arith.addf %275, %276 : vector<2x16xf32>
    %278 = arith.negf %277 : vector<2x16xf32>
    %279 = math.exp %278 : vector<2x16xf32>
    %cst_163 = arith.constant 1.000000e+00 : f32
    %280 = vector.broadcast %cst_163 : f32 to vector<2x16xf32>
    %281 = arith.addf %280, %279 : vector<2x16xf32>
    %282 = arith.divf %280, %281 : vector<2x16xf32>
    %283 = vector.extract_strided_slice %271 {offsets = [0, 16], sizes = [2, 16], strides = [1, 1]} : vector<2x48xf32> to vector<2x16xf32>
    %284 = vector.extract_strided_slice %274 {offsets = [0, 16], sizes = [2, 16], strides = [1, 1]} : vector<2x48xf32> to vector<2x16xf32>
    %285 = arith.addf %283, %284 : vector<2x16xf32>
    %286 = arith.negf %285 : vector<2x16xf32>
    %287 = math.exp %286 : vector<2x16xf32>
    %cst_164 = arith.constant 1.000000e+00 : f32
    %288 = vector.broadcast %cst_164 : f32 to vector<2x16xf32>
    %289 = arith.addf %288, %287 : vector<2x16xf32>
    %290 = arith.divf %288, %289 : vector<2x16xf32>
    %291 = vector.extract_strided_slice %271 {offsets = [0, 32], sizes = [2, 16], strides = [1, 1]} : vector<2x48xf32> to vector<2x16xf32>
    %292 = vector.extract_strided_slice %274 {offsets = [0, 32], sizes = [2, 16], strides = [1, 1]} : vector<2x48xf32> to vector<2x16xf32>
    %293 = arith.mulf %282, %292 : vector<2x16xf32>
    %294 = arith.addf %291, %293 : vector<2x16xf32>
    %295 = math.tanh %294 : vector<2x16xf32>
    %cst_165 = arith.constant 1.000000e+00 : f32
    %296 = vector.broadcast %cst_165 : f32 to vector<2x16xf32>
    %297 = arith.subf %296, %290 : vector<2x16xf32>
    %298 = arith.mulf %297, %295 : vector<2x16xf32>
    %299 = arith.mulf %290, %236 : vector<2x16xf32>
    %300 = arith.addf %298, %299 : vector<2x16xf32>
    %301 = vector.extract_strided_slice %270 {offsets = [0, 48], sizes = [2, 48], strides = [1, 1]} : vector<2x96xf32> to vector<2x48xf32>
    %cst_166 = arith.constant dense<0.000000e+00> : vector<2x48xf32>
    %302 = tpu.matmul %266, %134, %cst_166 {dimension_numbers = #tpu.dot_dimension_numbers<[1], [0], [0], [1], [0, 0, 1, 1], [], []>} : vector<2x16xf32>, vector<16x48xf32>, vector<2x48xf32> -> vector<2x48xf32>
    %303 = vector.broadcast %138 : vector<1x48xf32> to vector<2x48xf32>
    %304 = arith.addf %302, %303 : vector<2x48xf32>
    %305 = vector.extract_strided_slice %301 {offsets = [0, 0], sizes = [2, 16], strides = [1, 1]} : vector<2x48xf32> to vector<2x16xf32>
    %306 = vector.extract_strided_slice %304 {offsets = [0, 0], sizes = [2, 16], strides = [1, 1]} : vector<2x48xf32> to vector<2x16xf32>
    %307 = arith.addf %305, %306 : vector<2x16xf32>
    %308 = arith.negf %307 : vector<2x16xf32>
    %309 = math.exp %308 : vector<2x16xf32>
    %cst_167 = arith.constant 1.000000e+00 : f32
    %310 = vector.broadcast %cst_167 : f32 to vector<2x16xf32>
    %311 = arith.addf %310, %309 : vector<2x16xf32>
    %312 = arith.divf %310, %311 : vector<2x16xf32>
    %313 = vector.extract_strided_slice %301 {offsets = [0, 16], sizes = [2, 16], strides = [1, 1]} : vector<2x48xf32> to vector<2x16xf32>
    %314 = vector.extract_strided_slice %304 {offsets = [0, 16], sizes = [2, 16], strides = [1, 1]} : vector<2x48xf32> to vector<2x16xf32>
    %315 = arith.addf %313, %314 : vector<2x16xf32>
    %316 = arith.negf %315 : vector<2x16xf32>
    %317 = math.exp %316 : vector<2x16xf32>
    %cst_168 = arith.constant 1.000000e+00 : f32
    %318 = vector.broadcast %cst_168 : f32 to vector<2x16xf32>
    %319 = arith.addf %318, %317 : vector<2x16xf32>
    %320 = arith.divf %318, %319 : vector<2x16xf32>
    %321 = vector.extract_strided_slice %301 {offsets = [0, 32], sizes = [2, 16], strides = [1, 1]} : vector<2x48xf32> to vector<2x16xf32>
    %322 = vector.extract_strided_slice %304 {offsets = [0, 32], sizes = [2, 16], strides = [1, 1]} : vector<2x48xf32> to vector<2x16xf32>
    %323 = arith.mulf %312, %322 : vector<2x16xf32>
    %324 = arith.addf %321, %323 : vector<2x16xf32>
    %325 = math.tanh %324 : vector<2x16xf32>
    %cst_169 = arith.constant 1.000000e+00 : f32
    %326 = vector.broadcast %cst_169 : f32 to vector<2x16xf32>
    %327 = arith.subf %326, %320 : vector<2x16xf32>
    %328 = arith.mulf %327, %325 : vector<2x16xf32>
    %329 = arith.mulf %320, %266 : vector<2x16xf32>
    %330 = arith.addf %328, %329 : vector<2x16xf32>
    %c4_170 = arith.constant 4 : index
    %c0_171 = arith.constant 0 : index
    %331 = vector.load %arg25[%c4_170, %c0_171] : memref<16x32xf32, #tpu.memory_space<vmem>>, vector<2x16xf32>
    tpu.vector_store %arg25[%c4_170, %c0_171], %300 {strides = array<i32>} : memref<16x32xf32, #tpu.memory_space<vmem>>, vector<2x16xf32>,
    %c10_172 = arith.constant 10 : index
    %c16_173 = arith.constant 16 : index
    %332 = vector.load %arg25[%c10_172, %c16_173] : memref<16x32xf32, #tpu.memory_space<vmem>>, vector<2x16xf32>
    tpu.vector_store %arg25[%c10_172, %c16_173], %330 {strides = array<i32>} : memref<16x32xf32, #tpu.memory_space<vmem>>, vector<2x16xf32>,
    %c6_174 = arith.constant 6 : index
    %c0_175 = arith.constant 0 : index
    %333 = vector.load %arg24[%c6_174, %c0_175] : memref<16x96xf32, #tpu.memory_space<vmem>>, vector<2x96xf32>
    %c8 = arith.constant 8 : index
    %c0_176 = arith.constant 0 : index
    %334 = vector.load %arg24[%c8, %c0_176] : memref<16x96xf32, #tpu.memory_space<vmem>>, vector<2x96xf32>
    %335 = vector.extract_strided_slice %333 {offsets = [0, 0], sizes = [2, 48], strides = [1, 1]} : vector<2x96xf32> to vector<2x48xf32>
    %cst_177 = arith.constant dense<0.000000e+00> : vector<2x48xf32>
    %336 = tpu.matmul %300, %132, %cst_177 {dimension_numbers = #tpu.dot_dimension_numbers<[1], [0], [0], [1], [0, 0, 1, 1], [], []>} : vector<2x16xf32>, vector<16x48xf32>, vector<2x48xf32> -> vector<2x48xf32>
    %337 = vector.broadcast %136 : vector<1x48xf32> to vector<2x48xf32>
    %338 = arith.addf %336, %337 : vector<2x48xf32>
    %339 = vector.extract_strided_slice %335 {offsets = [0, 0], sizes = [2, 16], strides = [1, 1]} : vector<2x48xf32> to vector<2x16xf32>
    %340 = vector.extract_strided_slice %338 {offsets = [0, 0], sizes = [2, 16], strides = [1, 1]} : vector<2x48xf32> to vector<2x16xf32>
    %341 = arith.addf %339, %340 : vector<2x16xf32>
    %342 = arith.negf %341 : vector<2x16xf32>
    %343 = math.exp %342 : vector<2x16xf32>
    %cst_178 = arith.constant 1.000000e+00 : f32
    %344 = vector.broadcast %cst_178 : f32 to vector<2x16xf32>
    %345 = arith.addf %344, %343 : vector<2x16xf32>
    %346 = arith.divf %344, %345 : vector<2x16xf32>
    %347 = vector.extract_strided_slice %335 {offsets = [0, 16], sizes = [2, 16], strides = [1, 1]} : vector<2x48xf32> to vector<2x16xf32>
    %348 = vector.extract_strided_slice %338 {offsets = [0, 16], sizes = [2, 16], strides = [1, 1]} : vector<2x48xf32> to vector<2x16xf32>
    %349 = arith.addf %347, %348 : vector<2x16xf32>
    %350 = arith.negf %349 : vector<2x16xf32>
    %351 = math.exp %350 : vector<2x16xf32>
    %cst_179 = arith.constant 1.000000e+00 : f32
    %352 = vector.broadcast %cst_179 : f32 to vector<2x16xf32>
    %353 = arith.addf %352, %351 : vector<2x16xf32>
    %354 = arith.divf %352, %353 : vector<2x16xf32>
    %355 = vector.extract_strided_slice %335 {offsets = [0, 32], sizes = [2, 16], strides = [1, 1]} : vector<2x48xf32> to vector<2x16xf32>
    %356 = vector.extract_strided_slice %338 {offsets = [0, 32], sizes = [2, 16], strides = [1, 1]} : vector<2x48xf32> to vector<2x16xf32>
    %357 = arith.mulf %346, %356 : vector<2x16xf32>
    %358 = arith.addf %355, %357 : vector<2x16xf32>
    %359 = math.tanh %358 : vector<2x16xf32>
    %cst_180 = arith.constant 1.000000e+00 : f32
    %360 = vector.broadcast %cst_180 : f32 to vector<2x16xf32>
    %361 = arith.subf %360, %354 : vector<2x16xf32>
    %362 = arith.mulf %361, %359 : vector<2x16xf32>
    %363 = arith.mulf %354, %300 : vector<2x16xf32>
    %364 = arith.addf %362, %363 : vector<2x16xf32>
    %365 = vector.extract_strided_slice %334 {offsets = [0, 48], sizes = [2, 48], strides = [1, 1]} : vector<2x96xf32> to vector<2x48xf32>
    %cst_181 = arith.constant dense<0.000000e+00> : vector<2x48xf32>
    %366 = tpu.matmul %330, %134, %cst_181 {dimension_numbers = #tpu.dot_dimension_numbers<[1], [0], [0], [1], [0, 0, 1, 1], [], []>} : vector<2x16xf32>, vector<16x48xf32>, vector<2x48xf32> -> vector<2x48xf32>
    %367 = vector.broadcast %138 : vector<1x48xf32> to vector<2x48xf32>
    %368 = arith.addf %366, %367 : vector<2x48xf32>
    %369 = vector.extract_strided_slice %365 {offsets = [0, 0], sizes = [2, 16], strides = [1, 1]} : vector<2x48xf32> to vector<2x16xf32>
    %370 = vector.extract_strided_slice %368 {offsets = [0, 0], sizes = [2, 16], strides = [1, 1]} : vector<2x48xf32> to vector<2x16xf32>
    %371 = arith.addf %369, %370 : vector<2x16xf32>
    %372 = arith.negf %371 : vector<2x16xf32>
    %373 = math.exp %372 : vector<2x16xf32>
    %cst_182 = arith.constant 1.000000e+00 : f32
    %374 = vector.broadcast %cst_182 : f32 to vector<2x16xf32>
    %375 = arith.addf %374, %373 : vector<2x16xf32>
    %376 = arith.divf %374, %375 : vector<2x16xf32>
    %377 = vector.extract_strided_slice %365 {offsets = [0, 16], sizes = [2, 16], strides = [1, 1]} : vector<2x48xf32> to vector<2x16xf32>
    %378 = vector.extract_strided_slice %368 {offsets = [0, 16], sizes = [2, 16], strides = [1, 1]} : vector<2x48xf32> to vector<2x16xf32>
    %379 = arith.addf %377, %378 : vector<2x16xf32>
    %380 = arith.negf %379 : vector<2x16xf32>
    %381 = math.exp %380 : vector<2x16xf32>
    %cst_183 = arith.constant 1.000000e+00 : f32
    %382 = vector.broadcast %cst_183 : f32 to vector<2x16xf32>
    %383 = arith.addf %382, %381 : vector<2x16xf32>
    %384 = arith.divf %382, %383 : vector<2x16xf32>
    %385 = vector.extract_strided_slice %365 {offsets = [0, 32], sizes = [2, 16], strides = [1, 1]} : vector<2x48xf32> to vector<2x16xf32>
    %386 = vector.extract_strided_slice %368 {offsets = [0, 32], sizes = [2, 16], strides = [1, 1]} : vector<2x48xf32> to vector<2x16xf32>
    %387 = arith.mulf %376, %386 : vector<2x16xf32>
    %388 = arith.addf %385, %387 : vector<2x16xf32>
    %389 = math.tanh %388 : vector<2x16xf32>
    %cst_184 = arith.constant 1.000000e+00 : f32
    %390 = vector.broadcast %cst_184 : f32 to vector<2x16xf32>
    %391 = arith.subf %390, %384 : vector<2x16xf32>
    %392 = arith.mulf %391, %389 : vector<2x16xf32>
    %393 = arith.mulf %384, %330 : vector<2x16xf32>
    %394 = arith.addf %392, %393 : vector<2x16xf32>
    %c6_185 = arith.constant 6 : index
    %c0_186 = arith.constant 0 : index
    %395 = vector.load %arg25[%c6_185, %c0_186] : memref<16x32xf32, #tpu.memory_space<vmem>>, vector<2x16xf32>
    tpu.vector_store %arg25[%c6_185, %c0_186], %364 {strides = array<i32>} : memref<16x32xf32, #tpu.memory_space<vmem>>, vector<2x16xf32>,
    %c8_187 = arith.constant 8 : index
    %c16_188 = arith.constant 16 : index
    %396 = vector.load %arg25[%c8_187, %c16_188] : memref<16x32xf32, #tpu.memory_space<vmem>>, vector<2x16xf32>
    tpu.vector_store %arg25[%c8_187, %c16_188], %394 {strides = array<i32>} : memref<16x32xf32, #tpu.memory_space<vmem>>, vector<2x16xf32>,
    %c8_189 = arith.constant 8 : index
    %c0_190 = arith.constant 0 : index
    %397 = vector.load %arg24[%c8_189, %c0_190] : memref<16x96xf32, #tpu.memory_space<vmem>>, vector<2x96xf32>
    %c6_191 = arith.constant 6 : index
    %c0_192 = arith.constant 0 : index
    %398 = vector.load %arg24[%c6_191, %c0_192] : memref<16x96xf32, #tpu.memory_space<vmem>>, vector<2x96xf32>
    %399 = vector.extract_strided_slice %397 {offsets = [0, 0], sizes = [2, 48], strides = [1, 1]} : vector<2x96xf32> to vector<2x48xf32>
    %cst_193 = arith.constant dense<0.000000e+00> : vector<2x48xf32>
    %400 = tpu.matmul %364, %132, %cst_193 {dimension_numbers = #tpu.dot_dimension_numbers<[1], [0], [0], [1], [0, 0, 1, 1], [], []>} : vector<2x16xf32>, vector<16x48xf32>, vector<2x48xf32> -> vector<2x48xf32>
    %401 = vector.broadcast %136 : vector<1x48xf32> to vector<2x48xf32>
    %402 = arith.addf %400, %401 : vector<2x48xf32>
    %403 = vector.extract_strided_slice %399 {offsets = [0, 0], sizes = [2, 16], strides = [1, 1]} : vector<2x48xf32> to vector<2x16xf32>
    %404 = vector.extract_strided_slice %402 {offsets = [0, 0], sizes = [2, 16], strides = [1, 1]} : vector<2x48xf32> to vector<2x16xf32>
    %405 = arith.addf %403, %404 : vector<2x16xf32>
    %406 = arith.negf %405 : vector<2x16xf32>
    %407 = math.exp %406 : vector<2x16xf32>
    %cst_194 = arith.constant 1.000000e+00 : f32
    %408 = vector.broadcast %cst_194 : f32 to vector<2x16xf32>
    %409 = arith.addf %408, %407 : vector<2x16xf32>
    %410 = arith.divf %408, %409 : vector<2x16xf32>
    %411 = vector.extract_strided_slice %399 {offsets = [0, 16], sizes = [2, 16], strides = [1, 1]} : vector<2x48xf32> to vector<2x16xf32>
    %412 = vector.extract_strided_slice %402 {offsets = [0, 16], sizes = [2, 16], strides = [1, 1]} : vector<2x48xf32> to vector<2x16xf32>
    %413 = arith.addf %411, %412 : vector<2x16xf32>
    %414 = arith.negf %413 : vector<2x16xf32>
    %415 = math.exp %414 : vector<2x16xf32>
    %cst_195 = arith.constant 1.000000e+00 : f32
    %416 = vector.broadcast %cst_195 : f32 to vector<2x16xf32>
    %417 = arith.addf %416, %415 : vector<2x16xf32>
    %418 = arith.divf %416, %417 : vector<2x16xf32>
    %419 = vector.extract_strided_slice %399 {offsets = [0, 32], sizes = [2, 16], strides = [1, 1]} : vector<2x48xf32> to vector<2x16xf32>
    %420 = vector.extract_strided_slice %402 {offsets = [0, 32], sizes = [2, 16], strides = [1, 1]} : vector<2x48xf32> to vector<2x16xf32>
    %421 = arith.mulf %410, %420 : vector<2x16xf32>
    %422 = arith.addf %419, %421 : vector<2x16xf32>
    %423 = math.tanh %422 : vector<2x16xf32>
    %cst_196 = arith.constant 1.000000e+00 : f32
    %424 = vector.broadcast %cst_196 : f32 to vector<2x16xf32>
    %425 = arith.subf %424, %418 : vector<2x16xf32>
    %426 = arith.mulf %425, %423 : vector<2x16xf32>
    %427 = arith.mulf %418, %364 : vector<2x16xf32>
    %428 = arith.addf %426, %427 : vector<2x16xf32>
    %429 = vector.extract_strided_slice %398 {offsets = [0, 48], sizes = [2, 48], strides = [1, 1]} : vector<2x96xf32> to vector<2x48xf32>
    %cst_197 = arith.constant dense<0.000000e+00> : vector<2x48xf32>
    %430 = tpu.matmul %394, %134, %cst_197 {dimension_numbers = #tpu.dot_dimension_numbers<[1], [0], [0], [1], [0, 0, 1, 1], [], []>} : vector<2x16xf32>, vector<16x48xf32>, vector<2x48xf32> -> vector<2x48xf32>
    %431 = vector.broadcast %138 : vector<1x48xf32> to vector<2x48xf32>
    %432 = arith.addf %430, %431 : vector<2x48xf32>
    %433 = vector.extract_strided_slice %429 {offsets = [0, 0], sizes = [2, 16], strides = [1, 1]} : vector<2x48xf32> to vector<2x16xf32>
    %434 = vector.extract_strided_slice %432 {offsets = [0, 0], sizes = [2, 16], strides = [1, 1]} : vector<2x48xf32> to vector<2x16xf32>
    %435 = arith.addf %433, %434 : vector<2x16xf32>
    %436 = arith.negf %435 : vector<2x16xf32>
    %437 = math.exp %436 : vector<2x16xf32>
    %cst_198 = arith.constant 1.000000e+00 : f32
    %438 = vector.broadcast %cst_198 : f32 to vector<2x16xf32>
    %439 = arith.addf %438, %437 : vector<2x16xf32>
    %440 = arith.divf %438, %439 : vector<2x16xf32>
    %441 = vector.extract_strided_slice %429 {offsets = [0, 16], sizes = [2, 16], strides = [1, 1]} : vector<2x48xf32> to vector<2x16xf32>
    %442 = vector.extract_strided_slice %432 {offsets = [0, 16], sizes = [2, 16], strides = [1, 1]} : vector<2x48xf32> to vector<2x16xf32>
    %443 = arith.addf %441, %442 : vector<2x16xf32>
    %444 = arith.negf %443 : vector<2x16xf32>
    %445 = math.exp %444 : vector<2x16xf32>
    %cst_199 = arith.constant 1.000000e+00 : f32
    %446 = vector.broadcast %cst_199 : f32 to vector<2x16xf32>
    %447 = arith.addf %446, %445 : vector<2x16xf32>
    %448 = arith.divf %446, %447 : vector<2x16xf32>
    %449 = vector.extract_strided_slice %429 {offsets = [0, 32], sizes = [2, 16], strides = [1, 1]} : vector<2x48xf32> to vector<2x16xf32>
    %450 = vector.extract_strided_slice %432 {offsets = [0, 32], sizes = [2, 16], strides = [1, 1]} : vector<2x48xf32> to vector<2x16xf32>
    %451 = arith.mulf %440, %450 : vector<2x16xf32>
    %452 = arith.addf %449, %451 : vector<2x16xf32>
    %453 = math.tanh %452 : vector<2x16xf32>
    %cst_200 = arith.constant 1.000000e+00 : f32
    %454 = vector.broadcast %cst_200 : f32 to vector<2x16xf32>
    %455 = arith.subf %454, %448 : vector<2x16xf32>
    %456 = arith.mulf %455, %453 : vector<2x16xf32>
    %457 = arith.mulf %448, %394 : vector<2x16xf32>
    %458 = arith.addf %456, %457 : vector<2x16xf32>
    %c8_201 = arith.constant 8 : index
    %c0_202 = arith.constant 0 : index
    %459 = vector.load %arg25[%c8_201, %c0_202] : memref<16x32xf32, #tpu.memory_space<vmem>>, vector<2x16xf32>
    tpu.vector_store %arg25[%c8_201, %c0_202], %428 {strides = array<i32>} : memref<16x32xf32, #tpu.memory_space<vmem>>, vector<2x16xf32>,
    %c6_203 = arith.constant 6 : index
    %c16_204 = arith.constant 16 : index
    %460 = vector.load %arg25[%c6_203, %c16_204] : memref<16x32xf32, #tpu.memory_space<vmem>>, vector<2x16xf32>
    tpu.vector_store %arg25[%c6_203, %c16_204], %458 {strides = array<i32>} : memref<16x32xf32, #tpu.memory_space<vmem>>, vector<2x16xf32>,
    %c10_205 = arith.constant 10 : index
    %c0_206 = arith.constant 0 : index
    %461 = vector.load %arg24[%c10_205, %c0_206] : memref<16x96xf32, #tpu.memory_space<vmem>>, vector<2x96xf32>
    %c4_207 = arith.constant 4 : index
    %c0_208 = arith.constant 0 : index
    %462 = vector.load %arg24[%c4_207, %c0_208] : memref<16x96xf32, #tpu.memory_space<vmem>>, vector<2x96xf32>
    %463 = vector.extract_strided_slice %461 {offsets = [0, 0], sizes = [2, 48], strides = [1, 1]} : vector<2x96xf32> to vector<2x48xf32>
    %cst_209 = arith.constant dense<0.000000e+00> : vector<2x48xf32>
    %464 = tpu.matmul %428, %132, %cst_209 {dimension_numbers = #tpu.dot_dimension_numbers<[1], [0], [0], [1], [0, 0, 1, 1], [], []>} : vector<2x16xf32>, vector<16x48xf32>, vector<2x48xf32> -> vector<2x48xf32>
    %465 = vector.broadcast %136 : vector<1x48xf32> to vector<2x48xf32>
    %466 = arith.addf %464, %465 : vector<2x48xf32>
    %467 = vector.extract_strided_slice %463 {offsets = [0, 0], sizes = [2, 16], strides = [1, 1]} : vector<2x48xf32> to vector<2x16xf32>
    %468 = vector.extract_strided_slice %466 {offsets = [0, 0], sizes = [2, 16], strides = [1, 1]} : vector<2x48xf32> to vector<2x16xf32>
    %469 = arith.addf %467, %468 : vector<2x16xf32>
    %470 = arith.negf %469 : vector<2x16xf32>
    %471 = math.exp %470 : vector<2x16xf32>
    %cst_210 = arith.constant 1.000000e+00 : f32
    %472 = vector.broadcast %cst_210 : f32 to vector<2x16xf32>
    %473 = arith.addf %472, %471 : vector<2x16xf32>
    %474 = arith.divf %472, %473 : vector<2x16xf32>
    %475 = vector.extract_strided_slice %463 {offsets = [0, 16], sizes = [2, 16], strides = [1, 1]} : vector<2x48xf32> to vector<2x16xf32>
    %476 = vector.extract_strided_slice %466 {offsets = [0, 16], sizes = [2, 16], strides = [1, 1]} : vector<2x48xf32> to vector<2x16xf32>
    %477 = arith.addf %475, %476 : vector<2x16xf32>
    %478 = arith.negf %477 : vector<2x16xf32>
    %479 = math.exp %478 : vector<2x16xf32>
    %cst_211 = arith.constant 1.000000e+00 : f32
    %480 = vector.broadcast %cst_211 : f32 to vector<2x16xf32>
    %481 = arith.addf %480, %479 : vector<2x16xf32>
    %482 = arith.divf %480, %481 : vector<2x16xf32>
    %483 = vector.extract_strided_slice %463 {offsets = [0, 32], sizes = [2, 16], strides = [1, 1]} : vector<2x48xf32> to vector<2x16xf32>
    %484 = vector.extract_strided_slice %466 {offsets = [0, 32], sizes = [2, 16], strides = [1, 1]} : vector<2x48xf32> to vector<2x16xf32>
    %485 = arith.mulf %474, %484 : vector<2x16xf32>
    %486 = arith.addf %483, %485 : vector<2x16xf32>
    %487 = math.tanh %486 : vector<2x16xf32>
    %cst_212 = arith.constant 1.000000e+00 : f32
    %488 = vector.broadcast %cst_212 : f32 to vector<2x16xf32>
    %489 = arith.subf %488, %482 : vector<2x16xf32>
    %490 = arith.mulf %489, %487 : vector<2x16xf32>
    %491 = arith.mulf %482, %428 : vector<2x16xf32>
    %492 = arith.addf %490, %491 : vector<2x16xf32>
    %493 = vector.extract_strided_slice %462 {offsets = [0, 48], sizes = [2, 48], strides = [1, 1]} : vector<2x96xf32> to vector<2x48xf32>
    %cst_213 = arith.constant dense<0.000000e+00> : vector<2x48xf32>
    %494 = tpu.matmul %458, %134, %cst_213 {dimension_numbers = #tpu.dot_dimension_numbers<[1], [0], [0], [1], [0, 0, 1, 1], [], []>} : vector<2x16xf32>, vector<16x48xf32>, vector<2x48xf32> -> vector<2x48xf32>
    %495 = vector.broadcast %138 : vector<1x48xf32> to vector<2x48xf32>
    %496 = arith.addf %494, %495 : vector<2x48xf32>
    %497 = vector.extract_strided_slice %493 {offsets = [0, 0], sizes = [2, 16], strides = [1, 1]} : vector<2x48xf32> to vector<2x16xf32>
    %498 = vector.extract_strided_slice %496 {offsets = [0, 0], sizes = [2, 16], strides = [1, 1]} : vector<2x48xf32> to vector<2x16xf32>
    %499 = arith.addf %497, %498 : vector<2x16xf32>
    %500 = arith.negf %499 : vector<2x16xf32>
    %501 = math.exp %500 : vector<2x16xf32>
    %cst_214 = arith.constant 1.000000e+00 : f32
    %502 = vector.broadcast %cst_214 : f32 to vector<2x16xf32>
    %503 = arith.addf %502, %501 : vector<2x16xf32>
    %504 = arith.divf %502, %503 : vector<2x16xf32>
    %505 = vector.extract_strided_slice %493 {offsets = [0, 16], sizes = [2, 16], strides = [1, 1]} : vector<2x48xf32> to vector<2x16xf32>
    %506 = vector.extract_strided_slice %496 {offsets = [0, 16], sizes = [2, 16], strides = [1, 1]} : vector<2x48xf32> to vector<2x16xf32>
    %507 = arith.addf %505, %506 : vector<2x16xf32>
    %508 = arith.negf %507 : vector<2x16xf32>
    %509 = math.exp %508 : vector<2x16xf32>
    %cst_215 = arith.constant 1.000000e+00 : f32
    %510 = vector.broadcast %cst_215 : f32 to vector<2x16xf32>
    %511 = arith.addf %510, %509 : vector<2x16xf32>
    %512 = arith.divf %510, %511 : vector<2x16xf32>
    %513 = vector.extract_strided_slice %493 {offsets = [0, 32], sizes = [2, 16], strides = [1, 1]} : vector<2x48xf32> to vector<2x16xf32>
    %514 = vector.extract_strided_slice %496 {offsets = [0, 32], sizes = [2, 16], strides = [1, 1]} : vector<2x48xf32> to vector<2x16xf32>
    %515 = arith.mulf %504, %514 : vector<2x16xf32>
    %516 = arith.addf %513, %515 : vector<2x16xf32>
    %517 = math.tanh %516 : vector<2x16xf32>
    %cst_216 = arith.constant 1.000000e+00 : f32
    %518 = vector.broadcast %cst_216 : f32 to vector<2x16xf32>
    %519 = arith.subf %518, %512 : vector<2x16xf32>
    %520 = arith.mulf %519, %517 : vector<2x16xf32>
    %521 = arith.mulf %512, %458 : vector<2x16xf32>
    %522 = arith.addf %520, %521 : vector<2x16xf32>
    %c10_217 = arith.constant 10 : index
    %c0_218 = arith.constant 0 : index
    %523 = vector.load %arg25[%c10_217, %c0_218] : memref<16x32xf32, #tpu.memory_space<vmem>>, vector<2x16xf32>
    tpu.vector_store %arg25[%c10_217, %c0_218], %492 {strides = array<i32>} : memref<16x32xf32, #tpu.memory_space<vmem>>, vector<2x16xf32>,
    %c4_219 = arith.constant 4 : index
    %c16_220 = arith.constant 16 : index
    %524 = vector.load %arg25[%c4_219, %c16_220] : memref<16x32xf32, #tpu.memory_space<vmem>>, vector<2x16xf32>
    tpu.vector_store %arg25[%c4_219, %c16_220], %522 {strides = array<i32>} : memref<16x32xf32, #tpu.memory_space<vmem>>, vector<2x16xf32>,
    %c12_221 = arith.constant 12 : index
    %c0_222 = arith.constant 0 : index
    %525 = vector.load %arg24[%c12_221, %c0_222] : memref<16x96xf32, #tpu.memory_space<vmem>>, vector<2x96xf32>
    %c2_223 = arith.constant 2 : index
    %c0_224 = arith.constant 0 : index
    %526 = vector.load %arg24[%c2_223, %c0_224] : memref<16x96xf32, #tpu.memory_space<vmem>>, vector<2x96xf32>
    %527 = vector.extract_strided_slice %525 {offsets = [0, 0], sizes = [2, 48], strides = [1, 1]} : vector<2x96xf32> to vector<2x48xf32>
    %cst_225 = arith.constant dense<0.000000e+00> : vector<2x48xf32>
    %528 = tpu.matmul %492, %132, %cst_225 {dimension_numbers = #tpu.dot_dimension_numbers<[1], [0], [0], [1], [0, 0, 1, 1], [], []>} : vector<2x16xf32>, vector<16x48xf32>, vector<2x48xf32> -> vector<2x48xf32>
    %529 = vector.broadcast %136 : vector<1x48xf32> to vector<2x48xf32>
    %530 = arith.addf %528, %529 : vector<2x48xf32>
    %531 = vector.extract_strided_slice %527 {offsets = [0, 0], sizes = [2, 16], strides = [1, 1]} : vector<2x48xf32> to vector<2x16xf32>
    %532 = vector.extract_strided_slice %530 {offsets = [0, 0], sizes = [2, 16], strides = [1, 1]} : vector<2x48xf32> to vector<2x16xf32>
    %533 = arith.addf %531, %532 : vector<2x16xf32>
    %534 = arith.negf %533 : vector<2x16xf32>
    %535 = math.exp %534 : vector<2x16xf32>
    %cst_226 = arith.constant 1.000000e+00 : f32
    %536 = vector.broadcast %cst_226 : f32 to vector<2x16xf32>
    %537 = arith.addf %536, %535 : vector<2x16xf32>
    %538 = arith.divf %536, %537 : vector<2x16xf32>
    %539 = vector.extract_strided_slice %527 {offsets = [0, 16], sizes = [2, 16], strides = [1, 1]} : vector<2x48xf32> to vector<2x16xf32>
    %540 = vector.extract_strided_slice %530 {offsets = [0, 16], sizes = [2, 16], strides = [1, 1]} : vector<2x48xf32> to vector<2x16xf32>
    %541 = arith.addf %539, %540 : vector<2x16xf32>
    %542 = arith.negf %541 : vector<2x16xf32>
    %543 = math.exp %542 : vector<2x16xf32>
    %cst_227 = arith.constant 1.000000e+00 : f32
    %544 = vector.broadcast %cst_227 : f32 to vector<2x16xf32>
    %545 = arith.addf %544, %543 : vector<2x16xf32>
    %546 = arith.divf %544, %545 : vector<2x16xf32>
    %547 = vector.extract_strided_slice %527 {offsets = [0, 32], sizes = [2, 16], strides = [1, 1]} : vector<2x48xf32> to vector<2x16xf32>
    %548 = vector.extract_strided_slice %530 {offsets = [0, 32], sizes = [2, 16], strides = [1, 1]} : vector<2x48xf32> to vector<2x16xf32>
    %549 = arith.mulf %538, %548 : vector<2x16xf32>
    %550 = arith.addf %547, %549 : vector<2x16xf32>
    %551 = math.tanh %550 : vector<2x16xf32>
    %cst_228 = arith.constant 1.000000e+00 : f32
    %552 = vector.broadcast %cst_228 : f32 to vector<2x16xf32>
    %553 = arith.subf %552, %546 : vector<2x16xf32>
    %554 = arith.mulf %553, %551 : vector<2x16xf32>
    %555 = arith.mulf %546, %492 : vector<2x16xf32>
    %556 = arith.addf %554, %555 : vector<2x16xf32>
    %557 = vector.extract_strided_slice %526 {offsets = [0, 48], sizes = [2, 48], strides = [1, 1]} : vector<2x96xf32> to vector<2x48xf32>
    %cst_229 = arith.constant dense<0.000000e+00> : vector<2x48xf32>
    %558 = tpu.matmul %522, %134, %cst_229 {dimension_numbers = #tpu.dot_dimension_numbers<[1], [0], [0], [1], [0, 0, 1, 1], [], []>} : vector<2x16xf32>, vector<16x48xf32>, vector<2x48xf32> -> vector<2x48xf32>
    %559 = vector.broadcast %138 : vector<1x48xf32> to vector<2x48xf32>
    %560 = arith.addf %558, %559 : vector<2x48xf32>
    %561 = vector.extract_strided_slice %557 {offsets = [0, 0], sizes = [2, 16], strides = [1, 1]} : vector<2x48xf32> to vector<2x16xf32>
    %562 = vector.extract_strided_slice %560 {offsets = [0, 0], sizes = [2, 16], strides = [1, 1]} : vector<2x48xf32> to vector<2x16xf32>
    %563 = arith.addf %561, %562 : vector<2x16xf32>
    %564 = arith.negf %563 : vector<2x16xf32>
    %565 = math.exp %564 : vector<2x16xf32>
    %cst_230 = arith.constant 1.000000e+00 : f32
    %566 = vector.broadcast %cst_230 : f32 to vector<2x16xf32>
    %567 = arith.addf %566, %565 : vector<2x16xf32>
    %568 = arith.divf %566, %567 : vector<2x16xf32>
    %569 = vector.extract_strided_slice %557 {offsets = [0, 16], sizes = [2, 16], strides = [1, 1]} : vector<2x48xf32> to vector<2x16xf32>
    %570 = vector.extract_strided_slice %560 {offsets = [0, 16], sizes = [2, 16], strides = [1, 1]} : vector<2x48xf32> to vector<2x16xf32>
    %571 = arith.addf %569, %570 : vector<2x16xf32>
    %572 = arith.negf %571 : vector<2x16xf32>
    %573 = math.exp %572 : vector<2x16xf32>
    %cst_231 = arith.constant 1.000000e+00 : f32
    %574 = vector.broadcast %cst_231 : f32 to vector<2x16xf32>
    %575 = arith.addf %574, %573 : vector<2x16xf32>
    %576 = arith.divf %574, %575 : vector<2x16xf32>
    %577 = vector.extract_strided_slice %557 {offsets = [0, 32], sizes = [2, 16], strides = [1, 1]} : vector<2x48xf32> to vector<2x16xf32>
    %578 = vector.extract_strided_slice %560 {offsets = [0, 32], sizes = [2, 16], strides = [1, 1]} : vector<2x48xf32> to vector<2x16xf32>
    %579 = arith.mulf %568, %578 : vector<2x16xf32>
    %580 = arith.addf %577, %579 : vector<2x16xf32>
    %581 = math.tanh %580 : vector<2x16xf32>
    %cst_232 = arith.constant 1.000000e+00 : f32
    %582 = vector.broadcast %cst_232 : f32 to vector<2x16xf32>
    %583 = arith.subf %582, %576 : vector<2x16xf32>
    %584 = arith.mulf %583, %581 : vector<2x16xf32>
    %585 = arith.mulf %576, %522 : vector<2x16xf32>
    %586 = arith.addf %584, %585 : vector<2x16xf32>
    %c12_233 = arith.constant 12 : index
    %c0_234 = arith.constant 0 : index
    %587 = vector.load %arg25[%c12_233, %c0_234] : memref<16x32xf32, #tpu.memory_space<vmem>>, vector<2x16xf32>
    tpu.vector_store %arg25[%c12_233, %c0_234], %556 {strides = array<i32>} : memref<16x32xf32, #tpu.memory_space<vmem>>, vector<2x16xf32>,
    %c2_235 = arith.constant 2 : index
    %c16_236 = arith.constant 16 : index
    %588 = vector.load %arg25[%c2_235, %c16_236] : memref<16x32xf32, #tpu.memory_space<vmem>>, vector<2x16xf32>
    tpu.vector_store %arg25[%c2_235, %c16_236], %586 {strides = array<i32>} : memref<16x32xf32, #tpu.memory_space<vmem>>, vector<2x16xf32>,
    %c14_237 = arith.constant 14 : index
    %c0_238 = arith.constant 0 : index
    %589 = vector.load %arg24[%c14_237, %c0_238] : memref<16x96xf32, #tpu.memory_space<vmem>>, vector<2x96xf32>
    %c0_239 = arith.constant 0 : index
    %c0_240 = arith.constant 0 : index
    %590 = vector.load %arg24[%c0_239, %c0_240] : memref<16x96xf32, #tpu.memory_space<vmem>>, vector<2x96xf32>
    %591 = vector.extract_strided_slice %589 {offsets = [0, 0], sizes = [2, 48], strides = [1, 1]} : vector<2x96xf32> to vector<2x48xf32>
    %cst_241 = arith.constant dense<0.000000e+00> : vector<2x48xf32>
    %592 = tpu.matmul %556, %132, %cst_241 {dimension_numbers = #tpu.dot_dimension_numbers<[1], [0], [0], [1], [0, 0, 1, 1], [], []>} : vector<2x16xf32>, vector<16x48xf32>, vector<2x48xf32> -> vector<2x48xf32>
    %593 = vector.broadcast %136 : vector<1x48xf32> to vector<2x48xf32>
    %594 = arith.addf %592, %593 : vector<2x48xf32>
    %595 = vector.extract_strided_slice %591 {offsets = [0, 0], sizes = [2, 16], strides = [1, 1]} : vector<2x48xf32> to vector<2x16xf32>
    %596 = vector.extract_strided_slice %594 {offsets = [0, 0], sizes = [2, 16], strides = [1, 1]} : vector<2x48xf32> to vector<2x16xf32>
    %597 = arith.addf %595, %596 : vector<2x16xf32>
    %598 = arith.negf %597 : vector<2x16xf32>
    %599 = math.exp %598 : vector<2x16xf32>
    %cst_242 = arith.constant 1.000000e+00 : f32
    %600 = vector.broadcast %cst_242 : f32 to vector<2x16xf32>
    %601 = arith.addf %600, %599 : vector<2x16xf32>
    %602 = arith.divf %600, %601 : vector<2x16xf32>
    %603 = vector.extract_strided_slice %591 {offsets = [0, 16], sizes = [2, 16], strides = [1, 1]} : vector<2x48xf32> to vector<2x16xf32>
    %604 = vector.extract_strided_slice %594 {offsets = [0, 16], sizes = [2, 16], strides = [1, 1]} : vector<2x48xf32> to vector<2x16xf32>
    %605 = arith.addf %603, %604 : vector<2x16xf32>
    %606 = arith.negf %605 : vector<2x16xf32>
    %607 = math.exp %606 : vector<2x16xf32>
    %cst_243 = arith.constant 1.000000e+00 : f32
    %608 = vector.broadcast %cst_243 : f32 to vector<2x16xf32>
    %609 = arith.addf %608, %607 : vector<2x16xf32>
    %610 = arith.divf %608, %609 : vector<2x16xf32>
    %611 = vector.extract_strided_slice %591 {offsets = [0, 32], sizes = [2, 16], strides = [1, 1]} : vector<2x48xf32> to vector<2x16xf32>
    %612 = vector.extract_strided_slice %594 {offsets = [0, 32], sizes = [2, 16], strides = [1, 1]} : vector<2x48xf32> to vector<2x16xf32>
    %613 = arith.mulf %602, %612 : vector<2x16xf32>
    %614 = arith.addf %611, %613 : vector<2x16xf32>
    %615 = math.tanh %614 : vector<2x16xf32>
    %cst_244 = arith.constant 1.000000e+00 : f32
    %616 = vector.broadcast %cst_244 : f32 to vector<2x16xf32>
    %617 = arith.subf %616, %610 : vector<2x16xf32>
    %618 = arith.mulf %617, %615 : vector<2x16xf32>
    %619 = arith.mulf %610, %556 : vector<2x16xf32>
    %620 = arith.addf %618, %619 : vector<2x16xf32>
    %621 = vector.extract_strided_slice %590 {offsets = [0, 48], sizes = [2, 48], strides = [1, 1]} : vector<2x96xf32> to vector<2x48xf32>
    %cst_245 = arith.constant dense<0.000000e+00> : vector<2x48xf32>
    %622 = tpu.matmul %586, %134, %cst_245 {dimension_numbers = #tpu.dot_dimension_numbers<[1], [0], [0], [1], [0, 0, 1, 1], [], []>} : vector<2x16xf32>, vector<16x48xf32>, vector<2x48xf32> -> vector<2x48xf32>
    %623 = vector.broadcast %138 : vector<1x48xf32> to vector<2x48xf32>
    %624 = arith.addf %622, %623 : vector<2x48xf32>
    %625 = vector.extract_strided_slice %621 {offsets = [0, 0], sizes = [2, 16], strides = [1, 1]} : vector<2x48xf32> to vector<2x16xf32>
    %626 = vector.extract_strided_slice %624 {offsets = [0, 0], sizes = [2, 16], strides = [1, 1]} : vector<2x48xf32> to vector<2x16xf32>
    %627 = arith.addf %625, %626 : vector<2x16xf32>
    %628 = arith.negf %627 : vector<2x16xf32>
    %629 = math.exp %628 : vector<2x16xf32>
    %cst_246 = arith.constant 1.000000e+00 : f32
    %630 = vector.broadcast %cst_246 : f32 to vector<2x16xf32>
    %631 = arith.addf %630, %629 : vector<2x16xf32>
    %632 = arith.divf %630, %631 : vector<2x16xf32>
    %633 = vector.extract_strided_slice %621 {offsets = [0, 16], sizes = [2, 16], strides = [1, 1]} : vector<2x48xf32> to vector<2x16xf32>
    %634 = vector.extract_strided_slice %624 {offsets = [0, 16], sizes = [2, 16], strides = [1, 1]} : vector<2x48xf32> to vector<2x16xf32>
    %635 = arith.addf %633, %634 : vector<2x16xf32>
    %636 = arith.negf %635 : vector<2x16xf32>
    %637 = math.exp %636 : vector<2x16xf32>
    %cst_247 = arith.constant 1.000000e+00 : f32
    %638 = vector.broadcast %cst_247 : f32 to vector<2x16xf32>
    %639 = arith.addf %638, %637 : vector<2x16xf32>
    %640 = arith.divf %638, %639 : vector<2x16xf32>
    %641 = vector.extract_strided_slice %621 {offsets = [0, 32], sizes = [2, 16], strides = [1, 1]} : vector<2x48xf32> to vector<2x16xf32>
    %642 = vector.extract_strided_slice %624 {offsets = [0, 32], sizes = [2, 16], strides = [1, 1]} : vector<2x48xf32> to vector<2x16xf32>
    %643 = arith.mulf %632, %642 : vector<2x16xf32>
    %644 = arith.addf %641, %643 : vector<2x16xf32>
    %645 = math.tanh %644 : vector<2x16xf32>
    %cst_248 = arith.constant 1.000000e+00 : f32
    %646 = vector.broadcast %cst_248 : f32 to vector<2x16xf32>
    %647 = arith.subf %646, %640 : vector<2x16xf32>
    %648 = arith.mulf %647, %645 : vector<2x16xf32>
    %649 = arith.mulf %640, %586 : vector<2x16xf32>
    %650 = arith.addf %648, %649 : vector<2x16xf32>
    %c14_249 = arith.constant 14 : index
    %c0_250 = arith.constant 0 : index
    %651 = vector.load %arg25[%c14_249, %c0_250] : memref<16x32xf32, #tpu.memory_space<vmem>>, vector<2x16xf32>
    tpu.vector_store %arg25[%c14_249, %c0_250], %620 {strides = array<i32>} : memref<16x32xf32, #tpu.memory_space<vmem>>, vector<2x16xf32>,
    %c0_251 = arith.constant 0 : index
    %c16_252 = arith.constant 16 : index
    %652 = vector.load %arg25[%c0_251, %c16_252] : memref<16x32xf32, #tpu.memory_space<vmem>>, vector<2x16xf32>
    tpu.vector_store %arg25[%c0_251, %c16_252], %650 {strides = array<i32>} : memref<16x32xf32, #tpu.memory_space<vmem>>, vector<2x16xf32>,
    %c0_253 = arith.constant 0 : index
    %c0_254 = arith.constant 0 : index
    %653 = vector.load %arg25[%c0_253, %c0_254] : memref<16x32xf32, #tpu.memory_space<vmem>>, vector<16x32xf32>
    %c0_255 = arith.constant 0 : index
    %c0_256 = arith.constant 0 : index
    %654 = vector.load %arg17[%c0_255, %c0_256] : memref<32x16xf32, #tpu.memory_space<vmem>>, vector<32x16xf32>
    %cst_257 = arith.constant dense<0.000000e+00> : vector<16x16xf32>
    %655 = tpu.matmul %653, %654, %cst_257 {dimension_numbers = #tpu.dot_dimension_numbers<[1], [0], [0], [1], [0, 0, 1, 1], [], []>} : vector<16x32xf32>, vector<32x16xf32>, vector<16x16xf32> -> vector<16x16xf32>
    %c0_258 = arith.constant 0 : index
    %c0_259 = arith.constant 0 : index
    %656 = vector.load %arg18[%c0_258, %c0_259] : memref<1x16xf32, #tpu.memory_space<vmem>>, vector<1x16xf32>
    %657 = vector.broadcast %656 : vector<1x16xf32> to vector<16x16xf32>
    %658 = arith.addf %655, %657 : vector<16x16xf32>
    %c0_260 = arith.constant 0 : index
    %c0_261 = arith.constant 0 : index
    %659 = vector.load %arg21[%c0_260, %c0_261] : memref<16x16xf32, #tpu.memory_space<vmem>>, vector<16x16xf32>
    tpu.vector_store %arg21[%c0_260, %c0_261], %658 {strides = array<i32>} : memref<16x16xf32, #tpu.memory_space<vmem>>, vector<16x16xf32>,
    %c0_262 = arith.constant 0 : index
    %c0_263 = arith.constant 0 : index
    %660 = vector.load %arg19[%c0_262, %c0_263] : memref<16x16xf32, #tpu.memory_space<vmem>>, vector<16x16xf32>
    %cst_264 = arith.constant dense<0.000000e+00> : vector<16x16xf32>
    %661 = tpu.matmul %658, %660, %cst_264 {dimension_numbers = #tpu.dot_dimension_numbers<[1], [0], [0], [1], [0, 0, 1, 1], [], []>} : vector<16x16xf32>, vector<16x16xf32>, vector<16x16xf32> -> vector<16x16xf32>
    %c0_265 = arith.constant 0 : index
    %c0_266 = arith.constant 0 : index
    %662 = vector.load %arg20[%c0_265, %c0_266] : memref<1x16xf32, #tpu.memory_space<vmem>>, vector<1x16xf32>
    %663 = vector.broadcast %662 : vector<1x16xf32> to vector<16x16xf32>
    %664 = arith.addf %661, %663 : vector<16x16xf32>
    %c0_267 = arith.constant 0 : index
    %c0_268 = arith.constant 0 : index
    %665 = vector.load %arg22[%c0_267, %c0_268] : memref<16x16xf32, #tpu.memory_space<vmem>>, vector<16x16xf32>
    tpu.vector_store %arg22[%c0_267, %c0_268], %664 {strides = array<i32>} : memref<16x16xf32, #tpu.memory_space<vmem>>, vector<16x16xf32>,
    return
  }
}

</mosaic_0001>

<llo_original>
// kernel: net2_forward.3
$region0: #{net2_forward.3}
  #allocation0 [shape = 'u32[]', space=smem, size = 0x4, offset = 0x4, fixed_abs, tag = 'smem constant byte address 0x4 - core index']
  #allocation1 [shape = 'u32[144,128]{1,0:T(1,128)}', space=vmem, size = 0x12000, scoped, tag = 'internal scratch']
  #allocation2 [shape = 'f32[24,64]{1,0:T(8,128)}', space=vmem, size = 0x3000, scoped, tag = 'scratch operand']
  #allocation3 [shape = 'f32[16,96]{1,0:T(8,128)}', space=vmem, size = 0x2000, scoped, tag = 'scratch operand']
  #allocation4 [shape = 'f32[16,32]{1,0:T(8,128)}', space=vmem, size = 0x2000, scoped, tag = 'scratch operand']
  %s0 = inlined_call_operand.vmem [shape: f32[16,16], index: 0, kind: input, shape index: {}]
  %s1 = inlined_call_operand.vmem [shape: f32[64,64], index: 1, kind: input, shape index: {}]
  %s2 = inlined_call_operand.vmem [shape: f32[1,64], index: 2, kind: input, shape index: {}]
  %s3 = inlined_call_operand.vmem [shape: f32[192,16], index: 3, kind: input, shape index: {}]
  %s4 = inlined_call_operand.vmem [shape: f32[1,16], index: 4, kind: input, shape index: {}]
  %s5 = inlined_call_operand.vmem [shape: f32[48,16], index: 5, kind: input, shape index: {}]
  %s6 = inlined_call_operand.vmem [shape: f32[1,16], index: 6, kind: input, shape index: {}]
  %s7 = inlined_call_operand.vmem [shape: f32[2,16,32], index: 7, kind: input, shape index: {}]
  %s8 = inlined_call_operand.vmem [shape: f32[2,1,32], index: 8, kind: input, shape index: {}]
  %s9 = inlined_call_operand.vmem [shape: f32[16,96], index: 9, kind: input, shape index: {}]
  %s10 = inlined_call_operand.vmem [shape: f32[1,96], index: 10, kind: input, shape index: {}]
  %s11 = inlined_call_operand.vmem [shape: f32[2,16,48], index: 11, kind: input, shape index: {}]
  %s12 = inlined_call_operand.vmem [shape: f32[2,1,48], index: 12, kind: input, shape index: {}]
  %s13 = inlined_call_operand.vmem [shape: f32[32,33], index: 13, kind: input, shape index: {}]
  %s14 = inlined_call_operand.vmem [shape: f32[1,33], index: 14, kind: input, shape index: {}]
  %s15 = inlined_call_operand.vmem [shape: f32[16,33], index: 15, kind: output, shape index: {}]
  %s16 = sld [smem:[#allocation0]]
  $region70: #{net2_forward.3} parent=0
    _
  %s18 = ssub.s32 1, %s16
  %s19 = scalar_select 0, %s18, %s16
  // Predicated region
  $region2: #{net2_forward.3} parent=0 // pred_check
    _
  $region3: #{net2_forward.3} parent=0 // pred_check_branch
    %21 = sbr.rel (0) target = $region5
  $region4: #{net2_forward.3} parent=0 // pred_region
    _
  $region5: #{net2_forward.3} parent=0 // pred_fallthru
    _
  // Predicated region
  $region6: #{net2_forward.3} parent=0 // pred_check
    _
  $region7: #{net2_forward.3} parent=0 // pred_check_branch
    %23 = sbr.rel (0) target = $region9
  $region8: #{net2_forward.3} parent=0 // pred_region
    _
  $region9: #{net2_forward.3} parent=0 // pred_fallthru
    _
  // Predicated region
  $region10: #{net2_forward.3} parent=0 // pred_check
    _
  $region11: #{net2_forward.3} parent=0 // pred_check_branch
    %25 = sbr.rel (0) target = $region13
  $region12: #{net2_forward.3} parent=0 // pred_region
    _
  $region13: #{net2_forward.3} parent=0 // pred_fallthru
    _
  // Predicated region
  $region14: #{net2_forward.3} parent=0 // pred_check
    _
  $region15: #{net2_forward.3} parent=0 // pred_check_branch
    %27 = sbr.rel (0) target = $region17
  $region16: #{net2_forward.3} parent=0 // pred_region
    _
  $region17: #{net2_forward.3} parent=0 // pred_fallthru
    _
  // Predicated region
  $region18: #{net2_forward.3} parent=0 // pred_check
    _
  $region19: #{net2_forward.3} parent=0 // pred_check_branch
    %29 = sbr.rel (0) target = $region21
  $region20: #{net2_forward.3} parent=0 // pred_region
    _
  $region21: #{net2_forward.3} parent=0 // pred_fallthru
    _
  // Predicated region
  $region22: #{net2_forward.3} parent=0 // pred_check
    _
  $region23: #{net2_forward.3} parent=0 // pred_check_branch
    %31 = sbr.rel (0) target = $region25
  $region24: #{net2_forward.3} parent=0 // pred_region
    _
  $region25: #{net2_forward.3} parent=0 // pred_fallthru
    _
  // Predicated region
  $region26: #{net2_forward.3} parent=0 // pred_check
    _
  $region27: #{net2_forward.3} parent=0 // pred_check_branch
    %33 = sbr.rel (0) target = $region29
  $region28: #{net2_forward.3} parent=0 // pred_region
    _
  $region29: #{net2_forward.3} parent=0 // pred_fallthru
    _
  // Predicated region
  $region30: #{net2_forward.3} parent=0 // pred_check
    _
  $region31: #{net2_forward.3} parent=0 // pred_check_branch
    %35 = sbr.rel (0) target = $region33
  $region32: #{net2_forward.3} parent=0 // pred_region
    _
  $region33: #{net2_forward.3} parent=0 // pred_fallthru
    _
  // Predicated region
  $region34: #{net2_forward.3} parent=0 // pred_check
    _
  $region35: #{net2_forward.3} parent=0 // pred_check_branch
    %37 = sbr.rel (0) target = $region37
  $region36: #{net2_forward.3} parent=0 // pred_region
    _
  $region37: #{net2_forward.3} parent=0 // pred_fallthru
    _
  // Predicated region
  $region38: #{net2_forward.3} parent=0 // pred_check
    _
  $region39: #{net2_forward.3} parent=0 // pred_check_branch
    %39 = sbr.rel (0) target = $region41
  $region40: #{net2_forward.3} parent=0 // pred_region
    _
  $region41: #{net2_forward.3} parent=0 // pred_fallthru
    _
  // Predicated region
  $region42: #{net2_forward.3} parent=0 // pred_check
    _
  $region43: #{net2_forward.3} parent=0 // pred_check_branch
    %41 = sbr.rel (0) target = $region45
  $region44: #{net2_forward.3} parent=0 // pred_region
    _
  $region45: #{net2_forward.3} parent=0 // pred_fallthru
    _
  // Predicated region
  $region46: #{net2_forward.3} parent=0 // pred_check
    _
  $region47: #{net2_forward.3} parent=0 // pred_check_branch
    %43 = sbr.rel (0) target = $region49
  $region48: #{net2_forward.3} parent=0 // pred_region
    _
  $region49: #{net2_forward.3} parent=0 // pred_fallthru
    _
  // Predicated region
  $region50: #{net2_forward.3} parent=0 // pred_check
    _
  $region51: #{net2_forward.3} parent=0 // pred_check_branch
    %45 = sbr.rel (0) target = $region53
  $region52: #{net2_forward.3} parent=0 // pred_region
    _
  $region53: #{net2_forward.3} parent=0 // pred_fallthru
    _
  // Predicated region
  $region54: #{net2_forward.3} parent=0 // pred_check
    _
  $region55: #{net2_forward.3} parent=0 // pred_check_branch
    %47 = sbr.rel (0) target = $region57
  $region56: #{net2_forward.3} parent=0 // pred_region
    _
  $region57: #{net2_forward.3} parent=0 // pred_fallthru
    _
  // Predicated region
  $region58: #{net2_forward.3} parent=0 // pred_check
    _
  $region59: #{net2_forward.3} parent=0 // pred_check_branch
    %49 = sbr.rel (0) target = $region61
  $region60: #{net2_forward.3} parent=0 // pred_region
    _
  $region61: #{net2_forward.3} parent=0 // pred_fallthru
    _
  %v50 = vld [vmem:[%s0] sm:$0xff]
  %v51 = vld [vmem:[%s0 + $0x8] sm:$0xff]
  %vm52 = vcmask 125952
  %53 = vst.msk [vmem:[#allocation2] sm:$0xf] %vm52, 0.0
  %vm54 = vcmask 130048
  %55 = vst.msk [vmem:[#allocation2 + $0x4] sm:$0xff] %vm54, %v50
  %56 = vst.msk [vmem:[#allocation2 + $0xc] sm:$0xff] %vm54, %v51
  %57 = vst.msk [vmem:[#allocation2 + $0x14] sm:$0xf] %vm52, 0.0
  %v58 = vld [vmem:[%s2] sm:$0x1]
  %v59 = vld [vmem:[#allocation2] sm:$0xff]
  %v60 = vld [vmem:[#allocation2 + $0x8] sm:$0xff]
  %v61 = vld [vmem:[%s1] sm:$0xff]
  %v62 = vld [vmem:[%s1 + $0x8] sm:$0xff]
  %v64 = vsel %vm54, %v59, 0
  %v67 = vsel %vm54, %v60, 0
  %69 = vmatprep.subr.mxu0 0.0
  %70 = vmatpush1.msra.mxu0 0.0
  %71 = vmatprep.subr.mxu0 0.0
  %72 = vmatpush1.msra.mxu0 0.0
  %73 = vmatprep.subr.mxu0 0.0
  %74 = vmatpush1.msra.mxu0 0.0
  %75 = vmatprep.subr.mxu0 0.0
  %76 = vmatpush1.msra.mxu0 0.0
  %77 = vmatprep.subr.mxu0 0.0
  %78 = vmatpush1.msra.mxu0 0.0
  %79 = vmatprep.subr.mxu0 0.0
  %80 = vmatpush1.msra.mxu0 0.0
  %81 = vmatprep.subr.mxu0 0.0
  %82 = vmatpush1.msra.mxu0 0.0
  %83 = vmatprep.subr.mxu0 0.0
  %84 = vmatpush1.msra.mxu0 0.0
  %85 = vmatprep.subr.mxu0 0.0
  %86 = vmatpush1.msra.mxu0 0.0
  %87 = vmatprep.subr.mxu0 0.0
  %88 = vmatpush1.msra.mxu0 0.0
  %89 = vmatprep.subr.mxu0 0.0
  %90 = vmatpush1.msra.mxu0 0.0
  %91 = vmatprep.subr.mxu0 0.0
  %92 = vmatpush1.msra.mxu0 0.0
  %93 = vmatprep.subr.mxu0 0.0
  %94 = vmatpush1.msra.mxu0 0.0
  %95 = vmatprep.subr.mxu0 0.0
  %96 = vmatpush1.msra.mxu0 0.0
  %97 = vmatprep.subr.mxu0 0.0
  %98 = vmatpush1.msra.mxu0 %v62
  %99 = vmatprep.subr.mxu0 0.0
  %100 = vmatpush1.msra.mxu0 %v61
  %101 = vmatprep.subr.mxu0 0.0
  %102 = vmatpush2.msra.mxu0 0.0
  %103 = vmatprep.subr.mxu0 0.0
  %104 = vmatpush2.msra.mxu0 0.0
  %105 = vmatprep.subr.mxu0 0.0
  %106 = vmatpush2.msra.mxu0 0.0
  %107 = vmatprep.subr.mxu0 0.0
  %108 = vmatpush2.msra.mxu0 0.0
  %109 = vmatprep.subr.mxu0 0.0
  %110 = vmatpush2.msra.mxu0 0.0
  %111 = vmatprep.subr.mxu0 0.0
  %112 = vmatpush2.msra.mxu0 0.0
  %113 = vmatprep.subr.mxu0 0.0
  %114 = vmatpush2.msra.mxu0 0.0
  %115 = vmatprep.subr.mxu0 0.0
  %116 = vmatpush2.msra.mxu0 0.0
  %117 = vmatprep.subr.mxu0 0.0
  %118 = vmatpush2.msra.mxu0 0.0
  %119 = vmatprep.subr.mxu0 0.0
  %120 = vmatpush2.msra.mxu0 0.0
  %121 = vmatprep.subr.mxu0 0.0
  %122 = vmatpush2.msra.mxu0 0.0
  %123 = vmatprep.subr.mxu0 0.0
  %124 = vmatpush2.msra.mxu0 0.0
  %125 = vmatprep.subr.mxu0 0.0
  %126 = vmatpush2.msra.mxu0 0.0
  %127 = vmatprep.subr.mxu0 0.0
  %128 = vmatpush2.msra.mxu0 0.0
  %129 = vmatprep.subr.mxu0 0.0
  %130 = vmatpush2.msra.mxu0 0.0
  %131 = vmatprep.subr.mxu0 0.0
  %132 = vmatpush2.msra.mxu0 0.0
  %133 = vmatprep.mubr.f32.mxu0 0.0
  %134 = vmatmul.mubr.f32.gmra.mxu0 %v64
  %v135 = vpop.f32.mrf.mxu0
  %v136 = vadd.f32 0.0, %v135
  %v137 = vpop.f32.mrf.mxu0
  %138 = vmatprep.mubr.f32.mxu0 0.0
  %139 = vmatmul.mubr.f32.gmra.mxu0 %v67
  %v140 = vpop.f32.mrf.mxu0
  %v141 = vadd.f32 0.0, %v140
  %v142 = vpop.f32.mrf.mxu0
  %143 = vdwg.mxu0
  %v145 = vlaneseq
  %v146 = vshrl.u32 %v145, 7
  %v147 = vsub.s32 0, %v146
  %v148 = vrot.slane %v58, %v147
  %v150 = vadd.f32 %v148, %v136
  %v151 = vadd.f32 %v148, %v141
  %v152 = vld [vmem:[#allocation2 + $0x2] sm:$0xff]
  %v153 = vld [vmem:[#allocation2 + $0xa] sm:$0xff]
  %v154 = vld [vmem:[%s1 + $0x10] sm:$0xff]
  %v155 = vld [vmem:[%s1 + $0x18] sm:$0xff]
  %v157 = vsel %vm54, %v152, 0
  %v160 = vsel %vm54, %v153, 0
  %162 = vmatprep.subr.mxu0 0.0
  %163 = vmatpush1.msra.mxu0 0.0
  %164 = vmatprep.subr.mxu0 0.0
  %165 = vmatpush1.msra.mxu0 0.0
  %166 = vmatprep.subr.mxu0 0.0
  %167 = vmatpush1.msra.mxu0 0.0
  %168 = vmatprep.subr.mxu0 0.0
  %169 = vmatpush1.msra.mxu0 0.0
  %170 = vmatprep.subr.mxu0 0.0
  %171 = vmatpush1.msra.mxu0 0.0
  %172 = vmatprep.subr.mxu0 0.0
  %173 = vmatpush1.msra.mxu0 0.0
  %174 = vmatprep.subr.mxu0 0.0
  %175 = vmatpush1.msra.mxu0 0.0
  %176 = vmatprep.subr.mxu0 0.0
  %177 = vmatpush1.msra.mxu0 0.0
  %178 = vmatprep.subr.mxu0 0.0
  %179 = vmatpush1.msra.mxu0 0.0
  %180 = vmatprep.subr.mxu0 0.0
  %181 = vmatpush1.msra.mxu0 0.0
  %182 = vmatprep.subr.mxu0 0.0
  %183 = vmatpush1.msra.mxu0 0.0
  %184 = vmatprep.subr.mxu0 0.0
  %185 = vmatpush1.msra.mxu0 0.0
  %186 = vmatprep.subr.mxu0 0.0
  %187 = vmatpush1.msra.mxu0 0.0
  %188 = vmatprep.subr.mxu0 0.0
  %189 = vmatpush1.msra.mxu0 0.0
  %190 = vmatprep.subr.mxu0 0.0
  %191 = vmatpush1.msra.mxu0 %v155
  %192 = vmatprep.subr.mxu0 0.0
  %193 = vmatpush1.msra.mxu0 %v154
  %194 = vmatprep.subr.mxu0 0.0
  %195 = vmatpush2.msra.mxu0 0.0
  %196 = vmatprep.subr.mxu0 0.0
  %197 = vmatpush2.msra.mxu0 0.0
  %198 = vmatprep.subr.mxu0 0.0
  %199 = vmatpush2.msra.mxu0 0.0
  %200 = vmatprep.subr.mxu0 0.0
  %201 = vmatpush2.msra.mxu0 0.0
  %202 = vmatprep.subr.mxu0 0.0
  %203 = vmatpush2.msra.mxu0 0.0
  %204 = vmatprep.subr.mxu0 0.0
  %205 = vmatpush2.msra.mxu0 0.0
  %206 = vmatprep.subr.mxu0 0.0
  %207 = vmatpush2.msra.mxu0 0.0
  %208 = vmatprep.subr.mxu0 0.0
  %209 = vmatpush2.msra.mxu0 0.0
  %210 = vmatprep.subr.mxu0 0.0
  %211 = vmatpush2.msra.mxu0 0.0
  %212 = vmatprep.subr.mxu0 0.0
  %213 = vmatpush2.msra.mxu0 0.0
  %214 = vmatprep.subr.mxu0 0.0
  %215 = vmatpush2.msra.mxu0 0.0
  %216 = vmatprep.subr.mxu0 0.0
  %217 = vmatpush2.msra.mxu0 0.0
  %218 = vmatprep.subr.mxu0 0.0
  %219 = vmatpush2.msra.mxu0 0.0
  %220 = vmatprep.subr.mxu0 0.0
  %221 = vmatpush2.msra.mxu0 0.0
  %222 = vmatprep.subr.mxu0 0.0
  %223 = vmatpush2.msra.mxu0 0.0
  %224 = vmatprep.subr.mxu0 0.0
  %225 = vmatpush2.msra.mxu0 0.0
  %226 = vmatprep.mubr.f32.mxu0 0.0
  %227 = vmatmul.mubr.f32.gmra.mxu0 %v157
  %v228 = vpop.f32.mrf.mxu0
  %v229 = vadd.f32 0.0, %v228
  %v230 = vpop.f32.mrf.mxu0
  %231 = vmatprep.mubr.f32.mxu0 0.0
  %232 = vmatmul.mubr.f32.gmra.mxu0 %v160
  %v233 = vpop.f32.mrf.mxu0
  %v234 = vadd.f32 0.0, %v233
  %v235 = vpop.f32.mrf.mxu0
  %236 = vdwg.mxu0
  %v237 = vadd.f32 %v150, %v229
  %v238 = vadd.f32 %v151, %v234
  %v239 = vld [vmem:[#allocation2 + $0x4] sm:$0xff]
  %v240 = vld [vmem:[#allocation2 + $0xc] sm:$0xff]
  %v241 = vld [vmem:[%s1 + $0x20] sm:$0xff]
  %v242 = vld [vmem:[%s1 + $0x28] sm:$0xff]
  %v244 = vsel %vm54, %v239, 0
  %v247 = vsel %vm54, %v240, 0
  %249 = vmatprep.subr.mxu0 0.0
  %250 = vmatpush1.msra.mxu0 0.0
  %251 = vmatprep.subr.mxu0 0.0
  %252 = vmatpush1.msra.mxu0 0.0
  %253 = vmatprep.subr.mxu0 0.0
  %254 = vmatpush1.msra.mxu0 0.0
  %255 = vmatprep.subr.mxu0 0.0
  %256 = vmatpush1.msra.mxu0 0.0
  %257 = vmatprep.subr.mxu0 0.0
  %258 = vmatpush1.msra.mxu0 0.0
  %259 = vmatprep.subr.mxu0 0.0
  %260 = vmatpush1.msra.mxu0 0.0
  %261 = vmatprep.subr.mxu0 0.0
  %262 = vmatpush1.msra.mxu0 0.0
  %263 = vmatprep.subr.mxu0 0.0
  %264 = vmatpush1.msra.mxu0 0.0
  %265 = vmatprep.subr.mxu0 0.0
  %266 = vmatpush1.msra.mxu0 0.0
  %267 = vmatprep.subr.mxu0 0.0
  %268 = vmatpush1.msra.mxu0 0.0
  %269 = vmatprep.subr.mxu0 0.0
  %270 = vmatpush1.msra.mxu0 0.0
  %271 = vmatprep.subr.mxu0 0.0
  %272 = vmatpush1.msra.mxu0 0.0
  %273 = vmatprep.subr.mxu0 0.0
  %274 = vmatpush1.msra.mxu0 0.0
  %275 = vmatprep.subr.mxu0 0.0
  %276 = vmatpush1.msra.mxu0 0.0
  %277 = vmatprep.subr.mxu0 0.0
  %278 = vmatpush1.msra.mxu0 %v242
  %279 = vmatprep.subr.mxu0 0.0
  %280 = vmatpush1.msra.mxu0 %v241
  %281 = vmatprep.subr.mxu0 0.0
  %282 = vmatpush2.msra.mxu0 0.0
  %283 = vmatprep.subr.mxu0 0.0
  %284 = vmatpush2.msra.mxu0 0.0
  %285 = vmatprep.subr.mxu0 0.0
  %286 = vmatpush2.msra.mxu0 0.0
  %287 = vmatprep.subr.mxu0 0.0
  %288 = vmatpush2.msra.mxu0 0.0
  %289 = vmatprep.subr.mxu0 0.0
  %290 = vmatpush2.msra.mxu0 0.0
  %291 = vmatprep.subr.mxu0 0.0
  %292 = vmatpush2.msra.mxu0 0.0
  %293 = vmatprep.subr.mxu0 0.0
  %294 = vmatpush2.msra.mxu0 0.0
  %295 = vmatprep.subr.mxu0 0.0
  %296 = vmatpush2.msra.mxu0 0.0
  %297 = vmatprep.subr.mxu0 0.0
  %298 = vmatpush2.msra.mxu0 0.0
  %299 = vmatprep.subr.mxu0 0.0
  %300 = vmatpush2.msra.mxu0 0.0
  %301 = vmatprep.subr.mxu0 0.0
  %302 = vmatpush2.msra.mxu0 0.0
  %303 = vmatprep.subr.mxu0 0.0
  %304 = vmatpush2.msra.mxu0 0.0
  %305 = vmatprep.subr.mxu0 0.0
  %306 = vmatpush2.msra.mxu0 0.0
  %307 = vmatprep.subr.mxu0 0.0
  %308 = vmatpush2.msra.mxu0 0.0
  %309 = vmatprep.subr.mxu0 0.0
  %310 = vmatpush2.msra.mxu0 0.0
  %311 = vmatprep.subr.mxu0 0.0
  %312 = vmatpush2.msra.mxu0 0.0
  %313 = vmatprep.mubr.f32.mxu0 0.0
  %314 = vmatmul.mubr.f32.gmra.mxu0 %v244
  %v315 = vpop.f32.mrf.mxu0
  %v316 = vadd.f32 0.0, %v315
  %v317 = vpop.f32.mrf.mxu0
  %318 = vmatprep.mubr.f32.mxu0 0.0
  %319 = vmatmul.mubr.f32.gmra.mxu0 %v247
  %v320 = vpop.f32.mrf.mxu0
  %v321 = vadd.f32 0.0, %v320
  %v322 = vpop.f32.mrf.mxu0
  %323 = vdwg.mxu0
  %v324 = vadd.f32 %v237, %v316
  %v325 = vadd.f32 %v238, %v321
  %v326 = vld [vmem:[#allocation2 + $0x6] sm:$0xff]
  %v327 = vld [vmem:[#allocation2 + $0xe] sm:$0xff]
  %v328 = vld [vmem:[%s1 + $0x30] sm:$0xff]
  %v329 = vld [vmem:[%s1 + $0x38] sm:$0xff]
  %v331 = vsel %vm54, %v326, 0
  %v334 = vsel %vm54, %v327, 0
  %336 = vmatprep.subr.mxu0 0.0
  %337 = vmatpush1.msra.mxu0 0.0
  %338 = vmatprep.subr.mxu0 0.0
  %339 = vmatpush1.msra.mxu0 0.0
  %340 = vmatprep.subr.mxu0 0.0
  %341 = vmatpush1.msra.mxu0 0.0
  %342 = vmatprep.subr.mxu0 0.0
  %343 = vmatpush1.msra.mxu0 0.0
  %344 = vmatprep.subr.mxu0 0.0
  %345 = vmatpush1.msra.mxu0 0.0
  %346 = vmatprep.subr.mxu0 0.0
  %347 = vmatpush1.msra.mxu0 0.0
  %348 = vmatprep.subr.mxu0 0.0
  %349 = vmatpush1.msra.mxu0 0.0
  %350 = vmatprep.subr.mxu0 0.0
  %351 = vmatpush1.msra.mxu0 0.0
  %352 = vmatprep.subr.mxu0 0.0
  %353 = vmatpush1.msra.mxu0 0.0
  %354 = vmatprep.subr.mxu0 0.0
  %355 = vmatpush1.msra.mxu0 0.0
  %356 = vmatprep.subr.mxu0 0.0
  %357 = vmatpush1.msra.mxu0 0.0
  %358 = vmatprep.subr.mxu0 0.0
  %359 = vmatpush1.msra.mxu0 0.0
  %360 = vmatprep.subr.mxu0 0.0
  %361 = vmatpush1.msra.mxu0 0.0
  %362 = vmatprep.subr.mxu0 0.0
  %363 = vmatpush1.msra.mxu0 0.0
  %364 = vmatprep.subr.mxu0 0.0
  %365 = vmatpush1.msra.mxu0 %v329
  %366 = vmatprep.subr.mxu0 0.0
  %367 = vmatpush1.msra.mxu0 %v328
  %368 = vmatprep.subr.mxu0 0.0
  %369 = vmatpush2.msra.mxu0 0.0
  %370 = vmatprep.subr.mxu0 0.0
  %371 = vmatpush2.msra.mxu0 0.0
  %372 = vmatprep.subr.mxu0 0.0
  %373 = vmatpush2.msra.mxu0 0.0
  %374 = vmatprep.subr.mxu0 0.0
  %375 = vmatpush2.msra.mxu0 0.0
  %376 = vmatprep.subr.mxu0 0.0
  %377 = vmatpush2.msra.mxu0 0.0
  %378 = vmatprep.subr.mxu0 0.0
  %379 = vmatpush2.msra.mxu0 0.0
  %380 = vmatprep.subr.mxu0 0.0
  %381 = vmatpush2.msra.mxu0 0.0
  %382 = vmatprep.subr.mxu0 0.0
  %383 = vmatpush2.msra.mxu0 0.0
  %384 = vmatprep.subr.mxu0 0.0
  %385 = vmatpush2.msra.mxu0 0.0
  %386 = vmatprep.subr.mxu0 0.0
  %387 = vmatpush2.msra.mxu0 0.0
  %388 = vmatprep.subr.mxu0 0.0
  %389 = vmatpush2.msra.mxu0 0.0
  %390 = vmatprep.subr.mxu0 0.0
  %391 = vmatpush2.msra.mxu0 0.0
  %392 = vmatprep.subr.mxu0 0.0
  %393 = vmatpush2.msra.mxu0 0.0
  %394 = vmatprep.subr.mxu0 0.0
  %395 = vmatpush2.msra.mxu0 0.0
  %396 = vmatprep.subr.mxu0 0.0
  %397 = vmatpush2.msra.mxu0 0.0
  %398 = vmatprep.subr.mxu0 0.0
  %399 = vmatpush2.msra.mxu0 0.0
  %400 = vmatprep.mubr.f32.mxu0 0.0
  %401 = vmatmul.mubr.f32.gmra.mxu0 %v331
  %v402 = vpop.f32.mrf.mxu0
  %v403 = vadd.f32 0.0, %v402
  %v404 = vpop.f32.mrf.mxu0
  %405 = vmatprep.mubr.f32.mxu0 0.0
  %406 = vmatmul.mubr.f32.gmra.mxu0 %v334
  %v407 = vpop.f32.mrf.mxu0
  %v408 = vadd.f32 0.0, %v407
  %v409 = vpop.f32.mrf.mxu0
  %410 = vdwg.mxu0
  %v411 = vadd.f32 %v324, %v403
  %v412 = vadd.f32 %v325, %v408
  %v413 = vmax.f32 %v411, 0.0
  %v414 = vmax.f32 %v412, 0.0
  %vm415 = vcmask 519168
  %416 = vst.msk [vmem:[#allocation2] sm:$0xf] %vm415, -inf
  %vm417 = vcmask 523264
  %418 = vst.msk [vmem:[#allocation2 + $0x4] sm:$0xff] %vm417, %v413
  %419 = vst.msk [vmem:[#allocation2 + $0xc] sm:$0xff] %vm417, %v414
  %v420 = vld [vmem:[#allocation2 + $0x2] sm:$0xff]
  %v421 = vld [vmem:[#allocation2 + $0xa] sm:$0xff]
  %v422 = vmax.f32 %v413, %v420
  %v423 = vmax.f32 %v414, %v421
  %424 = vst.msk [vmem:[#allocation2] sm:$0xf] %vm415, 0.0
  %425 = vst.msk [vmem:[#allocation2 + $0x4] sm:$0xff] %vm417, %v422
  %426 = vst.msk [vmem:[#allocation2 + $0xc] sm:$0xff] %vm417, %v423
  %427 = vst.msk [vmem:[#allocation2 + $0x14] sm:$0xf] %vm415, 0.0
  %v428 = vld [vmem:[%s4] sm:$0x1]
  %v429 = vld [vmem:[#allocation2 + $0x2] sm:$0xff]
  %v430 = vld [vmem:[#allocation2 + $0xa] sm:$0xff]
  %v431 = vld [vmem:[%s3] sm:$0xff]
  %v432 = vld [vmem:[%s3 + $0x8] sm:$0xff]
  %v433 = vld [vmem:[%s3 + $0x10] sm:$0xff]
  %v434 = vld [vmem:[%s3 + $0x18] sm:$0xff]
  %v435 = vld [vmem:[%s3 + $0x20] sm:$0xff]
  %v436 = vld [vmem:[%s3 + $0x28] sm:$0xff]
  %v437 = vld [vmem:[%s3 + $0x30] sm:$0xff]
  %v438 = vld [vmem:[%s3 + $0x38] sm:$0xff]
  %v440 = vsel %vm417, %v429, 0
  %v443 = vsel %vm417, %v430, 0
  %445 = vmatprep.subr.mxu0 0.0
  %446 = vmatpush1.msra.mxu0 0.0
  %447 = vmatprep.subr.mxu0 0.0
  %448 = vmatpush1.msra.mxu0 0.0
  %449 = vmatprep.subr.mxu0 0.0
  %450 = vmatpush1.msra.mxu0 0.0
  %451 = vmatprep.subr.mxu0 0.0
  %452 = vmatpush1.msra.mxu0 0.0
  %453 = vmatprep.subr.mxu0 0.0
  %454 = vmatpush1.msra.mxu0 0.0
  %455 = vmatprep.subr.mxu0 0.0
  %456 = vmatpush1.msra.mxu0 0.0
  %457 = vmatprep.subr.mxu0 0.0
  %458 = vmatpush1.msra.mxu0 0.0
  %459 = vmatprep.subr.mxu0 0.0
  %460 = vmatpush1.msra.mxu0 0.0
  %461 = vmatprep.subr.mxu0 0.0
  %462 = vmatpush1.msra.mxu0 %v438
  %463 = vmatprep.subr.mxu0 0.0
  %464 = vmatpush1.msra.mxu0 %v437
  %465 = vmatprep.subr.mxu0 0.0
  %466 = vmatpush1.msra.mxu0 %v436
  %467 = vmatprep.subr.mxu0 0.0
  %468 = vmatpush1.msra.mxu0 %v435
  %469 = vmatprep.subr.mxu0 0.0
  %470 = vmatpush1.msra.mxu0 %v434
  %471 = vmatprep.subr.mxu0 0.0
  %472 = vmatpush1.msra.mxu0 %v433
  %473 = vmatprep.subr.mxu0 0.0
  %474 = vmatpush1.msra.mxu0 %v432
  %475 = vmatprep.subr.mxu0 0.0
  %476 = vmatpush1.msra.mxu0 %v431
  %477 = vmatprep.subr.mxu0 0.0
  %478 = vmatpush2.msra.mxu0 0.0
  %479 = vmatprep.subr.mxu0 0.0
  %480 = vmatpush2.msra.mxu0 0.0
  %481 = vmatprep.subr.mxu0 0.0
  %482 = vmatpush2.msra.mxu0 0.0
  %483 = vmatprep.subr.mxu0 0.0
  %484 = vmatpush2.msra.mxu0 0.0
  %485 = vmatprep.subr.mxu0 0.0
  %486 = vmatpush2.msra.mxu0 0.0
  %487 = vmatprep.subr.mxu0 0.0
  %488 = vmatpush2.msra.mxu0 0.0
  %489 = vmatprep.subr.mxu0 0.0
  %490 = vmatpush2.msra.mxu0 0.0
  %491 = vmatprep.subr.mxu0 0.0
  %492 = vmatpush2.msra.mxu0 0.0
  %493 = vmatprep.subr.mxu0 0.0
  %494 = vmatpush2.msra.mxu0 0.0
  %495 = vmatprep.subr.mxu0 0.0
  %496 = vmatpush2.msra.mxu0 0.0
  %497 = vmatprep.subr.mxu0 0.0
  %498 = vmatpush2.msra.mxu0 0.0
  %499 = vmatprep.subr.mxu0 0.0
  %500 = vmatpush2.msra.mxu0 0.0
  %501 = vmatprep.subr.mxu0 0.0
  %502 = vmatpush2.msra.mxu0 0.0
  %503 = vmatprep.subr.mxu0 0.0
  %504 = vmatpush2.msra.mxu0 0.0
  %505 = vmatprep.subr.mxu0 0.0
  %506 = vmatpush2.msra.mxu0 0.0
  %507 = vmatprep.subr.mxu0 0.0
  %508 = vmatpush2.msra.mxu0 0.0
  %509 = vmatprep.mubr.f32.mxu0 0.0
  %510 = vmatmul.mubr.f32.gmra.mxu0 %v440
  %v511 = vpop.f32.mrf.mxu0
  %v512 = vadd.f32 0.0, %v511
  %v513 = vpop.f32.mrf.mxu0
  %514 = vmatprep.mubr.f32.mxu0 0.0
  %515 = vmatmul.mubr.f32.gmra.mxu0 %v443
  %v516 = vpop.f32.mrf.mxu0
  %v517 = vadd.f32 0.0, %v516
  %v518 = vpop.f32.mrf.mxu0
  %519 = vdwg.mxu0
  %v521 = vlaneseq
  %v522 = vshrl.u32 %v521, 7
  %v523 = vsub.s32 0, %v522
  %v524 = vrot.slane %v428, %v523
  %v526 = vadd.f32 %v524, %v512
  %v527 = vadd.f32 %v524, %v517
  %v528 = vld [vmem:[#allocation2 + $0x4] sm:$0xff]
  %v529 = vld [vmem:[#allocation2 + $0xc] sm:$0xff]
  %v530 = vld [vmem:[%s3 + $0x40] sm:$0xff]
  %v531 = vld [vmem:[%s3 + $0x48] sm:$0xff]
  %v532 = vld [vmem:[%s3 + $0x50] sm:$0xff]
  %v533 = vld [vmem:[%s3 + $0x58] sm:$0xff]
  %v534 = vld [vmem:[%s3 + $0x60] sm:$0xff]
  %v535 = vld [vmem:[%s3 + $0x68] sm:$0xff]
  %v536 = vld [vmem:[%s3 + $0x70] sm:$0xff]
  %v537 = vld [vmem:[%s3 + $0x78] sm:$0xff]
  %v539 = vsel %vm417, %v528, 0
  %v542 = vsel %vm417, %v529, 0
  %544 = vmatprep.subr.mxu0 0.0
  %545 = vmatpush1.msra.mxu0 0.0
  %546 = vmatprep.subr.mxu0 0.0
  %547 = vmatpush1.msra.mxu0 0.0
  %548 = vmatprep.subr.mxu0 0.0
  %549 = vmatpush1.msra.mxu0 0.0
  %550 = vmatprep.subr.mxu0 0.0
  %551 = vmatpush1.msra.mxu0 0.0
  %552 = vmatprep.subr.mxu0 0.0
  %553 = vmatpush1.msra.mxu0 0.0
  %554 = vmatprep.subr.mxu0 0.0
  %555 = vmatpush1.msra.mxu0 0.0
  %556 = vmatprep.subr.mxu0 0.0
  %557 = vmatpush1.msra.mxu0 0.0
  %558 = vmatprep.subr.mxu0 0.0
  %559 = vmatpush1.msra.mxu0 0.0
  %560 = vmatprep.subr.mxu0 0.0
  %561 = vmatpush1.msra.mxu0 %v537
  %562 = vmatprep.subr.mxu0 0.0
  %563 = vmatpush1.msra.mxu0 %v536
  %564 = vmatprep.subr.mxu0 0.0
  %565 = vmatpush1.msra.mxu0 %v535
  %566 = vmatprep.subr.mxu0 0.0
  %567 = vmatpush1.msra.mxu0 %v534
  %568 = vmatprep.subr.mxu0 0.0
  %569 = vmatpush1.msra.mxu0 %v533
  %570 = vmatprep.subr.mxu0 0.0
  %571 = vmatpush1.msra.mxu0 %v532
  %572 = vmatprep.subr.mxu0 0.0
  %573 = vmatpush1.msra.mxu0 %v531
  %574 = vmatprep.subr.mxu0 0.0
  %575 = vmatpush1.msra.mxu0 %v530
  %576 = vmatprep.subr.mxu0 0.0
  %577 = vmatpush2.msra.mxu0 0.0
  %578 = vmatprep.subr.mxu0 0.0
  %579 = vmatpush2.msra.mxu0 0.0
  %580 = vmatprep.subr.mxu0 0.0
  %581 = vmatpush2.msra.mxu0 0.0
  %582 = vmatprep.subr.mxu0 0.0
  %583 = vmatpush2.msra.mxu0 0.0
  %584 = vmatprep.subr.mxu0 0.0
  %585 = vmatpush2.msra.mxu0 0.0
  %586 = vmatprep.subr.mxu0 0.0
  %587 = vmatpush2.msra.mxu0 0.0
  %588 = vmatprep.subr.mxu0 0.0
  %589 = vmatpush2.msra.mxu0 0.0
  %590 = vmatprep.subr.mxu0 0.0
  %591 = vmatpush2.msra.mxu0 0.0
  %592 = vmatprep.subr.mxu0 0.0
  %593 = vmatpush2.msra.mxu0 0.0
  %594 = vmatprep.subr.mxu0 0.0
  %595 = vmatpush2.msra.mxu0 0.0
  %596 = vmatprep.subr.mxu0 0.0
  %597 = vmatpush2.msra.mxu0 0.0
  %598 = vmatprep.subr.mxu0 0.0
  %599 = vmatpush2.msra.mxu0 0.0
  %600 = vmatprep.subr.mxu0 0.0
  %601 = vmatpush2.msra.mxu0 0.0
  %602 = vmatprep.subr.mxu0 0.0
  %603 = vmatpush2.msra.mxu0 0.0
  %604 = vmatprep.subr.mxu0 0.0
  %605 = vmatpush2.msra.mxu0 0.0
  %606 = vmatprep.subr.mxu0 0.0
  %607 = vmatpush2.msra.mxu0 0.0
  %608 = vmatprep.mubr.f32.mxu0 0.0
  %609 = vmatmul.mubr.f32.gmra.mxu0 %v539
  %v610 = vpop.f32.mrf.mxu0
  %v611 = vadd.f32 0.0, %v610
  %v612 = vpop.f32.mrf.mxu0
  %613 = vmatprep.mubr.f32.mxu0 0.0
  %614 = vmatmul.mubr.f32.gmra.mxu0 %v542
  %v615 = vpop.f32.mrf.mxu0
  %v616 = vadd.f32 0.0, %v615
  %v617 = vpop.f32.mrf.mxu0
  %618 = vdwg.mxu0
  %v619 = vadd.f32 %v526, %v611
  %v620 = vadd.f32 %v527, %v616
  %v621 = vld [vmem:[#allocation2 + $0x6] sm:$0xff]
  %v622 = vld [vmem:[#allocation2 + $0xe] sm:$0xff]
  %v623 = vld [vmem:[%s3 + $0x80] sm:$0xff]
  %v624 = vld [vmem:[%s3 + $0x88] sm:$0xff]
  %v625 = vld [vmem:[%s3 + $0x90] sm:$0xff]
  %v626 = vld [vmem:[%s3 + $0x98] sm:$0xff]
  %v627 = vld [vmem:[%s3 + $0xa0] sm:$0xff]
  %v628 = vld [vmem:[%s3 + $0xa8] sm:$0xff]
  %v629 = vld [vmem:[%s3 + $0xb0] sm:$0xff]
  %v630 = vld [vmem:[%s3 + $0xb8] sm:$0xff]
  %v632 = vsel %vm417, %v621, 0
  %v635 = vsel %vm417, %v622, 0
  %637 = vmatprep.subr.mxu0 0.0
  %638 = vmatpush1.msra.mxu0 0.0
  %639 = vmatprep.subr.mxu0 0.0
  %640 = vmatpush1.msra.mxu0 0.0
  %641 = vmatprep.subr.mxu0 0.0
  %642 = vmatpush1.msra.mxu0 0.0
  %643 = vmatprep.subr.mxu0 0.0
  %644 = vmatpush1.msra.mxu0 0.0
  %645 = vmatprep.subr.mxu0 0.0
  %646 = vmatpush1.msra.mxu0 0.0
  %647 = vmatprep.subr.mxu0 0.0
  %648 = vmatpush1.msra.mxu0 0.0
  %649 = vmatprep.subr.mxu0 0.0
  %650 = vmatpush1.msra.mxu0 0.0
  %651 = vmatprep.subr.mxu0 0.0
  %652 = vmatpush1.msra.mxu0 0.0
  %653 = vmatprep.subr.mxu0 0.0
  %654 = vmatpush1.msra.mxu0 %v630
  %655 = vmatprep.subr.mxu0 0.0
  %656 = vmatpush1.msra.mxu0 %v629
  %657 = vmatprep.subr.mxu0 0.0
  %658 = vmatpush1.msra.mxu0 %v628
  %659 = vmatprep.subr.mxu0 0.0
  %660 = vmatpush1.msra.mxu0 %v627
  %661 = vmatprep.subr.mxu0 0.0
  %662 = vmatpush1.msra.mxu0 %v626
  %663 = vmatprep.subr.mxu0 0.0
  %664 = vmatpush1.msra.mxu0 %v625
  %665 = vmatprep.subr.mxu0 0.0
  %666 = vmatpush1.msra.mxu0 %v624
  %667 = vmatprep.subr.mxu0 0.0
  %668 = vmatpush1.msra.mxu0 %v623
  %669 = vmatprep.subr.mxu0 0.0
  %670 = vmatpush2.msra.mxu0 0.0
  %671 = vmatprep.subr.mxu0 0.0
  %672 = vmatpush2.msra.mxu0 0.0
  %673 = vmatprep.subr.mxu0 0.0
  %674 = vmatpush2.msra.mxu0 0.0
  %675 = vmatprep.subr.mxu0 0.0
  %676 = vmatpush2.msra.mxu0 0.0
  %677 = vmatprep.subr.mxu0 0.0
  %678 = vmatpush2.msra.mxu0 0.0
  %679 = vmatprep.subr.mxu0 0.0
  %680 = vmatpush2.msra.mxu0 0.0
  %681 = vmatprep.subr.mxu0 0.0
  %682 = vmatpush2.msra.mxu0 0.0
  %683 = vmatprep.subr.mxu0 0.0
  %684 = vmatpush2.msra.mxu0 0.0
  %685 = vmatprep.subr.mxu0 0.0
  %686 = vmatpush2.msra.mxu0 0.0
  %687 = vmatprep.subr.mxu0 0.0
  %688 = vmatpush2.msra.mxu0 0.0
  %689 = vmatprep.subr.mxu0 0.0
  %690 = vmatpush2.msra.mxu0 0.0
  %691 = vmatprep.subr.mxu0 0.0
  %692 = vmatpush2.msra.mxu0 0.0
  %693 = vmatprep.subr.mxu0 0.0
  %694 = vmatpush2.msra.mxu0 0.0
  %695 = vmatprep.subr.mxu0 0.0
  %696 = vmatpush2.msra.mxu0 0.0
  %697 = vmatprep.subr.mxu0 0.0
  %698 = vmatpush2.msra.mxu0 0.0
  %699 = vmatprep.subr.mxu0 0.0
  %700 = vmatpush2.msra.mxu0 0.0
  %701 = vmatprep.mubr.f32.mxu0 0.0
  %702 = vmatmul.mubr.f32.gmra.mxu0 %v632
  %v703 = vpop.f32.mrf.mxu0
  %v704 = vadd.f32 0.0, %v703
  %v705 = vpop.f32.mrf.mxu0
  %706 = vmatprep.mubr.f32.mxu0 0.0
  %707 = vmatmul.mubr.f32.gmra.mxu0 %v635
  %v708 = vpop.f32.mrf.mxu0
  %v709 = vadd.f32 0.0, %v708
  %v710 = vpop.f32.mrf.mxu0
  %711 = vdwg.mxu0
  %v712 = vadd.f32 %v619, %v704
  %v713 = vadd.f32 %v620, %v709
  %v714 = vmax.f32 %v712, 0.0
  %v715 = vmax.f32 %v713, 0.0
  %716 = vst.msk [vmem:[#allocation2] sm:$0xf] %vm52, 0.0
  %717 = vst.msk [vmem:[#allocation2 + $0x4] sm:$0xff] %vm54, %v714
  %718 = vst.msk [vmem:[#allocation2 + $0xc] sm:$0xff] %vm54, %v715
  %719 = vst.msk [vmem:[#allocation2 + $0x14] sm:$0xf] %vm52, 0.0
  %v720 = vld [vmem:[%s6] sm:$0x1]
  %v721 = vld [vmem:[#allocation2 + $0x2] sm:$0xff]
  %v722 = vld [vmem:[#allocation2 + $0xa] sm:$0xff]
  %v723 = vld [vmem:[%s5] sm:$0xff]
  %v724 = vld [vmem:[%s5 + $0x8] sm:$0xff]
  %v726 = vsel %vm54, %v721, 0
  %v729 = vsel %vm54, %v722, 0
  %731 = vmatprep.subr.mxu0 0.0
  %732 = vmatpush1.msra.mxu0 0.0
  %733 = vmatprep.subr.mxu0 0.0
  %734 = vmatpush1.msra.mxu0 0.0
  %735 = vmatprep.subr.mxu0 0.0
  %736 = vmatpush1.msra.mxu0 0.0
  %737 = vmatprep.subr.mxu0 0.0
  %738 = vmatpush1.msra.mxu0 0.0
  %739 = vmatprep.subr.mxu0 0.0
  %740 = vmatpush1.msra.mxu0 0.0
  %741 = vmatprep.subr.mxu0 0.0
  %742 = vmatpush1.msra.mxu0 0.0
  %743 = vmatprep.subr.mxu0 0.0
  %744 = vmatpush1.msra.mxu0 0.0
  %745 = vmatprep.subr.mxu0 0.0
  %746 = vmatpush1.msra.mxu0 0.0
  %747 = vmatprep.subr.mxu0 0.0
  %748 = vmatpush1.msra.mxu0 0.0
  %749 = vmatprep.subr.mxu0 0.0
  %750 = vmatpush1.msra.mxu0 0.0
  %751 = vmatprep.subr.mxu0 0.0
  %752 = vmatpush1.msra.mxu0 0.0
  %753 = vmatprep.subr.mxu0 0.0
  %754 = vmatpush1.msra.mxu0 0.0
  %755 = vmatprep.subr.mxu0 0.0
  %756 = vmatpush1.msra.mxu0 0.0
  %757 = vmatprep.subr.mxu0 0.0
  %758 = vmatpush1.msra.mxu0 0.0
  %759 = vmatprep.subr.mxu0 0.0
  %760 = vmatpush1.msra.mxu0 %v724
  %761 = vmatprep.subr.mxu0 0.0
  %762 = vmatpush1.msra.mxu0 %v723
  %763 = vmatprep.subr.mxu0 0.0
  %764 = vmatpush2.msra.mxu0 0.0
  %765 = vmatprep.subr.mxu0 0.0
  %766 = vmatpush2.msra.mxu0 0.0
  %767 = vmatprep.subr.mxu0 0.0
  %768 = vmatpush2.msra.mxu0 0.0
  %769 = vmatprep.subr.mxu0 0.0
  %770 = vmatpush2.msra.mxu0 0.0
  %771 = vmatprep.subr.mxu0 0.0
  %772 = vmatpush2.msra.mxu0 0.0
  %773 = vmatprep.subr.mxu0 0.0
  %774 = vmatpush2.msra.mxu0 0.0
  %775 = vmatprep.subr.mxu0 0.0
  %776 = vmatpush2.msra.mxu0 0.0
  %777 = vmatprep.subr.mxu0 0.0
  %778 = vmatpush2.msra.mxu0 0.0
  %779 = vmatprep.subr.mxu0 0.0
  %780 = vmatpush2.msra.mxu0 0.0
  %781 = vmatprep.subr.mxu0 0.0
  %782 = vmatpush2.msra.mxu0 0.0
  %783 = vmatprep.subr.mxu0 0.0
  %784 = vmatpush2.msra.mxu0 0.0
  %785 = vmatprep.subr.mxu0 0.0
  %786 = vmatpush2.msra.mxu0 0.0
  %787 = vmatprep.subr.mxu0 0.0
  %788 = vmatpush2.msra.mxu0 0.0
  %789 = vmatprep.subr.mxu0 0.0
  %790 = vmatpush2.msra.mxu0 0.0
  %791 = vmatprep.subr.mxu0 0.0
  %792 = vmatpush2.msra.mxu0 0.0
  %793 = vmatprep.subr.mxu0 0.0
  %794 = vmatpush2.msra.mxu0 0.0
  %795 = vmatprep.mubr.f32.mxu0 0.0
  %796 = vmatmul.mubr.f32.gmra.mxu0 %v726
  %v797 = vpop.f32.mrf.mxu0
  %v798 = vadd.f32 0.0, %v797
  %v799 = vpop.f32.mrf.mxu0
  %800 = vmatprep.mubr.f32.mxu0 0.0
  %801 = vmatmul.mubr.f32.gmra.mxu0 %v729
  %v802 = vpop.f32.mrf.mxu0
  %v803 = vadd.f32 0.0, %v802
  %v804 = vpop.f32.mrf.mxu0
  %805 = vdwg.mxu0
  %v807 = vlaneseq
  %v808 = vshrl.u32 %v807, 7
  %v809 = vsub.s32 0, %v808
  %v810 = vrot.slane %v720, %v809
  %v812 = vadd.f32 %v810, %v798
  %v813 = vadd.f32 %v810, %v803
  %v814 = vld [vmem:[#allocation2 + $0x4] sm:$0xff]
  %v815 = vld [vmem:[#allocation2 + $0xc] sm:$0xff]
  %v816 = vld [vmem:[%s5 + $0x10] sm:$0xff]
  %v817 = vld [vmem:[%s5 + $0x18] sm:$0xff]
  %v819 = vsel %vm54, %v814, 0
  %v822 = vsel %vm54, %v815, 0
  %824 = vmatprep.subr.mxu0 0.0
  %825 = vmatpush1.msra.mxu0 0.0
  %826 = vmatprep.subr.mxu0 0.0
  %827 = vmatpush1.msra.mxu0 0.0
  %828 = vmatprep.subr.mxu0 0.0
  %829 = vmatpush1.msra.mxu0 0.0
  %830 = vmatprep.subr.mxu0 0.0
  %831 = vmatpush1.msra.mxu0 0.0
  %832 = vmatprep.subr.mxu0 0.0
  %833 = vmatpush1.msra.mxu0 0.0
  %834 = vmatprep.subr.mxu0 0.0
  %835 = vmatpush1.msra.mxu0 0.0
  %836 = vmatprep.subr.mxu0 0.0
  %837 = vmatpush1.msra.mxu0 0.0
  %838 = vmatprep.subr.mxu0 0.0
  %839 = vmatpush1.msra.mxu0 0.0
  %840 = vmatprep.subr.mxu0 0.0
  %841 = vmatpush1.msra.mxu0 0.0
  %842 = vmatprep.subr.mxu0 0.0
  %843 = vmatpush1.msra.mxu0 0.0
  %844 = vmatprep.subr.mxu0 0.0
  %845 = vmatpush1.msra.mxu0 0.0
  %846 = vmatprep.subr.mxu0 0.0
  %847 = vmatpush1.msra.mxu0 0.0
  %848 = vmatprep.subr.mxu0 0.0
  %849 = vmatpush1.msra.mxu0 0.0
  %850 = vmatprep.subr.mxu0 0.0
  %851 = vmatpush1.msra.mxu0 0.0
  %852 = vmatprep.subr.mxu0 0.0
  %853 = vmatpush1.msra.mxu0 %v817
  %854 = vmatprep.subr.mxu0 0.0
  %855 = vmatpush1.msra.mxu0 %v816
  %856 = vmatprep.subr.mxu0 0.0
  %857 = vmatpush2.msra.mxu0 0.0
  %858 = vmatprep.subr.mxu0 0.0
  %859 = vmatpush2.msra.mxu0 0.0
  %860 = vmatprep.subr.mxu0 0.0
  %861 = vmatpush2.msra.mxu0 0.0
  %862 = vmatprep.subr.mxu0 0.0
  %863 = vmatpush2.msra.mxu0 0.0
  %864 = vmatprep.subr.mxu0 0.0
  %865 = vmatpush2.msra.mxu0 0.0
  %866 = vmatprep.subr.mxu0 0.0
  %867 = vmatpush2.msra.mxu0 0.0
  %868 = vmatprep.subr.mxu0 0.0
  %869 = vmatpush2.msra.mxu0 0.0
  %870 = vmatprep.subr.mxu0 0.0
  %871 = vmatpush2.msra.mxu0 0.0
  %872 = vmatprep.subr.mxu0 0.0
  %873 = vmatpush2.msra.mxu0 0.0
  %874 = vmatprep.subr.mxu0 0.0
  %875 = vmatpush2.msra.mxu0 0.0
  %876 = vmatprep.subr.mxu0 0.0
  %877 = vmatpush2.msra.mxu0 0.0
  %878 = vmatprep.subr.mxu0 0.0
  %879 = vmatpush2.msra.mxu0 0.0
  %880 = vmatprep.subr.mxu0 0.0
  %881 = vmatpush2.msra.mxu0 0.0
  %882 = vmatprep.subr.mxu0 0.0
  %883 = vmatpush2.msra.mxu0 0.0
  %884 = vmatprep.subr.mxu0 0.0
  %885 = vmatpush2.msra.mxu0 0.0
  %886 = vmatprep.subr.mxu0 0.0
  %887 = vmatpush2.msra.mxu0 0.0
  %888 = vmatprep.mubr.f32.mxu0 0.0
  %889 = vmatmul.mubr.f32.gmra.mxu0 %v819
  %v890 = vpop.f32.mrf.mxu0
  %v891 = vadd.f32 0.0, %v890
  %v892 = vpop.f32.mrf.mxu0
  %893 = vmatprep.mubr.f32.mxu0 0.0
  %894 = vmatmul.mubr.f32.gmra.mxu0 %v822
  %v895 = vpop.f32.mrf.mxu0
  %v896 = vadd.f32 0.0, %v895
  %v897 = vpop.f32.mrf.mxu0
  %898 = vdwg.mxu0
  %v899 = vadd.f32 %v812, %v891
  %v900 = vadd.f32 %v813, %v896
  %v901 = vld [vmem:[#allocation2 + $0x6] sm:$0xff]
  %v902 = vld [vmem:[#allocation2 + $0xe] sm:$0xff]
  %v903 = vld [vmem:[%s5 + $0x20] sm:$0xff]
  %v904 = vld [vmem:[%s5 + $0x28] sm:$0xff]
  %v906 = vsel %vm54, %v901, 0
  %v909 = vsel %vm54, %v902, 0
  %911 = vmatprep.subr.mxu0 0.0
  %912 = vmatpush1.msra.mxu0 0.0
  %913 = vmatprep.subr.mxu0 0.0
  %914 = vmatpush1.msra.mxu0 0.0
  %915 = vmatprep.subr.mxu0 0.0
  %916 = vmatpush1.msra.mxu0 0.0
  %917 = vmatprep.subr.mxu0 0.0
  %918 = vmatpush1.msra.mxu0 0.0
  %919 = vmatprep.subr.mxu0 0.0
  %920 = vmatpush1.msra.mxu0 0.0
  %921 = vmatprep.subr.mxu0 0.0
  %922 = vmatpush1.msra.mxu0 0.0
  %923 = vmatprep.subr.mxu0 0.0
  %924 = vmatpush1.msra.mxu0 0.0
  %925 = vmatprep.subr.mxu0 0.0
  %926 = vmatpush1.msra.mxu0 0.0
  %927 = vmatprep.subr.mxu0 0.0
  %928 = vmatpush1.msra.mxu0 0.0
  %929 = vmatprep.subr.mxu0 0.0
  %930 = vmatpush1.msra.mxu0 0.0
  %931 = vmatprep.subr.mxu0 0.0
  %932 = vmatpush1.msra.mxu0 0.0
  %933 = vmatprep.subr.mxu0 0.0
  %934 = vmatpush1.msra.mxu0 0.0
  %935 = vmatprep.subr.mxu0 0.0
  %936 = vmatpush1.msra.mxu0 0.0
  %937 = vmatprep.subr.mxu0 0.0
  %938 = vmatpush1.msra.mxu0 0.0
  %939 = vmatprep.subr.mxu0 0.0
  %940 = vmatpush1.msra.mxu0 %v904
  %941 = vmatprep.subr.mxu0 0.0
  %942 = vmatpush1.msra.mxu0 %v903
  %943 = vmatprep.subr.mxu0 0.0
  %944 = vmatpush2.msra.mxu0 0.0
  %945 = vmatprep.subr.mxu0 0.0
  %946 = vmatpush2.msra.mxu0 0.0
  %947 = vmatprep.subr.mxu0 0.0
  %948 = vmatpush2.msra.mxu0 0.0
  %949 = vmatprep.subr.mxu0 0.0
  %950 = vmatpush2.msra.mxu0 0.0
  %951 = vmatprep.subr.mxu0 0.0
  %952 = vmatpush2.msra.mxu0 0.0
  %953 = vmatprep.subr.mxu0 0.0
  %954 = vmatpush2.msra.mxu0 0.0
  %955 = vmatprep.subr.mxu0 0.0
  %956 = vmatpush2.msra.mxu0 0.0
  %957 = vmatprep.subr.mxu0 0.0
  %958 = vmatpush2.msra.mxu0 0.0
  %959 = vmatprep.subr.mxu0 0.0
  %960 = vmatpush2.msra.mxu0 0.0
  %961 = vmatprep.subr.mxu0 0.0
  %962 = vmatpush2.msra.mxu0 0.0
  %963 = vmatprep.subr.mxu0 0.0
  %964 = vmatpush2.msra.mxu0 0.0
  %965 = vmatprep.subr.mxu0 0.0
  %966 = vmatpush2.msra.mxu0 0.0
  %967 = vmatprep.subr.mxu0 0.0
  %968 = vmatpush2.msra.mxu0 0.0
  %969 = vmatprep.subr.mxu0 0.0
  %970 = vmatpush2.msra.mxu0 0.0
  %971 = vmatprep.subr.mxu0 0.0
  %972 = vmatpush2.msra.mxu0 0.0
  %973 = vmatprep.subr.mxu0 0.0
  %974 = vmatpush2.msra.mxu0 0.0
  %975 = vmatprep.mubr.f32.mxu0 0.0
  %976 = vmatmul.mubr.f32.gmra.mxu0 %v906
  %v977 = vpop.f32.mrf.mxu0
  %v978 = vadd.f32 0.0, %v977
  %v979 = vpop.f32.mrf.mxu0
  %980 = vmatprep.mubr.f32.mxu0 0.0
  %981 = vmatmul.mubr.f32.gmra.mxu0 %v909
  %v982 = vpop.f32.mrf.mxu0
  %v983 = vadd.f32 0.0, %v982
  %v984 = vpop.f32.mrf.mxu0
  %985 = vdwg.mxu0
  %v986 = vadd.f32 %v899, %v978
  %v987 = vadd.f32 %v900, %v983
  %v988 = vadd.f32 %v986, %v50
  %v989 = vadd.f32 %v987, %v51
  %v990 = vld [vmem:[%s7] sm:$0xff]
  %v991 = vld [vmem:[%s7 + $0x8] sm:$0xff]
  %v992 = vld [vmem:[%s8] sm:$0x1]
  %v994 = vlaneseq
  %v995 = vshrl.u32 %v994, 7
  %v996 = vsub.s32 0, %v995
  %v997 = vrot.slane %v992, %v996
  %v1000 = vsel %vm54, %v988, 0
  %v1003 = vsel %vm54, %v989, 0
  %1005 = vmatprep.subr.mxu0 0.0
  %1006 = vmatpush1.msra.mxu0 0.0
  %1007 = vmatprep.subr.mxu0 0.0
  %1008 = vmatpush1.msra.mxu0 0.0
  %1009 = vmatprep.subr.mxu0 0.0
  %1010 = vmatpush1.msra.mxu0 0.0
  %1011 = vmatprep.subr.mxu0 0.0
  %1012 = vmatpush1.msra.mxu0 0.0
  %1013 = vmatprep.subr.mxu0 0.0
  %1014 = vmatpush1.msra.mxu0 0.0
  %1015 = vmatprep.subr.mxu0 0.0
  %1016 = vmatpush1.msra.mxu0 0.0
  %1017 = vmatprep.subr.mxu0 0.0
  %1018 = vmatpush1.msra.mxu0 0.0
  %1019 = vmatprep.subr.mxu0 0.0
  %1020 = vmatpush1.msra.mxu0 0.0
  %1021 = vmatprep.subr.mxu0 0.0
  %1022 = vmatpush1.msra.mxu0 0.0
  %1023 = vmatprep.subr.mxu0 0.0
  %1024 = vmatpush1.msra.mxu0 0.0
  %1025 = vmatprep.subr.mxu0 0.0
  %1026 = vmatpush1.msra.mxu0 0.0
  %1027 = vmatprep.subr.mxu0 0.0
  %1028 = vmatpush1.msra.mxu0 0.0
  %1029 = vmatprep.subr.mxu0 0.0
  %1030 = vmatpush1.msra.mxu0 0.0
  %1031 = vmatprep.subr.mxu0 0.0
  %1032 = vmatpush1.msra.mxu0 0.0
  %1033 = vmatprep.subr.mxu0 0.0
  %1034 = vmatpush1.msra.mxu0 %v991
  %1035 = vmatprep.subr.mxu0 0.0
  %1036 = vmatpush1.msra.mxu0 %v990
  %1037 = vmatprep.subr.mxu0 0.0
  %1038 = vmatpush2.msra.mxu0 0.0
  %1039 = vmatprep.subr.mxu0 0.0
  %1040 = vmatpush2.msra.mxu0 0.0
  %1041 = vmatprep.subr.mxu0 0.0
  %1042 = vmatpush2.msra.mxu0 0.0
  %1043 = vmatprep.subr.mxu0 0.0
  %1044 = vmatpush2.msra.mxu0 0.0
  %1045 = vmatprep.subr.mxu0 0.0
  %1046 = vmatpush2.msra.mxu0 0.0
  %1047 = vmatprep.subr.mxu0 0.0
  %1048 = vmatpush2.msra.mxu0 0.0
  %1049 = vmatprep.subr.mxu0 0.0
  %1050 = vmatpush2.msra.mxu0 0.0
  %1051 = vmatprep.subr.mxu0 0.0
  %1052 = vmatpush2.msra.mxu0 0.0
  %1053 = vmatprep.subr.mxu0 0.0
  %1054 = vmatpush2.msra.mxu0 0.0
  %1055 = vmatprep.subr.mxu0 0.0
  %1056 = vmatpush2.msra.mxu0 0.0
  %1057 = vmatprep.subr.mxu0 0.0
  %1058 = vmatpush2.msra.mxu0 0.0
  %1059 = vmatprep.subr.mxu0 0.0
  %1060 = vmatpush2.msra.mxu0 0.0
  %1061 = vmatprep.subr.mxu0 0.0
  %1062 = vmatpush2.msra.mxu0 0.0
  %1063 = vmatprep.subr.mxu0 0.0
  %1064 = vmatpush2.msra.mxu0 0.0
  %1065 = vmatprep.subr.mxu0 0.0
  %1066 = vmatpush2.msra.mxu0 0.0
  %1067 = vmatprep.subr.mxu0 0.0
  %1068 = vmatpush2.msra.mxu0 0.0
  %1069 = vmatprep.mubr.f32.mxu0 0.0
  %1070 = vmatmul.mubr.f32.gmra.mxu0 %v1000
  %v1071 = vpop.f32.mrf.mxu0
  %v1072 = vadd.f32 %v997, %v1071
  %v1073 = vpop.f32.mrf.mxu0
  %1074 = vmatprep.mubr.f32.mxu0 0.0
  %1075 = vmatmul.mubr.f32.gmra.mxu0 %v1003
  %v1076 = vpop.f32.mrf.mxu0
  %v1077 = vadd.f32 %v997, %v1076
  %v1078 = vpop.f32.mrf.mxu0
  %1079 = vdwg.mxu0
  %v1080 = vmax.f32 %v1072, 0.0
  %v1081 = vmax.f32 %v1077, 0.0
  %v1082 = vxor.u32 %v1072, 2147483648
  %v1083 = vxor.u32 %v1077, 2147483648
  %v1084 = vmul.f32 %v1082, 1.442695
  %v1085 = vpow.pop %v1084
  %v1086 = vmul.f32 %v1083, 1.442695
  %v1087 = vpow.pop %v1086
  %v1088 = vadd.f32 %v1085, 1.0
  %v1089 = vadd.f32 %v1087, 1.0
  %v1090 = vrcp.pop %v1088
  %v1091 = vmul.f32 1.0, %v1090
  %v1092 = vrcp.pop %v1089
  %v1093 = vmul.f32 1.0, %v1092
  %1096 = vrot.lane.b32.xlu0 %v1091, 112
  %v1097 = vpop.permute.xlu0 %1096
  %1098 = vrot.lane.b32.xlu0 %v1093, 112
  %v1099 = vpop.permute.xlu0 %1098
  %v1102 = vmul.f32 %v1080, %v1097
  %v1103 = vmul.f32 %v1081, %v1099
  %v1104 = vsub.f32 1.0, %v1091
  %v1105 = vsub.f32 1.0, %v1093
  %1108 = vrot.lane.b32.xlu0 %v1104, 112
  %v1109 = vpop.permute.xlu0 %1108
  %1110 = vrot.lane.b32.xlu0 %v1105, 112
  %v1111 = vpop.permute.xlu0 %1110
  %v1114 = vmul.f32 %v988, %v1109
  %v1115 = vmul.f32 %v989, %v1111
  %v1116 = vadd.f32 %v1102, %v1114
  %v1117 = vadd.f32 %v1103, %v1115
  %s1118 = scalar_lea.vmem %s7, 16
  %v1119 = vld [vmem:[%s1118] sm:$0xff]
  %v1120 = vld [vmem:[%s1118 + $0x8] sm:$0xff]
  %s1121 = scalar_lea.vmem %s8, 1
  %v1122 = vld [vmem:[%s1121] sm:$0x1]
  %v1124 = vlaneseq
  %v1125 = vshrl.u32 %v1124, 7
  %v1126 = vsub.s32 0, %v1125
  %v1127 = vrot.slane %v1122, %v1126
  %v1130 = vsel %vm54, %v1116, 0
  %v1133 = vsel %vm54, %v1117, 0
  %1135 = vmatprep.subr.mxu0 0.0
  %1136 = vmatpush1.msra.mxu0 0.0
  %1137 = vmatprep.subr.mxu0 0.0
  %1138 = vmatpush1.msra.mxu0 0.0
  %1139 = vmatprep.subr.mxu0 0.0
  %1140 = vmatpush1.msra.mxu0 0.0
  %1141 = vmatprep.subr.mxu0 0.0
  %1142 = vmatpush1.msra.mxu0 0.0
  %1143 = vmatprep.subr.mxu0 0.0
  %1144 = vmatpush1.msra.mxu0 0.0
  %1145 = vmatprep.subr.mxu0 0.0
  %1146 = vmatpush1.msra.mxu0 0.0
  %1147 = vmatprep.subr.mxu0 0.0
  %1148 = vmatpush1.msra.mxu0 0.0
  %1149 = vmatprep.subr.mxu0 0.0
  %1150 = vmatpush1.msra.mxu0 0.0
  %1151 = vmatprep.subr.mxu0 0.0
  %1152 = vmatpush1.msra.mxu0 0.0
  %1153 = vmatprep.subr.mxu0 0.0
  %1154 = vmatpush1.msra.mxu0 0.0
  %1155 = vmatprep.subr.mxu0 0.0
  %1156 = vmatpush1.msra.mxu0 0.0
  %1157 = vmatprep.subr.mxu0 0.0
  %1158 = vmatpush1.msra.mxu0 0.0
  %1159 = vmatprep.subr.mxu0 0.0
  %1160 = vmatpush1.msra.mxu0 0.0
  %1161 = vmatprep.subr.mxu0 0.0
  %1162 = vmatpush1.msra.mxu0 0.0
  %1163 = vmatprep.subr.mxu0 0.0
  %1164 = vmatpush1.msra.mxu0 %v1120
  %1165 = vmatprep.subr.mxu0 0.0
  %1166 = vmatpush1.msra.mxu0 %v1119
  %1167 = vmatprep.subr.mxu0 0.0
  %1168 = vmatpush2.msra.mxu0 0.0
  %1169 = vmatprep.subr.mxu0 0.0
  %1170 = vmatpush2.msra.mxu0 0.0
  %1171 = vmatprep.subr.mxu0 0.0
  %1172 = vmatpush2.msra.mxu0 0.0
  %1173 = vmatprep.subr.mxu0 0.0
  %1174 = vmatpush2.msra.mxu0 0.0
  %1175 = vmatprep.subr.mxu0 0.0
  %1176 = vmatpush2.msra.mxu0 0.0
  %1177 = vmatprep.subr.mxu0 0.0
  %1178 = vmatpush2.msra.mxu0 0.0
  %1179 = vmatprep.subr.mxu0 0.0
  %1180 = vmatpush2.msra.mxu0 0.0
  %1181 = vmatprep.subr.mxu0 0.0
  %1182 = vmatpush2.msra.mxu0 0.0
  %1183 = vmatprep.subr.mxu0 0.0
  %1184 = vmatpush2.msra.mxu0 0.0
  %1185 = vmatprep.subr.mxu0 0.0
  %1186 = vmatpush2.msra.mxu0 0.0
  %1187 = vmatprep.subr.mxu0 0.0
  %1188 = vmatpush2.msra.mxu0 0.0
  %1189 = vmatprep.subr.mxu0 0.0
  %1190 = vmatpush2.msra.mxu0 0.0
  %1191 = vmatprep.subr.mxu0 0.0
  %1192 = vmatpush2.msra.mxu0 0.0
  %1193 = vmatprep.subr.mxu0 0.0
  %1194 = vmatpush2.msra.mxu0 0.0
  %1195 = vmatprep.subr.mxu0 0.0
  %1196 = vmatpush2.msra.mxu0 0.0
  %1197 = vmatprep.subr.mxu0 0.0
  %1198 = vmatpush2.msra.mxu0 0.0
  %1199 = vmatprep.mubr.f32.mxu0 0.0
  %1200 = vmatmul.mubr.f32.gmra.mxu0 %v1130
  %v1201 = vpop.f32.mrf.mxu0
  %v1202 = vadd.f32 %v1127, %v1201
  %v1203 = vpop.f32.mrf.mxu0
  %1204 = vmatprep.mubr.f32.mxu0 0.0
  %1205 = vmatmul.mubr.f32.gmra.mxu0 %v1133
  %v1206 = vpop.f32.mrf.mxu0
  %v1207 = vadd.f32 %v1127, %v1206
  %v1208 = vpop.f32.mrf.mxu0
  %1209 = vdwg.mxu0
  %v1210 = vmax.f32 %v1202, 0.0
  %v1211 = vmax.f32 %v1207, 0.0
  %v1212 = vxor.u32 %v1202, 2147483648
  %v1213 = vxor.u32 %v1207, 2147483648
  %v1214 = vmul.f32 %v1212, 1.442695
  %v1215 = vpow.pop %v1214
  %v1216 = vmul.f32 %v1213, 1.442695
  %v1217 = vpow.pop %v1216
  %v1218 = vadd.f32 %v1215, 1.0
  %v1219 = vadd.f32 %v1217, 1.0
  %v1220 = vrcp.pop %v1218
  %v1221 = vmul.f32 1.0, %v1220
  %v1222 = vrcp.pop %v1219
  %v1223 = vmul.f32 1.0, %v1222
  %1226 = vrot.lane.b32.xlu0 %v1221, 112
  %v1227 = vpop.permute.xlu0 %1226
  %1228 = vrot.lane.b32.xlu0 %v1223, 112
  %v1229 = vpop.permute.xlu0 %1228
  %v1232 = vmul.f32 %v1210, %v1227
  %v1233 = vmul.f32 %v1211, %v1229
  %v1234 = vsub.f32 1.0, %v1221
  %v1235 = vsub.f32 1.0, %v1223
  %1238 = vrot.lane.b32.xlu0 %v1234, 112
  %v1239 = vpop.permute.xlu0 %1238
  %1240 = vrot.lane.b32.xlu0 %v1235, 112
  %v1241 = vpop.permute.xlu0 %1240
  %v1244 = vmul.f32 %v1116, %v1239
  %v1245 = vmul.f32 %v1117, %v1241
  %v1246 = vadd.f32 %v1232, %v1244
  %v1247 = vadd.f32 %v1233, %v1245
  %v1248 = vld [vmem:[%s9] sm:$0xff]
  %v1249 = vld [vmem:[%s9 + $0x8] sm:$0xff]
  %v1250 = vld [vmem:[%s10] sm:$0x1]
  %v1252 = vlaneseq
  %v1253 = vshrl.u32 %v1252, 7
  %v1254 = vsub.s32 0, %v1253
  %v1255 = vrot.slane %v1250, %v1254
  %v1258 = vsel %vm54, %v1246, 0
  %v1261 = vsel %vm54, %v1247, 0
  %1263 = vmatprep.subr.mxu0 0.0
  %1264 = vmatpush1.msra.mxu0 0.0
  %1265 = vmatprep.subr.mxu0 0.0
  %1266 = vmatpush1.msra.mxu0 0.0
  %1267 = vmatprep.subr.mxu0 0.0
  %1268 = vmatpush1.msra.mxu0 0.0
  %1269 = vmatprep.subr.mxu0 0.0
  %1270 = vmatpush1.msra.mxu0 0.0
  %1271 = vmatprep.subr.mxu0 0.0
  %1272 = vmatpush1.msra.mxu0 0.0
  %1273 = vmatprep.subr.mxu0 0.0
  %1274 = vmatpush1.msra.mxu0 0.0
  %1275 = vmatprep.subr.mxu0 0.0
  %1276 = vmatpush1.msra.mxu0 0.0
  %1277 = vmatprep.subr.mxu0 0.0
  %1278 = vmatpush1.msra.mxu0 0.0
  %1279 = vmatprep.subr.mxu0 0.0
  %1280 = vmatpush1.msra.mxu0 0.0
  %1281 = vmatprep.subr.mxu0 0.0
  %1282 = vmatpush1.msra.mxu0 0.0
  %1283 = vmatprep.subr.mxu0 0.0
  %1284 = vmatpush1.msra.mxu0 0.0
  %1285 = vmatprep.subr.mxu0 0.0
  %1286 = vmatpush1.msra.mxu0 0.0
  %1287 = vmatprep.subr.mxu0 0.0
  %1288 = vmatpush1.msra.mxu0 0.0
  %1289 = vmatprep.subr.mxu0 0.0
  %1290 = vmatpush1.msra.mxu0 0.0
  %1291 = vmatprep.subr.mxu0 0.0
  %1292 = vmatpush1.msra.mxu0 %v1249
  %1293 = vmatprep.subr.mxu0 0.0
  %1294 = vmatpush1.msra.mxu0 %v1248
  %1295 = vmatprep.subr.mxu0 0.0
  %1296 = vmatpush2.msra.mxu0 0.0
  %1297 = vmatprep.subr.mxu0 0.0
  %1298 = vmatpush2.msra.mxu0 0.0
  %1299 = vmatprep.subr.mxu0 0.0
  %1300 = vmatpush2.msra.mxu0 0.0
  %1301 = vmatprep.subr.mxu0 0.0
  %1302 = vmatpush2.msra.mxu0 0.0
  %1303 = vmatprep.subr.mxu0 0.0
  %1304 = vmatpush2.msra.mxu0 0.0
  %1305 = vmatprep.subr.mxu0 0.0
  %1306 = vmatpush2.msra.mxu0 0.0
  %1307 = vmatprep.subr.mxu0 0.0
  %1308 = vmatpush2.msra.mxu0 0.0
  %1309 = vmatprep.subr.mxu0 0.0
  %1310 = vmatpush2.msra.mxu0 0.0
  %1311 = vmatprep.subr.mxu0 0.0
  %1312 = vmatpush2.msra.mxu0 0.0
  %1313 = vmatprep.subr.mxu0 0.0
  %1314 = vmatpush2.msra.mxu0 0.0
  %1315 = vmatprep.subr.mxu0 0.0
  %1316 = vmatpush2.msra.mxu0 0.0
  %1317 = vmatprep.subr.mxu0 0.0
  %1318 = vmatpush2.msra.mxu0 0.0
  %1319 = vmatprep.subr.mxu0 0.0
  %1320 = vmatpush2.msra.mxu0 0.0
  %1321 = vmatprep.subr.mxu0 0.0
  %1322 = vmatpush2.msra.mxu0 0.0
  %1323 = vmatprep.subr.mxu0 0.0
  %1324 = vmatpush2.msra.mxu0 0.0
  %1325 = vmatprep.subr.mxu0 0.0
  %1326 = vmatpush2.msra.mxu0 0.0
  %1327 = vmatprep.mubr.f32.mxu0 0.0
  %1328 = vmatmul.mubr.f32.gmra.mxu0 %v1258
  %v1329 = vpop.f32.mrf.mxu0
  %v1330 = vadd.f32 %v1255, %v1329
  %v1331 = vpop.f32.mrf.mxu0
  %1332 = vmatprep.mubr.f32.mxu0 0.0
  %1333 = vmatmul.mubr.f32.gmra.mxu0 %v1261
  %v1334 = vpop.f32.mrf.mxu0
  %v1335 = vadd.f32 %v1255, %v1334
  %v1336 = vpop.f32.mrf.mxu0
  %1337 = vdwg.mxu0
  %vm1338 = vcmask 785408
  %1339 = vst.msk [vmem:[#allocation3] sm:$0xff] %vm1338, %v1330
  %1340 = vst.msk [vmem:[#allocation3 + $0x8] sm:$0xff] %vm1338, %v1335
  %v1341 = vld [vmem:[%s11] sm:$0xff]
  %v1342 = vld [vmem:[%s11 + $0x8] sm:$0xff]
  %s1343 = scalar_lea.vmem %s11, 16
  %v1344 = vld [vmem:[%s1343] sm:$0xff]
  %v1345 = vld [vmem:[%s1343 + $0x8] sm:$0xff]
  %v1346 = vld [vmem:[%s12] sm:$0x1]
  %s1347 = scalar_lea.vmem %s12, 1
  %v1348 = vld [vmem:[%s1347] sm:$0x1]
  %v1349 = vld [vmem:[#allocation3] sm:$0x3]
  %v1350 = vld [vmem:[#allocation3 + $0xe] sm:$0x3]
  %v1352 = vlaneseq
  %v1353 = vshrl.u32 %v1352, 7
  %v1354 = vsub.s32 0, %v1353
  %v1355 = vrot.slane %v1346, %v1354
  %v1358 = vsel %vm54, 0.0, 0
  %1360 = vmatprep.subr.mxu0 0.0
  %1361 = vmatpush1.msra.mxu0 0.0
  %1362 = vmatprep.subr.mxu0 0.0
  %1363 = vmatpush1.msra.mxu0 0.0
  %1364 = vmatprep.subr.mxu0 0.0
  %1365 = vmatpush1.msra.mxu0 0.0
  %1366 = vmatprep.subr.mxu0 0.0
  %1367 = vmatpush1.msra.mxu0 0.0
  %1368 = vmatprep.subr.mxu0 0.0
  %1369 = vmatpush1.msra.mxu0 0.0
  %1370 = vmatprep.subr.mxu0 0.0
  %1371 = vmatpush1.msra.mxu0 0.0
  %1372 = vmatprep.subr.mxu0 0.0
  %1373 = vmatpush1.msra.mxu0 0.0
  %1374 = vmatprep.subr.mxu0 0.0
  %1375 = vmatpush1.msra.mxu0 0.0
  %1376 = vmatprep.subr.mxu0 0.0
  %1377 = vmatpush1.msra.mxu0 0.0
  %1378 = vmatprep.subr.mxu0 0.0
  %1379 = vmatpush1.msra.mxu0 0.0
  %1380 = vmatprep.subr.mxu0 0.0
  %1381 = vmatpush1.msra.mxu0 0.0
  %1382 = vmatprep.subr.mxu0 0.0
  %1383 = vmatpush1.msra.mxu0 0.0
  %1384 = vmatprep.subr.mxu0 0.0
  %1385 = vmatpush1.msra.mxu0 0.0
  %1386 = vmatprep.subr.mxu0 0.0
  %1387 = vmatpush1.msra.mxu0 0.0
  %1388 = vmatprep.subr.mxu0 0.0
  %1389 = vmatpush1.msra.mxu0 %v1342
  %1390 = vmatprep.subr.mxu0 0.0
  %1391 = vmatpush1.msra.mxu0 %v1341
  %1392 = vmatprep.subr.mxu0 0.0
  %1393 = vmatpush2.msra.mxu0 0.0
  %1394 = vmatprep.subr.mxu0 0.0
  %1395 = vmatpush2.msra.mxu0 0.0
  %1396 = vmatprep.subr.mxu0 0.0
  %1397 = vmatpush2.msra.mxu0 0.0
  %1398 = vmatprep.subr.mxu0 0.0
  %1399 = vmatpush2.msra.mxu0 0.0
  %1400 = vmatprep.subr.mxu0 0.0
  %1401 = vmatpush2.msra.mxu0 0.0
  %1402 = vmatprep.subr.mxu0 0.0
  %1403 = vmatpush2.msra.mxu0 0.0
  %1404 = vmatprep.subr.mxu0 0.0
  %1405 = vmatpush2.msra.mxu0 0.0
  %1406 = vmatprep.subr.mxu0 0.0
  %1407 = vmatpush2.msra.mxu0 0.0
  %1408 = vmatprep.subr.mxu0 0.0
  %1409 = vmatpush2.msra.mxu0 0.0
  %1410 = vmatprep.subr.mxu0 0.0
  %1411 = vmatpush2.msra.mxu0 0.0
  %1412 = vmatprep.subr.mxu0 0.0
  %1413 = vmatpush2.msra.mxu0 0.0
  %1414 = vmatprep.subr.mxu0 0.0
  %1415 = vmatpush2.msra.mxu0 0.0
  %1416 = vmatprep.subr.mxu0 0.0
  %1417 = vmatpush2.msra.mxu0 0.0
  %1418 = vmatprep.subr.mxu0 0.0
  %1419 = vmatpush2.msra.mxu0 0.0
  %1420 = vmatprep.subr.mxu0 0.0
  %1421 = vmatpush2.msra.mxu0 0.0
  %1422 = vmatprep.subr.mxu0 0.0
  %1423 = vmatpush2.msra.mxu0 0.0
  %1424 = vmatprep.mubr.f32.mxu0 0.0
  %1425 = vmatmul.mubr.f32.gmra.mxu0 %v1358
  %v1426 = vpop.f32.mrf.mxu0
  %v1427 = vadd.f32 %v1355, %v1426
  %v1428 = vpop.f32.mrf.mxu0
  %1429 = vdwg.mxu0
  %v1430 = vadd.f32 %v1349, %v1427
  %v1431 = vxor.u32 %v1430, 2147483648
  %v1432 = vmul.f32 %v1431, 1.442695
  %v1433 = vpow.pop %v1432
  %v1434 = vadd.f32 %v1433, 1.0
  %v1435 = vrcp.pop %v1434
  %v1436 = vmul.f32 1.0, %v1435
  %1438 = vrot.lane.b32.xlu0 %v1427, 96
  %v1439 = vpop.permute.xlu0 %1438
  %v1441 = vmul.f32 %v1436, %v1439
  %1443 = vrot.lane.b32.xlu0 %v1441, 32
  %v1444 = vpop.permute.xlu0 %1443
  %v1446 = vadd.f32 %v1349, %v1444
  %v1447 = vtanh.pop %v1446
  %v1448 = vsub.f32 1.0, %v1436
  %1450 = vrot.lane.b32.xlu0 %v1447, 112
  %v1451 = vpop.permute.xlu0 %1450
  %v1453 = vmul.f32 %v1448, %v1451
  %v1454 = vmul.f32 %v1436, 0.0
  %v1455 = vadd.f32 %v1453, %v1454
  %v1457 = vlaneseq
  %v1458 = vshrl.u32 %v1457, 7
  %v1459 = vsub.s32 0, %v1458
  %v1460 = vrot.slane %v1348, %v1459
  %1462 = vmatprep.subr.mxu0 0.0
  %1463 = vmatpush1.msra.mxu0 0.0
  %1464 = vmatprep.subr.mxu0 0.0
  %1465 = vmatpush1.msra.mxu0 0.0
  %1466 = vmatprep.subr.mxu0 0.0
  %1467 = vmatpush1.msra.mxu0 0.0
  %1468 = vmatprep.subr.mxu0 0.0
  %1469 = vmatpush1.msra.mxu0 0.0
  %1470 = vmatprep.subr.mxu0 0.0
  %1471 = vmatpush1.msra.mxu0 0.0
  %1472 = vmatprep.subr.mxu0 0.0
  %1473 = vmatpush1.msra.mxu0 0.0
  %1474 = vmatprep.subr.mxu0 0.0
  %1475 = vmatpush1.msra.mxu0 0.0
  %1476 = vmatprep.subr.mxu0 0.0
  %1477 = vmatpush1.msra.mxu0 0.0
  %1478 = vmatprep.subr.mxu0 0.0
  %1479 = vmatpush1.msra.mxu0 0.0
  %1480 = vmatprep.subr.mxu0 0.0
  %1481 = vmatpush1.msra.mxu0 0.0
  %1482 = vmatprep.subr.mxu0 0.0
  %1483 = vmatpush1.msra.mxu0 0.0
  %1484 = vmatprep.subr.mxu0 0.0
  %1485 = vmatpush1.msra.mxu0 0.0
  %1486 = vmatprep.subr.mxu0 0.0
  %1487 = vmatpush1.msra.mxu0 0.0
  %1488 = vmatprep.subr.mxu0 0.0
  %1489 = vmatpush1.msra.mxu0 0.0
  %1490 = vmatprep.subr.mxu0 0.0
  %1491 = vmatpush1.msra.mxu0 %v1345
  %1492 = vmatprep.subr.mxu0 0.0
  %1493 = vmatpush1.msra.mxu0 %v1344
  %1494 = vmatprep.subr.mxu0 0.0
  %1495 = vmatpush2.msra.mxu0 0.0
  %1496 = vmatprep.subr.mxu0 0.0
  %1497 = vmatpush2.msra.mxu0 0.0
  %1498 = vmatprep.subr.mxu0 0.0
  %1499 = vmatpush2.msra.mxu0 0.0
  %1500 = vmatprep.subr.mxu0 0.0
  %1501 = vmatpush2.msra.mxu0 0.0
  %1502 = vmatprep.subr.mxu0 0.0
  %1503 = vmatpush2.msra.mxu0 0.0
  %1504 = vmatprep.subr.mxu0 0.0
  %1505 = vmatpush2.msra.mxu0 0.0
  %1506 = vmatprep.subr.mxu0 0.0
  %1507 = vmatpush2.msra.mxu0 0.0
  %1508 = vmatprep.subr.mxu0 0.0
  %1509 = vmatpush2.msra.mxu0 0.0
  %1510 = vmatprep.subr.mxu0 0.0
  %1511 = vmatpush2.msra.mxu0 0.0
  %1512 = vmatprep.subr.mxu0 0.0
  %1513 = vmatpush2.msra.mxu0 0.0
  %1514 = vmatprep.subr.mxu0 0.0
  %1515 = vmatpush2.msra.mxu0 0.0
  %1516 = vmatprep.subr.mxu0 0.0
  %1517 = vmatpush2.msra.mxu0 0.0
  %1518 = vmatprep.subr.mxu0 0.0
  %1519 = vmatpush2.msra.mxu0 0.0
  %1520 = vmatprep.subr.mxu0 0.0
  %1521 = vmatpush2.msra.mxu0 0.0
  %1522 = vmatprep.subr.mxu0 0.0
  %1523 = vmatpush2.msra.mxu0 0.0
  %1524 = vmatprep.subr.mxu0 0.0
  %1525 = vmatpush2.msra.mxu0 0.0
  %1526 = vmatprep.mubr.f32.mxu0 0.0
  %1527 = vmatmul.mubr.f32.gmra.mxu0 %v1358
  %v1528 = vpop.f32.mrf.mxu0
  %v1529 = vadd.f32 %v1460, %v1528
  %v1530 = vpop.f32.mrf.mxu0
  %1531 = vdwg.mxu0
  %1533 = vrot.lane.b32.xlu0 %v1529, 48
  %v1534 = vpop.permute.xlu0 %1533
  %v1536 = vadd.f32 %v1350, %v1534
  %v1537 = vxor.u32 %v1536, 2147483648
  %v1538 = vmul.f32 %v1537, 1.442695
  %v1539 = vpow.pop %v1538
  %v1540 = vadd.f32 %v1539, 1.0
  %v1541 = vrcp.pop %v1540
  %v1542 = vmul.f32 1.0, %v1541
  %1543 = vrot.lane.b32.xlu0 %v1529, 16
  %v1544 = vpop.permute.xlu0 %1543
  %v1546 = vmul.f32 %v1542, %v1544
  %1548 = vrot.lane.b32.xlu0 %v1546, 32
  %v1549 = vpop.permute.xlu0 %1548
  %v1551 = vadd.f32 %v1350, %v1549
  %v1552 = vtanh.pop %v1551
  %v1553 = vsub.f32 1.0, %v1542
  %1555 = vrot.lane.b32.xlu0 %v1552, 112
  %v1556 = vpop.permute.xlu0 %1555
  %v1558 = vmul.f32 %v1553, %v1556
  %v1559 = vmul.f32 %v1542, 0.0
  %v1560 = vadd.f32 %v1558, %v1559
  %1562 = vrot.lane.b32.xlu0 %v1455, 112
  %v1563 = vpop.permute.xlu0 %1562
  %vm1565 = vcmask 123904
  %1566 = vst.msk [vmem:[#allocation4] sm:$0x3] %vm1565, %v1563
  %1568 = vrot.lane.b32.xlu0 %v1560, 80
  %v1569 = vpop.permute.xlu0 %1568
  %vm1571 = vcmask 255104
  %1572 = vst.msk [vmem:[#allocation4 + $0xe] sm:$0x3] %vm1571, %v1569
  %v1573 = vld [vmem:[#allocation3 + $0x2] sm:$0x3]
  %v1574 = vld [vmem:[#allocation3 + $0xc] sm:$0x3]
  %v1575 = vsel %vm54, %v1563, 0
  %1577 = vmatprep.subr.mxu0 0.0
  %1578 = vmatpush1.msra.mxu0 0.0
  %1579 = vmatprep.subr.mxu0 0.0
  %1580 = vmatpush1.msra.mxu0 0.0
  %1581 = vmatprep.subr.mxu0 0.0
  %1582 = vmatpush1.msra.mxu0 0.0
  %1583 = vmatprep.subr.mxu0 0.0
  %1584 = vmatpush1.msra.mxu0 0.0
  %1585 = vmatprep.subr.mxu0 0.0
  %1586 = vmatpush1.msra.mxu0 0.0
  %1587 = vmatprep.subr.mxu0 0.0
  %1588 = vmatpush1.msra.mxu0 0.0
  %1589 = vmatprep.subr.mxu0 0.0
  %1590 = vmatpush1.msra.mxu0 0.0
  %1591 = vmatprep.subr.mxu0 0.0
  %1592 = vmatpush1.msra.mxu0 0.0
  %1593 = vmatprep.subr.mxu0 0.0
  %1594 = vmatpush1.msra.mxu0 0.0
  %1595 = vmatprep.subr.mxu0 0.0
  %1596 = vmatpush1.msra.mxu0 0.0
  %1597 = vmatprep.subr.mxu0 0.0
  %1598 = vmatpush1.msra.mxu0 0.0
  %1599 = vmatprep.subr.mxu0 0.0
  %1600 = vmatpush1.msra.mxu0 0.0
  %1601 = vmatprep.subr.mxu0 0.0
  %1602 = vmatpush1.msra.mxu0 0.0
  %1603 = vmatprep.subr.mxu0 0.0
  %1604 = vmatpush1.msra.mxu0 0.0
  %1605 = vmatprep.subr.mxu0 0.0
  %1606 = vmatpush1.msra.mxu0 %v1342
  %1607 = vmatprep.subr.mxu0 0.0
  %1608 = vmatpush1.msra.mxu0 %v1341
  %1609 = vmatprep.subr.mxu0 0.0
  %1610 = vmatpush2.msra.mxu0 0.0
  %1611 = vmatprep.subr.mxu0 0.0
  %1612 = vmatpush2.msra.mxu0 0.0
  %1613 = vmatprep.subr.mxu0 0.0
  %1614 = vmatpush2.msra.mxu0 0.0
  %1615 = vmatprep.subr.mxu0 0.0
  %1616 = vmatpush2.msra.mxu0 0.0
  %1617 = vmatprep.subr.mxu0 0.0
  %1618 = vmatpush2.msra.mxu0 0.0
  %1619 = vmatprep.subr.mxu0 0.0
  %1620 = vmatpush2.msra.mxu0 0.0
  %1621 = vmatprep.subr.mxu0 0.0
  %1622 = vmatpush2.msra.mxu0 0.0
  %1623 = vmatprep.subr.mxu0 0.0
  %1624 = vmatpush2.msra.mxu0 0.0
  %1625 = vmatprep.subr.mxu0 0.0
  %1626 = vmatpush2.msra.mxu0 0.0
  %1627 = vmatprep.subr.mxu0 0.0
  %1628 = vmatpush2.msra.mxu0 0.0
  %1629 = vmatprep.subr.mxu0 0.0
  %1630 = vmatpush2.msra.mxu0 0.0
  %1631 = vmatprep.subr.mxu0 0.0
  %1632 = vmatpush2.msra.mxu0 0.0
  %1633 = vmatprep.subr.mxu0 0.0
  %1634 = vmatpush2.msra.mxu0 0.0
  %1635 = vmatprep.subr.mxu0 0.0
  %1636 = vmatpush2.msra.mxu0 0.0
  %1637 = vmatprep.subr.mxu0 0.0
  %1638 = vmatpush2.msra.mxu0 0.0
  %1639 = vmatprep.subr.mxu0 0.0
  %1640 = vmatpush2.msra.mxu0 0.0
  %1641 = vmatprep.mubr.f32.mxu0 0.0
  %1642 = vmatmul.mubr.f32.gmra.mxu0 %v1575
  %v1643 = vpop.f32.mrf.mxu0
  %v1644 = vadd.f32 %v1355, %v1643
  %v1645 = vpop.f32.mrf.mxu0
  %1646 = vdwg.mxu0
  %v1647 = vadd.f32 %v1573, %v1644
  %v1648 = vxor.u32 %v1647, 2147483648
  %v1649 = vmul.f32 %v1648, 1.442695
  %v1650 = vpow.pop %v1649
  %v1651 = vadd.f32 %v1650, 1.0
  %v1652 = vrcp.pop %v1651
  %v1653 = vmul.f32 1.0, %v1652
  %1655 = vrot.lane.b32.xlu0 %v1644, 96
  %v1656 = vpop.permute.xlu0 %1655
  %v1658 = vmul.f32 %v1653, %v1656
  %1660 = vrot.lane.b32.xlu0 %v1658, 32
  %v1661 = vpop.permute.xlu0 %1660
  %v1663 = vadd.f32 %v1573, %v1661
  %v1664 = vtanh.pop %v1663
  %v1665 = vsub.f32 1.0, %v1653
  %1667 = vrot.lane.b32.xlu0 %v1664, 112
  %v1668 = vpop.permute.xlu0 %1667
  %v1670 = vmul.f32 %v1665, %v1668
  %v1671 = vmul.f32 %v1653, %v1455
  %v1672 = vadd.f32 %v1670, %v1671
  %1673 = vrot.lane.b32.xlu0 %v1560, 64
  %v1674 = vpop.permute.xlu0 %1673
  %v1675 = vsel %vm54, %v1674, 0
  %1677 = vmatprep.subr.mxu0 0.0
  %1678 = vmatpush1.msra.mxu0 0.0
  %1679 = vmatprep.subr.mxu0 0.0
  %1680 = vmatpush1.msra.mxu0 0.0
  %1681 = vmatprep.subr.mxu0 0.0
  %1682 = vmatpush1.msra.mxu0 0.0
  %1683 = vmatprep.subr.mxu0 0.0
  %1684 = vmatpush1.msra.mxu0 0.0
  %1685 = vmatprep.subr.mxu0 0.0
  %1686 = vmatpush1.msra.mxu0 0.0
  %1687 = vmatprep.subr.mxu0 0.0
  %1688 = vmatpush1.msra.mxu0 0.0
  %1689 = vmatprep.subr.mxu0 0.0
  %1690 = vmatpush1.msra.mxu0 0.0
  %1691 = vmatprep.subr.mxu0 0.0
  %1692 = vmatpush1.msra.mxu0 0.0
  %1693 = vmatprep.subr.mxu0 0.0
  %1694 = vmatpush1.msra.mxu0 0.0
  %1695 = vmatprep.subr.mxu0 0.0
  %1696 = vmatpush1.msra.mxu0 0.0
  %1697 = vmatprep.subr.mxu0 0.0
  %1698 = vmatpush1.msra.mxu0 0.0
  %1699 = vmatprep.subr.mxu0 0.0
  %1700 = vmatpush1.msra.mxu0 0.0
  %1701 = vmatprep.subr.mxu0 0.0
  %1702 = vmatpush1.msra.mxu0 0.0
  %1703 = vmatprep.subr.mxu0 0.0
  %1704 = vmatpush1.msra.mxu0 0.0
  %1705 = vmatprep.subr.mxu0 0.0
  %1706 = vmatpush1.msra.mxu0 %v1345
  %1707 = vmatprep.subr.mxu0 0.0
  %1708 = vmatpush1.msra.mxu0 %v1344
  %1709 = vmatprep.subr.mxu0 0.0
  %1710 = vmatpush2.msra.mxu0 0.0
  %1711 = vmatprep.subr.mxu0 0.0
  %1712 = vmatpush2.msra.mxu0 0.0
  %1713 = vmatprep.subr.mxu0 0.0
  %1714 = vmatpush2.msra.mxu0 0.0
  %1715 = vmatprep.subr.mxu0 0.0
  %1716 = vmatpush2.msra.mxu0 0.0
  %1717 = vmatprep.subr.mxu0 0.0
  %1718 = vmatpush2.msra.mxu0 0.0
  %1719 = vmatprep.subr.mxu0 0.0
  %1720 = vmatpush2.msra.mxu0 0.0
  %1721 = vmatprep.subr.mxu0 0.0
  %1722 = vmatpush2.msra.mxu0 0.0
  %1723 = vmatprep.subr.mxu0 0.0
  %1724 = vmatpush2.msra.mxu0 0.0
  %1725 = vmatprep.subr.mxu0 0.0
  %1726 = vmatpush2.msra.mxu0 0.0
  %1727 = vmatprep.subr.mxu0 0.0
  %1728 = vmatpush2.msra.mxu0 0.0
  %1729 = vmatprep.subr.mxu0 0.0
  %1730 = vmatpush2.msra.mxu0 0.0
  %1731 = vmatprep.subr.mxu0 0.0
  %1732 = vmatpush2.msra.mxu0 0.0
  %1733 = vmatprep.subr.mxu0 0.0
  %1734 = vmatpush2.msra.mxu0 0.0
  %1735 = vmatprep.subr.mxu0 0.0
  %1736 = vmatpush2.msra.mxu0 0.0
  %1737 = vmatprep.subr.mxu0 0.0
  %1738 = vmatpush2.msra.mxu0 0.0
  %1739 = vmatprep.subr.mxu0 0.0
  %1740 = vmatpush2.msra.mxu0 0.0
  %1741 = vmatprep.mubr.f32.mxu0 0.0
  %1742 = vmatmul.mubr.f32.gmra.mxu0 %v1675
  %v1743 = vpop.f32.mrf.mxu0
  %v1744 = vadd.f32 %v1460, %v1743
  %v1745 = vpop.f32.mrf.mxu0
  %1746 = vdwg.mxu0
  %1748 = vrot.lane.b32.xlu0 %v1744, 48
  %v1749 = vpop.permute.xlu0 %1748
  %v1751 = vadd.f32 %v1574, %v1749
  %v1752 = vxor.u32 %v1751, 2147483648
  %v1753 = vmul.f32 %v1752, 1.442695
  %v1754 = vpow.pop %v1753
  %v1755 = vadd.f32 %v1754, 1.0
  %v1756 = vrcp.pop %v1755
  %v1757 = vmul.f32 1.0, %v1756
  %1758 = vrot.lane.b32.xlu0 %v1744, 16
  %v1759 = vpop.permute.xlu0 %1758
  %v1761 = vmul.f32 %v1757, %v1759
  %1763 = vrot.lane.b32.xlu0 %v1761, 32
  %v1764 = vpop.permute.xlu0 %1763
  %v1766 = vadd.f32 %v1574, %v1764
  %v1767 = vtanh.pop %v1766
  %v1768 = vsub.f32 1.0, %v1757
  %1770 = vrot.lane.b32.xlu0 %v1767, 112
  %v1771 = vpop.permute.xlu0 %1770
  %v1773 = vmul.f32 %v1768, %v1771
  %v1774 = vmul.f32 %v1757, %v1560
  %v1775 = vadd.f32 %v1773, %v1774
  %1777 = vrot.lane.b32.xlu0 %v1672, 112
  %v1778 = vpop.permute.xlu0 %1777
  %1780 = vst.msk [vmem:[#allocation4 + $0x2] sm:$0x3] %vm1565, %v1778
  %1782 = vrot.lane.b32.xlu0 %v1775, 80
  %v1783 = vpop.permute.xlu0 %1782
  %1785 = vst.msk [vmem:[#allocation4 + $0xc] sm:$0x3] %vm1571, %v1783
  %v1786 = vld [vmem:[#allocation3 + $0x4] sm:$0x3]
  %v1787 = vld [vmem:[#allocation3 + $0xa] sm:$0x3]
  %v1788 = vsel %vm54, %v1778, 0
  %1790 = vmatprep.subr.mxu0 0.0
  %1791 = vmatpush1.msra.mxu0 0.0
  %1792 = vmatprep.subr.mxu0 0.0
  %1793 = vmatpush1.msra.mxu0 0.0
  %1794 = vmatprep.subr.mxu0 0.0
  %1795 = vmatpush1.msra.mxu0 0.0
  %1796 = vmatprep.subr.mxu0 0.0
  %1797 = vmatpush1.msra.mxu0 0.0
  %1798 = vmatprep.subr.mxu0 0.0
  %1799 = vmatpush1.msra.mxu0 0.0
  %1800 = vmatprep.subr.mxu0 0.0
  %1801 = vmatpush1.msra.mxu0 0.0
  %1802 = vmatprep.subr.mxu0 0.0
  %1803 = vmatpush1.msra.mxu0 0.0
  %1804 = vmatprep.subr.mxu0 0.0
  %1805 = vmatpush1.msra.mxu0 0.0
  %1806 = vmatprep.subr.mxu0 0.0
  %1807 = vmatpush1.msra.mxu0 0.0
  %1808 = vmatprep.subr.mxu0 0.0
  %1809 = vmatpush1.msra.mxu0 0.0
  %1810 = vmatprep.subr.mxu0 0.0
  %1811 = vmatpush1.msra.mxu0 0.0
  %1812 = vmatprep.subr.mxu0 0.0
  %1813 = vmatpush1.msra.mxu0 0.0
  %1814 = vmatprep.subr.mxu0 0.0
  %1815 = vmatpush1.msra.mxu0 0.0
  %1816 = vmatprep.subr.mxu0 0.0
  %1817 = vmatpush1.msra.mxu0 0.0
  %1818 = vmatprep.subr.mxu0 0.0
  %1819 = vmatpush1.msra.mxu0 %v1342
  %1820 = vmatprep.subr.mxu0 0.0
  %1821 = vmatpush1.msra.mxu0 %v1341
  %1822 = vmatprep.subr.mxu0 0.0
  %1823 = vmatpush2.msra.mxu0 0.0
  %1824 = vmatprep.subr.mxu0 0.0
  %1825 = vmatpush2.msra.mxu0 0.0
  %1826 = vmatprep.subr.mxu0 0.0
  %1827 = vmatpush2.msra.mxu0 0.0
  %1828 = vmatprep.subr.mxu0 0.0
  %1829 = vmatpush2.msra.mxu0 0.0
  %1830 = vmatprep.subr.mxu0 0.0
  %1831 = vmatpush2.msra.mxu0 0.0
  %1832 = vmatprep.subr.mxu0 0.0
  %1833 = vmatpush2.msra.mxu0 0.0
  %1834 = vmatprep.subr.mxu0 0.0
  %1835 = vmatpush2.msra.mxu0 0.0
  %1836 = vmatprep.subr.mxu0 0.0
  %1837 = vmatpush2.msra.mxu0 0.0
  %1838 = vmatprep.subr.mxu0 0.0
  %1839 = vmatpush2.msra.mxu0 0.0
  %1840 = vmatprep.subr.mxu0 0.0
  %1841 = vmatpush2.msra.mxu0 0.0
  %1842 = vmatprep.subr.mxu0 0.0
  %1843 = vmatpush2.msra.mxu0 0.0
  %1844 = vmatprep.subr.mxu0 0.0
  %1845 = vmatpush2.msra.mxu0 0.0
  %1846 = vmatprep.subr.mxu0 0.0
  %1847 = vmatpush2.msra.mxu0 0.0
  %1848 = vmatprep.subr.mxu0 0.0
  %1849 = vmatpush2.msra.mxu0 0.0
  %1850 = vmatprep.subr.mxu0 0.0
  %1851 = vmatpush2.msra.mxu0 0.0
  %1852 = vmatprep.subr.mxu0 0.0
  %1853 = vmatpush2.msra.mxu0 0.0
  %1854 = vmatprep.mubr.f32.mxu0 0.0
  %1855 = vmatmul.mubr.f32.gmra.mxu0 %v1788
  %v1856 = vpop.f32.mrf.mxu0
  %v1857 = vadd.f32 %v1355, %v1856
  %v1858 = vpop.f32.mrf.mxu0
  %1859 = vdwg.mxu0
  %v1860 = vadd.f32 %v1786, %v1857
  %v1861 = vxor.u32 %v1860, 2147483648
  %v1862 = vmul.f32 %v1861, 1.442695
  %v1863 = vpow.pop %v1862
  %v1864 = vadd.f32 %v1863, 1.0
  %v1865 = vrcp.pop %v1864
  %v1866 = vmul.f32 1.0, %v1865
  %1868 = vrot.lane.b32.xlu0 %v1857, 96
  %v1869 = vpop.permute.xlu0 %1868
  %v1871 = vmul.f32 %v1866, %v1869
  %1873 = vrot.lane.b32.xlu0 %v1871, 32
  %v1874 = vpop.permute.xlu0 %1873
  %v1876 = vadd.f32 %v1786, %v1874
  %v1877 = vtanh.pop %v1876
  %v1878 = vsub.f32 1.0, %v1866
  %1880 = vrot.lane.b32.xlu0 %v1877, 112
  %v1881 = vpop.permute.xlu0 %1880
  %v1883 = vmul.f32 %v1878, %v1881
  %v1884 = vmul.f32 %v1866, %v1672
  %v1885 = vadd.f32 %v1883, %v1884
  %1886 = vrot.lane.b32.xlu0 %v1775, 64
  %v1887 = vpop.permute.xlu0 %1886
  %v1888 = vsel %vm54, %v1887, 0
  %1890 = vmatprep.subr.mxu0 0.0
  %1891 = vmatpush1.msra.mxu0 0.0
  %1892 = vmatprep.subr.mxu0 0.0
  %1893 = vmatpush1.msra.mxu0 0.0
  %1894 = vmatprep.subr.mxu0 0.0
  %1895 = vmatpush1.msra.mxu0 0.0
  %1896 = vmatprep.subr.mxu0 0.0
  %1897 = vmatpush1.msra.mxu0 0.0
  %1898 = vmatprep.subr.mxu0 0.0
  %1899 = vmatpush1.msra.mxu0 0.0
  %1900 = vmatprep.subr.mxu0 0.0
  %1901 = vmatpush1.msra.mxu0 0.0
  %1902 = vmatprep.subr.mxu0 0.0
  %1903 = vmatpush1.msra.mxu0 0.0
  %1904 = vmatprep.subr.mxu0 0.0
  %1905 = vmatpush1.msra.mxu0 0.0
  %1906 = vmatprep.subr.mxu0 0.0
  %1907 = vmatpush1.msra.mxu0 0.0
  %1908 = vmatprep.subr.mxu0 0.0
  %1909 = vmatpush1.msra.mxu0 0.0
  %1910 = vmatprep.subr.mxu0 0.0
  %1911 = vmatpush1.msra.mxu0 0.0
  %1912 = vmatprep.subr.mxu0 0.0
  %1913 = vmatpush1.msra.mxu0 0.0
  %1914 = vmatprep.subr.mxu0 0.0
  %1915 = vmatpush1.msra.mxu0 0.0
  %1916 = vmatprep.subr.mxu0 0.0
  %1917 = vmatpush1.msra.mxu0 0.0
  %1918 = vmatprep.subr.mxu0 0.0
  %1919 = vmatpush1.msra.mxu0 %v1345
  %1920 = vmatprep.subr.mxu0 0.0
  %1921 = vmatpush1.msra.mxu0 %v1344
  %1922 = vmatprep.subr.mxu0 0.0
  %1923 = vmatpush2.msra.mxu0 0.0
  %1924 = vmatprep.subr.mxu0 0.0
  %1925 = vmatpush2.msra.mxu0 0.0
  %1926 = vmatprep.subr.mxu0 0.0
  %1927 = vmatpush2.msra.mxu0 0.0
  %1928 = vmatprep.subr.mxu0 0.0
  %1929 = vmatpush2.msra.mxu0 0.0
  %1930 = vmatprep.subr.mxu0 0.0
  %1931 = vmatpush2.msra.mxu0 0.0
  %1932 = vmatprep.subr.mxu0 0.0
  %1933 = vmatpush2.msra.mxu0 0.0
  %1934 = vmatprep.subr.mxu0 0.0
  %1935 = vmatpush2.msra.mxu0 0.0
  %1936 = vmatprep.subr.mxu0 0.0
  %1937 = vmatpush2.msra.mxu0 0.0
  %1938 = vmatprep.subr.mxu0 0.0
  %1939 = vmatpush2.msra.mxu0 0.0
  %1940 = vmatprep.subr.mxu0 0.0
  %1941 = vmatpush2.msra.mxu0 0.0
  %1942 = vmatprep.subr.mxu0 0.0
  %1943 = vmatpush2.msra.mxu0 0.0
  %1944 = vmatprep.subr.mxu0 0.0
  %1945 = vmatpush2.msra.mxu0 0.0
  %1946 = vmatprep.subr.mxu0 0.0
  %1947 = vmatpush2.msra.mxu0 0.0
  %1948 = vmatprep.subr.mxu0 0.0
  %1949 = vmatpush2.msra.mxu0 0.0
  %1950 = vmatprep.subr.mxu0 0.0
  %1951 = vmatpush2.msra.mxu0 0.0
  %1952 = vmatprep.subr.mxu0 0.0
  %1953 = vmatpush2.msra.mxu0 0.0
  %1954 = vmatprep.mubr.f32.mxu0 0.0
  %1955 = vmatmul.mubr.f32.gmra.mxu0 %v1888
  %v1956 = vpop.f32.mrf.mxu0
  %v1957 = vadd.f32 %v1460, %v1956
  %v1958 = vpop.f32.mrf.mxu0
  %1959 = vdwg.mxu0
  %1961 = vrot.lane.b32.xlu0 %v1957, 48
  %v1962 = vpop.permute.xlu0 %1961
  %v1964 = vadd.f32 %v1787, %v1962
  %v1965 = vxor.u32 %v1964, 2147483648
  %v1966 = vmul.f32 %v1965, 1.442695
  %v1967 = vpow.pop %v1966
  %v1968 = vadd.f32 %v1967, 1.0
  %v1969 = vrcp.pop %v1968
  %v1970 = vmul.f32 1.0, %v1969
  %1971 = vrot.lane.b32.xlu0 %v1957, 16
  %v1972 = vpop.permute.xlu0 %1971
  %v1974 = vmul.f32 %v1970, %v1972
  %1976 = vrot.lane.b32.xlu0 %v1974, 32
  %v1977 = vpop.permute.xlu0 %1976
  %v1979 = vadd.f32 %v1787, %v1977
  %v1980 = vtanh.pop %v1979
  %v1981 = vsub.f32 1.0, %v1970
  %1983 = vrot.lane.b32.xlu0 %v1980, 112
  %v1984 = vpop.permute.xlu0 %1983
  %v1986 = vmul.f32 %v1981, %v1984
  %v1987 = vmul.f32 %v1970, %v1775
  %v1988 = vadd.f32 %v1986, %v1987
  %1990 = vrot.lane.b32.xlu0 %v1885, 112
  %v1991 = vpop.permute.xlu0 %1990
  %1993 = vst.msk [vmem:[#allocation4 + $0x4] sm:$0x3] %vm1565, %v1991
  %1995 = vrot.lane.b32.xlu0 %v1988, 80
  %v1996 = vpop.permute.xlu0 %1995
  %1998 = vst.msk [vmem:[#allocation4 + $0xa] sm:$0x3] %vm1571, %v1996
  %v1999 = vld [vmem:[#allocation3 + $0x6] sm:$0x3]
  %v2000 = vld [vmem:[#allocation3 + $0x8] sm:$0x3]
  %v2001 = vsel %vm54, %v1991, 0
  %2003 = vmatprep.subr.mxu0 0.0
  %2004 = vmatpush1.msra.mxu0 0.0
  %2005 = vmatprep.subr.mxu0 0.0
  %2006 = vmatpush1.msra.mxu0 0.0
  %2007 = vmatprep.subr.mxu0 0.0
  %2008 = vmatpush1.msra.mxu0 0.0
  %2009 = vmatprep.subr.mxu0 0.0
  %2010 = vmatpush1.msra.mxu0 0.0
  %2011 = vmatprep.subr.mxu0 0.0
  %2012 = vmatpush1.msra.mxu0 0.0
  %2013 = vmatprep.subr.mxu0 0.0
  %2014 = vmatpush1.msra.mxu0 0.0
  %2015 = vmatprep.subr.mxu0 0.0
  %2016 = vmatpush1.msra.mxu0 0.0
  %2017 = vmatprep.subr.mxu0 0.0
  %2018 = vmatpush1.msra.mxu0 0.0
  %2019 = vmatprep.subr.mxu0 0.0
  %2020 = vmatpush1.msra.mxu0 0.0
  %2021 = vmatprep.subr.mxu0 0.0
  %2022 = vmatpush1.msra.mxu0 0.0
  %2023 = vmatprep.subr.mxu0 0.0
  %2024 = vmatpush1.msra.mxu0 0.0
  %2025 = vmatprep.subr.mxu0 0.0
  %2026 = vmatpush1.msra.mxu0 0.0
  %2027 = vmatprep.subr.mxu0 0.0
  %2028 = vmatpush1.msra.mxu0 0.0
  %2029 = vmatprep.subr.mxu0 0.0
  %2030 = vmatpush1.msra.mxu0 0.0
  %2031 = vmatprep.subr.mxu0 0.0
  %2032 = vmatpush1.msra.mxu0 %v1342
  %2033 = vmatprep.subr.mxu0 0.0
  %2034 = vmatpush1.msra.mxu0 %v1341
  %2035 = vmatprep.subr.mxu0 0.0
  %2036 = vmatpush2.msra.mxu0 0.0
  %2037 = vmatprep.subr.mxu0 0.0
  %2038 = vmatpush2.msra.mxu0 0.0
  %2039 = vmatprep.subr.mxu0 0.0
  %2040 = vmatpush2.msra.mxu0 0.0
  %2041 = vmatprep.subr.mxu0 0.0
  %2042 = vmatpush2.msra.mxu0 0.0
  %2043 = vmatprep.subr.mxu0 0.0
  %2044 = vmatpush2.msra.mxu0 0.0
  %2045 = vmatprep.subr.mxu0 0.0
  %2046 = vmatpush2.msra.mxu0 0.0
  %2047 = vmatprep.subr.mxu0 0.0
  %2048 = vmatpush2.msra.mxu0 0.0
  %2049 = vmatprep.subr.mxu0 0.0
  %2050 = vmatpush2.msra.mxu0 0.0
  %2051 = vmatprep.subr.mxu0 0.0
  %2052 = vmatpush2.msra.mxu0 0.0
  %2053 = vmatprep.subr.mxu0 0.0
  %2054 = vmatpush2.msra.mxu0 0.0
  %2055 = vmatprep.subr.mxu0 0.0
  %2056 = vmatpush2.msra.mxu0 0.0
  %2057 = vmatprep.subr.mxu0 0.0
  %2058 = vmatpush2.msra.mxu0 0.0
  %2059 = vmatprep.subr.mxu0 0.0
  %2060 = vmatpush2.msra.mxu0 0.0
  %2061 = vmatprep.subr.mxu0 0.0
  %2062 = vmatpush2.msra.mxu0 0.0
  %2063 = vmatprep.subr.mxu0 0.0
  %2064 = vmatpush2.msra.mxu0 0.0
  %2065 = vmatprep.subr.mxu0 0.0
  %2066 = vmatpush2.msra.mxu0 0.0
  %2067 = vmatprep.mubr.f32.mxu0 0.0
  %2068 = vmatmul.mubr.f32.gmra.mxu0 %v2001
  %v2069 = vpop.f32.mrf.mxu0
  %v2070 = vadd.f32 %v1355, %v2069
  %v2071 = vpop.f32.mrf.mxu0
  %2072 = vdwg.mxu0
  %v2073 = vadd.f32 %v1999, %v2070
  %v2074 = vxor.u32 %v2073, 2147483648
  %v2075 = vmul.f32 %v2074, 1.442695
  %v2076 = vpow.pop %v2075
  %v2077 = vadd.f32 %v2076, 1.0
  %v2078 = vrcp.pop %v2077
  %v2079 = vmul.f32 1.0, %v2078
  %2081 = vrot.lane.b32.xlu0 %v2070, 96
  %v2082 = vpop.permute.xlu0 %2081
  %v2084 = vmul.f32 %v2079, %v2082
  %2086 = vrot.lane.b32.xlu0 %v2084, 32
  %v2087 = vpop.permute.xlu0 %2086
  %v2089 = vadd.f32 %v1999, %v2087
  %v2090 = vtanh.pop %v2089
  %v2091 = vsub.f32 1.0, %v2079
  %2093 = vrot.lane.b32.xlu0 %v2090, 112
  %v2094 = vpop.permute.xlu0 %2093
  %v2096 = vmul.f32 %v2091, %v2094
  %v2097 = vmul.f32 %v2079, %v1885
  %v2098 = vadd.f32 %v2096, %v2097
  %2099 = vrot.lane.b32.xlu0 %v1988, 64
  %v2100 = vpop.permute.xlu0 %2099
  %v2101 = vsel %vm54, %v2100, 0
  %2103 = vmatprep.subr.mxu0 0.0
  %2104 = vmatpush1.msra.mxu0 0.0
  %2105 = vmatprep.subr.mxu0 0.0
  %2106 = vmatpush1.msra.mxu0 0.0
  %2107 = vmatprep.subr.mxu0 0.0
  %2108 = vmatpush1.msra.mxu0 0.0
  %2109 = vmatprep.subr.mxu0 0.0
  %2110 = vmatpush1.msra.mxu0 0.0
  %2111 = vmatprep.subr.mxu0 0.0
  %2112 = vmatpush1.msra.mxu0 0.0
  %2113 = vmatprep.subr.mxu0 0.0
  %2114 = vmatpush1.msra.mxu0 0.0
  %2115 = vmatprep.subr.mxu0 0.0
  %2116 = vmatpush1.msra.mxu0 0.0
  %2117 = vmatprep.subr.mxu0 0.0
  %2118 = vmatpush1.msra.mxu0 0.0
  %2119 = vmatprep.subr.mxu0 0.0
  %2120 = vmatpush1.msra.mxu0 0.0
  %2121 = vmatprep.subr.mxu0 0.0
  %2122 = vmatpush1.msra.mxu0 0.0
  %2123 = vmatprep.subr.mxu0 0.0
  %2124 = vmatpush1.msra.mxu0 0.0
  %2125 = vmatprep.subr.mxu0 0.0
  %2126 = vmatpush1.msra.mxu0 0.0
  %2127 = vmatprep.subr.mxu0 0.0
  %2128 = vmatpush1.msra.mxu0 0.0
  %2129 = vmatprep.subr.mxu0 0.0
  %2130 = vmatpush1.msra.mxu0 0.0
  %2131 = vmatprep.subr.mxu0 0.0
  %2132 = vmatpush1.msra.mxu0 %v1345
  %2133 = vmatprep.subr.mxu0 0.0
  %2134 = vmatpush1.msra.mxu0 %v1344
  %2135 = vmatprep.subr.mxu0 0.0
  %2136 = vmatpush2.msra.mxu0 0.0
  %2137 = vmatprep.subr.mxu0 0.0
  %2138 = vmatpush2.msra.mxu0 0.0
  %2139 = vmatprep.subr.mxu0 0.0
  %2140 = vmatpush2.msra.mxu0 0.0
  %2141 = vmatprep.subr.mxu0 0.0
  %2142 = vmatpush2.msra.mxu0 0.0
  %2143 = vmatprep.subr.mxu0 0.0
  %2144 = vmatpush2.msra.mxu0 0.0
  %2145 = vmatprep.subr.mxu0 0.0
  %2146 = vmatpush2.msra.mxu0 0.0
  %2147 = vmatprep.subr.mxu0 0.0
  %2148 = vmatpush2.msra.mxu0 0.0
  %2149 = vmatprep.subr.mxu0 0.0
  %2150 = vmatpush2.msra.mxu0 0.0
  %2151 = vmatprep.subr.mxu0 0.0
  %2152 = vmatpush2.msra.mxu0 0.0
  %2153 = vmatprep.subr.mxu0 0.0
  %2154 = vmatpush2.msra.mxu0 0.0
  %2155 = vmatprep.subr.mxu0 0.0
  %2156 = vmatpush2.msra.mxu0 0.0
  %2157 = vmatprep.subr.mxu0 0.0
  %2158 = vmatpush2.msra.mxu0 0.0
  %2159 = vmatprep.subr.mxu0 0.0
  %2160 = vmatpush2.msra.mxu0 0.0
  %2161 = vmatprep.subr.mxu0 0.0
  %2162 = vmatpush2.msra.mxu0 0.0
  %2163 = vmatprep.subr.mxu0 0.0
  %2164 = vmatpush2.msra.mxu0 0.0
  %2165 = vmatprep.subr.mxu0 0.0
  %2166 = vmatpush2.msra.mxu0 0.0
  %2167 = vmatprep.mubr.f32.mxu0 0.0
  %2168 = vmatmul.mubr.f32.gmra.mxu0 %v2101
  %v2169 = vpop.f32.mrf.mxu0
  %v2170 = vadd.f32 %v1460, %v2169
  %v2171 = vpop.f32.mrf.mxu0
  %2172 = vdwg.mxu0
  %2174 = vrot.lane.b32.xlu0 %v2170, 48
  %v2175 = vpop.permute.xlu0 %2174
  %v2177 = vadd.f32 %v2000, %v2175
  %v2178 = vxor.u32 %v2177, 2147483648
  %v2179 = vmul.f32 %v2178, 1.442695
  %v2180 = vpow.pop %v2179
  %v2181 = vadd.f32 %v2180, 1.0
  %v2182 = vrcp.pop %v2181
  %v2183 = vmul.f32 1.0, %v2182
  %2184 = vrot.lane.b32.xlu0 %v2170, 16
  %v2185 = vpop.permute.xlu0 %2184
  %v2187 = vmul.f32 %v2183, %v2185
  %2189 = vrot.lane.b32.xlu0 %v2187, 32
  %v2190 = vpop.permute.xlu0 %2189
  %v2192 = vadd.f32 %v2000, %v2190
  %v2193 = vtanh.pop %v2192
  %v2194 = vsub.f32 1.0, %v2183
  %2196 = vrot.lane.b32.xlu0 %v2193, 112
  %v2197 = vpop.permute.xlu0 %2196
  %v2199 = vmul.f32 %v2194, %v2197
  %v2200 = vmul.f32 %v2183, %v1988
  %v2201 = vadd.f32 %v2199, %v2200
  %2203 = vrot.lane.b32.xlu0 %v2098, 112
  %v2204 = vpop.permute.xlu0 %2203
  %2206 = vst.msk [vmem:[#allocation4 + $0x6] sm:$0x3] %vm1565, %v2204
  %2208 = vrot.lane.b32.xlu0 %v2201, 80
  %v2209 = vpop.permute.xlu0 %2208
  %2211 = vst.msk [vmem:[#allocation4 + $0x8] sm:$0x3] %vm1571, %v2209
  %v2212 = vld [vmem:[#allocation3 + $0x8] sm:$0x3]
  %v2213 = vld [vmem:[#allocation3 + $0x6] sm:$0x3]
  %v2214 = vsel %vm54, %v2204, 0
  %2216 = vmatprep.subr.mxu0 0.0
  %2217 = vmatpush1.msra.mxu0 0.0
  %2218 = vmatprep.subr.mxu0 0.0
  %2219 = vmatpush1.msra.mxu0 0.0
  %2220 = vmatprep.subr.mxu0 0.0
  %2221 = vmatpush1.msra.mxu0 0.0
  %2222 = vmatprep.subr.mxu0 0.0
  %2223 = vmatpush1.msra.mxu0 0.0
  %2224 = vmatprep.subr.mxu0 0.0
  %2225 = vmatpush1.msra.mxu0 0.0
  %2226 = vmatprep.subr.mxu0 0.0
  %2227 = vmatpush1.msra.mxu0 0.0
  %2228 = vmatprep.subr.mxu0 0.0
  %2229 = vmatpush1.msra.mxu0 0.0
  %2230 = vmatprep.subr.mxu0 0.0
  %2231 = vmatpush1.msra.mxu0 0.0
  %2232 = vmatprep.subr.mxu0 0.0
  %2233 = vmatpush1.msra.mxu0 0.0
  %2234 = vmatprep.subr.mxu0 0.0
  %2235 = vmatpush1.msra.mxu0 0.0
  %2236 = vmatprep.subr.mxu0 0.0
  %2237 = vmatpush1.msra.mxu0 0.0
  %2238 = vmatprep.subr.mxu0 0.0
  %2239 = vmatpush1.msra.mxu0 0.0
  %2240 = vmatprep.subr.mxu0 0.0
  %2241 = vmatpush1.msra.mxu0 0.0
  %2242 = vmatprep.subr.mxu0 0.0
  %2243 = vmatpush1.msra.mxu0 0.0
  %2244 = vmatprep.subr.mxu0 0.0
  %2245 = vmatpush1.msra.mxu0 %v1342
  %2246 = vmatprep.subr.mxu0 0.0
  %2247 = vmatpush1.msra.mxu0 %v1341
  %2248 = vmatprep.subr.mxu0 0.0
  %2249 = vmatpush2.msra.mxu0 0.0
  %2250 = vmatprep.subr.mxu0 0.0
  %2251 = vmatpush2.msra.mxu0 0.0
  %2252 = vmatprep.subr.mxu0 0.0
  %2253 = vmatpush2.msra.mxu0 0.0
  %2254 = vmatprep.subr.mxu0 0.0
  %2255 = vmatpush2.msra.mxu0 0.0
  %2256 = vmatprep.subr.mxu0 0.0
  %2257 = vmatpush2.msra.mxu0 0.0
  %2258 = vmatprep.subr.mxu0 0.0
  %2259 = vmatpush2.msra.mxu0 0.0
  %2260 = vmatprep.subr.mxu0 0.0
  %2261 = vmatpush2.msra.mxu0 0.0
  %2262 = vmatprep.subr.mxu0 0.0
  %2263 = vmatpush2.msra.mxu0 0.0
  %2264 = vmatprep.subr.mxu0 0.0
  %2265 = vmatpush2.msra.mxu0 0.0
  %2266 = vmatprep.subr.mxu0 0.0
  %2267 = vmatpush2.msra.mxu0 0.0
  %2268 = vmatprep.subr.mxu0 0.0
  %2269 = vmatpush2.msra.mxu0 0.0
  %2270 = vmatprep.subr.mxu0 0.0
  %2271 = vmatpush2.msra.mxu0 0.0
  %2272 = vmatprep.subr.mxu0 0.0
  %2273 = vmatpush2.msra.mxu0 0.0
  %2274 = vmatprep.subr.mxu0 0.0
  %2275 = vmatpush2.msra.mxu0 0.0
  %2276 = vmatprep.subr.mxu0 0.0
  %2277 = vmatpush2.msra.mxu0 0.0
  %2278 = vmatprep.subr.mxu0 0.0
  %2279 = vmatpush2.msra.mxu0 0.0
  %2280 = vmatprep.mubr.f32.mxu0 0.0
  %2281 = vmatmul.mubr.f32.gmra.mxu0 %v2214
  %v2282 = vpop.f32.mrf.mxu0
  %v2283 = vadd.f32 %v1355, %v2282
  %v2284 = vpop.f32.mrf.mxu0
  %2285 = vdwg.mxu0
  %v2286 = vadd.f32 %v2212, %v2283
  %v2287 = vxor.u32 %v2286, 2147483648
  %v2288 = vmul.f32 %v2287, 1.442695
  %v2289 = vpow.pop %v2288
  %v2290 = vadd.f32 %v2289, 1.0
  %v2291 = vrcp.pop %v2290
  %v2292 = vmul.f32 1.0, %v2291
  %2294 = vrot.lane.b32.xlu0 %v2283, 96
  %v2295 = vpop.permute.xlu0 %2294
  %v2297 = vmul.f32 %v2292, %v2295
  %2299 = vrot.lane.b32.xlu0 %v2297, 32
  %v2300 = vpop.permute.xlu0 %2299
  %v2302 = vadd.f32 %v2212, %v2300
  %v2303 = vtanh.pop %v2302
  %v2304 = vsub.f32 1.0, %v2292
  %2306 = vrot.lane.b32.xlu0 %v2303, 112
  %v2307 = vpop.permute.xlu0 %2306
  %v2309 = vmul.f32 %v2304, %v2307
  %v2310 = vmul.f32 %v2292, %v2098
  %v2311 = vadd.f32 %v2309, %v2310
  %2312 = vrot.lane.b32.xlu0 %v2201, 64
  %v2313 = vpop.permute.xlu0 %2312
  %v2314 = vsel %vm54, %v2313, 0
  %2316 = vmatprep.subr.mxu0 0.0
  %2317 = vmatpush1.msra.mxu0 0.0
  %2318 = vmatprep.subr.mxu0 0.0
  %2319 = vmatpush1.msra.mxu0 0.0
  %2320 = vmatprep.subr.mxu0 0.0
  %2321 = vmatpush1.msra.mxu0 0.0
  %2322 = vmatprep.subr.mxu0 0.0
  %2323 = vmatpush1.msra.mxu0 0.0
  %2324 = vmatprep.subr.mxu0 0.0
  %2325 = vmatpush1.msra.mxu0 0.0
  %2326 = vmatprep.subr.mxu0 0.0
  %2327 = vmatpush1.msra.mxu0 0.0
  %2328 = vmatprep.subr.mxu0 0.0
  %2329 = vmatpush1.msra.mxu0 0.0
  %2330 = vmatprep.subr.mxu0 0.0
  %2331 = vmatpush1.msra.mxu0 0.0
  %2332 = vmatprep.subr.mxu0 0.0
  %2333 = vmatpush1.msra.mxu0 0.0
  %2334 = vmatprep.subr.mxu0 0.0
  %2335 = vmatpush1.msra.mxu0 0.0
  %2336 = vmatprep.subr.mxu0 0.0
  %2337 = vmatpush1.msra.mxu0 0.0
  %2338 = vmatprep.subr.mxu0 0.0
  %2339 = vmatpush1.msra.mxu0 0.0
  %2340 = vmatprep.subr.mxu0 0.0
  %2341 = vmatpush1.msra.mxu0 0.0
  %2342 = vmatprep.subr.mxu0 0.0
  %2343 = vmatpush1.msra.mxu0 0.0
  %2344 = vmatprep.subr.mxu0 0.0
  %2345 = vmatpush1.msra.mxu0 %v1345
  %2346 = vmatprep.subr.mxu0 0.0
  %2347 = vmatpush1.msra.mxu0 %v1344
  %2348 = vmatprep.subr.mxu0 0.0
  %2349 = vmatpush2.msra.mxu0 0.0
  %2350 = vmatprep.subr.mxu0 0.0
  %2351 = vmatpush2.msra.mxu0 0.0
  %2352 = vmatprep.subr.mxu0 0.0
  %2353 = vmatpush2.msra.mxu0 0.0
  %2354 = vmatprep.subr.mxu0 0.0
  %2355 = vmatpush2.msra.mxu0 0.0
  %2356 = vmatprep.subr.mxu0 0.0
  %2357 = vmatpush2.msra.mxu0 0.0
  %2358 = vmatprep.subr.mxu0 0.0
  %2359 = vmatpush2.msra.mxu0 0.0
  %2360 = vmatprep.subr.mxu0 0.0
  %2361 = vmatpush2.msra.mxu0 0.0
  %2362 = vmatprep.subr.mxu0 0.0
  %2363 = vmatpush2.msra.mxu0 0.0
  %2364 = vmatprep.subr.mxu0 0.0
  %2365 = vmatpush2.msra.mxu0 0.0
  %2366 = vmatprep.subr.mxu0 0.0
  %2367 = vmatpush2.msra.mxu0 0.0
  %2368 = vmatprep.subr.mxu0 0.0
  %2369 = vmatpush2.msra.mxu0 0.0
  %2370 = vmatprep.subr.mxu0 0.0
  %2371 = vmatpush2.msra.mxu0 0.0
  %2372 = vmatprep.subr.mxu0 0.0
  %2373 = vmatpush2.msra.mxu0 0.0
  %2374 = vmatprep.subr.mxu0 0.0
  %2375 = vmatpush2.msra.mxu0 0.0
  %2376 = vmatprep.subr.mxu0 0.0
  %2377 = vmatpush2.msra.mxu0 0.0
  %2378 = vmatprep.subr.mxu0 0.0
  %2379 = vmatpush2.msra.mxu0 0.0
  %2380 = vmatprep.mubr.f32.mxu0 0.0
  %2381 = vmatmul.mubr.f32.gmra.mxu0 %v2314
  %v2382 = vpop.f32.mrf.mxu0
  %v2383 = vadd.f32 %v1460, %v2382
  %v2384 = vpop.f32.mrf.mxu0
  %2385 = vdwg.mxu0
  %2387 = vrot.lane.b32.xlu0 %v2383, 48
  %v2388 = vpop.permute.xlu0 %2387
  %v2390 = vadd.f32 %v2213, %v2388
  %v2391 = vxor.u32 %v2390, 2147483648
  %v2392 = vmul.f32 %v2391, 1.442695
  %v2393 = vpow.pop %v2392
  %v2394 = vadd.f32 %v2393, 1.0
  %v2395 = vrcp.pop %v2394
  %v2396 = vmul.f32 1.0, %v2395
  %2397 = vrot.lane.b32.xlu0 %v2383, 16
  %v2398 = vpop.permute.xlu0 %2397
  %v2400 = vmul.f32 %v2396, %v2398
  %2402 = vrot.lane.b32.xlu0 %v2400, 32
  %v2403 = vpop.permute.xlu0 %2402
  %v2405 = vadd.f32 %v2213, %v2403
  %v2406 = vtanh.pop %v2405
  %v2407 = vsub.f32 1.0, %v2396
  %2409 = vrot.lane.b32.xlu0 %v2406, 112
  %v2410 = vpop.permute.xlu0 %2409
  %v2412 = vmul.f32 %v2407, %v2410
  %v2413 = vmul.f32 %v2396, %v2201
  %v2414 = vadd.f32 %v2412, %v2413
  %2416 = vrot.lane.b32.xlu0 %v2311, 112
  %v2417 = vpop.permute.xlu0 %2416
  %2419 = vst.msk [vmem:[#allocation4 + $0x8] sm:$0x3] %vm1565, %v2417
  %2421 = vrot.lane.b32.xlu0 %v2414, 80
  %v2422 = vpop.permute.xlu0 %2421
  %2424 = vst.msk [vmem:[#allocation4 + $0x6] sm:$0x3] %vm1571, %v2422
  %v2425 = vld [vmem:[#allocation3 + $0xa] sm:$0x3]
  %v2426 = vld [vmem:[#allocation3 + $0x4] sm:$0x3]
  %v2427 = vsel %vm54, %v2417, 0
  %2429 = vmatprep.subr.mxu0 0.0
  %2430 = vmatpush1.msra.mxu0 0.0
  %2431 = vmatprep.subr.mxu0 0.0
  %2432 = vmatpush1.msra.mxu0 0.0
  %2433 = vmatprep.subr.mxu0 0.0
  %2434 = vmatpush1.msra.mxu0 0.0
  %2435 = vmatprep.subr.mxu0 0.0
  %2436 = vmatpush1.msra.mxu0 0.0
  %2437 = vmatprep.subr.mxu0 0.0
  %2438 = vmatpush1.msra.mxu0 0.0
  %2439 = vmatprep.subr.mxu0 0.0
  %2440 = vmatpush1.msra.mxu0 0.0
  %2441 = vmatprep.subr.mxu0 0.0
  %2442 = vmatpush1.msra.mxu0 0.0
  %2443 = vmatprep.subr.mxu0 0.0
  %2444 = vmatpush1.msra.mxu0 0.0
  %2445 = vmatprep.subr.mxu0 0.0
  %2446 = vmatpush1.msra.mxu0 0.0
  %2447 = vmatprep.subr.mxu0 0.0
  %2448 = vmatpush1.msra.mxu0 0.0
  %2449 = vmatprep.subr.mxu0 0.0
  %2450 = vmatpush1.msra.mxu0 0.0
  %2451 = vmatprep.subr.mxu0 0.0
  %2452 = vmatpush1.msra.mxu0 0.0
  %2453 = vmatprep.subr.mxu0 0.0
  %2454 = vmatpush1.msra.mxu0 0.0
  %2455 = vmatprep.subr.mxu0 0.0
  %2456 = vmatpush1.msra.mxu0 0.0
  %2457 = vmatprep.subr.mxu0 0.0
  %2458 = vmatpush1.msra.mxu0 %v1342
  %2459 = vmatprep.subr.mxu0 0.0
  %2460 = vmatpush1.msra.mxu0 %v1341
  %2461 = vmatprep.subr.mxu0 0.0
  %2462 = vmatpush2.msra.mxu0 0.0
  %2463 = vmatprep.subr.mxu0 0.0
  %2464 = vmatpush2.msra.mxu0 0.0
  %2465 = vmatprep.subr.mxu0 0.0
  %2466 = vmatpush2.msra.mxu0 0.0
  %2467 = vmatprep.subr.mxu0 0.0
  %2468 = vmatpush2.msra.mxu0 0.0
  %2469 = vmatprep.subr.mxu0 0.0
  %2470 = vmatpush2.msra.mxu0 0.0
  %2471 = vmatprep.subr.mxu0 0.0
  %2472 = vmatpush2.msra.mxu0 0.0
  %2473 = vmatprep.subr.mxu0 0.0
  %2474 = vmatpush2.msra.mxu0 0.0
  %2475 = vmatprep.subr.mxu0 0.0
  %2476 = vmatpush2.msra.mxu0 0.0
  %2477 = vmatprep.subr.mxu0 0.0
  %2478 = vmatpush2.msra.mxu0 0.0
  %2479 = vmatprep.subr.mxu0 0.0
  %2480 = vmatpush2.msra.mxu0 0.0
  %2481 = vmatprep.subr.mxu0 0.0
  %2482 = vmatpush2.msra.mxu0 0.0
  %2483 = vmatprep.subr.mxu0 0.0
  %2484 = vmatpush2.msra.mxu0 0.0
  %2485 = vmatprep.subr.mxu0 0.0
  %2486 = vmatpush2.msra.mxu0 0.0
  %2487 = vmatprep.subr.mxu0 0.0
  %2488 = vmatpush2.msra.mxu0 0.0
  %2489 = vmatprep.subr.mxu0 0.0
  %2490 = vmatpush2.msra.mxu0 0.0
  %2491 = vmatprep.subr.mxu0 0.0
  %2492 = vmatpush2.msra.mxu0 0.0
  %2493 = vmatprep.mubr.f32.mxu0 0.0
  %2494 = vmatmul.mubr.f32.gmra.mxu0 %v2427
  %v2495 = vpop.f32.mrf.mxu0
  %v2496 = vadd.f32 %v1355, %v2495
  %v2497 = vpop.f32.mrf.mxu0
  %2498 = vdwg.mxu0
  %v2499 = vadd.f32 %v2425, %v2496
  %v2500 = vxor.u32 %v2499, 2147483648
  %v2501 = vmul.f32 %v2500, 1.442695
  %v2502 = vpow.pop %v2501
  %v2503 = vadd.f32 %v2502, 1.0
  %v2504 = vrcp.pop %v2503
  %v2505 = vmul.f32 1.0, %v2504
  %2507 = vrot.lane.b32.xlu0 %v2496, 96
  %v2508 = vpop.permute.xlu0 %2507
  %v2510 = vmul.f32 %v2505, %v2508
  %2512 = vrot.lane.b32.xlu0 %v2510, 32
  %v2513 = vpop.permute.xlu0 %2512
  %v2515 = vadd.f32 %v2425, %v2513
  %v2516 = vtanh.pop %v2515
  %v2517 = vsub.f32 1.0, %v2505
  %2519 = vrot.lane.b32.xlu0 %v2516, 112
  %v2520 = vpop.permute.xlu0 %2519
  %v2522 = vmul.f32 %v2517, %v2520
  %v2523 = vmul.f32 %v2505, %v2311
  %v2524 = vadd.f32 %v2522, %v2523
  %2525 = vrot.lane.b32.xlu0 %v2414, 64
  %v2526 = vpop.permute.xlu0 %2525
  %v2527 = vsel %vm54, %v2526, 0
  %2529 = vmatprep.subr.mxu0 0.0
  %2530 = vmatpush1.msra.mxu0 0.0
  %2531 = vmatprep.subr.mxu0 0.0
  %2532 = vmatpush1.msra.mxu0 0.0
  %2533 = vmatprep.subr.mxu0 0.0
  %2534 = vmatpush1.msra.mxu0 0.0
  %2535 = vmatprep.subr.mxu0 0.0
  %2536 = vmatpush1.msra.mxu0 0.0
  %2537 = vmatprep.subr.mxu0 0.0
  %2538 = vmatpush1.msra.mxu0 0.0
  %2539 = vmatprep.subr.mxu0 0.0
  %2540 = vmatpush1.msra.mxu0 0.0
  %2541 = vmatprep.subr.mxu0 0.0
  %2542 = vmatpush1.msra.mxu0 0.0
  %2543 = vmatprep.subr.mxu0 0.0
  %2544 = vmatpush1.msra.mxu0 0.0
  %2545 = vmatprep.subr.mxu0 0.0
  %2546 = vmatpush1.msra.mxu0 0.0
  %2547 = vmatprep.subr.mxu0 0.0
  %2548 = vmatpush1.msra.mxu0 0.0
  %2549 = vmatprep.subr.mxu0 0.0
  %2550 = vmatpush1.msra.mxu0 0.0
  %2551 = vmatprep.subr.mxu0 0.0
  %2552 = vmatpush1.msra.mxu0 0.0
  %2553 = vmatprep.subr.mxu0 0.0
  %2554 = vmatpush1.msra.mxu0 0.0
  %2555 = vmatprep.subr.mxu0 0.0
  %2556 = vmatpush1.msra.mxu0 0.0
  %2557 = vmatprep.subr.mxu0 0.0
  %2558 = vmatpush1.msra.mxu0 %v1345
  %2559 = vmatprep.subr.mxu0 0.0
  %2560 = vmatpush1.msra.mxu0 %v1344
  %2561 = vmatprep.subr.mxu0 0.0
  %2562 = vmatpush2.msra.mxu0 0.0
  %2563 = vmatprep.subr.mxu0 0.0
  %2564 = vmatpush2.msra.mxu0 0.0
  %2565 = vmatprep.subr.mxu0 0.0
  %2566 = vmatpush2.msra.mxu0 0.0
  %2567 = vmatprep.subr.mxu0 0.0
  %2568 = vmatpush2.msra.mxu0 0.0
  %2569 = vmatprep.subr.mxu0 0.0
  %2570 = vmatpush2.msra.mxu0 0.0
  %2571 = vmatprep.subr.mxu0 0.0
  %2572 = vmatpush2.msra.mxu0 0.0
  %2573 = vmatprep.subr.mxu0 0.0
  %2574 = vmatpush2.msra.mxu0 0.0
  %2575 = vmatprep.subr.mxu0 0.0
  %2576 = vmatpush2.msra.mxu0 0.0
  %2577 = vmatprep.subr.mxu0 0.0
  %2578 = vmatpush2.msra.mxu0 0.0
  %2579 = vmatprep.subr.mxu0 0.0
  %2580 = vmatpush2.msra.mxu0 0.0
  %2581 = vmatprep.subr.mxu0 0.0
  %2582 = vmatpush2.msra.mxu0 0.0
  %2583 = vmatprep.subr.mxu0 0.0
  %2584 = vmatpush2.msra.mxu0 0.0
  %2585 = vmatprep.subr.mxu0 0.0
  %2586 = vmatpush2.msra.mxu0 0.0
  %2587 = vmatprep.subr.mxu0 0.0
  %2588 = vmatpush2.msra.mxu0 0.0
  %2589 = vmatprep.subr.mxu0 0.0
  %2590 = vmatpush2.msra.mxu0 0.0
  %2591 = vmatprep.subr.mxu0 0.0
  %2592 = vmatpush2.msra.mxu0 0.0
  %2593 = vmatprep.mubr.f32.mxu0 0.0
  %2594 = vmatmul.mubr.f32.gmra.mxu0 %v2527
  %v2595 = vpop.f32.mrf.mxu0
  %v2596 = vadd.f32 %v1460, %v2595
  %v2597 = vpop.f32.mrf.mxu0
  %2598 = vdwg.mxu0
  %2600 = vrot.lane.b32.xlu0 %v2596, 48
  %v2601 = vpop.permute.xlu0 %2600
  %v2603 = vadd.f32 %v2426, %v2601
  %v2604 = vxor.u32 %v2603, 2147483648
  %v2605 = vmul.f32 %v2604, 1.442695
  %v2606 = vpow.pop %v2605
  %v2607 = vadd.f32 %v2606, 1.0
  %v2608 = vrcp.pop %v2607
  %v2609 = vmul.f32 1.0, %v2608
  %2610 = vrot.lane.b32.xlu0 %v2596, 16
  %v2611 = vpop.permute.xlu0 %2610
  %v2613 = vmul.f32 %v2609, %v2611
  %2615 = vrot.lane.b32.xlu0 %v2613, 32
  %v2616 = vpop.permute.xlu0 %2615
  %v2618 = vadd.f32 %v2426, %v2616
  %v2619 = vtanh.pop %v2618
  %v2620 = vsub.f32 1.0, %v2609
  %2622 = vrot.lane.b32.xlu0 %v2619, 112
  %v2623 = vpop.permute.xlu0 %2622
  %v2625 = vmul.f32 %v2620, %v2623
  %v2626 = vmul.f32 %v2609, %v2414
  %v2627 = vadd.f32 %v2625, %v2626
  %2629 = vrot.lane.b32.xlu0 %v2524, 112
  %v2630 = vpop.permute.xlu0 %2629
  %2632 = vst.msk [vmem:[#allocation4 + $0xa] sm:$0x3] %vm1565, %v2630
  %2634 = vrot.lane.b32.xlu0 %v2627, 80
  %v2635 = vpop.permute.xlu0 %2634
  %2637 = vst.msk [vmem:[#allocation4 + $0x4] sm:$0x3] %vm1571, %v2635
  %v2638 = vld [vmem:[#allocation3 + $0xc] sm:$0x3]
  %v2639 = vld [vmem:[#allocation3 + $0x2] sm:$0x3]
  %v2640 = vsel %vm54, %v2630, 0
  %2642 = vmatprep.subr.mxu0 0.0
  %2643 = vmatpush1.msra.mxu0 0.0
  %2644 = vmatprep.subr.mxu0 0.0
  %2645 = vmatpush1.msra.mxu0 0.0
  %2646 = vmatprep.subr.mxu0 0.0
  %2647 = vmatpush1.msra.mxu0 0.0
  %2648 = vmatprep.subr.mxu0 0.0
  %2649 = vmatpush1.msra.mxu0 0.0
  %2650 = vmatprep.subr.mxu0 0.0
  %2651 = vmatpush1.msra.mxu0 0.0
  %2652 = vmatprep.subr.mxu0 0.0
  %2653 = vmatpush1.msra.mxu0 0.0
  %2654 = vmatprep.subr.mxu0 0.0
  %2655 = vmatpush1.msra.mxu0 0.0
  %2656 = vmatprep.subr.mxu0 0.0
  %2657 = vmatpush1.msra.mxu0 0.0
  %2658 = vmatprep.subr.mxu0 0.0
  %2659 = vmatpush1.msra.mxu0 0.0
  %2660 = vmatprep.subr.mxu0 0.0
  %2661 = vmatpush1.msra.mxu0 0.0
  %2662 = vmatprep.subr.mxu0 0.0
  %2663 = vmatpush1.msra.mxu0 0.0
  %2664 = vmatprep.subr.mxu0 0.0
  %2665 = vmatpush1.msra.mxu0 0.0
  %2666 = vmatprep.subr.mxu0 0.0
  %2667 = vmatpush1.msra.mxu0 0.0
  %2668 = vmatprep.subr.mxu0 0.0
  %2669 = vmatpush1.msra.mxu0 0.0
  %2670 = vmatprep.subr.mxu0 0.0
  %2671 = vmatpush1.msra.mxu0 %v1342
  %2672 = vmatprep.subr.mxu0 0.0
  %2673 = vmatpush1.msra.mxu0 %v1341
  %2674 = vmatprep.subr.mxu0 0.0
  %2675 = vmatpush2.msra.mxu0 0.0
  %2676 = vmatprep.subr.mxu0 0.0
  %2677 = vmatpush2.msra.mxu0 0.0
  %2678 = vmatprep.subr.mxu0 0.0
  %2679 = vmatpush2.msra.mxu0 0.0
  %2680 = vmatprep.subr.mxu0 0.0
  %2681 = vmatpush2.msra.mxu0 0.0
  %2682 = vmatprep.subr.mxu0 0.0
  %2683 = vmatpush2.msra.mxu0 0.0
  %2684 = vmatprep.subr.mxu0 0.0
  %2685 = vmatpush2.msra.mxu0 0.0
  %2686 = vmatprep.subr.mxu0 0.0
  %2687 = vmatpush2.msra.mxu0 0.0
  %2688 = vmatprep.subr.mxu0 0.0
  %2689 = vmatpush2.msra.mxu0 0.0
  %2690 = vmatprep.subr.mxu0 0.0
  %2691 = vmatpush2.msra.mxu0 0.0
  %2692 = vmatprep.subr.mxu0 0.0
  %2693 = vmatpush2.msra.mxu0 0.0
  %2694 = vmatprep.subr.mxu0 0.0
  %2695 = vmatpush2.msra.mxu0 0.0
  %2696 = vmatprep.subr.mxu0 0.0
  %2697 = vmatpush2.msra.mxu0 0.0
  %2698 = vmatprep.subr.mxu0 0.0
  %2699 = vmatpush2.msra.mxu0 0.0
  %2700 = vmatprep.subr.mxu0 0.0
  %2701 = vmatpush2.msra.mxu0 0.0
  %2702 = vmatprep.subr.mxu0 0.0
  %2703 = vmatpush2.msra.mxu0 0.0
  %2704 = vmatprep.subr.mxu0 0.0
  %2705 = vmatpush2.msra.mxu0 0.0
  %2706 = vmatprep.mubr.f32.mxu0 0.0
  %2707 = vmatmul.mubr.f32.gmra.mxu0 %v2640
  %v2708 = vpop.f32.mrf.mxu0
  %v2709 = vadd.f32 %v1355, %v2708
  %v2710 = vpop.f32.mrf.mxu0
  %2711 = vdwg.mxu0
  %v2712 = vadd.f32 %v2638, %v2709
  %v2713 = vxor.u32 %v2712, 2147483648
  %v2714 = vmul.f32 %v2713, 1.442695
  %v2715 = vpow.pop %v2714
  %v2716 = vadd.f32 %v2715, 1.0
  %v2717 = vrcp.pop %v2716
  %v2718 = vmul.f32 1.0, %v2717
  %2720 = vrot.lane.b32.xlu0 %v2709, 96
  %v2721 = vpop.permute.xlu0 %2720
  %v2723 = vmul.f32 %v2718, %v2721
  %2725 = vrot.lane.b32.xlu0 %v2723, 32
  %v2726 = vpop.permute.xlu0 %2725
  %v2728 = vadd.f32 %v2638, %v2726
  %v2729 = vtanh.pop %v2728
  %v2730 = vsub.f32 1.0, %v2718
  %2732 = vrot.lane.b32.xlu0 %v2729, 112
  %v2733 = vpop.permute.xlu0 %2732
  %v2735 = vmul.f32 %v2730, %v2733
  %v2736 = vmul.f32 %v2718, %v2524
  %v2737 = vadd.f32 %v2735, %v2736
  %2738 = vrot.lane.b32.xlu0 %v2627, 64
  %v2739 = vpop.permute.xlu0 %2738
  %v2740 = vsel %vm54, %v2739, 0
  %2742 = vmatprep.subr.mxu0 0.0
  %2743 = vmatpush1.msra.mxu0 0.0
  %2744 = vmatprep.subr.mxu0 0.0
  %2745 = vmatpush1.msra.mxu0 0.0
  %2746 = vmatprep.subr.mxu0 0.0
  %2747 = vmatpush1.msra.mxu0 0.0
  %2748 = vmatprep.subr.mxu0 0.0
  %2749 = vmatpush1.msra.mxu0 0.0
  %2750 = vmatprep.subr.mxu0 0.0
  %2751 = vmatpush1.msra.mxu0 0.0
  %2752 = vmatprep.subr.mxu0 0.0
  %2753 = vmatpush1.msra.mxu0 0.0
  %2754 = vmatprep.subr.mxu0 0.0
  %2755 = vmatpush1.msra.mxu0 0.0
  %2756 = vmatprep.subr.mxu0 0.0
  %2757 = vmatpush1.msra.mxu0 0.0
  %2758 = vmatprep.subr.mxu0 0.0
  %2759 = vmatpush1.msra.mxu0 0.0
  %2760 = vmatprep.subr.mxu0 0.0
  %2761 = vmatpush1.msra.mxu0 0.0
  %2762 = vmatprep.subr.mxu0 0.0
  %2763 = vmatpush1.msra.mxu0 0.0
  %2764 = vmatprep.subr.mxu0 0.0
  %2765 = vmatpush1.msra.mxu0 0.0
  %2766 = vmatprep.subr.mxu0 0.0
  %2767 = vmatpush1.msra.mxu0 0.0
  %2768 = vmatprep.subr.mxu0 0.0
  %2769 = vmatpush1.msra.mxu0 0.0
  %2770 = vmatprep.subr.mxu0 0.0
  %2771 = vmatpush1.msra.mxu0 %v1345
  %2772 = vmatprep.subr.mxu0 0.0
  %2773 = vmatpush1.msra.mxu0 %v1344
  %2774 = vmatprep.subr.mxu0 0.0
  %2775 = vmatpush2.msra.mxu0 0.0
  %2776 = vmatprep.subr.mxu0 0.0
  %2777 = vmatpush2.msra.mxu0 0.0
  %2778 = vmatprep.subr.mxu0 0.0
  %2779 = vmatpush2.msra.mxu0 0.0
  %2780 = vmatprep.subr.mxu0 0.0
  %2781 = vmatpush2.msra.mxu0 0.0
  %2782 = vmatprep.subr.mxu0 0.0
  %2783 = vmatpush2.msra.mxu0 0.0
  %2784 = vmatprep.subr.mxu0 0.0
  %2785 = vmatpush2.msra.mxu0 0.0
  %2786 = vmatprep.subr.mxu0 0.0
  %2787 = vmatpush2.msra.mxu0 0.0
  %2788 = vmatprep.subr.mxu0 0.0
  %2789 = vmatpush2.msra.mxu0 0.0
  %2790 = vmatprep.subr.mxu0 0.0
  %2791 = vmatpush2.msra.mxu0 0.0
  %2792 = vmatprep.subr.mxu0 0.0
  %2793 = vmatpush2.msra.mxu0 0.0
  %2794 = vmatprep.subr.mxu0 0.0
  %2795 = vmatpush2.msra.mxu0 0.0
  %2796 = vmatprep.subr.mxu0 0.0
  %2797 = vmatpush2.msra.mxu0 0.0
  %2798 = vmatprep.subr.mxu0 0.0
  %2799 = vmatpush2.msra.mxu0 0.0
  %2800 = vmatprep.subr.mxu0 0.0
  %2801 = vmatpush2.msra.mxu0 0.0
  %2802 = vmatprep.subr.mxu0 0.0
  %2803 = vmatpush2.msra.mxu0 0.0
  %2804 = vmatprep.subr.mxu0 0.0
  %2805 = vmatpush2.msra.mxu0 0.0
  %2806 = vmatprep.mubr.f32.mxu0 0.0
  %2807 = vmatmul.mubr.f32.gmra.mxu0 %v2740
  %v2808 = vpop.f32.mrf.mxu0
  %v2809 = vadd.f32 %v1460, %v2808
  %v2810 = vpop.f32.mrf.mxu0
  %2811 = vdwg.mxu0
  %2813 = vrot.lane.b32.xlu0 %v2809, 48
  %v2814 = vpop.permute.xlu0 %2813
  %v2816 = vadd.f32 %v2639, %v2814
  %v2817 = vxor.u32 %v2816, 2147483648
  %v2818 = vmul.f32 %v2817, 1.442695
  %v2819 = vpow.pop %v2818
  %v2820 = vadd.f32 %v2819, 1.0
  %v2821 = vrcp.pop %v2820
  %v2822 = vmul.f32 1.0, %v2821
  %2823 = vrot.lane.b32.xlu0 %v2809, 16
  %v2824 = vpop.permute.xlu0 %2823
  %v2826 = vmul.f32 %v2822, %v2824
  %2828 = vrot.lane.b32.xlu0 %v2826, 32
  %v2829 = vpop.permute.xlu0 %2828
  %v2831 = vadd.f32 %v2639, %v2829
  %v2832 = vtanh.pop %v2831
  %v2833 = vsub.f32 1.0, %v2822
  %2835 = vrot.lane.b32.xlu0 %v2832, 112
  %v2836 = vpop.permute.xlu0 %2835
  %v2838 = vmul.f32 %v2833, %v2836
  %v2839 = vmul.f32 %v2822, %v2627
  %v2840 = vadd.f32 %v2838, %v2839
  %2842 = vrot.lane.b32.xlu0 %v2737, 112
  %v2843 = vpop.permute.xlu0 %2842
  %2845 = vst.msk [vmem:[#allocation4 + $0xc] sm:$0x3] %vm1565, %v2843
  %2847 = vrot.lane.b32.xlu0 %v2840, 80
  %v2848 = vpop.permute.xlu0 %2847
  %2850 = vst.msk [vmem:[#allocation4 + $0x2] sm:$0x3] %vm1571, %v2848
  %v2851 = vld [vmem:[#allocation3 + $0xe] sm:$0x3]
  %v2852 = vld [vmem:[#allocation3] sm:$0x3]
  %v2853 = vsel %vm54, %v2843, 0
  %2855 = vmatprep.subr.mxu0 0.0
  %2856 = vmatpush1.msra.mxu0 0.0
  %2857 = vmatprep.subr.mxu0 0.0
  %2858 = vmatpush1.msra.mxu0 0.0
  %2859 = vmatprep.subr.mxu0 0.0
  %2860 = vmatpush1.msra.mxu0 0.0
  %2861 = vmatprep.subr.mxu0 0.0
  %2862 = vmatpush1.msra.mxu0 0.0
  %2863 = vmatprep.subr.mxu0 0.0
  %2864 = vmatpush1.msra.mxu0 0.0
  %2865 = vmatprep.subr.mxu0 0.0
  %2866 = vmatpush1.msra.mxu0 0.0
  %2867 = vmatprep.subr.mxu0 0.0
  %2868 = vmatpush1.msra.mxu0 0.0
  %2869 = vmatprep.subr.mxu0 0.0
  %2870 = vmatpush1.msra.mxu0 0.0
  %2871 = vmatprep.subr.mxu0 0.0
  %2872 = vmatpush1.msra.mxu0 0.0
  %2873 = vmatprep.subr.mxu0 0.0
  %2874 = vmatpush1.msra.mxu0 0.0
  %2875 = vmatprep.subr.mxu0 0.0
  %2876 = vmatpush1.msra.mxu0 0.0
  %2877 = vmatprep.subr.mxu0 0.0
  %2878 = vmatpush1.msra.mxu0 0.0
  %2879 = vmatprep.subr.mxu0 0.0
  %2880 = vmatpush1.msra.mxu0 0.0
  %2881 = vmatprep.subr.mxu0 0.0
  %2882 = vmatpush1.msra.mxu0 0.0
  %2883 = vmatprep.subr.mxu0 0.0
  %2884 = vmatpush1.msra.mxu0 %v1342
  %2885 = vmatprep.subr.mxu0 0.0
  %2886 = vmatpush1.msra.mxu0 %v1341
  %2887 = vmatprep.subr.mxu0 0.0
  %2888 = vmatpush2.msra.mxu0 0.0
  %2889 = vmatprep.subr.mxu0 0.0
  %2890 = vmatpush2.msra.mxu0 0.0
  %2891 = vmatprep.subr.mxu0 0.0
  %2892 = vmatpush2.msra.mxu0 0.0
  %2893 = vmatprep.subr.mxu0 0.0
  %2894 = vmatpush2.msra.mxu0 0.0
  %2895 = vmatprep.subr.mxu0 0.0
  %2896 = vmatpush2.msra.mxu0 0.0
  %2897 = vmatprep.subr.mxu0 0.0
  %2898 = vmatpush2.msra.mxu0 0.0
  %2899 = vmatprep.subr.mxu0 0.0
  %2900 = vmatpush2.msra.mxu0 0.0
  %2901 = vmatprep.subr.mxu0 0.0
  %2902 = vmatpush2.msra.mxu0 0.0
  %2903 = vmatprep.subr.mxu0 0.0
  %2904 = vmatpush2.msra.mxu0 0.0
  %2905 = vmatprep.subr.mxu0 0.0
  %2906 = vmatpush2.msra.mxu0 0.0
  %2907 = vmatprep.subr.mxu0 0.0
  %2908 = vmatpush2.msra.mxu0 0.0
  %2909 = vmatprep.subr.mxu0 0.0
  %2910 = vmatpush2.msra.mxu0 0.0
  %2911 = vmatprep.subr.mxu0 0.0
  %2912 = vmatpush2.msra.mxu0 0.0
  %2913 = vmatprep.subr.mxu0 0.0
  %2914 = vmatpush2.msra.mxu0 0.0
  %2915 = vmatprep.subr.mxu0 0.0
  %2916 = vmatpush2.msra.mxu0 0.0
  %2917 = vmatprep.subr.mxu0 0.0
  %2918 = vmatpush2.msra.mxu0 0.0
  %2919 = vmatprep.mubr.f32.mxu0 0.0
  %2920 = vmatmul.mubr.f32.gmra.mxu0 %v2853
  %v2921 = vpop.f32.mrf.mxu0
  %v2922 = vadd.f32 %v1355, %v2921
  %v2923 = vpop.f32.mrf.mxu0
  %2924 = vdwg.mxu0
  %v2925 = vadd.f32 %v2851, %v2922
  %v2926 = vxor.u32 %v2925, 2147483648
  %v2927 = vmul.f32 %v2926, 1.442695
  %v2928 = vpow.pop %v2927
  %v2929 = vadd.f32 %v2928, 1.0
  %v2930 = vrcp.pop %v2929
  %v2931 = vmul.f32 1.0, %v2930
  %2933 = vrot.lane.b32.xlu0 %v2922, 96
  %v2934 = vpop.permute.xlu0 %2933
  %v2936 = vmul.f32 %v2931, %v2934
  %2938 = vrot.lane.b32.xlu0 %v2936, 32
  %v2939 = vpop.permute.xlu0 %2938
  %v2941 = vadd.f32 %v2851, %v2939
  %v2942 = vtanh.pop %v2941
  %v2943 = vsub.f32 1.0, %v2931
  %2945 = vrot.lane.b32.xlu0 %v2942, 112
  %v2946 = vpop.permute.xlu0 %2945
  %v2948 = vmul.f32 %v2943, %v2946
  %v2949 = vmul.f32 %v2931, %v2737
  %v2950 = vadd.f32 %v2948, %v2949
  %2951 = vrot.lane.b32.xlu0 %v2840, 64
  %v2952 = vpop.permute.xlu0 %2951
  %v2953 = vsel %vm54, %v2952, 0
  %2955 = vmatprep.subr.mxu0 0.0
  %2956 = vmatpush1.msra.mxu0 0.0
  %2957 = vmatprep.subr.mxu0 0.0
  %2958 = vmatpush1.msra.mxu0 0.0
  %2959 = vmatprep.subr.mxu0 0.0
  %2960 = vmatpush1.msra.mxu0 0.0
  %2961 = vmatprep.subr.mxu0 0.0
  %2962 = vmatpush1.msra.mxu0 0.0
  %2963 = vmatprep.subr.mxu0 0.0
  %2964 = vmatpush1.msra.mxu0 0.0
  %2965 = vmatprep.subr.mxu0 0.0
  %2966 = vmatpush1.msra.mxu0 0.0
  %2967 = vmatprep.subr.mxu0 0.0
  %2968 = vmatpush1.msra.mxu0 0.0
  %2969 = vmatprep.subr.mxu0 0.0
  %2970 = vmatpush1.msra.mxu0 0.0
  %2971 = vmatprep.subr.mxu0 0.0
  %2972 = vmatpush1.msra.mxu0 0.0
  %2973 = vmatprep.subr.mxu0 0.0
  %2974 = vmatpush1.msra.mxu0 0.0
  %2975 = vmatprep.subr.mxu0 0.0
  %2976 = vmatpush1.msra.mxu0 0.0
  %2977 = vmatprep.subr.mxu0 0.0
  %2978 = vmatpush1.msra.mxu0 0.0
  %2979 = vmatprep.subr.mxu0 0.0
  %2980 = vmatpush1.msra.mxu0 0.0
  %2981 = vmatprep.subr.mxu0 0.0
  %2982 = vmatpush1.msra.mxu0 0.0
  %2983 = vmatprep.subr.mxu0 0.0
  %2984 = vmatpush1.msra.mxu0 %v1345
  %2985 = vmatprep.subr.mxu0 0.0
  %2986 = vmatpush1.msra.mxu0 %v1344
  %2987 = vmatprep.subr.mxu0 0.0
  %2988 = vmatpush2.msra.mxu0 0.0
  %2989 = vmatprep.subr.mxu0 0.0
  %2990 = vmatpush2.msra.mxu0 0.0
  %2991 = vmatprep.subr.mxu0 0.0
  %2992 = vmatpush2.msra.mxu0 0.0
  %2993 = vmatprep.subr.mxu0 0.0
  %2994 = vmatpush2.msra.mxu0 0.0
  %2995 = vmatprep.subr.mxu0 0.0
  %2996 = vmatpush2.msra.mxu0 0.0
  %2997 = vmatprep.subr.mxu0 0.0
  %2998 = vmatpush2.msra.mxu0 0.0
  %2999 = vmatprep.subr.mxu0 0.0
  %3000 = vmatpush2.msra.mxu0 0.0
  %3001 = vmatprep.subr.mxu0 0.0
  %3002 = vmatpush2.msra.mxu0 0.0
  %3003 = vmatprep.subr.mxu0 0.0
  %3004 = vmatpush2.msra.mxu0 0.0
  %3005 = vmatprep.subr.mxu0 0.0
  %3006 = vmatpush2.msra.mxu0 0.0
  %3007 = vmatprep.subr.mxu0 0.0
  %3008 = vmatpush2.msra.mxu0 0.0
  %3009 = vmatprep.subr.mxu0 0.0
  %3010 = vmatpush2.msra.mxu0 0.0
  %3011 = vmatprep.subr.mxu0 0.0
  %3012 = vmatpush2.msra.mxu0 0.0
  %3013 = vmatprep.subr.mxu0 0.0
  %3014 = vmatpush2.msra.mxu0 0.0
  %3015 = vmatprep.subr.mxu0 0.0
  %3016 = vmatpush2.msra.mxu0 0.0
  %3017 = vmatprep.subr.mxu0 0.0
  %3018 = vmatpush2.msra.mxu0 0.0
  %3019 = vmatprep.mubr.f32.mxu0 0.0
  %3020 = vmatmul.mubr.f32.gmra.mxu0 %v2953
  %v3021 = vpop.f32.mrf.mxu0
  %v3022 = vadd.f32 %v1460, %v3021
  %v3023 = vpop.f32.mrf.mxu0
  %3024 = vdwg.mxu0
  %3026 = vrot.lane.b32.xlu0 %v3022, 48
  %v3027 = vpop.permute.xlu0 %3026
  %v3029 = vadd.f32 %v2852, %v3027
  %v3030 = vxor.u32 %v3029, 2147483648
  %v3031 = vmul.f32 %v3030, 1.442695
  %v3032 = vpow.pop %v3031
  %v3033 = vadd.f32 %v3032, 1.0
  %v3034 = vrcp.pop %v3033
  %v3035 = vmul.f32 1.0, %v3034
  %3036 = vrot.lane.b32.xlu0 %v3022, 16
  %v3037 = vpop.permute.xlu0 %3036
  %v3039 = vmul.f32 %v3035, %v3037
  %3041 = vrot.lane.b32.xlu0 %v3039, 32
  %v3042 = vpop.permute.xlu0 %3041
  %v3044 = vadd.f32 %v2852, %v3042
  %v3045 = vtanh.pop %v3044
  %v3046 = vsub.f32 1.0, %v3035
  %3048 = vrot.lane.b32.xlu0 %v3045, 112
  %v3049 = vpop.permute.xlu0 %3048
  %v3051 = vmul.f32 %v3046, %v3049
  %v3052 = vmul.f32 %v3035, %v2840
  %v3053 = vadd.f32 %v3051, %v3052
  %3055 = vrot.lane.b32.xlu0 %v2950, 112
  %v3056 = vpop.permute.xlu0 %3055
  %3058 = vst.msk [vmem:[#allocation4 + $0xe] sm:$0x3] %vm1565, %v3056
  %3060 = vrot.lane.b32.xlu0 %v3053, 80
  %v3061 = vpop.permute.xlu0 %3060
  %3063 = vst.msk [vmem:[#allocation4] sm:$0x3] %vm1571, %v3061
  %v3064 = vld [vmem:[#allocation4] sm:$0xff]
  %v3065 = vld [vmem:[#allocation4 + $0x8] sm:$0xff]
  %v3066 = vld [vmem:[%s13] sm:$0xff]
  %v3067 = vld [vmem:[%s13 + $0x8] sm:$0xff]
  %v3068 = vld [vmem:[%s13 + $0x10] sm:$0xff]
  %v3069 = vld [vmem:[%s13 + $0x18] sm:$0xff]
  %v3070 = vld [vmem:[%s14] sm:$0x1]
  %v3072 = vlaneseq
  %v3073 = vshrl.u32 %v3072, 7
  %v3074 = vsub.s32 0, %v3073
  %v3075 = vrot.slane %v3070, %v3074
  %vm3077 = vcmask 261120
  %v3079 = vsel %vm3077, %v3064, 0
  %v3082 = vsel %vm3077, %v3065, 0
  %3084 = vmatprep.subr.mxu0 0.0
  %3085 = vmatpush1.msra.mxu0 0.0
  %3086 = vmatprep.subr.mxu0 0.0
  %3087 = vmatpush1.msra.mxu0 0.0
  %3088 = vmatprep.subr.mxu0 0.0
  %3089 = vmatpush1.msra.mxu0 0.0
  %3090 = vmatprep.subr.mxu0 0.0
  %3091 = vmatpush1.msra.mxu0 0.0
  %3092 = vmatprep.subr.mxu0 0.0
  %3093 = vmatpush1.msra.mxu0 0.0
  %3094 = vmatprep.subr.mxu0 0.0
  %3095 = vmatpush1.msra.mxu0 0.0
  %3096 = vmatprep.subr.mxu0 0.0
  %3097 = vmatpush1.msra.mxu0 0.0
  %3098 = vmatprep.subr.mxu0 0.0
  %3099 = vmatpush1.msra.mxu0 0.0
  %3100 = vmatprep.subr.mxu0 0.0
  %3101 = vmatpush1.msra.mxu0 0.0
  %3102 = vmatprep.subr.mxu0 0.0
  %3103 = vmatpush1.msra.mxu0 0.0
  %3104 = vmatprep.subr.mxu0 0.0
  %3105 = vmatpush1.msra.mxu0 0.0
  %3106 = vmatprep.subr.mxu0 0.0
  %3107 = vmatpush1.msra.mxu0 0.0
  %3108 = vmatprep.subr.mxu0 0.0
  %3109 = vmatpush1.msra.mxu0 %v3069
  %3110 = vmatprep.subr.mxu0 0.0
  %3111 = vmatpush1.msra.mxu0 %v3068
  %3112 = vmatprep.subr.mxu0 0.0
  %3113 = vmatpush1.msra.mxu0 %v3067
  %3114 = vmatprep.subr.mxu0 0.0
  %3115 = vmatpush1.msra.mxu0 %v3066
  %3116 = vmatprep.subr.mxu0 0.0
  %3117 = vmatpush2.msra.mxu0 0.0
  %3118 = vmatprep.subr.mxu0 0.0
  %3119 = vmatpush2.msra.mxu0 0.0
  %3120 = vmatprep.subr.mxu0 0.0
  %3121 = vmatpush2.msra.mxu0 0.0
  %3122 = vmatprep.subr.mxu0 0.0
  %3123 = vmatpush2.msra.mxu0 0.0
  %3124 = vmatprep.subr.mxu0 0.0
  %3125 = vmatpush2.msra.mxu0 0.0
  %3126 = vmatprep.subr.mxu0 0.0
  %3127 = vmatpush2.msra.mxu0 0.0
  %3128 = vmatprep.subr.mxu0 0.0
  %3129 = vmatpush2.msra.mxu0 0.0
  %3130 = vmatprep.subr.mxu0 0.0
  %3131 = vmatpush2.msra.mxu0 0.0
  %3132 = vmatprep.subr.mxu0 0.0
  %3133 = vmatpush2.msra.mxu0 0.0
  %3134 = vmatprep.subr.mxu0 0.0
  %3135 = vmatpush2.msra.mxu0 0.0
  %3136 = vmatprep.subr.mxu0 0.0
  %3137 = vmatpush2.msra.mxu0 0.0
  %3138 = vmatprep.subr.mxu0 0.0
  %3139 = vmatpush2.msra.mxu0 0.0
  %3140 = vmatprep.subr.mxu0 0.0
  %3141 = vmatpush2.msra.mxu0 0.0
  %3142 = vmatprep.subr.mxu0 0.0
  %3143 = vmatpush2.msra.mxu0 0.0
  %3144 = vmatprep.subr.mxu0 0.0
  %3145 = vmatpush2.msra.mxu0 0.0
  %3146 = vmatprep.subr.mxu0 0.0
  %3147 = vmatpush2.msra.mxu0 0.0
  %3148 = vmatprep.mubr.f32.mxu0 0.0
  %3149 = vmatmul.mubr.f32.gmra.mxu0 %v3079
  %v3150 = vpop.f32.mrf.mxu0
  %v3151 = vadd.f32 %v3075, %v3150
  %v3152 = vpop.f32.mrf.mxu0
  %3153 = vmatprep.mubr.f32.mxu0 0.0
  %3154 = vmatmul.mubr.f32.gmra.mxu0 %v3082
  %v3155 = vpop.f32.mrf.mxu0
  %v3156 = vadd.f32 %v3075, %v3155
  %v3157 = vpop.f32.mrf.mxu0
  %3158 = vdwg.mxu0
  %vm3159 = vcmask 269312
  %3160 = vst.msk [vmem:[%s15] sm:$0xff] %vm3159, %v3151
  %3161 = vst.msk [vmem:[%s15 + $0x8] sm:$0xff] %vm3159, %v3156
  // Predicated region
  $region62: #{net2_forward.3} parent=0 // pred_check
    _
  $region63: #{net2_forward.3} parent=0 // pred_check_branch
    %3163 = sbr.rel (0) target = $region65
  $region64: #{net2_forward.3} parent=0 // pred_region
    _
  $region65: #{net2_forward.3} parent=0 // pred_fallthru
    _
  // Predicated region
  $region66: #{net2_forward.3} parent=0 // pred_check
    _
  $region67: #{net2_forward.3} parent=0 // pred_check_branch
    %3165 = sbr.rel (0) target = $region69
  $region68: #{net2_forward.3} parent=0 // pred_region
    _
  $region69: #{net2_forward.3} parent=0 // pred_fallthru
    _

// kernel: net2_forward.2
$region0: #{net2_forward.2}
  #allocation0 [shape = 'u32[]', space=smem, size = 0x4, offset = 0x4, fixed_abs, tag = 'smem constant byte address 0x4 - core index']
  #allocation1 [shape = 'u32[144,128]{1,0:T(1,128)}', space=vmem, size = 0x12000, scoped, tag = 'internal scratch']
  #allocation2 [shape = 'f32[24,64]{1,0:T(8,128)}', space=vmem, size = 0x3000, scoped, tag = 'scratch operand']
  #allocation3 [shape = 'f32[16,96]{1,0:T(8,128)}', space=vmem, size = 0x2000, scoped, tag = 'scratch operand']
  #allocation4 [shape = 'f32[16,32]{1,0:T(8,128)}', space=vmem, size = 0x2000, scoped, tag = 'scratch operand']
  %s0 = inlined_call_operand.vmem [shape: f32[16,8], index: 0, kind: input, shape index: {}]
  %s1 = inlined_call_operand.vmem [shape: f32[8,32], index: 1, kind: input, shape index: {}]
  %s2 = inlined_call_operand.vmem [shape: f32[1,32], index: 2, kind: input, shape index: {}]
  %s3 = inlined_call_operand.vmem [shape: f32[32,16], index: 3, kind: input, shape index: {}]
  %s4 = inlined_call_operand.vmem [shape: f32[1,16], index: 4, kind: input, shape index: {}]
  %s5 = inlined_call_operand.vmem [shape: f32[64,64], index: 5, kind: input, shape index: {}]
  %s6 = inlined_call_operand.vmem [shape: f32[1,64], index: 6, kind: input, shape index: {}]
  %s7 = inlined_call_operand.vmem [shape: f32[192,16], index: 7, kind: input, shape index: {}]
  %s8 = inlined_call_operand.vmem [shape: f32[1,16], index: 8, kind: input, shape index: {}]
  %s9 = inlined_call_operand.vmem [shape: f32[48,16], index: 9, kind: input, shape index: {}]
  %s10 = inlined_call_operand.vmem [shape: f32[1,16], index: 10, kind: input, shape index: {}]
  %s11 = inlined_call_operand.vmem [shape: f32[2,16,32], index: 11, kind: input, shape index: {}]
  %s12 = inlined_call_operand.vmem [shape: f32[2,1,32], index: 12, kind: input, shape index: {}]
  %s13 = inlined_call_operand.vmem [shape: f32[16,96], index: 13, kind: input, shape index: {}]
  %s14 = inlined_call_operand.vmem [shape: f32[1,96], index: 14, kind: input, shape index: {}]
  %s15 = inlined_call_operand.vmem [shape: f32[2,16,48], index: 15, kind: input, shape index: {}]
  %s16 = inlined_call_operand.vmem [shape: f32[2,1,48], index: 16, kind: input, shape index: {}]
  %s17 = inlined_call_operand.vmem [shape: f32[32,16], index: 17, kind: input, shape index: {}]
  %s18 = inlined_call_operand.vmem [shape: f32[1,16], index: 18, kind: input, shape index: {}]
  %s19 = inlined_call_operand.vmem [shape: f32[16,16], index: 19, kind: input, shape index: {}]
  %s20 = inlined_call_operand.vmem [shape: f32[1,16], index: 20, kind: input, shape index: {}]
  %s21 = inlined_call_operand.vmem [shape: f32[16,16], index: 21, kind: output, shape index: {0}]
  %s22 = inlined_call_operand.vmem [shape: f32[16,16], index: 22, kind: output, shape index: {1}]
  %23 = xla_tuple %s21, %s22
  %s24 = sld [smem:[#allocation0]]
  $region102: #{net2_forward.2} parent=0
    _
  %s26 = ssub.s32 1, %s24
  %s27 = scalar_select 0, %s26, %s24
  // Predicated region
  $region2: #{net2_forward.2} parent=0 // pred_check
    _
  $region3: #{net2_forward.2} parent=0 // pred_check_branch
    %29 = sbr.rel (0) target = $region5
  $region4: #{net2_forward.2} parent=0 // pred_region
    _
  $region5: #{net2_forward.2} parent=0 // pred_fallthru
    _
  // Predicated region
  $region6: #{net2_forward.2} parent=0 // pred_check
    _
  $region7: #{net2_forward.2} parent=0 // pred_check_branch
    %31 = sbr.rel (0) target = $region9
  $region8: #{net2_forward.2} parent=0 // pred_region
    _
  $region9: #{net2_forward.2} parent=0 // pred_fallthru
    _
  // Predicated region
  $region10: #{net2_forward.2} parent=0 // pred_check
    _
  $region11: #{net2_forward.2} parent=0 // pred_check_branch
    %33 = sbr.rel (0) target = $region13
  $region12: #{net2_forward.2} parent=0 // pred_region
    _
  $region13: #{net2_forward.2} parent=0 // pred_fallthru
    _
  // Predicated region
  $region14: #{net2_forward.2} parent=0 // pred_check
    _
  $region15: #{net2_forward.2} parent=0 // pred_check_branch
    %35 = sbr.rel (0) target = $region17
  $region16: #{net2_forward.2} parent=0 // pred_region
    _
  $region17: #{net2_forward.2} parent=0 // pred_fallthru
    _
  // Predicated region
  $region18: #{net2_forward.2} parent=0 // pred_check
    _
  $region19: #{net2_forward.2} parent=0 // pred_check_branch
    %37 = sbr.rel (0) target = $region21
  $region20: #{net2_forward.2} parent=0 // pred_region
    _
  $region21: #{net2_forward.2} parent=0 // pred_fallthru
    _
  // Predicated region
  $region22: #{net2_forward.2} parent=0 // pred_check
    _
  $region23: #{net2_forward.2} parent=0 // pred_check_branch
    %39 = sbr.rel (0) target = $region25
  $region24: #{net2_forward.2} parent=0 // pred_region
    _
  $region25: #{net2_forward.2} parent=0 // pred_fallthru
    _
  // Predicated region
  $region26: #{net2_forward.2} parent=0 // pred_check
    _
  $region27: #{net2_forward.2} parent=0 // pred_check_branch
    %41 = sbr.rel (0) target = $region29
  $region28: #{net2_forward.2} parent=0 // pred_region
    _
  $region29: #{net2_forward.2} parent=0 // pred_fallthru
    _
  // Predicated region
  $region30: #{net2_forward.2} parent=0 // pred_check
    _
  $region31: #{net2_forward.2} parent=0 // pred_check_branch
    %43 = sbr.rel (0) target = $region33
  $region32: #{net2_forward.2} parent=0 // pred_region
    _
  $region33: #{net2_forward.2} parent=0 // pred_fallthru
    _
  // Predicated region
  $region34: #{net2_forward.2} parent=0 // pred_check
    _
  $region35: #{net2_forward.2} parent=0 // pred_check_branch
    %45 = sbr.rel (0) target = $region37
  $region36: #{net2_forward.2} parent=0 // pred_region
    _
  $region37: #{net2_forward.2} parent=0 // pred_fallthru
    _
  // Predicated region
  $region38: #{net2_forward.2} parent=0 // pred_check
    _
  $region39: #{net2_forward.2} parent=0 // pred_check_branch
    %47 = sbr.rel (0) target = $region41
  $region40: #{net2_forward.2} parent=0 // pred_region
    _
  $region41: #{net2_forward.2} parent=0 // pred_fallthru
    _
  // Predicated region
  $region42: #{net2_forward.2} parent=0 // pred_check
    _
  $region43: #{net2_forward.2} parent=0 // pred_check_branch
    %49 = sbr.rel (0) target = $region45
  $region44: #{net2_forward.2} parent=0 // pred_region
    _
  $region45: #{net2_forward.2} parent=0 // pred_fallthru
    _
  // Predicated region
  $region46: #{net2_forward.2} parent=0 // pred_check
    _
  $region47: #{net2_forward.2} parent=0 // pred_check_branch
    %51 = sbr.rel (0) target = $region49
  $region48: #{net2_forward.2} parent=0 // pred_region
    _
  $region49: #{net2_forward.2} parent=0 // pred_fallthru
    _
  // Predicated region
  $region50: #{net2_forward.2} parent=0 // pred_check
    _
  $region51: #{net2_forward.2} parent=0 // pred_check_branch
    %53 = sbr.rel (0) target = $region53
  $region52: #{net2_forward.2} parent=0 // pred_region
    _
  $region53: #{net2_forward.2} parent=0 // pred_fallthru
    _
  // Predicated region
  $region54: #{net2_forward.2} parent=0 // pred_check
    _
  $region55: #{net2_forward.2} parent=0 // pred_check_branch
    %55 = sbr.rel (0) target = $region57
  $region56: #{net2_forward.2} parent=0 // pred_region
    _
  $region57: #{net2_forward.2} parent=0 // pred_fallthru
    _
  // Predicated region
  $region58: #{net2_forward.2} parent=0 // pred_check
    _
  $region59: #{net2_forward.2} parent=0 // pred_check_branch
    %57 = sbr.rel (0) target = $region61
  $region60: #{net2_forward.2} parent=0 // pred_region
    _
  $region61: #{net2_forward.2} parent=0 // pred_fallthru
    _
  // Predicated region
  $region62: #{net2_forward.2} parent=0 // pred_check
    _
  $region63: #{net2_forward.2} parent=0 // pred_check_branch
    %59 = sbr.rel (0) target = $region65
  $region64: #{net2_forward.2} parent=0 // pred_region
    _
  $region65: #{net2_forward.2} parent=0 // pred_fallthru
    _
  // Predicated region
  $region66: #{net2_forward.2} parent=0 // pred_check
    _
  $region67: #{net2_forward.2} parent=0 // pred_check_branch
    %61 = sbr.rel (0) target = $region69
  $region68: #{net2_forward.2} parent=0 // pred_region
    _
  $region69: #{net2_forward.2} parent=0 // pred_fallthru
    _
  // Predicated region
  $region70: #{net2_forward.2} parent=0 // pred_check
    _
  $region71: #{net2_forward.2} parent=0 // pred_check_branch
    %63 = sbr.rel (0) target = $region73
  $region72: #{net2_forward.2} parent=0 // pred_region
    _
  $region73: #{net2_forward.2} parent=0 // pred_fallthru
    _
  // Predicated region
  $region74: #{net2_forward.2} parent=0 // pred_check
    _
  $region75: #{net2_forward.2} parent=0 // pred_check_branch
    %65 = sbr.rel (0) target = $region77
  $region76: #{net2_forward.2} parent=0 // pred_region
    _
  $region77: #{net2_forward.2} parent=0 // pred_fallthru
    _
  // Predicated region
  $region78: #{net2_forward.2} parent=0 // pred_check
    _
  $region79: #{net2_forward.2} parent=0 // pred_check_branch
    %67 = sbr.rel (0) target = $region81
  $region80: #{net2_forward.2} parent=0 // pred_region
    _
  $region81: #{net2_forward.2} parent=0 // pred_fallthru
    _
  // Predicated region
  $region82: #{net2_forward.2} parent=0 // pred_check
    _
  $region83: #{net2_forward.2} parent=0 // pred_check_branch
    %69 = sbr.rel (0) target = $region85
  $region84: #{net2_forward.2} parent=0 // pred_region
    _
  $region85: #{net2_forward.2} parent=0 // pred_fallthru
    _
  %v70 = vld [vmem:[%s0] sm:$0xff]
  %v71 = vld [vmem:[%s0 + $0x8] sm:$0xff]
  %v72 = vld [vmem:[%s1] sm:$0xff]
  %v73 = vld [vmem:[%s2] sm:$0x1]
  %v75 = vlaneseq
  %v76 = vshrl.u32 %v75, 7
  %v77 = vsub.s32 0, %v76
  %v78 = vrot.slane %v73, %v77
  %vm80 = vcmask 64512
  %v82 = vsel %vm80, %v70, 0
  %v85 = vsel %vm80, %v71, 0
  %87 = vmatprep.subr.mxu0 0.0
  %88 = vmatpush1.msra.mxu0 0.0
  %89 = vmatprep.subr.mxu0 0.0
  %90 = vmatpush1.msra.mxu0 0.0
  %91 = vmatprep.subr.mxu0 0.0
  %92 = vmatpush1.msra.mxu0 0.0
  %93 = vmatprep.subr.mxu0 0.0
  %94 = vmatpush1.msra.mxu0 0.0
  %95 = vmatprep.subr.mxu0 0.0
  %96 = vmatpush1.msra.mxu0 0.0
  %97 = vmatprep.subr.mxu0 0.0
  %98 = vmatpush1.msra.mxu0 0.0
  %99 = vmatprep.subr.mxu0 0.0
  %100 = vmatpush1.msra.mxu0 0.0
  %101 = vmatprep.subr.mxu0 0.0
  %102 = vmatpush1.msra.mxu0 0.0
  %103 = vmatprep.subr.mxu0 0.0
  %104 = vmatpush1.msra.mxu0 0.0
  %105 = vmatprep.subr.mxu0 0.0
  %106 = vmatpush1.msra.mxu0 0.0
  %107 = vmatprep.subr.mxu0 0.0
  %108 = vmatpush1.msra.mxu0 0.0
  %109 = vmatprep.subr.mxu0 0.0
  %110 = vmatpush1.msra.mxu0 0.0
  %111 = vmatprep.subr.mxu0 0.0
  %112 = vmatpush1.msra.mxu0 0.0
  %113 = vmatprep.subr.mxu0 0.0
  %114 = vmatpush1.msra.mxu0 0.0
  %115 = vmatprep.subr.mxu0 0.0
  %116 = vmatpush1.msra.mxu0 0.0
  %117 = vmatprep.subr.mxu0 0.0
  %118 = vmatpush1.msra.mxu0 %v72
  %119 = vmatprep.subr.mxu0 0.0
  %120 = vmatpush2.msra.mxu0 0.0
  %121 = vmatprep.subr.mxu0 0.0
  %122 = vmatpush2.msra.mxu0 0.0
  %123 = vmatprep.subr.mxu0 0.0
  %124 = vmatpush2.msra.mxu0 0.0
  %125 = vmatprep.subr.mxu0 0.0
  %126 = vmatpush2.msra.mxu0 0.0
  %127 = vmatprep.subr.mxu0 0.0
  %128 = vmatpush2.msra.mxu0 0.0
  %129 = vmatprep.subr.mxu0 0.0
  %130 = vmatpush2.msra.mxu0 0.0
  %131 = vmatprep.subr.mxu0 0.0
  %132 = vmatpush2.msra.mxu0 0.0
  %133 = vmatprep.subr.mxu0 0.0
  %134 = vmatpush2.msra.mxu0 0.0
  %135 = vmatprep.subr.mxu0 0.0
  %136 = vmatpush2.msra.mxu0 0.0
  %137 = vmatprep.subr.mxu0 0.0
  %138 = vmatpush2.msra.mxu0 0.0
  %139 = vmatprep.subr.mxu0 0.0
  %140 = vmatpush2.msra.mxu0 0.0
  %141 = vmatprep.subr.mxu0 0.0
  %142 = vmatpush2.msra.mxu0 0.0
  %143 = vmatprep.subr.mxu0 0.0
  %144 = vmatpush2.msra.mxu0 0.0
  %145 = vmatprep.subr.mxu0 0.0
  %146 = vmatpush2.msra.mxu0 0.0
  %147 = vmatprep.subr.mxu0 0.0
  %148 = vmatpush2.msra.mxu0 0.0
  %149 = vmatprep.subr.mxu0 0.0
  %150 = vmatpush2.msra.mxu0 0.0
  %151 = vmatprep.mubr.f32.mxu0 0.0
  %152 = vmatmul.mubr.f32.gmra.mxu0 %v82
  %v153 = vpop.f32.mrf.mxu0
  %v154 = vadd.f32 %v78, %v153
  %v155 = vpop.f32.mrf.mxu0
  %156 = vmatprep.mubr.f32.mxu0 0.0
  %157 = vmatmul.mubr.f32.gmra.mxu0 %v85
  %v158 = vpop.f32.mrf.mxu0
  %v159 = vadd.f32 %v78, %v158
  %v160 = vpop.f32.mrf.mxu0
  %161 = vdwg.mxu0
  %v162 = vmax.f32 %v154, 0.0
  %v163 = vmax.f32 %v159, 0.0
  %v164 = vld [vmem:[%s3] sm:$0xff]
  %v165 = vld [vmem:[%s3 + $0x8] sm:$0xff]
  %v166 = vld [vmem:[%s3 + $0x10] sm:$0xff]
  %v167 = vld [vmem:[%s3 + $0x18] sm:$0xff]
  %v168 = vld [vmem:[%s4] sm:$0x1]
  %v170 = vlaneseq
  %v171 = vshrl.u32 %v170, 7
  %v172 = vsub.s32 0, %v171
  %v173 = vrot.slane %v168, %v172
  %vm175 = vcmask 261120
  %v177 = vsel %vm175, %v162, 0
  %v180 = vsel %vm175, %v163, 0
  %182 = vmatprep.subr.mxu0 0.0
  %183 = vmatpush1.msra.mxu0 0.0
  %184 = vmatprep.subr.mxu0 0.0
  %185 = vmatpush1.msra.mxu0 0.0
  %186 = vmatprep.subr.mxu0 0.0
  %187 = vmatpush1.msra.mxu0 0.0
  %188 = vmatprep.subr.mxu0 0.0
  %189 = vmatpush1.msra.mxu0 0.0
  %190 = vmatprep.subr.mxu0 0.0
  %191 = vmatpush1.msra.mxu0 0.0
  %192 = vmatprep.subr.mxu0 0.0
  %193 = vmatpush1.msra.mxu0 0.0
  %194 = vmatprep.subr.mxu0 0.0
  %195 = vmatpush1.msra.mxu0 0.0
  %196 = vmatprep.subr.mxu0 0.0
  %197 = vmatpush1.msra.mxu0 0.0
  %198 = vmatprep.subr.mxu0 0.0
  %199 = vmatpush1.msra.mxu0 0.0
  %200 = vmatprep.subr.mxu0 0.0
  %201 = vmatpush1.msra.mxu0 0.0
  %202 = vmatprep.subr.mxu0 0.0
  %203 = vmatpush1.msra.mxu0 0.0
  %204 = vmatprep.subr.mxu0 0.0
  %205 = vmatpush1.msra.mxu0 0.0
  %206 = vmatprep.subr.mxu0 0.0
  %207 = vmatpush1.msra.mxu0 %v167
  %208 = vmatprep.subr.mxu0 0.0
  %209 = vmatpush1.msra.mxu0 %v166
  %210 = vmatprep.subr.mxu0 0.0
  %211 = vmatpush1.msra.mxu0 %v165
  %212 = vmatprep.subr.mxu0 0.0
  %213 = vmatpush1.msra.mxu0 %v164
  %214 = vmatprep.subr.mxu0 0.0
  %215 = vmatpush2.msra.mxu0 0.0
  %216 = vmatprep.subr.mxu0 0.0
  %217 = vmatpush2.msra.mxu0 0.0
  %218 = vmatprep.subr.mxu0 0.0
  %219 = vmatpush2.msra.mxu0 0.0
  %220 = vmatprep.subr.mxu0 0.0
  %221 = vmatpush2.msra.mxu0 0.0
  %222 = vmatprep.subr.mxu0 0.0
  %223 = vmatpush2.msra.mxu0 0.0
  %224 = vmatprep.subr.mxu0 0.0
  %225 = vmatpush2.msra.mxu0 0.0
  %226 = vmatprep.subr.mxu0 0.0
  %227 = vmatpush2.msra.mxu0 0.0
  %228 = vmatprep.subr.mxu0 0.0
  %229 = vmatpush2.msra.mxu0 0.0
  %230 = vmatprep.subr.mxu0 0.0
  %231 = vmatpush2.msra.mxu0 0.0
  %232 = vmatprep.subr.mxu0 0.0
  %233 = vmatpush2.msra.mxu0 0.0
  %234 = vmatprep.subr.mxu0 0.0
  %235 = vmatpush2.msra.mxu0 0.0
  %236 = vmatprep.subr.mxu0 0.0
  %237 = vmatpush2.msra.mxu0 0.0
  %238 = vmatprep.subr.mxu0 0.0
  %239 = vmatpush2.msra.mxu0 0.0
  %240 = vmatprep.subr.mxu0 0.0
  %241 = vmatpush2.msra.mxu0 0.0
  %242 = vmatprep.subr.mxu0 0.0
  %243 = vmatpush2.msra.mxu0 0.0
  %244 = vmatprep.subr.mxu0 0.0
  %245 = vmatpush2.msra.mxu0 0.0
  %246 = vmatprep.mubr.f32.mxu0 0.0
  %247 = vmatmul.mubr.f32.gmra.mxu0 %v177
  %v248 = vpop.f32.mrf.mxu0
  %v249 = vadd.f32 %v173, %v248
  %v250 = vpop.f32.mrf.mxu0
  %251 = vmatprep.mubr.f32.mxu0 0.0
  %252 = vmatmul.mubr.f32.gmra.mxu0 %v180
  %v253 = vpop.f32.mrf.mxu0
  %v254 = vadd.f32 %v173, %v253
  %v255 = vpop.f32.mrf.mxu0
  %256 = vdwg.mxu0
  %v257 = vmax.f32 %v249, 0.0
  %v258 = vmax.f32 %v254, 0.0
  %vm259 = vcmask 125952
  %260 = vst.msk [vmem:[#allocation2] sm:$0xf] %vm259, 0.0
  %vm261 = vcmask 130048
  %262 = vst.msk [vmem:[#allocation2 + $0x4] sm:$0xff] %vm261, %v257
  %263 = vst.msk [vmem:[#allocation2 + $0xc] sm:$0xff] %vm261, %v258
  %264 = vst.msk [vmem:[#allocation2 + $0x14] sm:$0xf] %vm259, 0.0
  %v265 = vld [vmem:[%s6] sm:$0x1]
  %v266 = vld [vmem:[#allocation2] sm:$0xff]
  %v267 = vld [vmem:[#allocation2 + $0x8] sm:$0xff]
  %v268 = vld [vmem:[%s5] sm:$0xff]
  %v269 = vld [vmem:[%s5 + $0x8] sm:$0xff]
  %v271 = vsel %vm261, %v266, 0
  %v274 = vsel %vm261, %v267, 0
  %276 = vmatprep.subr.mxu0 0.0
  %277 = vmatpush1.msra.mxu0 0.0
  %278 = vmatprep.subr.mxu0 0.0
  %279 = vmatpush1.msra.mxu0 0.0
  %280 = vmatprep.subr.mxu0 0.0
  %281 = vmatpush1.msra.mxu0 0.0
  %282 = vmatprep.subr.mxu0 0.0
  %283 = vmatpush1.msra.mxu0 0.0
  %284 = vmatprep.subr.mxu0 0.0
  %285 = vmatpush1.msra.mxu0 0.0
  %286 = vmatprep.subr.mxu0 0.0
  %287 = vmatpush1.msra.mxu0 0.0
  %288 = vmatprep.subr.mxu0 0.0
  %289 = vmatpush1.msra.mxu0 0.0
  %290 = vmatprep.subr.mxu0 0.0
  %291 = vmatpush1.msra.mxu0 0.0
  %292 = vmatprep.subr.mxu0 0.0
  %293 = vmatpush1.msra.mxu0 0.0
  %294 = vmatprep.subr.mxu0 0.0
  %295 = vmatpush1.msra.mxu0 0.0
  %296 = vmatprep.subr.mxu0 0.0
  %297 = vmatpush1.msra.mxu0 0.0
  %298 = vmatprep.subr.mxu0 0.0
  %299 = vmatpush1.msra.mxu0 0.0
  %300 = vmatprep.subr.mxu0 0.0
  %301 = vmatpush1.msra.mxu0 0.0
  %302 = vmatprep.subr.mxu0 0.0
  %303 = vmatpush1.msra.mxu0 0.0
  %304 = vmatprep.subr.mxu0 0.0
  %305 = vmatpush1.msra.mxu0 %v269
  %306 = vmatprep.subr.mxu0 0.0
  %307 = vmatpush1.msra.mxu0 %v268
  %308 = vmatprep.subr.mxu0 0.0
  %309 = vmatpush2.msra.mxu0 0.0
  %310 = vmatprep.subr.mxu0 0.0
  %311 = vmatpush2.msra.mxu0 0.0
  %312 = vmatprep.subr.mxu0 0.0
  %313 = vmatpush2.msra.mxu0 0.0
  %314 = vmatprep.subr.mxu0 0.0
  %315 = vmatpush2.msra.mxu0 0.0
  %316 = vmatprep.subr.mxu0 0.0
  %317 = vmatpush2.msra.mxu0 0.0
  %318 = vmatprep.subr.mxu0 0.0
  %319 = vmatpush2.msra.mxu0 0.0
  %320 = vmatprep.subr.mxu0 0.0
  %321 = vmatpush2.msra.mxu0 0.0
  %322 = vmatprep.subr.mxu0 0.0
  %323 = vmatpush2.msra.mxu0 0.0
  %324 = vmatprep.subr.mxu0 0.0
  %325 = vmatpush2.msra.mxu0 0.0
  %326 = vmatprep.subr.mxu0 0.0
  %327 = vmatpush2.msra.mxu0 0.0
  %328 = vmatprep.subr.mxu0 0.0
  %329 = vmatpush2.msra.mxu0 0.0
  %330 = vmatprep.subr.mxu0 0.0
  %331 = vmatpush2.msra.mxu0 0.0
  %332 = vmatprep.subr.mxu0 0.0
  %333 = vmatpush2.msra.mxu0 0.0
  %334 = vmatprep.subr.mxu0 0.0
  %335 = vmatpush2.msra.mxu0 0.0
  %336 = vmatprep.subr.mxu0 0.0
  %337 = vmatpush2.msra.mxu0 0.0
  %338 = vmatprep.subr.mxu0 0.0
  %339 = vmatpush2.msra.mxu0 0.0
  %340 = vmatprep.mubr.f32.mxu0 0.0
  %341 = vmatmul.mubr.f32.gmra.mxu0 %v271
  %v342 = vpop.f32.mrf.mxu0
  %v343 = vadd.f32 0.0, %v342
  %v344 = vpop.f32.mrf.mxu0
  %345 = vmatprep.mubr.f32.mxu0 0.0
  %346 = vmatmul.mubr.f32.gmra.mxu0 %v274
  %v347 = vpop.f32.mrf.mxu0
  %v348 = vadd.f32 0.0, %v347
  %v349 = vpop.f32.mrf.mxu0
  %350 = vdwg.mxu0
  %v352 = vlaneseq
  %v353 = vshrl.u32 %v352, 7
  %v354 = vsub.s32 0, %v353
  %v355 = vrot.slane %v265, %v354
  %v357 = vadd.f32 %v355, %v343
  %v358 = vadd.f32 %v355, %v348
  %v359 = vld [vmem:[#allocation2 + $0x2] sm:$0xff]
  %v360 = vld [vmem:[#allocation2 + $0xa] sm:$0xff]
  %v361 = vld [vmem:[%s5 + $0x10] sm:$0xff]
  %v362 = vld [vmem:[%s5 + $0x18] sm:$0xff]
  %v364 = vsel %vm261, %v359, 0
  %v367 = vsel %vm261, %v360, 0
  %369 = vmatprep.subr.mxu0 0.0
  %370 = vmatpush1.msra.mxu0 0.0
  %371 = vmatprep.subr.mxu0 0.0
  %372 = vmatpush1.msra.mxu0 0.0
  %373 = vmatprep.subr.mxu0 0.0
  %374 = vmatpush1.msra.mxu0 0.0
  %375 = vmatprep.subr.mxu0 0.0
  %376 = vmatpush1.msra.mxu0 0.0
  %377 = vmatprep.subr.mxu0 0.0
  %378 = vmatpush1.msra.mxu0 0.0
  %379 = vmatprep.subr.mxu0 0.0
  %380 = vmatpush1.msra.mxu0 0.0
  %381 = vmatprep.subr.mxu0 0.0
  %382 = vmatpush1.msra.mxu0 0.0
  %383 = vmatprep.subr.mxu0 0.0
  %384 = vmatpush1.msra.mxu0 0.0
  %385 = vmatprep.subr.mxu0 0.0
  %386 = vmatpush1.msra.mxu0 0.0
  %387 = vmatprep.subr.mxu0 0.0
  %388 = vmatpush1.msra.mxu0 0.0
  %389 = vmatprep.subr.mxu0 0.0
  %390 = vmatpush1.msra.mxu0 0.0
  %391 = vmatprep.subr.mxu0 0.0
  %392 = vmatpush1.msra.mxu0 0.0
  %393 = vmatprep.subr.mxu0 0.0
  %394 = vmatpush1.msra.mxu0 0.0
  %395 = vmatprep.subr.mxu0 0.0
  %396 = vmatpush1.msra.mxu0 0.0
  %397 = vmatprep.subr.mxu0 0.0
  %398 = vmatpush1.msra.mxu0 %v362
  %399 = vmatprep.subr.mxu0 0.0
  %400 = vmatpush1.msra.mxu0 %v361
  %401 = vmatprep.subr.mxu0 0.0
  %402 = vmatpush2.msra.mxu0 0.0
  %403 = vmatprep.subr.mxu0 0.0
  %404 = vmatpush2.msra.mxu0 0.0
  %405 = vmatprep.subr.mxu0 0.0
  %406 = vmatpush2.msra.mxu0 0.0
  %407 = vmatprep.subr.mxu0 0.0
  %408 = vmatpush2.msra.mxu0 0.0
  %409 = vmatprep.subr.mxu0 0.0
  %410 = vmatpush2.msra.mxu0 0.0
  %411 = vmatprep.subr.mxu0 0.0
  %412 = vmatpush2.msra.mxu0 0.0
  %413 = vmatprep.subr.mxu0 0.0
  %414 = vmatpush2.msra.mxu0 0.0
  %415 = vmatprep.subr.mxu0 0.0
  %416 = vmatpush2.msra.mxu0 0.0
  %417 = vmatprep.subr.mxu0 0.0
  %418 = vmatpush2.msra.mxu0 0.0
  %419 = vmatprep.subr.mxu0 0.0
  %420 = vmatpush2.msra.mxu0 0.0
  %421 = vmatprep.subr.mxu0 0.0
  %422 = vmatpush2.msra.mxu0 0.0
  %423 = vmatprep.subr.mxu0 0.0
  %424 = vmatpush2.msra.mxu0 0.0
  %425 = vmatprep.subr.mxu0 0.0
  %426 = vmatpush2.msra.mxu0 0.0
  %427 = vmatprep.subr.mxu0 0.0
  %428 = vmatpush2.msra.mxu0 0.0
  %429 = vmatprep.subr.mxu0 0.0
  %430 = vmatpush2.msra.mxu0 0.0
  %431 = vmatprep.subr.mxu0 0.0
  %432 = vmatpush2.msra.mxu0 0.0
  %433 = vmatprep.mubr.f32.mxu0 0.0
  %434 = vmatmul.mubr.f32.gmra.mxu0 %v364
  %v435 = vpop.f32.mrf.mxu0
  %v436 = vadd.f32 0.0, %v435
  %v437 = vpop.f32.mrf.mxu0
  %438 = vmatprep.mubr.f32.mxu0 0.0
  %439 = vmatmul.mubr.f32.gmra.mxu0 %v367
  %v440 = vpop.f32.mrf.mxu0
  %v441 = vadd.f32 0.0, %v440
  %v442 = vpop.f32.mrf.mxu0
  %443 = vdwg.mxu0
  %v444 = vadd.f32 %v357, %v436
  %v445 = vadd.f32 %v358, %v441
  %v446 = vld [vmem:[#allocation2 + $0x4] sm:$0xff]
  %v447 = vld [vmem:[#allocation2 + $0xc] sm:$0xff]
  %v448 = vld [vmem:[%s5 + $0x20] sm:$0xff]
  %v449 = vld [vmem:[%s5 + $0x28] sm:$0xff]
  %v451 = vsel %vm261, %v446, 0
  %v454 = vsel %vm261, %v447, 0
  %456 = vmatprep.subr.mxu0 0.0
  %457 = vmatpush1.msra.mxu0 0.0
  %458 = vmatprep.subr.mxu0 0.0
  %459 = vmatpush1.msra.mxu0 0.0
  %460 = vmatprep.subr.mxu0 0.0
  %461 = vmatpush1.msra.mxu0 0.0
  %462 = vmatprep.subr.mxu0 0.0
  %463 = vmatpush1.msra.mxu0 0.0
  %464 = vmatprep.subr.mxu0 0.0
  %465 = vmatpush1.msra.mxu0 0.0
  %466 = vmatprep.subr.mxu0 0.0
  %467 = vmatpush1.msra.mxu0 0.0
  %468 = vmatprep.subr.mxu0 0.0
  %469 = vmatpush1.msra.mxu0 0.0
  %470 = vmatprep.subr.mxu0 0.0
  %471 = vmatpush1.msra.mxu0 0.0
  %472 = vmatprep.subr.mxu0 0.0
  %473 = vmatpush1.msra.mxu0 0.0
  %474 = vmatprep.subr.mxu0 0.0
  %475 = vmatpush1.msra.mxu0 0.0
  %476 = vmatprep.subr.mxu0 0.0
  %477 = vmatpush1.msra.mxu0 0.0
  %478 = vmatprep.subr.mxu0 0.0
  %479 = vmatpush1.msra.mxu0 0.0
  %480 = vmatprep.subr.mxu0 0.0
  %481 = vmatpush1.msra.mxu0 0.0
  %482 = vmatprep.subr.mxu0 0.0
  %483 = vmatpush1.msra.mxu0 0.0
  %484 = vmatprep.subr.mxu0 0.0
  %485 = vmatpush1.msra.mxu0 %v449
  %486 = vmatprep.subr.mxu0 0.0
  %487 = vmatpush1.msra.mxu0 %v448
  %488 = vmatprep.subr.mxu0 0.0
  %489 = vmatpush2.msra.mxu0 0.0
  %490 = vmatprep.subr.mxu0 0.0
  %491 = vmatpush2.msra.mxu0 0.0
  %492 = vmatprep.subr.mxu0 0.0
  %493 = vmatpush2.msra.mxu0 0.0
  %494 = vmatprep.subr.mxu0 0.0
  %495 = vmatpush2.msra.mxu0 0.0
  %496 = vmatprep.subr.mxu0 0.0
  %497 = vmatpush2.msra.mxu0 0.0
  %498 = vmatprep.subr.mxu0 0.0
  %499 = vmatpush2.msra.mxu0 0.0
  %500 = vmatprep.subr.mxu0 0.0
  %501 = vmatpush2.msra.mxu0 0.0
  %502 = vmatprep.subr.mxu0 0.0
  %503 = vmatpush2.msra.mxu0 0.0
  %504 = vmatprep.subr.mxu0 0.0
  %505 = vmatpush2.msra.mxu0 0.0
  %506 = vmatprep.subr.mxu0 0.0
  %507 = vmatpush2.msra.mxu0 0.0
  %508 = vmatprep.subr.mxu0 0.0
  %509 = vmatpush2.msra.mxu0 0.0
  %510 = vmatprep.subr.mxu0 0.0
  %511 = vmatpush2.msra.mxu0 0.0
  %512 = vmatprep.subr.mxu0 0.0
  %513 = vmatpush2.msra.mxu0 0.0
  %514 = vmatprep.subr.mxu0 0.0
  %515 = vmatpush2.msra.mxu0 0.0
  %516 = vmatprep.subr.mxu0 0.0
  %517 = vmatpush2.msra.mxu0 0.0
  %518 = vmatprep.subr.mxu0 0.0
  %519 = vmatpush2.msra.mxu0 0.0
  %520 = vmatprep.mubr.f32.mxu0 0.0
  %521 = vmatmul.mubr.f32.gmra.mxu0 %v451
  %v522 = vpop.f32.mrf.mxu0
  %v523 = vadd.f32 0.0, %v522
  %v524 = vpop.f32.mrf.mxu0
  %525 = vmatprep.mubr.f32.mxu0 0.0
  %526 = vmatmul.mubr.f32.gmra.mxu0 %v454
  %v527 = vpop.f32.mrf.mxu0
  %v528 = vadd.f32 0.0, %v527
  %v529 = vpop.f32.mrf.mxu0
  %530 = vdwg.mxu0
  %v531 = vadd.f32 %v444, %v523
  %v532 = vadd.f32 %v445, %v528
  %v533 = vld [vmem:[#allocation2 + $0x6] sm:$0xff]
  %v534 = vld [vmem:[#allocation2 + $0xe] sm:$0xff]
  %v535 = vld [vmem:[%s5 + $0x30] sm:$0xff]
  %v536 = vld [vmem:[%s5 + $0x38] sm:$0xff]
  %v538 = vsel %vm261, %v533, 0
  %v541 = vsel %vm261, %v534, 0
  %543 = vmatprep.subr.mxu0 0.0
  %544 = vmatpush1.msra.mxu0 0.0
  %545 = vmatprep.subr.mxu0 0.0
  %546 = vmatpush1.msra.mxu0 0.0
  %547 = vmatprep.subr.mxu0 0.0
  %548 = vmatpush1.msra.mxu0 0.0
  %549 = vmatprep.subr.mxu0 0.0
  %550 = vmatpush1.msra.mxu0 0.0
  %551 = vmatprep.subr.mxu0 0.0
  %552 = vmatpush1.msra.mxu0 0.0
  %553 = vmatprep.subr.mxu0 0.0
  %554 = vmatpush1.msra.mxu0 0.0
  %555 = vmatprep.subr.mxu0 0.0
  %556 = vmatpush1.msra.mxu0 0.0
  %557 = vmatprep.subr.mxu0 0.0
  %558 = vmatpush1.msra.mxu0 0.0
  %559 = vmatprep.subr.mxu0 0.0
  %560 = vmatpush1.msra.mxu0 0.0
  %561 = vmatprep.subr.mxu0 0.0
  %562 = vmatpush1.msra.mxu0 0.0
  %563 = vmatprep.subr.mxu0 0.0
  %564 = vmatpush1.msra.mxu0 0.0
  %565 = vmatprep.subr.mxu0 0.0
  %566 = vmatpush1.msra.mxu0 0.0
  %567 = vmatprep.subr.mxu0 0.0
  %568 = vmatpush1.msra.mxu0 0.0
  %569 = vmatprep.subr.mxu0 0.0
  %570 = vmatpush1.msra.mxu0 0.0
  %571 = vmatprep.subr.mxu0 0.0
  %572 = vmatpush1.msra.mxu0 %v536
  %573 = vmatprep.subr.mxu0 0.0
  %574 = vmatpush1.msra.mxu0 %v535
  %575 = vmatprep.subr.mxu0 0.0
  %576 = vmatpush2.msra.mxu0 0.0
  %577 = vmatprep.subr.mxu0 0.0
  %578 = vmatpush2.msra.mxu0 0.0
  %579 = vmatprep.subr.mxu0 0.0
  %580 = vmatpush2.msra.mxu0 0.0
  %581 = vmatprep.subr.mxu0 0.0
  %582 = vmatpush2.msra.mxu0 0.0
  %583 = vmatprep.subr.mxu0 0.0
  %584 = vmatpush2.msra.mxu0 0.0
  %585 = vmatprep.subr.mxu0 0.0
  %586 = vmatpush2.msra.mxu0 0.0
  %587 = vmatprep.subr.mxu0 0.0
  %588 = vmatpush2.msra.mxu0 0.0
  %589 = vmatprep.subr.mxu0 0.0
  %590 = vmatpush2.msra.mxu0 0.0
  %591 = vmatprep.subr.mxu0 0.0
  %592 = vmatpush2.msra.mxu0 0.0
  %593 = vmatprep.subr.mxu0 0.0
  %594 = vmatpush2.msra.mxu0 0.0
  %595 = vmatprep.subr.mxu0 0.0
  %596 = vmatpush2.msra.mxu0 0.0
  %597 = vmatprep.subr.mxu0 0.0
  %598 = vmatpush2.msra.mxu0 0.0
  %599 = vmatprep.subr.mxu0 0.0
  %600 = vmatpush2.msra.mxu0 0.0
  %601 = vmatprep.subr.mxu0 0.0
  %602 = vmatpush2.msra.mxu0 0.0
  %603 = vmatprep.subr.mxu0 0.0
  %604 = vmatpush2.msra.mxu0 0.0
  %605 = vmatprep.subr.mxu0 0.0
  %606 = vmatpush2.msra.mxu0 0.0
  %607 = vmatprep.mubr.f32.mxu0 0.0
  %608 = vmatmul.mubr.f32.gmra.mxu0 %v538
  %v609 = vpop.f32.mrf.mxu0
  %v610 = vadd.f32 0.0, %v609
  %v611 = vpop.f32.mrf.mxu0
  %612 = vmatprep.mubr.f32.mxu0 0.0
  %613 = vmatmul.mubr.f32.gmra.mxu0 %v541
  %v614 = vpop.f32.mrf.mxu0
  %v615 = vadd.f32 0.0, %v614
  %v616 = vpop.f32.mrf.mxu0
  %617 = vdwg.mxu0
  %v618 = vadd.f32 %v531, %v610
  %v619 = vadd.f32 %v532, %v615
  %v620 = vmax.f32 %v618, 0.0
  %v621 = vmax.f32 %v619, 0.0
  %vm622 = vcmask 519168
  %623 = vst.msk [vmem:[#allocation2] sm:$0xf] %vm622, -inf
  %vm624 = vcmask 523264
  %625 = vst.msk [vmem:[#allocation2 + $0x4] sm:$0xff] %vm624, %v620
  %626 = vst.msk [vmem:[#allocation2 + $0xc] sm:$0xff] %vm624, %v621
  %v627 = vld [vmem:[#allocation2 + $0x2] sm:$0xff]
  %v628 = vld [vmem:[#allocation2 + $0xa] sm:$0xff]
  %v629 = vmax.f32 %v620, %v627
  %v630 = vmax.f32 %v621, %v628
  %631 = vst.msk [vmem:[#allocation2] sm:$0xf] %vm622, 0.0
  %632 = vst.msk [vmem:[#allocation2 + $0x4] sm:$0xff] %vm624, %v629
  %633 = vst.msk [vmem:[#allocation2 + $0xc] sm:$0xff] %vm624, %v630
  %634 = vst.msk [vmem:[#allocation2 + $0x14] sm:$0xf] %vm622, 0.0
  %v635 = vld [vmem:[%s8] sm:$0x1]
  %v636 = vld [vmem:[#allocation2 + $0x2] sm:$0xff]
  %v637 = vld [vmem:[#allocation2 + $0xa] sm:$0xff]
  %v638 = vld [vmem:[%s7] sm:$0xff]
  %v639 = vld [vmem:[%s7 + $0x8] sm:$0xff]
  %v640 = vld [vmem:[%s7 + $0x10] sm:$0xff]
  %v641 = vld [vmem:[%s7 + $0x18] sm:$0xff]
  %v642 = vld [vmem:[%s7 + $0x20] sm:$0xff]
  %v643 = vld [vmem:[%s7 + $0x28] sm:$0xff]
  %v644 = vld [vmem:[%s7 + $0x30] sm:$0xff]
  %v645 = vld [vmem:[%s7 + $0x38] sm:$0xff]
  %v647 = vsel %vm624, %v636, 0
  %v650 = vsel %vm624, %v637, 0
  %652 = vmatprep.subr.mxu0 0.0
  %653 = vmatpush1.msra.mxu0 0.0
  %654 = vmatprep.subr.mxu0 0.0
  %655 = vmatpush1.msra.mxu0 0.0
  %656 = vmatprep.subr.mxu0 0.0
  %657 = vmatpush1.msra.mxu0 0.0
  %658 = vmatprep.subr.mxu0 0.0
  %659 = vmatpush1.msra.mxu0 0.0
  %660 = vmatprep.subr.mxu0 0.0
  %661 = vmatpush1.msra.mxu0 0.0
  %662 = vmatprep.subr.mxu0 0.0
  %663 = vmatpush1.msra.mxu0 0.0
  %664 = vmatprep.subr.mxu0 0.0
  %665 = vmatpush1.msra.mxu0 0.0
  %666 = vmatprep.subr.mxu0 0.0
  %667 = vmatpush1.msra.mxu0 0.0
  %668 = vmatprep.subr.mxu0 0.0
  %669 = vmatpush1.msra.mxu0 %v645
  %670 = vmatprep.subr.mxu0 0.0
  %671 = vmatpush1.msra.mxu0 %v644
  %672 = vmatprep.subr.mxu0 0.0
  %673 = vmatpush1.msra.mxu0 %v643
  %674 = vmatprep.subr.mxu0 0.0
  %675 = vmatpush1.msra.mxu0 %v642
  %676 = vmatprep.subr.mxu0 0.0
  %677 = vmatpush1.msra.mxu0 %v641
  %678 = vmatprep.subr.mxu0 0.0
  %679 = vmatpush1.msra.mxu0 %v640
  %680 = vmatprep.subr.mxu0 0.0
  %681 = vmatpush1.msra.mxu0 %v639
  %682 = vmatprep.subr.mxu0 0.0
  %683 = vmatpush1.msra.mxu0 %v638
  %684 = vmatprep.subr.mxu0 0.0
  %685 = vmatpush2.msra.mxu0 0.0
  %686 = vmatprep.subr.mxu0 0.0
  %687 = vmatpush2.msra.mxu0 0.0
  %688 = vmatprep.subr.mxu0 0.0
  %689 = vmatpush2.msra.mxu0 0.0
  %690 = vmatprep.subr.mxu0 0.0
  %691 = vmatpush2.msra.mxu0 0.0
  %692 = vmatprep.subr.mxu0 0.0
  %693 = vmatpush2.msra.mxu0 0.0
  %694 = vmatprep.subr.mxu0 0.0
  %695 = vmatpush2.msra.mxu0 0.0
  %696 = vmatprep.subr.mxu0 0.0
  %697 = vmatpush2.msra.mxu0 0.0
  %698 = vmatprep.subr.mxu0 0.0
  %699 = vmatpush2.msra.mxu0 0.0
  %700 = vmatprep.subr.mxu0 0.0
  %701 = vmatpush2.msra.mxu0 0.0
  %702 = vmatprep.subr.mxu0 0.0
  %703 = vmatpush2.msra.mxu0 0.0
  %704 = vmatprep.subr.mxu0 0.0
  %705 = vmatpush2.msra.mxu0 0.0
  %706 = vmatprep.subr.mxu0 0.0
  %707 = vmatpush2.msra.mxu0 0.0
  %708 = vmatprep.subr.mxu0 0.0
  %709 = vmatpush2.msra.mxu0 0.0
  %710 = vmatprep.subr.mxu0 0.0
  %711 = vmatpush2.msra.mxu0 0.0
  %712 = vmatprep.subr.mxu0 0.0
  %713 = vmatpush2.msra.mxu0 0.0
  %714 = vmatprep.subr.mxu0 0.0
  %715 = vmatpush2.msra.mxu0 0.0
  %716 = vmatprep.mubr.f32.mxu0 0.0
  %717 = vmatmul.mubr.f32.gmra.mxu0 %v647
  %v718 = vpop.f32.mrf.mxu0
  %v719 = vadd.f32 0.0, %v718
  %v720 = vpop.f32.mrf.mxu0
  %721 = vmatprep.mubr.f32.mxu0 0.0
  %722 = vmatmul.mubr.f32.gmra.mxu0 %v650
  %v723 = vpop.f32.mrf.mxu0
  %v724 = vadd.f32 0.0, %v723
  %v725 = vpop.f32.mrf.mxu0
  %726 = vdwg.mxu0
  %v728 = vlaneseq
  %v729 = vshrl.u32 %v728, 7
  %v730 = vsub.s32 0, %v729
  %v731 = vrot.slane %v635, %v730
  %v733 = vadd.f32 %v731, %v719
  %v734 = vadd.f32 %v731, %v724
  %v735 = vld [vmem:[#allocation2 + $0x4] sm:$0xff]
  %v736 = vld [vmem:[#allocation2 + $0xc] sm:$0xff]
  %v737 = vld [vmem:[%s7 + $0x40] sm:$0xff]
  %v738 = vld [vmem:[%s7 + $0x48] sm:$0xff]
  %v739 = vld [vmem:[%s7 + $0x50] sm:$0xff]
  %v740 = vld [vmem:[%s7 + $0x58] sm:$0xff]
  %v741 = vld [vmem:[%s7 + $0x60] sm:$0xff]
  %v742 = vld [vmem:[%s7 + $0x68] sm:$0xff]
  %v743 = vld [vmem:[%s7 + $0x70] sm:$0xff]
  %v744 = vld [vmem:[%s7 + $0x78] sm:$0xff]
  %v746 = vsel %vm624, %v735, 0
  %v749 = vsel %vm624, %v736, 0
  %751 = vmatprep.subr.mxu0 0.0
  %752 = vmatpush1.msra.mxu0 0.0
  %753 = vmatprep.subr.mxu0 0.0
  %754 = vmatpush1.msra.mxu0 0.0
  %755 = vmatprep.subr.mxu0 0.0
  %756 = vmatpush1.msra.mxu0 0.0
  %757 = vmatprep.subr.mxu0 0.0
  %758 = vmatpush1.msra.mxu0 0.0
  %759 = vmatprep.subr.mxu0 0.0
  %760 = vmatpush1.msra.mxu0 0.0
  %761 = vmatprep.subr.mxu0 0.0
  %762 = vmatpush1.msra.mxu0 0.0
  %763 = vmatprep.subr.mxu0 0.0
  %764 = vmatpush1.msra.mxu0 0.0
  %765 = vmatprep.subr.mxu0 0.0
  %766 = vmatpush1.msra.mxu0 0.0
  %767 = vmatprep.subr.mxu0 0.0
  %768 = vmatpush1.msra.mxu0 %v744
  %769 = vmatprep.subr.mxu0 0.0
  %770 = vmatpush1.msra.mxu0 %v743
  %771 = vmatprep.subr.mxu0 0.0
  %772 = vmatpush1.msra.mxu0 %v742
  %773 = vmatprep.subr.mxu0 0.0
  %774 = vmatpush1.msra.mxu0 %v741
  %775 = vmatprep.subr.mxu0 0.0
  %776 = vmatpush1.msra.mxu0 %v740
  %777 = vmatprep.subr.mxu0 0.0
  %778 = vmatpush1.msra.mxu0 %v739
  %779 = vmatprep.subr.mxu0 0.0
  %780 = vmatpush1.msra.mxu0 %v738
  %781 = vmatprep.subr.mxu0 0.0
  %782 = vmatpush1.msra.mxu0 %v737
  %783 = vmatprep.subr.mxu0 0.0
  %784 = vmatpush2.msra.mxu0 0.0
  %785 = vmatprep.subr.mxu0 0.0
  %786 = vmatpush2.msra.mxu0 0.0
  %787 = vmatprep.subr.mxu0 0.0
  %788 = vmatpush2.msra.mxu0 0.0
  %789 = vmatprep.subr.mxu0 0.0
  %790 = vmatpush2.msra.mxu0 0.0
  %791 = vmatprep.subr.mxu0 0.0
  %792 = vmatpush2.msra.mxu0 0.0
  %793 = vmatprep.subr.mxu0 0.0
  %794 = vmatpush2.msra.mxu0 0.0
  %795 = vmatprep.subr.mxu0 0.0
  %796 = vmatpush2.msra.mxu0 0.0
  %797 = vmatprep.subr.mxu0 0.0
  %798 = vmatpush2.msra.mxu0 0.0
  %799 = vmatprep.subr.mxu0 0.0
  %800 = vmatpush2.msra.mxu0 0.0
  %801 = vmatprep.subr.mxu0 0.0
  %802 = vmatpush2.msra.mxu0 0.0
  %803 = vmatprep.subr.mxu0 0.0
  %804 = vmatpush2.msra.mxu0 0.0
  %805 = vmatprep.subr.mxu0 0.0
  %806 = vmatpush2.msra.mxu0 0.0
  %807 = vmatprep.subr.mxu0 0.0
  %808 = vmatpush2.msra.mxu0 0.0
  %809 = vmatprep.subr.mxu0 0.0
  %810 = vmatpush2.msra.mxu0 0.0
  %811 = vmatprep.subr.mxu0 0.0
  %812 = vmatpush2.msra.mxu0 0.0
  %813 = vmatprep.subr.mxu0 0.0
  %814 = vmatpush2.msra.mxu0 0.0
  %815 = vmatprep.mubr.f32.mxu0 0.0
  %816 = vmatmul.mubr.f32.gmra.mxu0 %v746
  %v817 = vpop.f32.mrf.mxu0
  %v818 = vadd.f32 0.0, %v817
  %v819 = vpop.f32.mrf.mxu0
  %820 = vmatprep.mubr.f32.mxu0 0.0
  %821 = vmatmul.mubr.f32.gmra.mxu0 %v749
  %v822 = vpop.f32.mrf.mxu0
  %v823 = vadd.f32 0.0, %v822
  %v824 = vpop.f32.mrf.mxu0
  %825 = vdwg.mxu0
  %v826 = vadd.f32 %v733, %v818
  %v827 = vadd.f32 %v734, %v823
  %v828 = vld [vmem:[#allocation2 + $0x6] sm:$0xff]
  %v829 = vld [vmem:[#allocation2 + $0xe] sm:$0xff]
  %v830 = vld [vmem:[%s7 + $0x80] sm:$0xff]
  %v831 = vld [vmem:[%s7 + $0x88] sm:$0xff]
  %v832 = vld [vmem:[%s7 + $0x90] sm:$0xff]
  %v833 = vld [vmem:[%s7 + $0x98] sm:$0xff]
  %v834 = vld [vmem:[%s7 + $0xa0] sm:$0xff]
  %v835 = vld [vmem:[%s7 + $0xa8] sm:$0xff]
  %v836 = vld [vmem:[%s7 + $0xb0] sm:$0xff]
  %v837 = vld [vmem:[%s7 + $0xb8] sm:$0xff]
  %v839 = vsel %vm624, %v828, 0
  %v842 = vsel %vm624, %v829, 0
  %844 = vmatprep.subr.mxu0 0.0
  %845 = vmatpush1.msra.mxu0 0.0
  %846 = vmatprep.subr.mxu0 0.0
  %847 = vmatpush1.msra.mxu0 0.0
  %848 = vmatprep.subr.mxu0 0.0
  %849 = vmatpush1.msra.mxu0 0.0
  %850 = vmatprep.subr.mxu0 0.0
  %851 = vmatpush1.msra.mxu0 0.0
  %852 = vmatprep.subr.mxu0 0.0
  %853 = vmatpush1.msra.mxu0 0.0
  %854 = vmatprep.subr.mxu0 0.0
  %855 = vmatpush1.msra.mxu0 0.0
  %856 = vmatprep.subr.mxu0 0.0
  %857 = vmatpush1.msra.mxu0 0.0
  %858 = vmatprep.subr.mxu0 0.0
  %859 = vmatpush1.msra.mxu0 0.0
  %860 = vmatprep.subr.mxu0 0.0
  %861 = vmatpush1.msra.mxu0 %v837
  %862 = vmatprep.subr.mxu0 0.0
  %863 = vmatpush1.msra.mxu0 %v836
  %864 = vmatprep.subr.mxu0 0.0
  %865 = vmatpush1.msra.mxu0 %v835
  %866 = vmatprep.subr.mxu0 0.0
  %867 = vmatpush1.msra.mxu0 %v834
  %868 = vmatprep.subr.mxu0 0.0
  %869 = vmatpush1.msra.mxu0 %v833
  %870 = vmatprep.subr.mxu0 0.0
  %871 = vmatpush1.msra.mxu0 %v832
  %872 = vmatprep.subr.mxu0 0.0
  %873 = vmatpush1.msra.mxu0 %v831
  %874 = vmatprep.subr.mxu0 0.0
  %875 = vmatpush1.msra.mxu0 %v830
  %876 = vmatprep.subr.mxu0 0.0
  %877 = vmatpush2.msra.mxu0 0.0
  %878 = vmatprep.subr.mxu0 0.0
  %879 = vmatpush2.msra.mxu0 0.0
  %880 = vmatprep.subr.mxu0 0.0
  %881 = vmatpush2.msra.mxu0 0.0
  %882 = vmatprep.subr.mxu0 0.0
  %883 = vmatpush2.msra.mxu0 0.0
  %884 = vmatprep.subr.mxu0 0.0
  %885 = vmatpush2.msra.mxu0 0.0
  %886 = vmatprep.subr.mxu0 0.0
  %887 = vmatpush2.msra.mxu0 0.0
  %888 = vmatprep.subr.mxu0 0.0
  %889 = vmatpush2.msra.mxu0 0.0
  %890 = vmatprep.subr.mxu0 0.0
  %891 = vmatpush2.msra.mxu0 0.0
  %892 = vmatprep.subr.mxu0 0.0
  %893 = vmatpush2.msra.mxu0 0.0
  %894 = vmatprep.subr.mxu0 0.0
  %895 = vmatpush2.msra.mxu0 0.0
  %896 = vmatprep.subr.mxu0 0.0
  %897 = vmatpush2.msra.mxu0 0.0
  %898 = vmatprep.subr.mxu0 0.0
  %899 = vmatpush2.msra.mxu0 0.0
  %900 = vmatprep.subr.mxu0 0.0
  %901 = vmatpush2.msra.mxu0 0.0
  %902 = vmatprep.subr.mxu0 0.0
  %903 = vmatpush2.msra.mxu0 0.0
  %904 = vmatprep.subr.mxu0 0.0
  %905 = vmatpush2.msra.mxu0 0.0
  %906 = vmatprep.subr.mxu0 0.0
  %907 = vmatpush2.msra.mxu0 0.0
  %908 = vmatprep.mubr.f32.mxu0 0.0
  %909 = vmatmul.mubr.f32.gmra.mxu0 %v839
  %v910 = vpop.f32.mrf.mxu0
  %v911 = vadd.f32 0.0, %v910
  %v912 = vpop.f32.mrf.mxu0
  %913 = vmatprep.mubr.f32.mxu0 0.0
  %914 = vmatmul.mubr.f32.gmra.mxu0 %v842
  %v915 = vpop.f32.mrf.mxu0
  %v916 = vadd.f32 0.0, %v915
  %v917 = vpop.f32.mrf.mxu0
  %918 = vdwg.mxu0
  %v919 = vadd.f32 %v826, %v911
  %v920 = vadd.f32 %v827, %v916
  %v921 = vmax.f32 %v919, 0.0
  %v922 = vmax.f32 %v920, 0.0
  %923 = vst.msk [vmem:[#allocation2] sm:$0xf] %vm259, 0.0
  %924 = vst.msk [vmem:[#allocation2 + $0x4] sm:$0xff] %vm261, %v921
  %925 = vst.msk [vmem:[#allocation2 + $0xc] sm:$0xff] %vm261, %v922
  %926 = vst.msk [vmem:[#allocation2 + $0x14] sm:$0xf] %vm259, 0.0
  %v927 = vld [vmem:[%s10] sm:$0x1]
  %v928 = vld [vmem:[#allocation2 + $0x2] sm:$0xff]
  %v929 = vld [vmem:[#allocation2 + $0xa] sm:$0xff]
  %v930 = vld [vmem:[%s9] sm:$0xff]
  %v931 = vld [vmem:[%s9 + $0x8] sm:$0xff]
  %v933 = vsel %vm261, %v928, 0
  %v936 = vsel %vm261, %v929, 0
  %938 = vmatprep.subr.mxu0 0.0
  %939 = vmatpush1.msra.mxu0 0.0
  %940 = vmatprep.subr.mxu0 0.0
  %941 = vmatpush1.msra.mxu0 0.0
  %942 = vmatprep.subr.mxu0 0.0
  %943 = vmatpush1.msra.mxu0 0.0
  %944 = vmatprep.subr.mxu0 0.0
  %945 = vmatpush1.msra.mxu0 0.0
  %946 = vmatprep.subr.mxu0 0.0
  %947 = vmatpush1.msra.mxu0 0.0
  %948 = vmatprep.subr.mxu0 0.0
  %949 = vmatpush1.msra.mxu0 0.0
  %950 = vmatprep.subr.mxu0 0.0
  %951 = vmatpush1.msra.mxu0 0.0
  %952 = vmatprep.subr.mxu0 0.0
  %953 = vmatpush1.msra.mxu0 0.0
  %954 = vmatprep.subr.mxu0 0.0
  %955 = vmatpush1.msra.mxu0 0.0
  %956 = vmatprep.subr.mxu0 0.0
  %957 = vmatpush1.msra.mxu0 0.0
  %958 = vmatprep.subr.mxu0 0.0
  %959 = vmatpush1.msra.mxu0 0.0
  %960 = vmatprep.subr.mxu0 0.0
  %961 = vmatpush1.msra.mxu0 0.0
  %962 = vmatprep.subr.mxu0 0.0
  %963 = vmatpush1.msra.mxu0 0.0
  %964 = vmatprep.subr.mxu0 0.0
  %965 = vmatpush1.msra.mxu0 0.0
  %966 = vmatprep.subr.mxu0 0.0
  %967 = vmatpush1.msra.mxu0 %v931
  %968 = vmatprep.subr.mxu0 0.0
  %969 = vmatpush1.msra.mxu0 %v930
  %970 = vmatprep.subr.mxu0 0.0
  %971 = vmatpush2.msra.mxu0 0.0
  %972 = vmatprep.subr.mxu0 0.0
  %973 = vmatpush2.msra.mxu0 0.0
  %974 = vmatprep.subr.mxu0 0.0
  %975 = vmatpush2.msra.mxu0 0.0
  %976 = vmatprep.subr.mxu0 0.0
  %977 = vmatpush2.msra.mxu0 0.0
  %978 = vmatprep.subr.mxu0 0.0
  %979 = vmatpush2.msra.mxu0 0.0
  %980 = vmatprep.subr.mxu0 0.0
  %981 = vmatpush2.msra.mxu0 0.0
  %982 = vmatprep.subr.mxu0 0.0
  %983 = vmatpush2.msra.mxu0 0.0
  %984 = vmatprep.subr.mxu0 0.0
  %985 = vmatpush2.msra.mxu0 0.0
  %986 = vmatprep.subr.mxu0 0.0
  %987 = vmatpush2.msra.mxu0 0.0
  %988 = vmatprep.subr.mxu0 0.0
  %989 = vmatpush2.msra.mxu0 0.0
  %990 = vmatprep.subr.mxu0 0.0
  %991 = vmatpush2.msra.mxu0 0.0
  %992 = vmatprep.subr.mxu0 0.0
  %993 = vmatpush2.msra.mxu0 0.0
  %994 = vmatprep.subr.mxu0 0.0
  %995 = vmatpush2.msra.mxu0 0.0
  %996 = vmatprep.subr.mxu0 0.0
  %997 = vmatpush2.msra.mxu0 0.0
  %998 = vmatprep.subr.mxu0 0.0
  %999 = vmatpush2.msra.mxu0 0.0
  %1000 = vmatprep.subr.mxu0 0.0
  %1001 = vmatpush2.msra.mxu0 0.0
  %1002 = vmatprep.mubr.f32.mxu0 0.0
  %1003 = vmatmul.mubr.f32.gmra.mxu0 %v933
  %v1004 = vpop.f32.mrf.mxu0
  %v1005 = vadd.f32 0.0, %v1004
  %v1006 = vpop.f32.mrf.mxu0
  %1007 = vmatprep.mubr.f32.mxu0 0.0
  %1008 = vmatmul.mubr.f32.gmra.mxu0 %v936
  %v1009 = vpop.f32.mrf.mxu0
  %v1010 = vadd.f32 0.0, %v1009
  %v1011 = vpop.f32.mrf.mxu0
  %1012 = vdwg.mxu0
  %v1014 = vlaneseq
  %v1015 = vshrl.u32 %v1014, 7
  %v1016 = vsub.s32 0, %v1015
  %v1017 = vrot.slane %v927, %v1016
  %v1019 = vadd.f32 %v1017, %v1005
  %v1020 = vadd.f32 %v1017, %v1010
  %v1021 = vld [vmem:[#allocation2 + $0x4] sm:$0xff]
  %v1022 = vld [vmem:[#allocation2 + $0xc] sm:$0xff]
  %v1023 = vld [vmem:[%s9 + $0x10] sm:$0xff]
  %v1024 = vld [vmem:[%s9 + $0x18] sm:$0xff]
  %v1026 = vsel %vm261, %v1021, 0
  %v1029 = vsel %vm261, %v1022, 0
  %1031 = vmatprep.subr.mxu0 0.0
  %1032 = vmatpush1.msra.mxu0 0.0
  %1033 = vmatprep.subr.mxu0 0.0
  %1034 = vmatpush1.msra.mxu0 0.0
  %1035 = vmatprep.subr.mxu0 0.0
  %1036 = vmatpush1.msra.mxu0 0.0
  %1037 = vmatprep.subr.mxu0 0.0
  %1038 = vmatpush1.msra.mxu0 0.0
  %1039 = vmatprep.subr.mxu0 0.0
  %1040 = vmatpush1.msra.mxu0 0.0
  %1041 = vmatprep.subr.mxu0 0.0
  %1042 = vmatpush1.msra.mxu0 0.0
  %1043 = vmatprep.subr.mxu0 0.0
  %1044 = vmatpush1.msra.mxu0 0.0
  %1045 = vmatprep.subr.mxu0 0.0
  %1046 = vmatpush1.msra.mxu0 0.0
  %1047 = vmatprep.subr.mxu0 0.0
  %1048 = vmatpush1.msra.mxu0 0.0
  %1049 = vmatprep.subr.mxu0 0.0
  %1050 = vmatpush1.msra.mxu0 0.0
  %1051 = vmatprep.subr.mxu0 0.0
  %1052 = vmatpush1.msra.mxu0 0.0
  %1053 = vmatprep.subr.mxu0 0.0
  %1054 = vmatpush1.msra.mxu0 0.0
  %1055 = vmatprep.subr.mxu0 0.0
  %1056 = vmatpush1.msra.mxu0 0.0
  %1057 = vmatprep.subr.mxu0 0.0
  %1058 = vmatpush1.msra.mxu0 0.0
  %1059 = vmatprep.subr.mxu0 0.0
  %1060 = vmatpush1.msra.mxu0 %v1024
  %1061 = vmatprep.subr.mxu0 0.0
  %1062 = vmatpush1.msra.mxu0 %v1023
  %1063 = vmatprep.subr.mxu0 0.0
  %1064 = vmatpush2.msra.mxu0 0.0
  %1065 = vmatprep.subr.mxu0 0.0
  %1066 = vmatpush2.msra.mxu0 0.0
  %1067 = vmatprep.subr.mxu0 0.0
  %1068 = vmatpush2.msra.mxu0 0.0
  %1069 = vmatprep.subr.mxu0 0.0
  %1070 = vmatpush2.msra.mxu0 0.0
  %1071 = vmatprep.subr.mxu0 0.0
  %1072 = vmatpush2.msra.mxu0 0.0
  %1073 = vmatprep.subr.mxu0 0.0
  %1074 = vmatpush2.msra.mxu0 0.0
  %1075 = vmatprep.subr.mxu0 0.0
  %1076 = vmatpush2.msra.mxu0 0.0
  %1077 = vmatprep.subr.mxu0 0.0
  %1078 = vmatpush2.msra.mxu0 0.0
  %1079 = vmatprep.subr.mxu0 0.0
  %1080 = vmatpush2.msra.mxu0 0.0
  %1081 = vmatprep.subr.mxu0 0.0
  %1082 = vmatpush2.msra.mxu0 0.0
  %1083 = vmatprep.subr.mxu0 0.0
  %1084 = vmatpush2.msra.mxu0 0.0
  %1085 = vmatprep.subr.mxu0 0.0
  %1086 = vmatpush2.msra.mxu0 0.0
  %1087 = vmatprep.subr.mxu0 0.0
  %1088 = vmatpush2.msra.mxu0 0.0
  %1089 = vmatprep.subr.mxu0 0.0
  %1090 = vmatpush2.msra.mxu0 0.0
  %1091 = vmatprep.subr.mxu0 0.0
  %1092 = vmatpush2.msra.mxu0 0.0
  %1093 = vmatprep.subr.mxu0 0.0
  %1094 = vmatpush2.msra.mxu0 0.0
  %1095 = vmatprep.mubr.f32.mxu0 0.0
  %1096 = vmatmul.mubr.f32.gmra.mxu0 %v1026
  %v1097 = vpop.f32.mrf.mxu0
  %v1098 = vadd.f32 0.0, %v1097
  %v1099 = vpop.f32.mrf.mxu0
  %1100 = vmatprep.mubr.f32.mxu0 0.0
  %1101 = vmatmul.mubr.f32.gmra.mxu0 %v1029
  %v1102 = vpop.f32.mrf.mxu0
  %v1103 = vadd.f32 0.0, %v1102
  %v1104 = vpop.f32.mrf.mxu0
  %1105 = vdwg.mxu0
  %v1106 = vadd.f32 %v1019, %v1098
  %v1107 = vadd.f32 %v1020, %v1103
  %v1108 = vld [vmem:[#allocation2 + $0x6] sm:$0xff]
  %v1109 = vld [vmem:[#allocation2 + $0xe] sm:$0xff]
  %v1110 = vld [vmem:[%s9 + $0x20] sm:$0xff]
  %v1111 = vld [vmem:[%s9 + $0x28] sm:$0xff]
  %v1113 = vsel %vm261, %v1108, 0
  %v1116 = vsel %vm261, %v1109, 0
  %1118 = vmatprep.subr.mxu0 0.0
  %1119 = vmatpush1.msra.mxu0 0.0
  %1120 = vmatprep.subr.mxu0 0.0
  %1121 = vmatpush1.msra.mxu0 0.0
  %1122 = vmatprep.subr.mxu0 0.0
  %1123 = vmatpush1.msra.mxu0 0.0
  %1124 = vmatprep.subr.mxu0 0.0
  %1125 = vmatpush1.msra.mxu0 0.0
  %1126 = vmatprep.subr.mxu0 0.0
  %1127 = vmatpush1.msra.mxu0 0.0
  %1128 = vmatprep.subr.mxu0 0.0
  %1129 = vmatpush1.msra.mxu0 0.0
  %1130 = vmatprep.subr.mxu0 0.0
  %1131 = vmatpush1.msra.mxu0 0.0
  %1132 = vmatprep.subr.mxu0 0.0
  %1133 = vmatpush1.msra.mxu0 0.0
  %1134 = vmatprep.subr.mxu0 0.0
  %1135 = vmatpush1.msra.mxu0 0.0
  %1136 = vmatprep.subr.mxu0 0.0
  %1137 = vmatpush1.msra.mxu0 0.0
  %1138 = vmatprep.subr.mxu0 0.0
  %1139 = vmatpush1.msra.mxu0 0.0
  %1140 = vmatprep.subr.mxu0 0.0
  %1141 = vmatpush1.msra.mxu0 0.0
  %1142 = vmatprep.subr.mxu0 0.0
  %1143 = vmatpush1.msra.mxu0 0.0
  %1144 = vmatprep.subr.mxu0 0.0
  %1145 = vmatpush1.msra.mxu0 0.0
  %1146 = vmatprep.subr.mxu0 0.0
  %1147 = vmatpush1.msra.mxu0 %v1111
  %1148 = vmatprep.subr.mxu0 0.0
  %1149 = vmatpush1.msra.mxu0 %v1110
  %1150 = vmatprep.subr.mxu0 0.0
  %1151 = vmatpush2.msra.mxu0 0.0
  %1152 = vmatprep.subr.mxu0 0.0
  %1153 = vmatpush2.msra.mxu0 0.0
  %1154 = vmatprep.subr.mxu0 0.0
  %1155 = vmatpush2.msra.mxu0 0.0
  %1156 = vmatprep.subr.mxu0 0.0
  %1157 = vmatpush2.msra.mxu0 0.0
  %1158 = vmatprep.subr.mxu0 0.0
  %1159 = vmatpush2.msra.mxu0 0.0
  %1160 = vmatprep.subr.mxu0 0.0
  %1161 = vmatpush2.msra.mxu0 0.0
  %1162 = vmatprep.subr.mxu0 0.0
  %1163 = vmatpush2.msra.mxu0 0.0
  %1164 = vmatprep.subr.mxu0 0.0
  %1165 = vmatpush2.msra.mxu0 0.0
  %1166 = vmatprep.subr.mxu0 0.0
  %1167 = vmatpush2.msra.mxu0 0.0
  %1168 = vmatprep.subr.mxu0 0.0
  %1169 = vmatpush2.msra.mxu0 0.0
  %1170 = vmatprep.subr.mxu0 0.0
  %1171 = vmatpush2.msra.mxu0 0.0
  %1172 = vmatprep.subr.mxu0 0.0
  %1173 = vmatpush2.msra.mxu0 0.0
  %1174 = vmatprep.subr.mxu0 0.0
  %1175 = vmatpush2.msra.mxu0 0.0
  %1176 = vmatprep.subr.mxu0 0.0
  %1177 = vmatpush2.msra.mxu0 0.0
  %1178 = vmatprep.subr.mxu0 0.0
  %1179 = vmatpush2.msra.mxu0 0.0
  %1180 = vmatprep.subr.mxu0 0.0
  %1181 = vmatpush2.msra.mxu0 0.0
  %1182 = vmatprep.mubr.f32.mxu0 0.0
  %1183 = vmatmul.mubr.f32.gmra.mxu0 %v1113
  %v1184 = vpop.f32.mrf.mxu0
  %v1185 = vadd.f32 0.0, %v1184
  %v1186 = vpop.f32.mrf.mxu0
  %1187 = vmatprep.mubr.f32.mxu0 0.0
  %1188 = vmatmul.mubr.f32.gmra.mxu0 %v1116
  %v1189 = vpop.f32.mrf.mxu0
  %v1190 = vadd.f32 0.0, %v1189
  %v1191 = vpop.f32.mrf.mxu0
  %1192 = vdwg.mxu0
  %v1193 = vadd.f32 %v1106, %v1185
  %v1194 = vadd.f32 %v1107, %v1190
  %v1195 = vadd.f32 %v1193, %v257
  %v1196 = vadd.f32 %v1194, %v258
  %v1197 = vld [vmem:[%s11] sm:$0xff]
  %v1198 = vld [vmem:[%s11 + $0x8] sm:$0xff]
  %v1199 = vld [vmem:[%s12] sm:$0x1]
  %v1201 = vlaneseq
  %v1202 = vshrl.u32 %v1201, 7
  %v1203 = vsub.s32 0, %v1202
  %v1204 = vrot.slane %v1199, %v1203
  %v1207 = vsel %vm261, %v1195, 0
  %v1210 = vsel %vm261, %v1196, 0
  %1212 = vmatprep.subr.mxu0 0.0
  %1213 = vmatpush1.msra.mxu0 0.0
  %1214 = vmatprep.subr.mxu0 0.0
  %1215 = vmatpush1.msra.mxu0 0.0
  %1216 = vmatprep.subr.mxu0 0.0
  %1217 = vmatpush1.msra.mxu0 0.0
  %1218 = vmatprep.subr.mxu0 0.0
  %1219 = vmatpush1.msra.mxu0 0.0
  %1220 = vmatprep.subr.mxu0 0.0
  %1221 = vmatpush1.msra.mxu0 0.0
  %1222 = vmatprep.subr.mxu0 0.0
  %1223 = vmatpush1.msra.mxu0 0.0
  %1224 = vmatprep.subr.mxu0 0.0
  %1225 = vmatpush1.msra.mxu0 0.0
  %1226 = vmatprep.subr.mxu0 0.0
  %1227 = vmatpush1.msra.mxu0 0.0
  %1228 = vmatprep.subr.mxu0 0.0
  %1229 = vmatpush1.msra.mxu0 0.0
  %1230 = vmatprep.subr.mxu0 0.0
  %1231 = vmatpush1.msra.mxu0 0.0
  %1232 = vmatprep.subr.mxu0 0.0
  %1233 = vmatpush1.msra.mxu0 0.0
  %1234 = vmatprep.subr.mxu0 0.0
  %1235 = vmatpush1.msra.mxu0 0.0
  %1236 = vmatprep.subr.mxu0 0.0
  %1237 = vmatpush1.msra.mxu0 0.0
  %1238 = vmatprep.subr.mxu0 0.0
  %1239 = vmatpush1.msra.mxu0 0.0
  %1240 = vmatprep.subr.mxu0 0.0
  %1241 = vmatpush1.msra.mxu0 %v1198
  %1242 = vmatprep.subr.mxu0 0.0
  %1243 = vmatpush1.msra.mxu0 %v1197
  %1244 = vmatprep.subr.mxu0 0.0
  %1245 = vmatpush2.msra.mxu0 0.0
  %1246 = vmatprep.subr.mxu0 0.0
  %1247 = vmatpush2.msra.mxu0 0.0
  %1248 = vmatprep.subr.mxu0 0.0
  %1249 = vmatpush2.msra.mxu0 0.0
  %1250 = vmatprep.subr.mxu0 0.0
  %1251 = vmatpush2.msra.mxu0 0.0
  %1252 = vmatprep.subr.mxu0 0.0
  %1253 = vmatpush2.msra.mxu0 0.0
  %1254 = vmatprep.subr.mxu0 0.0
  %1255 = vmatpush2.msra.mxu0 0.0
  %1256 = vmatprep.subr.mxu0 0.0
  %1257 = vmatpush2.msra.mxu0 0.0
  %1258 = vmatprep.subr.mxu0 0.0
  %1259 = vmatpush2.msra.mxu0 0.0
  %1260 = vmatprep.subr.mxu0 0.0
  %1261 = vmatpush2.msra.mxu0 0.0
  %1262 = vmatprep.subr.mxu0 0.0
  %1263 = vmatpush2.msra.mxu0 0.0
  %1264 = vmatprep.subr.mxu0 0.0
  %1265 = vmatpush2.msra.mxu0 0.0
  %1266 = vmatprep.subr.mxu0 0.0
  %1267 = vmatpush2.msra.mxu0 0.0
  %1268 = vmatprep.subr.mxu0 0.0
  %1269 = vmatpush2.msra.mxu0 0.0
  %1270 = vmatprep.subr.mxu0 0.0
  %1271 = vmatpush2.msra.mxu0 0.0
  %1272 = vmatprep.subr.mxu0 0.0
  %1273 = vmatpush2.msra.mxu0 0.0
  %1274 = vmatprep.subr.mxu0 0.0
  %1275 = vmatpush2.msra.mxu0 0.0
  %1276 = vmatprep.mubr.f32.mxu0 0.0
  %1277 = vmatmul.mubr.f32.gmra.mxu0 %v1207
  %v1278 = vpop.f32.mrf.mxu0
  %v1279 = vadd.f32 %v1204, %v1278
  %v1280 = vpop.f32.mrf.mxu0
  %1281 = vmatprep.mubr.f32.mxu0 0.0
  %1282 = vmatmul.mubr.f32.gmra.mxu0 %v1210
  %v1283 = vpop.f32.mrf.mxu0
  %v1284 = vadd.f32 %v1204, %v1283
  %v1285 = vpop.f32.mrf.mxu0
  %1286 = vdwg.mxu0
  %v1287 = vmax.f32 %v1279, 0.0
  %v1288 = vmax.f32 %v1284, 0.0
  %v1289 = vxor.u32 %v1279, 2147483648
  %v1290 = vxor.u32 %v1284, 2147483648
  %v1291 = vmul.f32 %v1289, 1.442695
  %v1292 = vpow.pop %v1291
  %v1293 = vmul.f32 %v1290, 1.442695
  %v1294 = vpow.pop %v1293
  %v1295 = vadd.f32 %v1292, 1.0
  %v1296 = vadd.f32 %v1294, 1.0
  %v1297 = vrcp.pop %v1295
  %v1298 = vmul.f32 1.0, %v1297
  %v1299 = vrcp.pop %v1296
  %v1300 = vmul.f32 1.0, %v1299
  %1303 = vrot.lane.b32.xlu0 %v1298, 112
  %v1304 = vpop.permute.xlu0 %1303
  %1305 = vrot.lane.b32.xlu0 %v1300, 112
  %v1306 = vpop.permute.xlu0 %1305
  %v1309 = vmul.f32 %v1287, %v1304
  %v1310 = vmul.f32 %v1288, %v1306
  %v1311 = vsub.f32 1.0, %v1298
  %v1312 = vsub.f32 1.0, %v1300
  %1315 = vrot.lane.b32.xlu0 %v1311, 112
  %v1316 = vpop.permute.xlu0 %1315
  %1317 = vrot.lane.b32.xlu0 %v1312, 112
  %v1318 = vpop.permute.xlu0 %1317
  %v1321 = vmul.f32 %v1195, %v1316
  %v1322 = vmul.f32 %v1196, %v1318
  %v1323 = vadd.f32 %v1309, %v1321
  %v1324 = vadd.f32 %v1310, %v1322
  %s1325 = scalar_lea.vmem %s11, 16
  %v1326 = vld [vmem:[%s1325] sm:$0xff]
  %v1327 = vld [vmem:[%s1325 + $0x8] sm:$0xff]
  %s1328 = scalar_lea.vmem %s12, 1
  %v1329 = vld [vmem:[%s1328] sm:$0x1]
  %v1331 = vlaneseq
  %v1332 = vshrl.u32 %v1331, 7
  %v1333 = vsub.s32 0, %v1332
  %v1334 = vrot.slane %v1329, %v1333
  %v1337 = vsel %vm261, %v1323, 0
  %v1340 = vsel %vm261, %v1324, 0
  %1342 = vmatprep.subr.mxu0 0.0
  %1343 = vmatpush1.msra.mxu0 0.0
  %1344 = vmatprep.subr.mxu0 0.0
  %1345 = vmatpush1.msra.mxu0 0.0
  %1346 = vmatprep.subr.mxu0 0.0
  %1347 = vmatpush1.msra.mxu0 0.0
  %1348 = vmatprep.subr.mxu0 0.0
  %1349 = vmatpush1.msra.mxu0 0.0
  %1350 = vmatprep.subr.mxu0 0.0
  %1351 = vmatpush1.msra.mxu0 0.0
  %1352 = vmatprep.subr.mxu0 0.0
  %1353 = vmatpush1.msra.mxu0 0.0
  %1354 = vmatprep.subr.mxu0 0.0
  %1355 = vmatpush1.msra.mxu0 0.0
  %1356 = vmatprep.subr.mxu0 0.0
  %1357 = vmatpush1.msra.mxu0 0.0
  %1358 = vmatprep.subr.mxu0 0.0
  %1359 = vmatpush1.msra.mxu0 0.0
  %1360 = vmatprep.subr.mxu0 0.0
  %1361 = vmatpush1.msra.mxu0 0.0
  %1362 = vmatprep.subr.mxu0 0.0
  %1363 = vmatpush1.msra.mxu0 0.0
  %1364 = vmatprep.subr.mxu0 0.0
  %1365 = vmatpush1.msra.mxu0 0.0
  %1366 = vmatprep.subr.mxu0 0.0
  %1367 = vmatpush1.msra.mxu0 0.0
  %1368 = vmatprep.subr.mxu0 0.0
  %1369 = vmatpush1.msra.mxu0 0.0
  %1370 = vmatprep.subr.mxu0 0.0
  %1371 = vmatpush1.msra.mxu0 %v1327
  %1372 = vmatprep.subr.mxu0 0.0
  %1373 = vmatpush1.msra.mxu0 %v1326
  %1374 = vmatprep.subr.mxu0 0.0
  %1375 = vmatpush2.msra.mxu0 0.0
  %1376 = vmatprep.subr.mxu0 0.0
  %1377 = vmatpush2.msra.mxu0 0.0
  %1378 = vmatprep.subr.mxu0 0.0
  %1379 = vmatpush2.msra.mxu0 0.0
  %1380 = vmatprep.subr.mxu0 0.0
  %1381 = vmatpush2.msra.mxu0 0.0
  %1382 = vmatprep.subr.mxu0 0.0
  %1383 = vmatpush2.msra.mxu0 0.0
  %1384 = vmatprep.subr.mxu0 0.0
  %1385 = vmatpush2.msra.mxu0 0.0
  %1386 = vmatprep.subr.mxu0 0.0
  %1387 = vmatpush2.msra.mxu0 0.0
  %1388 = vmatprep.subr.mxu0 0.0
  %1389 = vmatpush2.msra.mxu0 0.0
  %1390 = vmatprep.subr.mxu0 0.0
  %1391 = vmatpush2.msra.mxu0 0.0
  %1392 = vmatprep.subr.mxu0 0.0
  %1393 = vmatpush2.msra.mxu0 0.0
  %1394 = vmatprep.subr.mxu0 0.0
  %1395 = vmatpush2.msra.mxu0 0.0
  %1396 = vmatprep.subr.mxu0 0.0
  %1397 = vmatpush2.msra.mxu0 0.0
  %1398 = vmatprep.subr.mxu0 0.0
  %1399 = vmatpush2.msra.mxu0 0.0
  %1400 = vmatprep.subr.mxu0 0.0
  %1401 = vmatpush2.msra.mxu0 0.0
  %1402 = vmatprep.subr.mxu0 0.0
  %1403 = vmatpush2.msra.mxu0 0.0
  %1404 = vmatprep.subr.mxu0 0.0
  %1405 = vmatpush2.msra.mxu0 0.0
  %1406 = vmatprep.mubr.f32.mxu0 0.0
  %1407 = vmatmul.mubr.f32.gmra.mxu0 %v1337
  %v1408 = vpop.f32.mrf.mxu0
  %v1409 = vadd.f32 %v1334, %v1408
  %v1410 = vpop.f32.mrf.mxu0
  %1411 = vmatprep.mubr.f32.mxu0 0.0
  %1412 = vmatmul.mubr.f32.gmra.mxu0 %v1340
  %v1413 = vpop.f32.mrf.mxu0
  %v1414 = vadd.f32 %v1334, %v1413
  %v1415 = vpop.f32.mrf.mxu0
  %1416 = vdwg.mxu0
  %v1417 = vmax.f32 %v1409, 0.0
  %v1418 = vmax.f32 %v1414, 0.0
  %v1419 = vxor.u32 %v1409, 2147483648
  %v1420 = vxor.u32 %v1414, 2147483648
  %v1421 = vmul.f32 %v1419, 1.442695
  %v1422 = vpow.pop %v1421
  %v1423 = vmul.f32 %v1420, 1.442695
  %v1424 = vpow.pop %v1423
  %v1425 = vadd.f32 %v1422, 1.0
  %v1426 = vadd.f32 %v1424, 1.0
  %v1427 = vrcp.pop %v1425
  %v1428 = vmul.f32 1.0, %v1427
  %v1429 = vrcp.pop %v1426
  %v1430 = vmul.f32 1.0, %v1429
  %1433 = vrot.lane.b32.xlu0 %v1428, 112
  %v1434 = vpop.permute.xlu0 %1433
  %1435 = vrot.lane.b32.xlu0 %v1430, 112
  %v1436 = vpop.permute.xlu0 %1435
  %v1439 = vmul.f32 %v1417, %v1434
  %v1440 = vmul.f32 %v1418, %v1436
  %v1441 = vsub.f32 1.0, %v1428
  %v1442 = vsub.f32 1.0, %v1430
  %1445 = vrot.lane.b32.xlu0 %v1441, 112
  %v1446 = vpop.permute.xlu0 %1445
  %1447 = vrot.lane.b32.xlu0 %v1442, 112
  %v1448 = vpop.permute.xlu0 %1447
  %v1451 = vmul.f32 %v1323, %v1446
  %v1452 = vmul.f32 %v1324, %v1448
  %v1453 = vadd.f32 %v1439, %v1451
  %v1454 = vadd.f32 %v1440, %v1452
  %v1455 = vld [vmem:[%s13] sm:$0xff]
  %v1456 = vld [vmem:[%s13 + $0x8] sm:$0xff]
  %v1457 = vld [vmem:[%s14] sm:$0x1]
  %v1459 = vlaneseq
  %v1460 = vshrl.u32 %v1459, 7
  %v1461 = vsub.s32 0, %v1460
  %v1462 = vrot.slane %v1457, %v1461
  %v1465 = vsel %vm261, %v1453, 0
  %v1468 = vsel %vm261, %v1454, 0
  %1470 = vmatprep.subr.mxu0 0.0
  %1471 = vmatpush1.msra.mxu0 0.0
  %1472 = vmatprep.subr.mxu0 0.0
  %1473 = vmatpush1.msra.mxu0 0.0
  %1474 = vmatprep.subr.mxu0 0.0
  %1475 = vmatpush1.msra.mxu0 0.0
  %1476 = vmatprep.subr.mxu0 0.0
  %1477 = vmatpush1.msra.mxu0 0.0
  %1478 = vmatprep.subr.mxu0 0.0
  %1479 = vmatpush1.msra.mxu0 0.0
  %1480 = vmatprep.subr.mxu0 0.0
  %1481 = vmatpush1.msra.mxu0 0.0
  %1482 = vmatprep.subr.mxu0 0.0
  %1483 = vmatpush1.msra.mxu0 0.0
  %1484 = vmatprep.subr.mxu0 0.0
  %1485 = vmatpush1.msra.mxu0 0.0
  %1486 = vmatprep.subr.mxu0 0.0
  %1487 = vmatpush1.msra.mxu0 0.0
  %1488 = vmatprep.subr.mxu0 0.0
  %1489 = vmatpush1.msra.mxu0 0.0
  %1490 = vmatprep.subr.mxu0 0.0
  %1491 = vmatpush1.msra.mxu0 0.0
  %1492 = vmatprep.subr.mxu0 0.0
  %1493 = vmatpush1.msra.mxu0 0.0
  %1494 = vmatprep.subr.mxu0 0.0
  %1495 = vmatpush1.msra.mxu0 0.0
  %1496 = vmatprep.subr.mxu0 0.0
  %1497 = vmatpush1.msra.mxu0 0.0
  %1498 = vmatprep.subr.mxu0 0.0
  %1499 = vmatpush1.msra.mxu0 %v1456
  %1500 = vmatprep.subr.mxu0 0.0
  %1501 = vmatpush1.msra.mxu0 %v1455
  %1502 = vmatprep.subr.mxu0 0.0
  %1503 = vmatpush2.msra.mxu0 0.0
  %1504 = vmatprep.subr.mxu0 0.0
  %1505 = vmatpush2.msra.mxu0 0.0
  %1506 = vmatprep.subr.mxu0 0.0
  %1507 = vmatpush2.msra.mxu0 0.0
  %1508 = vmatprep.subr.mxu0 0.0
  %1509 = vmatpush2.msra.mxu0 0.0
  %1510 = vmatprep.subr.mxu0 0.0
  %1511 = vmatpush2.msra.mxu0 0.0
  %1512 = vmatprep.subr.mxu0 0.0
  %1513 = vmatpush2.msra.mxu0 0.0
  %1514 = vmatprep.subr.mxu0 0.0
  %1515 = vmatpush2.msra.mxu0 0.0
  %1516 = vmatprep.subr.mxu0 0.0
  %1517 = vmatpush2.msra.mxu0 0.0
  %1518 = vmatprep.subr.mxu0 0.0
  %1519 = vmatpush2.msra.mxu0 0.0
  %1520 = vmatprep.subr.mxu0 0.0
  %1521 = vmatpush2.msra.mxu0 0.0
  %1522 = vmatprep.subr.mxu0 0.0
  %1523 = vmatpush2.msra.mxu0 0.0
  %1524 = vmatprep.subr.mxu0 0.0
  %1525 = vmatpush2.msra.mxu0 0.0
  %1526 = vmatprep.subr.mxu0 0.0
  %1527 = vmatpush2.msra.mxu0 0.0
  %1528 = vmatprep.subr.mxu0 0.0
  %1529 = vmatpush2.msra.mxu0 0.0
  %1530 = vmatprep.subr.mxu0 0.0
  %1531 = vmatpush2.msra.mxu0 0.0
  %1532 = vmatprep.subr.mxu0 0.0
  %1533 = vmatpush2.msra.mxu0 0.0
  %1534 = vmatprep.mubr.f32.mxu0 0.0
  %1535 = vmatmul.mubr.f32.gmra.mxu0 %v1465
  %v1536 = vpop.f32.mrf.mxu0
  %v1537 = vadd.f32 %v1462, %v1536
  %v1538 = vpop.f32.mrf.mxu0
  %1539 = vmatprep.mubr.f32.mxu0 0.0
  %1540 = vmatmul.mubr.f32.gmra.mxu0 %v1468
  %v1541 = vpop.f32.mrf.mxu0
  %v1542 = vadd.f32 %v1462, %v1541
  %v1543 = vpop.f32.mrf.mxu0
  %1544 = vdwg.mxu0
  %vm1545 = vcmask 785408
  %1546 = vst.msk [vmem:[#allocation3] sm:$0xff] %vm1545, %v1537
  %1547 = vst.msk [vmem:[#allocation3 + $0x8] sm:$0xff] %vm1545, %v1542
  %v1548 = vld [vmem:[%s15] sm:$0xff]
  %v1549 = vld [vmem:[%s15 + $0x8] sm:$0xff]
  %s1550 = scalar_lea.vmem %s15, 16
  %v1551 = vld [vmem:[%s1550] sm:$0xff]
  %v1552 = vld [vmem:[%s1550 + $0x8] sm:$0xff]
  %v1553 = vld [vmem:[%s16] sm:$0x1]
  %s1554 = scalar_lea.vmem %s16, 1
  %v1555 = vld [vmem:[%s1554] sm:$0x1]
  %v1556 = vld [vmem:[#allocation3] sm:$0x3]
  %v1557 = vld [vmem:[#allocation3 + $0xe] sm:$0x3]
  %v1559 = vlaneseq
  %v1560 = vshrl.u32 %v1559, 7
  %v1561 = vsub.s32 0, %v1560
  %v1562 = vrot.slane %v1553, %v1561
  %v1565 = vsel %vm261, 0.0, 0
  %1567 = vmatprep.subr.mxu0 0.0
  %1568 = vmatpush1.msra.mxu0 0.0
  %1569 = vmatprep.subr.mxu0 0.0
  %1570 = vmatpush1.msra.mxu0 0.0
  %1571 = vmatprep.subr.mxu0 0.0
  %1572 = vmatpush1.msra.mxu0 0.0
  %1573 = vmatprep.subr.mxu0 0.0
  %1574 = vmatpush1.msra.mxu0 0.0
  %1575 = vmatprep.subr.mxu0 0.0
  %1576 = vmatpush1.msra.mxu0 0.0
  %1577 = vmatprep.subr.mxu0 0.0
  %1578 = vmatpush1.msra.mxu0 0.0
  %1579 = vmatprep.subr.mxu0 0.0
  %1580 = vmatpush1.msra.mxu0 0.0
  %1581 = vmatprep.subr.mxu0 0.0
  %1582 = vmatpush1.msra.mxu0 0.0
  %1583 = vmatprep.subr.mxu0 0.0
  %1584 = vmatpush1.msra.mxu0 0.0
  %1585 = vmatprep.subr.mxu0 0.0
  %1586 = vmatpush1.msra.mxu0 0.0
  %1587 = vmatprep.subr.mxu0 0.0
  %1588 = vmatpush1.msra.mxu0 0.0
  %1589 = vmatprep.subr.mxu0 0.0
  %1590 = vmatpush1.msra.mxu0 0.0
  %1591 = vmatprep.subr.mxu0 0.0
  %1592 = vmatpush1.msra.mxu0 0.0
  %1593 = vmatprep.subr.mxu0 0.0
  %1594 = vmatpush1.msra.mxu0 0.0
  %1595 = vmatprep.subr.mxu0 0.0
  %1596 = vmatpush1.msra.mxu0 %v1549
  %1597 = vmatprep.subr.mxu0 0.0
  %1598 = vmatpush1.msra.mxu0 %v1548
  %1599 = vmatprep.subr.mxu0 0.0
  %1600 = vmatpush2.msra.mxu0 0.0
  %1601 = vmatprep.subr.mxu0 0.0
  %1602 = vmatpush2.msra.mxu0 0.0
  %1603 = vmatprep.subr.mxu0 0.0
  %1604 = vmatpush2.msra.mxu0 0.0
  %1605 = vmatprep.subr.mxu0 0.0
  %1606 = vmatpush2.msra.mxu0 0.0
  %1607 = vmatprep.subr.mxu0 0.0
  %1608 = vmatpush2.msra.mxu0 0.0
  %1609 = vmatprep.subr.mxu0 0.0
  %1610 = vmatpush2.msra.mxu0 0.0
  %1611 = vmatprep.subr.mxu0 0.0
  %1612 = vmatpush2.msra.mxu0 0.0
  %1613 = vmatprep.subr.mxu0 0.0
  %1614 = vmatpush2.msra.mxu0 0.0
  %1615 = vmatprep.subr.mxu0 0.0
  %1616 = vmatpush2.msra.mxu0 0.0
  %1617 = vmatprep.subr.mxu0 0.0
  %1618 = vmatpush2.msra.mxu0 0.0
  %1619 = vmatprep.subr.mxu0 0.0
  %1620 = vmatpush2.msra.mxu0 0.0
  %1621 = vmatprep.subr.mxu0 0.0
  %1622 = vmatpush2.msra.mxu0 0.0
  %1623 = vmatprep.subr.mxu0 0.0
  %1624 = vmatpush2.msra.mxu0 0.0
  %1625 = vmatprep.subr.mxu0 0.0
  %1626 = vmatpush2.msra.mxu0 0.0
  %1627 = vmatprep.subr.mxu0 0.0
  %1628 = vmatpush2.msra.mxu0 0.0
  %1629 = vmatprep.subr.mxu0 0.0
  %1630 = vmatpush2.msra.mxu0 0.0
  %1631 = vmatprep.mubr.f32.mxu0 0.0
  %1632 = vmatmul.mubr.f32.gmra.mxu0 %v1565
  %v1633 = vpop.f32.mrf.mxu0
  %v1634 = vadd.f32 %v1562, %v1633
  %v1635 = vpop.f32.mrf.mxu0
  %1636 = vdwg.mxu0
  %v1637 = vadd.f32 %v1556, %v1634
  %v1638 = vxor.u32 %v1637, 2147483648
  %v1639 = vmul.f32 %v1638, 1.442695
  %v1640 = vpow.pop %v1639
  %v1641 = vadd.f32 %v1640, 1.0
  %v1642 = vrcp.pop %v1641
  %v1643 = vmul.f32 1.0, %v1642
  %1645 = vrot.lane.b32.xlu0 %v1634, 96
  %v1646 = vpop.permute.xlu0 %1645
  %v1648 = vmul.f32 %v1643, %v1646
  %1650 = vrot.lane.b32.xlu0 %v1648, 32
  %v1651 = vpop.permute.xlu0 %1650
  %v1653 = vadd.f32 %v1556, %v1651
  %v1654 = vtanh.pop %v1653
  %v1655 = vsub.f32 1.0, %v1643
  %1657 = vrot.lane.b32.xlu0 %v1654, 112
  %v1658 = vpop.permute.xlu0 %1657
  %v1660 = vmul.f32 %v1655, %v1658
  %v1661 = vmul.f32 %v1643, 0.0
  %v1662 = vadd.f32 %v1660, %v1661
  %v1664 = vlaneseq
  %v1665 = vshrl.u32 %v1664, 7
  %v1666 = vsub.s32 0, %v1665
  %v1667 = vrot.slane %v1555, %v1666
  %1669 = vmatprep.subr.mxu0 0.0
  %1670 = vmatpush1.msra.mxu0 0.0
  %1671 = vmatprep.subr.mxu0 0.0
  %1672 = vmatpush1.msra.mxu0 0.0
  %1673 = vmatprep.subr.mxu0 0.0
  %1674 = vmatpush1.msra.mxu0 0.0
  %1675 = vmatprep.subr.mxu0 0.0
  %1676 = vmatpush1.msra.mxu0 0.0
  %1677 = vmatprep.subr.mxu0 0.0
  %1678 = vmatpush1.msra.mxu0 0.0
  %1679 = vmatprep.subr.mxu0 0.0
  %1680 = vmatpush1.msra.mxu0 0.0
  %1681 = vmatprep.subr.mxu0 0.0
  %1682 = vmatpush1.msra.mxu0 0.0
  %1683 = vmatprep.subr.mxu0 0.0
  %1684 = vmatpush1.msra.mxu0 0.0
  %1685 = vmatprep.subr.mxu0 0.0
  %1686 = vmatpush1.msra.mxu0 0.0
  %1687 = vmatprep.subr.mxu0 0.0
  %1688 = vmatpush1.msra.mxu0 0.0
  %1689 = vmatprep.subr.mxu0 0.0
  %1690 = vmatpush1.msra.mxu0 0.0
  %1691 = vmatprep.subr.mxu0 0.0
  %1692 = vmatpush1.msra.mxu0 0.0
  %1693 = vmatprep.subr.mxu0 0.0
  %1694 = vmatpush1.msra.mxu0 0.0
  %1695 = vmatprep.subr.mxu0 0.0
  %1696 = vmatpush1.msra.mxu0 0.0
  %1697 = vmatprep.subr.mxu0 0.0
  %1698 = vmatpush1.msra.mxu0 %v1552
  %1699 = vmatprep.subr.mxu0 0.0
  %1700 = vmatpush1.msra.mxu0 %v1551
  %1701 = vmatprep.subr.mxu0 0.0
  %1702 = vmatpush2.msra.mxu0 0.0
  %1703 = vmatprep.subr.mxu0 0.0
  %1704 = vmatpush2.msra.mxu0 0.0
  %1705 = vmatprep.subr.mxu0 0.0
  %1706 = vmatpush2.msra.mxu0 0.0
  %1707 = vmatprep.subr.mxu0 0.0
  %1708 = vmatpush2.msra.mxu0 0.0
  %1709 = vmatprep.subr.mxu0 0.0
  %1710 = vmatpush2.msra.mxu0 0.0
  %1711 = vmatprep.subr.mxu0 0.0
  %1712 = vmatpush2.msra.mxu0 0.0
  %1713 = vmatprep.subr.mxu0 0.0
  %1714 = vmatpush2.msra.mxu0 0.0
  %1715 = vmatprep.subr.mxu0 0.0
  %1716 = vmatpush2.msra.mxu0 0.0
  %1717 = vmatprep.subr.mxu0 0.0
  %1718 = vmatpush2.msra.mxu0 0.0
  %1719 = vmatprep.subr.mxu0 0.0
  %1720 = vmatpush2.msra.mxu0 0.0
  %1721 = vmatprep.subr.mxu0 0.0
  %1722 = vmatpush2.msra.mxu0 0.0
  %1723 = vmatprep.subr.mxu0 0.0
  %1724 = vmatpush2.msra.mxu0 0.0
  %1725 = vmatprep.subr.mxu0 0.0
  %1726 = vmatpush2.msra.mxu0 0.0
  %1727 = vmatprep.subr.mxu0 0.0
  %1728 = vmatpush2.msra.mxu0 0.0
  %1729 = vmatprep.subr.mxu0 0.0
  %1730 = vmatpush2.msra.mxu0 0.0
  %1731 = vmatprep.subr.mxu0 0.0
  %1732 = vmatpush2.msra.mxu0 0.0
  %1733 = vmatprep.mubr.f32.mxu0 0.0
  %1734 = vmatmul.mubr.f32.gmra.mxu0 %v1565
  %v1735 = vpop.f32.mrf.mxu0
  %v1736 = vadd.f32 %v1667, %v1735
  %v1737 = vpop.f32.mrf.mxu0
  %1738 = vdwg.mxu0
  %1740 = vrot.lane.b32.xlu0 %v1736, 48
  %v1741 = vpop.permute.xlu0 %1740
  %v1743 = vadd.f32 %v1557, %v1741
  %v1744 = vxor.u32 %v1743, 2147483648
  %v1745 = vmul.f32 %v1744, 1.442695
  %v1746 = vpow.pop %v1745
  %v1747 = vadd.f32 %v1746, 1.0
  %v1748 = vrcp.pop %v1747
  %v1749 = vmul.f32 1.0, %v1748
  %1750 = vrot.lane.b32.xlu0 %v1736, 16
  %v1751 = vpop.permute.xlu0 %1750
  %v1753 = vmul.f32 %v1749, %v1751
  %1755 = vrot.lane.b32.xlu0 %v1753, 32
  %v1756 = vpop.permute.xlu0 %1755
  %v1758 = vadd.f32 %v1557, %v1756
  %v1759 = vtanh.pop %v1758
  %v1760 = vsub.f32 1.0, %v1749
  %1762 = vrot.lane.b32.xlu0 %v1759, 112
  %v1763 = vpop.permute.xlu0 %1762
  %v1765 = vmul.f32 %v1760, %v1763
  %v1766 = vmul.f32 %v1749, 0.0
  %v1767 = vadd.f32 %v1765, %v1766
  %1769 = vrot.lane.b32.xlu0 %v1662, 112
  %v1770 = vpop.permute.xlu0 %1769
  %vm1772 = vcmask 123904
  %1773 = vst.msk [vmem:[#allocation4] sm:$0x3] %vm1772, %v1770
  %1775 = vrot.lane.b32.xlu0 %v1767, 80
  %v1776 = vpop.permute.xlu0 %1775
  %vm1778 = vcmask 255104
  %1779 = vst.msk [vmem:[#allocation4 + $0xe] sm:$0x3] %vm1778, %v1776
  %v1780 = vld [vmem:[#allocation3 + $0x2] sm:$0x3]
  %v1781 = vld [vmem:[#allocation3 + $0xc] sm:$0x3]
  %v1782 = vsel %vm261, %v1770, 0
  %1784 = vmatprep.subr.mxu0 0.0
  %1785 = vmatpush1.msra.mxu0 0.0
  %1786 = vmatprep.subr.mxu0 0.0
  %1787 = vmatpush1.msra.mxu0 0.0
  %1788 = vmatprep.subr.mxu0 0.0
  %1789 = vmatpush1.msra.mxu0 0.0
  %1790 = vmatprep.subr.mxu0 0.0
  %1791 = vmatpush1.msra.mxu0 0.0
  %1792 = vmatprep.subr.mxu0 0.0
  %1793 = vmatpush1.msra.mxu0 0.0
  %1794 = vmatprep.subr.mxu0 0.0
  %1795 = vmatpush1.msra.mxu0 0.0
  %1796 = vmatprep.subr.mxu0 0.0
  %1797 = vmatpush1.msra.mxu0 0.0
  %1798 = vmatprep.subr.mxu0 0.0
  %1799 = vmatpush1.msra.mxu0 0.0
  %1800 = vmatprep.subr.mxu0 0.0
  %1801 = vmatpush1.msra.mxu0 0.0
  %1802 = vmatprep.subr.mxu0 0.0
  %1803 = vmatpush1.msra.mxu0 0.0
  %1804 = vmatprep.subr.mxu0 0.0
  %1805 = vmatpush1.msra.mxu0 0.0
  %1806 = vmatprep.subr.mxu0 0.0
  %1807 = vmatpush1.msra.mxu0 0.0
  %1808 = vmatprep.subr.mxu0 0.0
  %1809 = vmatpush1.msra.mxu0 0.0
  %1810 = vmatprep.subr.mxu0 0.0
  %1811 = vmatpush1.msra.mxu0 0.0
  %1812 = vmatprep.subr.mxu0 0.0
  %1813 = vmatpush1.msra.mxu0 %v1549
  %1814 = vmatprep.subr.mxu0 0.0
  %1815 = vmatpush1.msra.mxu0 %v1548
  %1816 = vmatprep.subr.mxu0 0.0
  %1817 = vmatpush2.msra.mxu0 0.0
  %1818 = vmatprep.subr.mxu0 0.0
  %1819 = vmatpush2.msra.mxu0 0.0
  %1820 = vmatprep.subr.mxu0 0.0
  %1821 = vmatpush2.msra.mxu0 0.0
  %1822 = vmatprep.subr.mxu0 0.0
  %1823 = vmatpush2.msra.mxu0 0.0
  %1824 = vmatprep.subr.mxu0 0.0
  %1825 = vmatpush2.msra.mxu0 0.0
  %1826 = vmatprep.subr.mxu0 0.0
  %1827 = vmatpush2.msra.mxu0 0.0
  %1828 = vmatprep.subr.mxu0 0.0
  %1829 = vmatpush2.msra.mxu0 0.0
  %1830 = vmatprep.subr.mxu0 0.0
  %1831 = vmatpush2.msra.mxu0 0.0
  %1832 = vmatprep.subr.mxu0 0.0
  %1833 = vmatpush2.msra.mxu0 0.0
  %1834 = vmatprep.subr.mxu0 0.0
  %1835 = vmatpush2.msra.mxu0 0.0
  %1836 = vmatprep.subr.mxu0 0.0
  %1837 = vmatpush2.msra.mxu0 0.0
  %1838 = vmatprep.subr.mxu0 0.0
  %1839 = vmatpush2.msra.mxu0 0.0
  %1840 = vmatprep.subr.mxu0 0.0
  %1841 = vmatpush2.msra.mxu0 0.0
  %1842 = vmatprep.subr.mxu0 0.0
  %1843 = vmatpush2.msra.mxu0 0.0
  %1844 = vmatprep.subr.mxu0 0.0
  %1845 = vmatpush2.msra.mxu0 0.0
  %1846 = vmatprep.subr.mxu0 0.0
  %1847 = vmatpush2.msra.mxu0 0.0
  %1848 = vmatprep.mubr.f32.mxu0 0.0
  %1849 = vmatmul.mubr.f32.gmra.mxu0 %v1782
  %v1850 = vpop.f32.mrf.mxu0
  %v1851 = vadd.f32 %v1562, %v1850
  %v1852 = vpop.f32.mrf.mxu0
  %1853 = vdwg.mxu0
  %v1854 = vadd.f32 %v1780, %v1851
  %v1855 = vxor.u32 %v1854, 2147483648
  %v1856 = vmul.f32 %v1855, 1.442695
  %v1857 = vpow.pop %v1856
  %v1858 = vadd.f32 %v1857, 1.0
  %v1859 = vrcp.pop %v1858
  %v1860 = vmul.f32 1.0, %v1859
  %1862 = vrot.lane.b32.xlu0 %v1851, 96
  %v1863 = vpop.permute.xlu0 %1862
  %v1865 = vmul.f32 %v1860, %v1863
  %1867 = vrot.lane.b32.xlu0 %v1865, 32
  %v1868 = vpop.permute.xlu0 %1867
  %v1870 = vadd.f32 %v1780, %v1868
  %v1871 = vtanh.pop %v1870
  %v1872 = vsub.f32 1.0, %v1860
  %1874 = vrot.lane.b32.xlu0 %v1871, 112
  %v1875 = vpop.permute.xlu0 %1874
  %v1877 = vmul.f32 %v1872, %v1875
  %v1878 = vmul.f32 %v1860, %v1662
  %v1879 = vadd.f32 %v1877, %v1878
  %1880 = vrot.lane.b32.xlu0 %v1767, 64
  %v1881 = vpop.permute.xlu0 %1880
  %v1882 = vsel %vm261, %v1881, 0
  %1884 = vmatprep.subr.mxu0 0.0
  %1885 = vmatpush1.msra.mxu0 0.0
  %1886 = vmatprep.subr.mxu0 0.0
  %1887 = vmatpush1.msra.mxu0 0.0
  %1888 = vmatprep.subr.mxu0 0.0
  %1889 = vmatpush1.msra.mxu0 0.0
  %1890 = vmatprep.subr.mxu0 0.0
  %1891 = vmatpush1.msra.mxu0 0.0
  %1892 = vmatprep.subr.mxu0 0.0
  %1893 = vmatpush1.msra.mxu0 0.0
  %1894 = vmatprep.subr.mxu0 0.0
  %1895 = vmatpush1.msra.mxu0 0.0
  %1896 = vmatprep.subr.mxu0 0.0
  %1897 = vmatpush1.msra.mxu0 0.0
  %1898 = vmatprep.subr.mxu0 0.0
  %1899 = vmatpush1.msra.mxu0 0.0
  %1900 = vmatprep.subr.mxu0 0.0
  %1901 = vmatpush1.msra.mxu0 0.0
  %1902 = vmatprep.subr.mxu0 0.0
  %1903 = vmatpush1.msra.mxu0 0.0
  %1904 = vmatprep.subr.mxu0 0.0
  %1905 = vmatpush1.msra.mxu0 0.0
  %1906 = vmatprep.subr.mxu0 0.0
  %1907 = vmatpush1.msra.mxu0 0.0
  %1908 = vmatprep.subr.mxu0 0.0
  %1909 = vmatpush1.msra.mxu0 0.0
  %1910 = vmatprep.subr.mxu0 0.0
  %1911 = vmatpush1.msra.mxu0 0.0
  %1912 = vmatprep.subr.mxu0 0.0
  %1913 = vmatpush1.msra.mxu0 %v1552
  %1914 = vmatprep.subr.mxu0 0.0
  %1915 = vmatpush1.msra.mxu0 %v1551
  %1916 = vmatprep.subr.mxu0 0.0
  %1917 = vmatpush2.msra.mxu0 0.0
  %1918 = vmatprep.subr.mxu0 0.0
  %1919 = vmatpush2.msra.mxu0 0.0
  %1920 = vmatprep.subr.mxu0 0.0
  %1921 = vmatpush2.msra.mxu0 0.0
  %1922 = vmatprep.subr.mxu0 0.0
  %1923 = vmatpush2.msra.mxu0 0.0
  %1924 = vmatprep.subr.mxu0 0.0
  %1925 = vmatpush2.msra.mxu0 0.0
  %1926 = vmatprep.subr.mxu0 0.0
  %1927 = vmatpush2.msra.mxu0 0.0
  %1928 = vmatprep.subr.mxu0 0.0
  %1929 = vmatpush2.msra.mxu0 0.0
  %1930 = vmatprep.subr.mxu0 0.0
  %1931 = vmatpush2.msra.mxu0 0.0
  %1932 = vmatprep.subr.mxu0 0.0
  %1933 = vmatpush2.msra.mxu0 0.0
  %1934 = vmatprep.subr.mxu0 0.0
  %1935 = vmatpush2.msra.mxu0 0.0
  %1936 = vmatprep.subr.mxu0 0.0
  %1937 = vmatpush2.msra.mxu0 0.0
  %1938 = vmatprep.subr.mxu0 0.0
  %1939 = vmatpush2.msra.mxu0 0.0
  %1940 = vmatprep.subr.mxu0 0.0
  %1941 = vmatpush2.msra.mxu0 0.0
  %1942 = vmatprep.subr.mxu0 0.0
  %1943 = vmatpush2.msra.mxu0 0.0
  %1944 = vmatprep.subr.mxu0 0.0
  %1945 = vmatpush2.msra.mxu0 0.0
  %1946 = vmatprep.subr.mxu0 0.0
  %1947 = vmatpush2.msra.mxu0 0.0
  %1948 = vmatprep.mubr.f32.mxu0 0.0
  %1949 = vmatmul.mubr.f32.gmra.mxu0 %v1882
  %v1950 = vpop.f32.mrf.mxu0
  %v1951 = vadd.f32 %v1667, %v1950
  %v1952 = vpop.f32.mrf.mxu0
  %1953 = vdwg.mxu0
  %1955 = vrot.lane.b32.xlu0 %v1951, 48
  %v1956 = vpop.permute.xlu0 %1955
  %v1958 = vadd.f32 %v1781, %v1956
  %v1959 = vxor.u32 %v1958, 2147483648
  %v1960 = vmul.f32 %v1959, 1.442695
  %v1961 = vpow.pop %v1960
  %v1962 = vadd.f32 %v1961, 1.0
  %v1963 = vrcp.pop %v1962
  %v1964 = vmul.f32 1.0, %v1963
  %1965 = vrot.lane.b32.xlu0 %v1951, 16
  %v1966 = vpop.permute.xlu0 %1965
  %v1968 = vmul.f32 %v1964, %v1966
  %1970 = vrot.lane.b32.xlu0 %v1968, 32
  %v1971 = vpop.permute.xlu0 %1970
  %v1973 = vadd.f32 %v1781, %v1971
  %v1974 = vtanh.pop %v1973
  %v1975 = vsub.f32 1.0, %v1964
  %1977 = vrot.lane.b32.xlu0 %v1974, 112
  %v1978 = vpop.permute.xlu0 %1977
  %v1980 = vmul.f32 %v1975, %v1978
  %v1981 = vmul.f32 %v1964, %v1767
  %v1982 = vadd.f32 %v1980, %v1981
  %1984 = vrot.lane.b32.xlu0 %v1879, 112
  %v1985 = vpop.permute.xlu0 %1984
  %1987 = vst.msk [vmem:[#allocation4 + $0x2] sm:$0x3] %vm1772, %v1985
  %1989 = vrot.lane.b32.xlu0 %v1982, 80
  %v1990 = vpop.permute.xlu0 %1989
  %1992 = vst.msk [vmem:[#allocation4 + $0xc] sm:$0x3] %vm1778, %v1990
  %v1993 = vld [vmem:[#allocation3 + $0x4] sm:$0x3]
  %v1994 = vld [vmem:[#allocation3 + $0xa] sm:$0x3]
  %v1995 = vsel %vm261, %v1985, 0
  %1997 = vmatprep.subr.mxu0 0.0
  %1998 = vmatpush1.msra.mxu0 0.0
  %1999 = vmatprep.subr.mxu0 0.0
  %2000 = vmatpush1.msra.mxu0 0.0
  %2001 = vmatprep.subr.mxu0 0.0
  %2002 = vmatpush1.msra.mxu0 0.0
  %2003 = vmatprep.subr.mxu0 0.0
  %2004 = vmatpush1.msra.mxu0 0.0
  %2005 = vmatprep.subr.mxu0 0.0
  %2006 = vmatpush1.msra.mxu0 0.0
  %2007 = vmatprep.subr.mxu0 0.0
  %2008 = vmatpush1.msra.mxu0 0.0
  %2009 = vmatprep.subr.mxu0 0.0
  %2010 = vmatpush1.msra.mxu0 0.0
  %2011 = vmatprep.subr.mxu0 0.0
  %2012 = vmatpush1.msra.mxu0 0.0
  %2013 = vmatprep.subr.mxu0 0.0
  %2014 = vmatpush1.msra.mxu0 0.0
  %2015 = vmatprep.subr.mxu0 0.0
  %2016 = vmatpush1.msra.mxu0 0.0
  %2017 = vmatprep.subr.mxu0 0.0
  %2018 = vmatpush1.msra.mxu0 0.0
  %2019 = vmatprep.subr.mxu0 0.0
  %2020 = vmatpush1.msra.mxu0 0.0
  %2021 = vmatprep.subr.mxu0 0.0
  %2022 = vmatpush1.msra.mxu0 0.0
  %2023 = vmatprep.subr.mxu0 0.0
  %2024 = vmatpush1.msra.mxu0 0.0
  %2025 = vmatprep.subr.mxu0 0.0
  %2026 = vmatpush1.msra.mxu0 %v1549
  %2027 = vmatprep.subr.mxu0 0.0
  %2028 = vmatpush1.msra.mxu0 %v1548
  %2029 = vmatprep.subr.mxu0 0.0
  %2030 = vmatpush2.msra.mxu0 0.0
  %2031 = vmatprep.subr.mxu0 0.0
  %2032 = vmatpush2.msra.mxu0 0.0
  %2033 = vmatprep.subr.mxu0 0.0
  %2034 = vmatpush2.msra.mxu0 0.0
  %2035 = vmatprep.subr.mxu0 0.0
  %2036 = vmatpush2.msra.mxu0 0.0
  %2037 = vmatprep.subr.mxu0 0.0
  %2038 = vmatpush2.msra.mxu0 0.0
  %2039 = vmatprep.subr.mxu0 0.0
  %2040 = vmatpush2.msra.mxu0 0.0
  %2041 = vmatprep.subr.mxu0 0.0
  %2042 = vmatpush2.msra.mxu0 0.0
  %2043 = vmatprep.subr.mxu0 0.0
  %2044 = vmatpush2.msra.mxu0 0.0
  %2045 = vmatprep.subr.mxu0 0.0
  %2046 = vmatpush2.msra.mxu0 0.0
  %2047 = vmatprep.subr.mxu0 0.0
  %2048 = vmatpush2.msra.mxu0 0.0
  %2049 = vmatprep.subr.mxu0 0.0
  %2050 = vmatpush2.msra.mxu0 0.0
  %2051 = vmatprep.subr.mxu0 0.0
  %2052 = vmatpush2.msra.mxu0 0.0
  %2053 = vmatprep.subr.mxu0 0.0
  %2054 = vmatpush2.msra.mxu0 0.0
  %2055 = vmatprep.subr.mxu0 0.0
  %2056 = vmatpush2.msra.mxu0 0.0
  %2057 = vmatprep.subr.mxu0 0.0
  %2058 = vmatpush2.msra.mxu0 0.0
  %2059 = vmatprep.subr.mxu0 0.0
  %2060 = vmatpush2.msra.mxu0 0.0
  %2061 = vmatprep.mubr.f32.mxu0 0.0
  %2062 = vmatmul.mubr.f32.gmra.mxu0 %v1995
  %v2063 = vpop.f32.mrf.mxu0
  %v2064 = vadd.f32 %v1562, %v2063
  %v2065 = vpop.f32.mrf.mxu0
  %2066 = vdwg.mxu0
  %v2067 = vadd.f32 %v1993, %v2064
  %v2068 = vxor.u32 %v2067, 2147483648
  %v2069 = vmul.f32 %v2068, 1.442695
  %v2070 = vpow.pop %v2069
  %v2071 = vadd.f32 %v2070, 1.0
  %v2072 = vrcp.pop %v2071
  %v2073 = vmul.f32 1.0, %v2072
  %2075 = vrot.lane.b32.xlu0 %v2064, 96
  %v2076 = vpop.permute.xlu0 %2075
  %v2078 = vmul.f32 %v2073, %v2076
  %2080 = vrot.lane.b32.xlu0 %v2078, 32
  %v2081 = vpop.permute.xlu0 %2080
  %v2083 = vadd.f32 %v1993, %v2081
  %v2084 = vtanh.pop %v2083
  %v2085 = vsub.f32 1.0, %v2073
  %2087 = vrot.lane.b32.xlu0 %v2084, 112
  %v2088 = vpop.permute.xlu0 %2087
  %v2090 = vmul.f32 %v2085, %v2088
  %v2091 = vmul.f32 %v2073, %v1879
  %v2092 = vadd.f32 %v2090, %v2091
  %2093 = vrot.lane.b32.xlu0 %v1982, 64
  %v2094 = vpop.permute.xlu0 %2093
  %v2095 = vsel %vm261, %v2094, 0
  %2097 = vmatprep.subr.mxu0 0.0
  %2098 = vmatpush1.msra.mxu0 0.0
  %2099 = vmatprep.subr.mxu0 0.0
  %2100 = vmatpush1.msra.mxu0 0.0
  %2101 = vmatprep.subr.mxu0 0.0
  %2102 = vmatpush1.msra.mxu0 0.0
  %2103 = vmatprep.subr.mxu0 0.0
  %2104 = vmatpush1.msra.mxu0 0.0
  %2105 = vmatprep.subr.mxu0 0.0
  %2106 = vmatpush1.msra.mxu0 0.0
  %2107 = vmatprep.subr.mxu0 0.0
  %2108 = vmatpush1.msra.mxu0 0.0
  %2109 = vmatprep.subr.mxu0 0.0
  %2110 = vmatpush1.msra.mxu0 0.0
  %2111 = vmatprep.subr.mxu0 0.0
  %2112 = vmatpush1.msra.mxu0 0.0
  %2113 = vmatprep.subr.mxu0 0.0
  %2114 = vmatpush1.msra.mxu0 0.0
  %2115 = vmatprep.subr.mxu0 0.0
  %2116 = vmatpush1.msra.mxu0 0.0
  %2117 = vmatprep.subr.mxu0 0.0
  %2118 = vmatpush1.msra.mxu0 0.0
  %2119 = vmatprep.subr.mxu0 0.0
  %2120 = vmatpush1.msra.mxu0 0.0
  %2121 = vmatprep.subr.mxu0 0.0
  %2122 = vmatpush1.msra.mxu0 0.0
  %2123 = vmatprep.subr.mxu0 0.0
  %2124 = vmatpush1.msra.mxu0 0.0
  %2125 = vmatprep.subr.mxu0 0.0
  %2126 = vmatpush1.msra.mxu0 %v1552
  %2127 = vmatprep.subr.mxu0 0.0
  %2128 = vmatpush1.msra.mxu0 %v1551
  %2129 = vmatprep.subr.mxu0 0.0
  %2130 = vmatpush2.msra.mxu0 0.0
  %2131 = vmatprep.subr.mxu0 0.0
  %2132 = vmatpush2.msra.mxu0 0.0
  %2133 = vmatprep.subr.mxu0 0.0
  %2134 = vmatpush2.msra.mxu0 0.0
  %2135 = vmatprep.subr.mxu0 0.0
  %2136 = vmatpush2.msra.mxu0 0.0
  %2137 = vmatprep.subr.mxu0 0.0
  %2138 = vmatpush2.msra.mxu0 0.0
  %2139 = vmatprep.subr.mxu0 0.0
  %2140 = vmatpush2.msra.mxu0 0.0
  %2141 = vmatprep.subr.mxu0 0.0
  %2142 = vmatpush2.msra.mxu0 0.0
  %2143 = vmatprep.subr.mxu0 0.0
  %2144 = vmatpush2.msra.mxu0 0.0
  %2145 = vmatprep.subr.mxu0 0.0
  %2146 = vmatpush2.msra.mxu0 0.0
  %2147 = vmatprep.subr.mxu0 0.0
  %2148 = vmatpush2.msra.mxu0 0.0
  %2149 = vmatprep.subr.mxu0 0.0
  %2150 = vmatpush2.msra.mxu0 0.0
  %2151 = vmatprep.subr.mxu0 0.0
  %2152 = vmatpush2.msra.mxu0 0.0
  %2153 = vmatprep.subr.mxu0 0.0
  %2154 = vmatpush2.msra.mxu0 0.0
  %2155 = vmatprep.subr.mxu0 0.0
  %2156 = vmatpush2.msra.mxu0 0.0
  %2157 = vmatprep.subr.mxu0 0.0
  %2158 = vmatpush2.msra.mxu0 0.0
  %2159 = vmatprep.subr.mxu0 0.0
  %2160 = vmatpush2.msra.mxu0 0.0
  %2161 = vmatprep.mubr.f32.mxu0 0.0
  %2162 = vmatmul.mubr.f32.gmra.mxu0 %v2095
  %v2163 = vpop.f32.mrf.mxu0
  %v2164 = vadd.f32 %v1667, %v2163
  %v2165 = vpop.f32.mrf.mxu0
  %2166 = vdwg.mxu0
  %2168 = vrot.lane.b32.xlu0 %v2164, 48
  %v2169 = vpop.permute.xlu0 %2168
  %v2171 = vadd.f32 %v1994, %v2169
  %v2172 = vxor.u32 %v2171, 2147483648
  %v2173 = vmul.f32 %v2172, 1.442695
  %v2174 = vpow.pop %v2173
  %v2175 = vadd.f32 %v2174, 1.0
  %v2176 = vrcp.pop %v2175
  %v2177 = vmul.f32 1.0, %v2176
  %2178 = vrot.lane.b32.xlu0 %v2164, 16
  %v2179 = vpop.permute.xlu0 %2178
  %v2181 = vmul.f32 %v2177, %v2179
  %2183 = vrot.lane.b32.xlu0 %v2181, 32
  %v2184 = vpop.permute.xlu0 %2183
  %v2186 = vadd.f32 %v1994, %v2184
  %v2187 = vtanh.pop %v2186
  %v2188 = vsub.f32 1.0, %v2177
  %2190 = vrot.lane.b32.xlu0 %v2187, 112
  %v2191 = vpop.permute.xlu0 %2190
  %v2193 = vmul.f32 %v2188, %v2191
  %v2194 = vmul.f32 %v2177, %v1982
  %v2195 = vadd.f32 %v2193, %v2194
  %2197 = vrot.lane.b32.xlu0 %v2092, 112
  %v2198 = vpop.permute.xlu0 %2197
  %2200 = vst.msk [vmem:[#allocation4 + $0x4] sm:$0x3] %vm1772, %v2198
  %2202 = vrot.lane.b32.xlu0 %v2195, 80
  %v2203 = vpop.permute.xlu0 %2202
  %2205 = vst.msk [vmem:[#allocation4 + $0xa] sm:$0x3] %vm1778, %v2203
  %v2206 = vld [vmem:[#allocation3 + $0x6] sm:$0x3]
  %v2207 = vld [vmem:[#allocation3 + $0x8] sm:$0x3]
  %v2208 = vsel %vm261, %v2198, 0
  %2210 = vmatprep.subr.mxu0 0.0
  %2211 = vmatpush1.msra.mxu0 0.0
  %2212 = vmatprep.subr.mxu0 0.0
  %2213 = vmatpush1.msra.mxu0 0.0
  %2214 = vmatprep.subr.mxu0 0.0
  %2215 = vmatpush1.msra.mxu0 0.0
  %2216 = vmatprep.subr.mxu0 0.0
  %2217 = vmatpush1.msra.mxu0 0.0
  %2218 = vmatprep.subr.mxu0 0.0
  %2219 = vmatpush1.msra.mxu0 0.0
  %2220 = vmatprep.subr.mxu0 0.0
  %2221 = vmatpush1.msra.mxu0 0.0
  %2222 = vmatprep.subr.mxu0 0.0
  %2223 = vmatpush1.msra.mxu0 0.0
  %2224 = vmatprep.subr.mxu0 0.0
  %2225 = vmatpush1.msra.mxu0 0.0
  %2226 = vmatprep.subr.mxu0 0.0
  %2227 = vmatpush1.msra.mxu0 0.0
  %2228 = vmatprep.subr.mxu0 0.0
  %2229 = vmatpush1.msra.mxu0 0.0
  %2230 = vmatprep.subr.mxu0 0.0
  %2231 = vmatpush1.msra.mxu0 0.0
  %2232 = vmatprep.subr.mxu0 0.0
  %2233 = vmatpush1.msra.mxu0 0.0
  %2234 = vmatprep.subr.mxu0 0.0
  %2235 = vmatpush1.msra.mxu0 0.0
  %2236 = vmatprep.subr.mxu0 0.0
  %2237 = vmatpush1.msra.mxu0 0.0
  %2238 = vmatprep.subr.mxu0 0.0
  %2239 = vmatpush1.msra.mxu0 %v1549
  %2240 = vmatprep.subr.mxu0 0.0
  %2241 = vmatpush1.msra.mxu0 %v1548
  %2242 = vmatprep.subr.mxu0 0.0
  %2243 = vmatpush2.msra.mxu0 0.0
  %2244 = vmatprep.subr.mxu0 0.0
  %2245 = vmatpush2.msra.mxu0 0.0
  %2246 = vmatprep.subr.mxu0 0.0
  %2247 = vmatpush2.msra.mxu0 0.0
  %2248 = vmatprep.subr.mxu0 0.0
  %2249 = vmatpush2.msra.mxu0 0.0
  %2250 = vmatprep.subr.mxu0 0.0
  %2251 = vmatpush2.msra.mxu0 0.0
  %2252 = vmatprep.subr.mxu0 0.0
  %2253 = vmatpush2.msra.mxu0 0.0
  %2254 = vmatprep.subr.mxu0 0.0
  %2255 = vmatpush2.msra.mxu0 0.0
  %2256 = vmatprep.subr.mxu0 0.0
  %2257 = vmatpush2.msra.mxu0 0.0
  %2258 = vmatprep.subr.mxu0 0.0
  %2259 = vmatpush2.msra.mxu0 0.0
  %2260 = vmatprep.subr.mxu0 0.0
  %2261 = vmatpush2.msra.mxu0 0.0
  %2262 = vmatprep.subr.mxu0 0.0
  %2263 = vmatpush2.msra.mxu0 0.0
  %2264 = vmatprep.subr.mxu0 0.0
  %2265 = vmatpush2.msra.mxu0 0.0
  %2266 = vmatprep.subr.mxu0 0.0
  %2267 = vmatpush2.msra.mxu0 0.0
  %2268 = vmatprep.subr.mxu0 0.0
  %2269 = vmatpush2.msra.mxu0 0.0
  %2270 = vmatprep.subr.mxu0 0.0
  %2271 = vmatpush2.msra.mxu0 0.0
  %2272 = vmatprep.subr.mxu0 0.0
  %2273 = vmatpush2.msra.mxu0 0.0
  %2274 = vmatprep.mubr.f32.mxu0 0.0
  %2275 = vmatmul.mubr.f32.gmra.mxu0 %v2208
  %v2276 = vpop.f32.mrf.mxu0
  %v2277 = vadd.f32 %v1562, %v2276
  %v2278 = vpop.f32.mrf.mxu0
  %2279 = vdwg.mxu0
  %v2280 = vadd.f32 %v2206, %v2277
  %v2281 = vxor.u32 %v2280, 2147483648
  %v2282 = vmul.f32 %v2281, 1.442695
  %v2283 = vpow.pop %v2282
  %v2284 = vadd.f32 %v2283, 1.0
  %v2285 = vrcp.pop %v2284
  %v2286 = vmul.f32 1.0, %v2285
  %2288 = vrot.lane.b32.xlu0 %v2277, 96
  %v2289 = vpop.permute.xlu0 %2288
  %v2291 = vmul.f32 %v2286, %v2289
  %2293 = vrot.lane.b32.xlu0 %v2291, 32
  %v2294 = vpop.permute.xlu0 %2293
  %v2296 = vadd.f32 %v2206, %v2294
  %v2297 = vtanh.pop %v2296
  %v2298 = vsub.f32 1.0, %v2286
  %2300 = vrot.lane.b32.xlu0 %v2297, 112
  %v2301 = vpop.permute.xlu0 %2300
  %v2303 = vmul.f32 %v2298, %v2301
  %v2304 = vmul.f32 %v2286, %v2092
  %v2305 = vadd.f32 %v2303, %v2304
  %2306 = vrot.lane.b32.xlu0 %v2195, 64
  %v2307 = vpop.permute.xlu0 %2306
  %v2308 = vsel %vm261, %v2307, 0
  %2310 = vmatprep.subr.mxu0 0.0
  %2311 = vmatpush1.msra.mxu0 0.0
  %2312 = vmatprep.subr.mxu0 0.0
  %2313 = vmatpush1.msra.mxu0 0.0
  %2314 = vmatprep.subr.mxu0 0.0
  %2315 = vmatpush1.msra.mxu0 0.0
  %2316 = vmatprep.subr.mxu0 0.0
  %2317 = vmatpush1.msra.mxu0 0.0
  %2318 = vmatprep.subr.mxu0 0.0
  %2319 = vmatpush1.msra.mxu0 0.0
  %2320 = vmatprep.subr.mxu0 0.0
  %2321 = vmatpush1.msra.mxu0 0.0
  %2322 = vmatprep.subr.mxu0 0.0
  %2323 = vmatpush1.msra.mxu0 0.0
  %2324 = vmatprep.subr.mxu0 0.0
  %2325 = vmatpush1.msra.mxu0 0.0
  %2326 = vmatprep.subr.mxu0 0.0
  %2327 = vmatpush1.msra.mxu0 0.0
  %2328 = vmatprep.subr.mxu0 0.0
  %2329 = vmatpush1.msra.mxu0 0.0
  %2330 = vmatprep.subr.mxu0 0.0
  %2331 = vmatpush1.msra.mxu0 0.0
  %2332 = vmatprep.subr.mxu0 0.0
  %2333 = vmatpush1.msra.mxu0 0.0
  %2334 = vmatprep.subr.mxu0 0.0
  %2335 = vmatpush1.msra.mxu0 0.0
  %2336 = vmatprep.subr.mxu0 0.0
  %2337 = vmatpush1.msra.mxu0 0.0
  %2338 = vmatprep.subr.mxu0 0.0
  %2339 = vmatpush1.msra.mxu0 %v1552
  %2340 = vmatprep.subr.mxu0 0.0
  %2341 = vmatpush1.msra.mxu0 %v1551
  %2342 = vmatprep.subr.mxu0 0.0
  %2343 = vmatpush2.msra.mxu0 0.0
  %2344 = vmatprep.subr.mxu0 0.0
  %2345 = vmatpush2.msra.mxu0 0.0
  %2346 = vmatprep.subr.mxu0 0.0
  %2347 = vmatpush2.msra.mxu0 0.0
  %2348 = vmatprep.subr.mxu0 0.0
  %2349 = vmatpush2.msra.mxu0 0.0
  %2350 = vmatprep.subr.mxu0 0.0
  %2351 = vmatpush2.msra.mxu0 0.0
  %2352 = vmatprep.subr.mxu0 0.0
  %2353 = vmatpush2.msra.mxu0 0.0
  %2354 = vmatprep.subr.mxu0 0.0
  %2355 = vmatpush2.msra.mxu0 0.0
  %2356 = vmatprep.subr.mxu0 0.0
  %2357 = vmatpush2.msra.mxu0 0.0
  %2358 = vmatprep.subr.mxu0 0.0
  %2359 = vmatpush2.msra.mxu0 0.0
  %2360 = vmatprep.subr.mxu0 0.0
  %2361 = vmatpush2.msra.mxu0 0.0
  %2362 = vmatprep.subr.mxu0 0.0
  %2363 = vmatpush2.msra.mxu0 0.0
  %2364 = vmatprep.subr.mxu0 0.0
  %2365 = vmatpush2.msra.mxu0 0.0
  %2366 = vmatprep.subr.mxu0 0.0
  %2367 = vmatpush2.msra.mxu0 0.0
  %2368 = vmatprep.subr.mxu0 0.0
  %2369 = vmatpush2.msra.mxu0 0.0
  %2370 = vmatprep.subr.mxu0 0.0
  %2371 = vmatpush2.msra.mxu0 0.0
  %2372 = vmatprep.subr.mxu0 0.0
  %2373 = vmatpush2.msra.mxu0 0.0
  %2374 = vmatprep.mubr.f32.mxu0 0.0
  %2375 = vmatmul.mubr.f32.gmra.mxu0 %v2308
  %v2376 = vpop.f32.mrf.mxu0
  %v2377 = vadd.f32 %v1667, %v2376
  %v2378 = vpop.f32.mrf.mxu0
  %2379 = vdwg.mxu0
  %2381 = vrot.lane.b32.xlu0 %v2377, 48
  %v2382 = vpop.permute.xlu0 %2381
  %v2384 = vadd.f32 %v2207, %v2382
  %v2385 = vxor.u32 %v2384, 2147483648
  %v2386 = vmul.f32 %v2385, 1.442695
  %v2387 = vpow.pop %v2386
  %v2388 = vadd.f32 %v2387, 1.0
  %v2389 = vrcp.pop %v2388
  %v2390 = vmul.f32 1.0, %v2389
  %2391 = vrot.lane.b32.xlu0 %v2377, 16
  %v2392 = vpop.permute.xlu0 %2391
  %v2394 = vmul.f32 %v2390, %v2392
  %2396 = vrot.lane.b32.xlu0 %v2394, 32
  %v2397 = vpop.permute.xlu0 %2396
  %v2399 = vadd.f32 %v2207, %v2397
  %v2400 = vtanh.pop %v2399
  %v2401 = vsub.f32 1.0, %v2390
  %2403 = vrot.lane.b32.xlu0 %v2400, 112
  %v2404 = vpop.permute.xlu0 %2403
  %v2406 = vmul.f32 %v2401, %v2404
  %v2407 = vmul.f32 %v2390, %v2195
  %v2408 = vadd.f32 %v2406, %v2407
  %2410 = vrot.lane.b32.xlu0 %v2305, 112
  %v2411 = vpop.permute.xlu0 %2410
  %2413 = vst.msk [vmem:[#allocation4 + $0x6] sm:$0x3] %vm1772, %v2411
  %2415 = vrot.lane.b32.xlu0 %v2408, 80
  %v2416 = vpop.permute.xlu0 %2415
  %2418 = vst.msk [vmem:[#allocation4 + $0x8] sm:$0x3] %vm1778, %v2416
  %v2419 = vld [vmem:[#allocation3 + $0x8] sm:$0x3]
  %v2420 = vld [vmem:[#allocation3 + $0x6] sm:$0x3]
  %v2421 = vsel %vm261, %v2411, 0
  %2423 = vmatprep.subr.mxu0 0.0
  %2424 = vmatpush1.msra.mxu0 0.0
  %2425 = vmatprep.subr.mxu0 0.0
  %2426 = vmatpush1.msra.mxu0 0.0
  %2427 = vmatprep.subr.mxu0 0.0
  %2428 = vmatpush1.msra.mxu0 0.0
  %2429 = vmatprep.subr.mxu0 0.0
  %2430 = vmatpush1.msra.mxu0 0.0
  %2431 = vmatprep.subr.mxu0 0.0
  %2432 = vmatpush1.msra.mxu0 0.0
  %2433 = vmatprep.subr.mxu0 0.0
  %2434 = vmatpush1.msra.mxu0 0.0
  %2435 = vmatprep.subr.mxu0 0.0
  %2436 = vmatpush1.msra.mxu0 0.0
  %2437 = vmatprep.subr.mxu0 0.0
  %2438 = vmatpush1.msra.mxu0 0.0
  %2439 = vmatprep.subr.mxu0 0.0
  %2440 = vmatpush1.msra.mxu0 0.0
  %2441 = vmatprep.subr.mxu0 0.0
  %2442 = vmatpush1.msra.mxu0 0.0
  %2443 = vmatprep.subr.mxu0 0.0
  %2444 = vmatpush1.msra.mxu0 0.0
  %2445 = vmatprep.subr.mxu0 0.0
  %2446 = vmatpush1.msra.mxu0 0.0
  %2447 = vmatprep.subr.mxu0 0.0
  %2448 = vmatpush1.msra.mxu0 0.0
  %2449 = vmatprep.subr.mxu0 0.0
  %2450 = vmatpush1.msra.mxu0 0.0
  %2451 = vmatprep.subr.mxu0 0.0
  %2452 = vmatpush1.msra.mxu0 %v1549
  %2453 = vmatprep.subr.mxu0 0.0
  %2454 = vmatpush1.msra.mxu0 %v1548
  %2455 = vmatprep.subr.mxu0 0.0
  %2456 = vmatpush2.msra.mxu0 0.0
  %2457 = vmatprep.subr.mxu0 0.0
  %2458 = vmatpush2.msra.mxu0 0.0
  %2459 = vmatprep.subr.mxu0 0.0
  %2460 = vmatpush2.msra.mxu0 0.0
  %2461 = vmatprep.subr.mxu0 0.0
  %2462 = vmatpush2.msra.mxu0 0.0
  %2463 = vmatprep.subr.mxu0 0.0
  %2464 = vmatpush2.msra.mxu0 0.0
  %2465 = vmatprep.subr.mxu0 0.0
  %2466 = vmatpush2.msra.mxu0 0.0
  %2467 = vmatprep.subr.mxu0 0.0
  %2468 = vmatpush2.msra.mxu0 0.0
  %2469 = vmatprep.subr.mxu0 0.0
  %2470 = vmatpush2.msra.mxu0 0.0
  %2471 = vmatprep.subr.mxu0 0.0
  %2472 = vmatpush2.msra.mxu0 0.0
  %2473 = vmatprep.subr.mxu0 0.0
  %2474 = vmatpush2.msra.mxu0 0.0
  %2475 = vmatprep.subr.mxu0 0.0
  %2476 = vmatpush2.msra.mxu0 0.0
  %2477 = vmatprep.subr.mxu0 0.0
  %2478 = vmatpush2.msra.mxu0 0.0
  %2479 = vmatprep.subr.mxu0 0.0
  %2480 = vmatpush2.msra.mxu0 0.0
  %2481 = vmatprep.subr.mxu0 0.0
  %2482 = vmatpush2.msra.mxu0 0.0
  %2483 = vmatprep.subr.mxu0 0.0
  %2484 = vmatpush2.msra.mxu0 0.0
  %2485 = vmatprep.subr.mxu0 0.0
  %2486 = vmatpush2.msra.mxu0 0.0
  %2487 = vmatprep.mubr.f32.mxu0 0.0
  %2488 = vmatmul.mubr.f32.gmra.mxu0 %v2421
  %v2489 = vpop.f32.mrf.mxu0
  %v2490 = vadd.f32 %v1562, %v2489
  %v2491 = vpop.f32.mrf.mxu0
  %2492 = vdwg.mxu0
  %v2493 = vadd.f32 %v2419, %v2490
  %v2494 = vxor.u32 %v2493, 2147483648
  %v2495 = vmul.f32 %v2494, 1.442695
  %v2496 = vpow.pop %v2495
  %v2497 = vadd.f32 %v2496, 1.0
  %v2498 = vrcp.pop %v2497
  %v2499 = vmul.f32 1.0, %v2498
  %2501 = vrot.lane.b32.xlu0 %v2490, 96
  %v2502 = vpop.permute.xlu0 %2501
  %v2504 = vmul.f32 %v2499, %v2502
  %2506 = vrot.lane.b32.xlu0 %v2504, 32
  %v2507 = vpop.permute.xlu0 %2506
  %v2509 = vadd.f32 %v2419, %v2507
  %v2510 = vtanh.pop %v2509
  %v2511 = vsub.f32 1.0, %v2499
  %2513 = vrot.lane.b32.xlu0 %v2510, 112
  %v2514 = vpop.permute.xlu0 %2513
  %v2516 = vmul.f32 %v2511, %v2514
  %v2517 = vmul.f32 %v2499, %v2305
  %v2518 = vadd.f32 %v2516, %v2517
  %2519 = vrot.lane.b32.xlu0 %v2408, 64
  %v2520 = vpop.permute.xlu0 %2519
  %v2521 = vsel %vm261, %v2520, 0
  %2523 = vmatprep.subr.mxu0 0.0
  %2524 = vmatpush1.msra.mxu0 0.0
  %2525 = vmatprep.subr.mxu0 0.0
  %2526 = vmatpush1.msra.mxu0 0.0
  %2527 = vmatprep.subr.mxu0 0.0
  %2528 = vmatpush1.msra.mxu0 0.0
  %2529 = vmatprep.subr.mxu0 0.0
  %2530 = vmatpush1.msra.mxu0 0.0
  %2531 = vmatprep.subr.mxu0 0.0
  %2532 = vmatpush1.msra.mxu0 0.0
  %2533 = vmatprep.subr.mxu0 0.0
  %2534 = vmatpush1.msra.mxu0 0.0
  %2535 = vmatprep.subr.mxu0 0.0
  %2536 = vmatpush1.msra.mxu0 0.0
  %2537 = vmatprep.subr.mxu0 0.0
  %2538 = vmatpush1.msra.mxu0 0.0
  %2539 = vmatprep.subr.mxu0 0.0
  %2540 = vmatpush1.msra.mxu0 0.0
  %2541 = vmatprep.subr.mxu0 0.0
  %2542 = vmatpush1.msra.mxu0 0.0
  %2543 = vmatprep.subr.mxu0 0.0
  %2544 = vmatpush1.msra.mxu0 0.0
  %2545 = vmatprep.subr.mxu0 0.0
  %2546 = vmatpush1.msra.mxu0 0.0
  %2547 = vmatprep.subr.mxu0 0.0
  %2548 = vmatpush1.msra.mxu0 0.0
  %2549 = vmatprep.subr.mxu0 0.0
  %2550 = vmatpush1.msra.mxu0 0.0
  %2551 = vmatprep.subr.mxu0 0.0
  %2552 = vmatpush1.msra.mxu0 %v1552
  %2553 = vmatprep.subr.mxu0 0.0
  %2554 = vmatpush1.msra.mxu0 %v1551
  %2555 = vmatprep.subr.mxu0 0.0
  %2556 = vmatpush2.msra.mxu0 0.0
  %2557 = vmatprep.subr.mxu0 0.0
  %2558 = vmatpush2.msra.mxu0 0.0
  %2559 = vmatprep.subr.mxu0 0.0
  %2560 = vmatpush2.msra.mxu0 0.0
  %2561 = vmatprep.subr.mxu0 0.0
  %2562 = vmatpush2.msra.mxu0 0.0
  %2563 = vmatprep.subr.mxu0 0.0
  %2564 = vmatpush2.msra.mxu0 0.0
  %2565 = vmatprep.subr.mxu0 0.0
  %2566 = vmatpush2.msra.mxu0 0.0
  %2567 = vmatprep.subr.mxu0 0.0
  %2568 = vmatpush2.msra.mxu0 0.0
  %2569 = vmatprep.subr.mxu0 0.0
  %2570 = vmatpush2.msra.mxu0 0.0
  %2571 = vmatprep.subr.mxu0 0.0
  %2572 = vmatpush2.msra.mxu0 0.0
  %2573 = vmatprep.subr.mxu0 0.0
  %2574 = vmatpush2.msra.mxu0 0.0
  %2575 = vmatprep.subr.mxu0 0.0
  %2576 = vmatpush2.msra.mxu0 0.0
  %2577 = vmatprep.subr.mxu0 0.0
  %2578 = vmatpush2.msra.mxu0 0.0
  %2579 = vmatprep.subr.mxu0 0.0
  %2580 = vmatpush2.msra.mxu0 0.0
  %2581 = vmatprep.subr.mxu0 0.0
  %2582 = vmatpush2.msra.mxu0 0.0
  %2583 = vmatprep.subr.mxu0 0.0
  %2584 = vmatpush2.msra.mxu0 0.0
  %2585 = vmatprep.subr.mxu0 0.0
  %2586 = vmatpush2.msra.mxu0 0.0
  %2587 = vmatprep.mubr.f32.mxu0 0.0
  %2588 = vmatmul.mubr.f32.gmra.mxu0 %v2521
  %v2589 = vpop.f32.mrf.mxu0
  %v2590 = vadd.f32 %v1667, %v2589
  %v2591 = vpop.f32.mrf.mxu0
  %2592 = vdwg.mxu0
  %2594 = vrot.lane.b32.xlu0 %v2590, 48
  %v2595 = vpop.permute.xlu0 %2594
  %v2597 = vadd.f32 %v2420, %v2595
  %v2598 = vxor.u32 %v2597, 2147483648
  %v2599 = vmul.f32 %v2598, 1.442695
  %v2600 = vpow.pop %v2599
  %v2601 = vadd.f32 %v2600, 1.0
  %v2602 = vrcp.pop %v2601
  %v2603 = vmul.f32 1.0, %v2602
  %2604 = vrot.lane.b32.xlu0 %v2590, 16
  %v2605 = vpop.permute.xlu0 %2604
  %v2607 = vmul.f32 %v2603, %v2605
  %2609 = vrot.lane.b32.xlu0 %v2607, 32
  %v2610 = vpop.permute.xlu0 %2609
  %v2612 = vadd.f32 %v2420, %v2610
  %v2613 = vtanh.pop %v2612
  %v2614 = vsub.f32 1.0, %v2603
  %2616 = vrot.lane.b32.xlu0 %v2613, 112
  %v2617 = vpop.permute.xlu0 %2616
  %v2619 = vmul.f32 %v2614, %v2617
  %v2620 = vmul.f32 %v2603, %v2408
  %v2621 = vadd.f32 %v2619, %v2620
  %2623 = vrot.lane.b32.xlu0 %v2518, 112
  %v2624 = vpop.permute.xlu0 %2623
  %2626 = vst.msk [vmem:[#allocation4 + $0x8] sm:$0x3] %vm1772, %v2624
  %2628 = vrot.lane.b32.xlu0 %v2621, 80
  %v2629 = vpop.permute.xlu0 %2628
  %2631 = vst.msk [vmem:[#allocation4 + $0x6] sm:$0x3] %vm1778, %v2629
  %v2632 = vld [vmem:[#allocation3 + $0xa] sm:$0x3]
  %v2633 = vld [vmem:[#allocation3 + $0x4] sm:$0x3]
  %v2634 = vsel %vm261, %v2624, 0
  %2636 = vmatprep.subr.mxu0 0.0
  %2637 = vmatpush1.msra.mxu0 0.0
  %2638 = vmatprep.subr.mxu0 0.0
  %2639 = vmatpush1.msra.mxu0 0.0
  %2640 = vmatprep.subr.mxu0 0.0
  %2641 = vmatpush1.msra.mxu0 0.0
  %2642 = vmatprep.subr.mxu0 0.0
  %2643 = vmatpush1.msra.mxu0 0.0
  %2644 = vmatprep.subr.mxu0 0.0
  %2645 = vmatpush1.msra.mxu0 0.0
  %2646 = vmatprep.subr.mxu0 0.0
  %2647 = vmatpush1.msra.mxu0 0.0
  %2648 = vmatprep.subr.mxu0 0.0
  %2649 = vmatpush1.msra.mxu0 0.0
  %2650 = vmatprep.subr.mxu0 0.0
  %2651 = vmatpush1.msra.mxu0 0.0
  %2652 = vmatprep.subr.mxu0 0.0
  %2653 = vmatpush1.msra.mxu0 0.0
  %2654 = vmatprep.subr.mxu0 0.0
  %2655 = vmatpush1.msra.mxu0 0.0
  %2656 = vmatprep.subr.mxu0 0.0
  %2657 = vmatpush1.msra.mxu0 0.0
  %2658 = vmatprep.subr.mxu0 0.0
  %2659 = vmatpush1.msra.mxu0 0.0
  %2660 = vmatprep.subr.mxu0 0.0
  %2661 = vmatpush1.msra.mxu0 0.0
  %2662 = vmatprep.subr.mxu0 0.0
  %2663 = vmatpush1.msra.mxu0 0.0
  %2664 = vmatprep.subr.mxu0 0.0
  %2665 = vmatpush1.msra.mxu0 %v1549
  %2666 = vmatprep.subr.mxu0 0.0
  %2667 = vmatpush1.msra.mxu0 %v1548
  %2668 = vmatprep.subr.mxu0 0.0
  %2669 = vmatpush2.msra.mxu0 0.0
  %2670 = vmatprep.subr.mxu0 0.0
  %2671 = vmatpush2.msra.mxu0 0.0
  %2672 = vmatprep.subr.mxu0 0.0
  %2673 = vmatpush2.msra.mxu0 0.0
  %2674 = vmatprep.subr.mxu0 0.0
  %2675 = vmatpush2.msra.mxu0 0.0
  %2676 = vmatprep.subr.mxu0 0.0
  %2677 = vmatpush2.msra.mxu0 0.0
  %2678 = vmatprep.subr.mxu0 0.0
  %2679 = vmatpush2.msra.mxu0 0.0
  %2680 = vmatprep.subr.mxu0 0.0
  %2681 = vmatpush2.msra.mxu0 0.0
  %2682 = vmatprep.subr.mxu0 0.0
  %2683 = vmatpush2.msra.mxu0 0.0
  %2684 = vmatprep.subr.mxu0 0.0
  %2685 = vmatpush2.msra.mxu0 0.0
  %2686 = vmatprep.subr.mxu0 0.0
  %2687 = vmatpush2.msra.mxu0 0.0
  %2688 = vmatprep.subr.mxu0 0.0
  %2689 = vmatpush2.msra.mxu0 0.0
  %2690 = vmatprep.subr.mxu0 0.0
  %2691 = vmatpush2.msra.mxu0 0.0
  %2692 = vmatprep.subr.mxu0 0.0
  %2693 = vmatpush2.msra.mxu0 0.0
  %2694 = vmatprep.subr.mxu0 0.0
  %2695 = vmatpush2.msra.mxu0 0.0
  %2696 = vmatprep.subr.mxu0 0.0
  %2697 = vmatpush2.msra.mxu0 0.0
  %2698 = vmatprep.subr.mxu0 0.0
  %2699 = vmatpush2.msra.mxu0 0.0
  %2700 = vmatprep.mubr.f32.mxu0 0.0
  %2701 = vmatmul.mubr.f32.gmra.mxu0 %v2634
  %v2702 = vpop.f32.mrf.mxu0
  %v2703 = vadd.f32 %v1562, %v2702
  %v2704 = vpop.f32.mrf.mxu0
  %2705 = vdwg.mxu0
  %v2706 = vadd.f32 %v2632, %v2703
  %v2707 = vxor.u32 %v2706, 2147483648
  %v2708 = vmul.f32 %v2707, 1.442695
  %v2709 = vpow.pop %v2708
  %v2710 = vadd.f32 %v2709, 1.0
  %v2711 = vrcp.pop %v2710
  %v2712 = vmul.f32 1.0, %v2711
  %2714 = vrot.lane.b32.xlu0 %v2703, 96
  %v2715 = vpop.permute.xlu0 %2714
  %v2717 = vmul.f32 %v2712, %v2715
  %2719 = vrot.lane.b32.xlu0 %v2717, 32
  %v2720 = vpop.permute.xlu0 %2719
  %v2722 = vadd.f32 %v2632, %v2720
  %v2723 = vtanh.pop %v2722
  %v2724 = vsub.f32 1.0, %v2712
  %2726 = vrot.lane.b32.xlu0 %v2723, 112
  %v2727 = vpop.permute.xlu0 %2726
  %v2729 = vmul.f32 %v2724, %v2727
  %v2730 = vmul.f32 %v2712, %v2518
  %v2731 = vadd.f32 %v2729, %v2730
  %2732 = vrot.lane.b32.xlu0 %v2621, 64
  %v2733 = vpop.permute.xlu0 %2732
  %v2734 = vsel %vm261, %v2733, 0
  %2736 = vmatprep.subr.mxu0 0.0
  %2737 = vmatpush1.msra.mxu0 0.0
  %2738 = vmatprep.subr.mxu0 0.0
  %2739 = vmatpush1.msra.mxu0 0.0
  %2740 = vmatprep.subr.mxu0 0.0
  %2741 = vmatpush1.msra.mxu0 0.0
  %2742 = vmatprep.subr.mxu0 0.0
  %2743 = vmatpush1.msra.mxu0 0.0
  %2744 = vmatprep.subr.mxu0 0.0
  %2745 = vmatpush1.msra.mxu0 0.0
  %2746 = vmatprep.subr.mxu0 0.0
  %2747 = vmatpush1.msra.mxu0 0.0
  %2748 = vmatprep.subr.mxu0 0.0
  %2749 = vmatpush1.msra.mxu0 0.0
  %2750 = vmatprep.subr.mxu0 0.0
  %2751 = vmatpush1.msra.mxu0 0.0
  %2752 = vmatprep.subr.mxu0 0.0
  %2753 = vmatpush1.msra.mxu0 0.0
  %2754 = vmatprep.subr.mxu0 0.0
  %2755 = vmatpush1.msra.mxu0 0.0
  %2756 = vmatprep.subr.mxu0 0.0
  %2757 = vmatpush1.msra.mxu0 0.0
  %2758 = vmatprep.subr.mxu0 0.0
  %2759 = vmatpush1.msra.mxu0 0.0
  %2760 = vmatprep.subr.mxu0 0.0
  %2761 = vmatpush1.msra.mxu0 0.0
  %2762 = vmatprep.subr.mxu0 0.0
  %2763 = vmatpush1.msra.mxu0 0.0
  %2764 = vmatprep.subr.mxu0 0.0
  %2765 = vmatpush1.msra.mxu0 %v1552
  %2766 = vmatprep.subr.mxu0 0.0
  %2767 = vmatpush1.msra.mxu0 %v1551
  %2768 = vmatprep.subr.mxu0 0.0
  %2769 = vmatpush2.msra.mxu0 0.0
  %2770 = vmatprep.subr.mxu0 0.0
  %2771 = vmatpush2.msra.mxu0 0.0
  %2772 = vmatprep.subr.mxu0 0.0
  %2773 = vmatpush2.msra.mxu0 0.0
  %2774 = vmatprep.subr.mxu0 0.0
  %2775 = vmatpush2.msra.mxu0 0.0
  %2776 = vmatprep.subr.mxu0 0.0
  %2777 = vmatpush2.msra.mxu0 0.0
  %2778 = vmatprep.subr.mxu0 0.0
  %2779 = vmatpush2.msra.mxu0 0.0
  %2780 = vmatprep.subr.mxu0 0.0
  %2781 = vmatpush2.msra.mxu0 0.0
  %2782 = vmatprep.subr.mxu0 0.0
  %2783 = vmatpush2.msra.mxu0 0.0
  %2784 = vmatprep.subr.mxu0 0.0
  %2785 = vmatpush2.msra.mxu0 0.0
  %2786 = vmatprep.subr.mxu0 0.0
  %2787 = vmatpush2.msra.mxu0 0.0
  %2788 = vmatprep.subr.mxu0 0.0
  %2789 = vmatpush2.msra.mxu0 0.0
  %2790 = vmatprep.subr.mxu0 0.0
  %2791 = vmatpush2.msra.mxu0 0.0
  %2792 = vmatprep.subr.mxu0 0.0
  %2793 = vmatpush2.msra.mxu0 0.0
  %2794 = vmatprep.subr.mxu0 0.0
  %2795 = vmatpush2.msra.mxu0 0.0
  %2796 = vmatprep.subr.mxu0 0.0
  %2797 = vmatpush2.msra.mxu0 0.0
  %2798 = vmatprep.subr.mxu0 0.0
  %2799 = vmatpush2.msra.mxu0 0.0
  %2800 = vmatprep.mubr.f32.mxu0 0.0
  %2801 = vmatmul.mubr.f32.gmra.mxu0 %v2734
  %v2802 = vpop.f32.mrf.mxu0
  %v2803 = vadd.f32 %v1667, %v2802
  %v2804 = vpop.f32.mrf.mxu0
  %2805 = vdwg.mxu0
  %2807 = vrot.lane.b32.xlu0 %v2803, 48
  %v2808 = vpop.permute.xlu0 %2807
  %v2810 = vadd.f32 %v2633, %v2808
  %v2811 = vxor.u32 %v2810, 2147483648
  %v2812 = vmul.f32 %v2811, 1.442695
  %v2813 = vpow.pop %v2812
  %v2814 = vadd.f32 %v2813, 1.0
  %v2815 = vrcp.pop %v2814
  %v2816 = vmul.f32 1.0, %v2815
  %2817 = vrot.lane.b32.xlu0 %v2803, 16
  %v2818 = vpop.permute.xlu0 %2817
  %v2820 = vmul.f32 %v2816, %v2818
  %2822 = vrot.lane.b32.xlu0 %v2820, 32
  %v2823 = vpop.permute.xlu0 %2822
  %v2825 = vadd.f32 %v2633, %v2823
  %v2826 = vtanh.pop %v2825
  %v2827 = vsub.f32 1.0, %v2816
  %2829 = vrot.lane.b32.xlu0 %v2826, 112
  %v2830 = vpop.permute.xlu0 %2829
  %v2832 = vmul.f32 %v2827, %v2830
  %v2833 = vmul.f32 %v2816, %v2621
  %v2834 = vadd.f32 %v2832, %v2833
  %2836 = vrot.lane.b32.xlu0 %v2731, 112
  %v2837 = vpop.permute.xlu0 %2836
  %2839 = vst.msk [vmem:[#allocation4 + $0xa] sm:$0x3] %vm1772, %v2837
  %2841 = vrot.lane.b32.xlu0 %v2834, 80
  %v2842 = vpop.permute.xlu0 %2841
  %2844 = vst.msk [vmem:[#allocation4 + $0x4] sm:$0x3] %vm1778, %v2842
  %v2845 = vld [vmem:[#allocation3 + $0xc] sm:$0x3]
  %v2846 = vld [vmem:[#allocation3 + $0x2] sm:$0x3]
  %v2847 = vsel %vm261, %v2837, 0
  %2849 = vmatprep.subr.mxu0 0.0
  %2850 = vmatpush1.msra.mxu0 0.0
  %2851 = vmatprep.subr.mxu0 0.0
  %2852 = vmatpush1.msra.mxu0 0.0
  %2853 = vmatprep.subr.mxu0 0.0
  %2854 = vmatpush1.msra.mxu0 0.0
  %2855 = vmatprep.subr.mxu0 0.0
  %2856 = vmatpush1.msra.mxu0 0.0
  %2857 = vmatprep.subr.mxu0 0.0
  %2858 = vmatpush1.msra.mxu0 0.0
  %2859 = vmatprep.subr.mxu0 0.0
  %2860 = vmatpush1.msra.mxu0 0.0
  %2861 = vmatprep.subr.mxu0 0.0
  %2862 = vmatpush1.msra.mxu0 0.0
  %2863 = vmatprep.subr.mxu0 0.0
  %2864 = vmatpush1.msra.mxu0 0.0
  %2865 = vmatprep.subr.mxu0 0.0
  %2866 = vmatpush1.msra.mxu0 0.0
  %2867 = vmatprep.subr.mxu0 0.0
  %2868 = vmatpush1.msra.mxu0 0.0
  %2869 = vmatprep.subr.mxu0 0.0
  %2870 = vmatpush1.msra.mxu0 0.0
  %2871 = vmatprep.subr.mxu0 0.0
  %2872 = vmatpush1.msra.mxu0 0.0
  %2873 = vmatprep.subr.mxu0 0.0
  %2874 = vmatpush1.msra.mxu0 0.0
  %2875 = vmatprep.subr.mxu0 0.0
  %2876 = vmatpush1.msra.mxu0 0.0
  %2877 = vmatprep.subr.mxu0 0.0
  %2878 = vmatpush1.msra.mxu0 %v1549
  %2879 = vmatprep.subr.mxu0 0.0
  %2880 = vmatpush1.msra.mxu0 %v1548
  %2881 = vmatprep.subr.mxu0 0.0
  %2882 = vmatpush2.msra.mxu0 0.0
  %2883 = vmatprep.subr.mxu0 0.0
  %2884 = vmatpush2.msra.mxu0 0.0
  %2885 = vmatprep.subr.mxu0 0.0
  %2886 = vmatpush2.msra.mxu0 0.0
  %2887 = vmatprep.subr.mxu0 0.0
  %2888 = vmatpush2.msra.mxu0 0.0
  %2889 = vmatprep.subr.mxu0 0.0
  %2890 = vmatpush2.msra.mxu0 0.0
  %2891 = vmatprep.subr.mxu0 0.0
  %2892 = vmatpush2.msra.mxu0 0.0
  %2893 = vmatprep.subr.mxu0 0.0
  %2894 = vmatpush2.msra.mxu0 0.0
  %2895 = vmatprep.subr.mxu0 0.0
  %2896 = vmatpush2.msra.mxu0 0.0
  %2897 = vmatprep.subr.mxu0 0.0
  %2898 = vmatpush2.msra.mxu0 0.0
  %2899 = vmatprep.subr.mxu0 0.0
  %2900 = vmatpush2.msra.mxu0 0.0
  %2901 = vmatprep.subr.mxu0 0.0
  %2902 = vmatpush2.msra.mxu0 0.0
  %2903 = vmatprep.subr.mxu0 0.0
  %2904 = vmatpush2.msra.mxu0 0.0
  %2905 = vmatprep.subr.mxu0 0.0
  %2906 = vmatpush2.msra.mxu0 0.0
  %2907 = vmatprep.subr.mxu0 0.0
  %2908 = vmatpush2.msra.mxu0 0.0
  %2909 = vmatprep.subr.mxu0 0.0
  %2910 = vmatpush2.msra.mxu0 0.0
  %2911 = vmatprep.subr.mxu0 0.0
  %2912 = vmatpush2.msra.mxu0 0.0
  %2913 = vmatprep.mubr.f32.mxu0 0.0
  %2914 = vmatmul.mubr.f32.gmra.mxu0 %v2847
  %v2915 = vpop.f32.mrf.mxu0
  %v2916 = vadd.f32 %v1562, %v2915
  %v2917 = vpop.f32.mrf.mxu0
  %2918 = vdwg.mxu0
  %v2919 = vadd.f32 %v2845, %v2916
  %v2920 = vxor.u32 %v2919, 2147483648
  %v2921 = vmul.f32 %v2920, 1.442695
  %v2922 = vpow.pop %v2921
  %v2923 = vadd.f32 %v2922, 1.0
  %v2924 = vrcp.pop %v2923
  %v2925 = vmul.f32 1.0, %v2924
  %2927 = vrot.lane.b32.xlu0 %v2916, 96
  %v2928 = vpop.permute.xlu0 %2927
  %v2930 = vmul.f32 %v2925, %v2928
  %2932 = vrot.lane.b32.xlu0 %v2930, 32
  %v2933 = vpop.permute.xlu0 %2932
  %v2935 = vadd.f32 %v2845, %v2933
  %v2936 = vtanh.pop %v2935
  %v2937 = vsub.f32 1.0, %v2925
  %2939 = vrot.lane.b32.xlu0 %v2936, 112
  %v2940 = vpop.permute.xlu0 %2939
  %v2942 = vmul.f32 %v2937, %v2940
  %v2943 = vmul.f32 %v2925, %v2731
  %v2944 = vadd.f32 %v2942, %v2943
  %2945 = vrot.lane.b32.xlu0 %v2834, 64
  %v2946 = vpop.permute.xlu0 %2945
  %v2947 = vsel %vm261, %v2946, 0
  %2949 = vmatprep.subr.mxu0 0.0
  %2950 = vmatpush1.msra.mxu0 0.0
  %2951 = vmatprep.subr.mxu0 0.0
  %2952 = vmatpush1.msra.mxu0 0.0
  %2953 = vmatprep.subr.mxu0 0.0
  %2954 = vmatpush1.msra.mxu0 0.0
  %2955 = vmatprep.subr.mxu0 0.0
  %2956 = vmatpush1.msra.mxu0 0.0
  %2957 = vmatprep.subr.mxu0 0.0
  %2958 = vmatpush1.msra.mxu0 0.0
  %2959 = vmatprep.subr.mxu0 0.0
  %2960 = vmatpush1.msra.mxu0 0.0
  %2961 = vmatprep.subr.mxu0 0.0
  %2962 = vmatpush1.msra.mxu0 0.0
  %2963 = vmatprep.subr.mxu0 0.0
  %2964 = vmatpush1.msra.mxu0 0.0
  %2965 = vmatprep.subr.mxu0 0.0
  %2966 = vmatpush1.msra.mxu0 0.0
  %2967 = vmatprep.subr.mxu0 0.0
  %2968 = vmatpush1.msra.mxu0 0.0
  %2969 = vmatprep.subr.mxu0 0.0
  %2970 = vmatpush1.msra.mxu0 0.0
  %2971 = vmatprep.subr.mxu0 0.0
  %2972 = vmatpush1.msra.mxu0 0.0
  %2973 = vmatprep.subr.mxu0 0.0
  %2974 = vmatpush1.msra.mxu0 0.0
  %2975 = vmatprep.subr.mxu0 0.0
  %2976 = vmatpush1.msra.mxu0 0.0
  %2977 = vmatprep.subr.mxu0 0.0
  %2978 = vmatpush1.msra.mxu0 %v1552
  %2979 = vmatprep.subr.mxu0 0.0
  %2980 = vmatpush1.msra.mxu0 %v1551
  %2981 = vmatprep.subr.mxu0 0.0
  %2982 = vmatpush2.msra.mxu0 0.0
  %2983 = vmatprep.subr.mxu0 0.0
  %2984 = vmatpush2.msra.mxu0 0.0
  %2985 = vmatprep.subr.mxu0 0.0
  %2986 = vmatpush2.msra.mxu0 0.0
  %2987 = vmatprep.subr.mxu0 0.0
  %2988 = vmatpush2.msra.mxu0 0.0
  %2989 = vmatprep.subr.mxu0 0.0
  %2990 = vmatpush2.msra.mxu0 0.0
  %2991 = vmatprep.subr.mxu0 0.0
  %2992 = vmatpush2.msra.mxu0 0.0
  %2993 = vmatprep.subr.mxu0 0.0
  %2994 = vmatpush2.msra.mxu0 0.0
  %2995 = vmatprep.subr.mxu0 0.0
  %2996 = vmatpush2.msra.mxu0 0.0
  %2997 = vmatprep.subr.mxu0 0.0
  %2998 = vmatpush2.msra.mxu0 0.0
  %2999 = vmatprep.subr.mxu0 0.0
  %3000 = vmatpush2.msra.mxu0 0.0
  %3001 = vmatprep.subr.mxu0 0.0
  %3002 = vmatpush2.msra.mxu0 0.0
  %3003 = vmatprep.subr.mxu0 0.0
  %3004 = vmatpush2.msra.mxu0 0.0
  %3005 = vmatprep.subr.mxu0 0.0
  %3006 = vmatpush2.msra.mxu0 0.0
  %3007 = vmatprep.subr.mxu0 0.0
  %3008 = vmatpush2.msra.mxu0 0.0
  %3009 = vmatprep.subr.mxu0 0.0
  %3010 = vmatpush2.msra.mxu0 0.0
  %3011 = vmatprep.subr.mxu0 0.0
  %3012 = vmatpush2.msra.mxu0 0.0
  %3013 = vmatprep.mubr.f32.mxu0 0.0
  %3014 = vmatmul.mubr.f32.gmra.mxu0 %v2947
  %v3015 = vpop.f32.mrf.mxu0
  %v3016 = vadd.f32 %v1667, %v3015
  %v3017 = vpop.f32.mrf.mxu0
  %3018 = vdwg.mxu0
  %3020 = vrot.lane.b32.xlu0 %v3016, 48
  %v3021 = vpop.permute.xlu0 %3020
  %v3023 = vadd.f32 %v2846, %v3021
  %v3024 = vxor.u32 %v3023, 2147483648
  %v3025 = vmul.f32 %v3024, 1.442695
  %v3026 = vpow.pop %v3025
  %v3027 = vadd.f32 %v3026, 1.0
  %v3028 = vrcp.pop %v3027
  %v3029 = vmul.f32 1.0, %v3028
  %3030 = vrot.lane.b32.xlu0 %v3016, 16
  %v3031 = vpop.permute.xlu0 %3030
  %v3033 = vmul.f32 %v3029, %v3031
  %3035 = vrot.lane.b32.xlu0 %v3033, 32
  %v3036 = vpop.permute.xlu0 %3035
  %v3038 = vadd.f32 %v2846, %v3036
  %v3039 = vtanh.pop %v3038
  %v3040 = vsub.f32 1.0, %v3029
  %3042 = vrot.lane.b32.xlu0 %v3039, 112
  %v3043 = vpop.permute.xlu0 %3042
  %v3045 = vmul.f32 %v3040, %v3043
  %v3046 = vmul.f32 %v3029, %v2834
  %v3047 = vadd.f32 %v3045, %v3046
  %3049 = vrot.lane.b32.xlu0 %v2944, 112
  %v3050 = vpop.permute.xlu0 %3049
  %3052 = vst.msk [vmem:[#allocation4 + $0xc] sm:$0x3] %vm1772, %v3050
  %3054 = vrot.lane.b32.xlu0 %v3047, 80
  %v3055 = vpop.permute.xlu0 %3054
  %3057 = vst.msk [vmem:[#allocation4 + $0x2] sm:$0x3] %vm1778, %v3055
  %v3058 = vld [vmem:[#allocation3 + $0xe] sm:$0x3]
  %v3059 = vld [vmem:[#allocation3] sm:$0x3]
  %v3060 = vsel %vm261, %v3050, 0
  %3062 = vmatprep.subr.mxu0 0.0
  %3063 = vmatpush1.msra.mxu0 0.0
  %3064 = vmatprep.subr.mxu0 0.0
  %3065 = vmatpush1.msra.mxu0 0.0
  %3066 = vmatprep.subr.mxu0 0.0
  %3067 = vmatpush1.msra.mxu0 0.0
  %3068 = vmatprep.subr.mxu0 0.0
  %3069 = vmatpush1.msra.mxu0 0.0
  %3070 = vmatprep.subr.mxu0 0.0
  %3071 = vmatpush1.msra.mxu0 0.0
  %3072 = vmatprep.subr.mxu0 0.0
  %3073 = vmatpush1.msra.mxu0 0.0
  %3074 = vmatprep.subr.mxu0 0.0
  %3075 = vmatpush1.msra.mxu0 0.0
  %3076 = vmatprep.subr.mxu0 0.0
  %3077 = vmatpush1.msra.mxu0 0.0
  %3078 = vmatprep.subr.mxu0 0.0
  %3079 = vmatpush1.msra.mxu0 0.0
  %3080 = vmatprep.subr.mxu0 0.0
  %3081 = vmatpush1.msra.mxu0 0.0
  %3082 = vmatprep.subr.mxu0 0.0
  %3083 = vmatpush1.msra.mxu0 0.0
  %3084 = vmatprep.subr.mxu0 0.0
  %3085 = vmatpush1.msra.mxu0 0.0
  %3086 = vmatprep.subr.mxu0 0.0
  %3087 = vmatpush1.msra.mxu0 0.0
  %3088 = vmatprep.subr.mxu0 0.0
  %3089 = vmatpush1.msra.mxu0 0.0
  %3090 = vmatprep.subr.mxu0 0.0
  %3091 = vmatpush1.msra.mxu0 %v1549
  %3092 = vmatprep.subr.mxu0 0.0
  %3093 = vmatpush1.msra.mxu0 %v1548
  %3094 = vmatprep.subr.mxu0 0.0
  %3095 = vmatpush2.msra.mxu0 0.0
  %3096 = vmatprep.subr.mxu0 0.0
  %3097 = vmatpush2.msra.mxu0 0.0
  %3098 = vmatprep.subr.mxu0 0.0
  %3099 = vmatpush2.msra.mxu0 0.0
  %3100 = vmatprep.subr.mxu0 0.0
  %3101 = vmatpush2.msra.mxu0 0.0
  %3102 = vmatprep.subr.mxu0 0.0
  %3103 = vmatpush2.msra.mxu0 0.0
  %3104 = vmatprep.subr.mxu0 0.0
  %3105 = vmatpush2.msra.mxu0 0.0
  %3106 = vmatprep.subr.mxu0 0.0
  %3107 = vmatpush2.msra.mxu0 0.0
  %3108 = vmatprep.subr.mxu0 0.0
  %3109 = vmatpush2.msra.mxu0 0.0
  %3110 = vmatprep.subr.mxu0 0.0
  %3111 = vmatpush2.msra.mxu0 0.0
  %3112 = vmatprep.subr.mxu0 0.0
  %3113 = vmatpush2.msra.mxu0 0.0
  %3114 = vmatprep.subr.mxu0 0.0
  %3115 = vmatpush2.msra.mxu0 0.0
  %3116 = vmatprep.subr.mxu0 0.0
  %3117 = vmatpush2.msra.mxu0 0.0
  %3118 = vmatprep.subr.mxu0 0.0
  %3119 = vmatpush2.msra.mxu0 0.0
  %3120 = vmatprep.subr.mxu0 0.0
  %3121 = vmatpush2.msra.mxu0 0.0
  %3122 = vmatprep.subr.mxu0 0.0
  %3123 = vmatpush2.msra.mxu0 0.0
  %3124 = vmatprep.subr.mxu0 0.0
  %3125 = vmatpush2.msra.mxu0 0.0
  %3126 = vmatprep.mubr.f32.mxu0 0.0
  %3127 = vmatmul.mubr.f32.gmra.mxu0 %v3060
  %v3128 = vpop.f32.mrf.mxu0
  %v3129 = vadd.f32 %v1562, %v3128
  %v3130 = vpop.f32.mrf.mxu0
  %3131 = vdwg.mxu0
  %v3132 = vadd.f32 %v3058, %v3129
  %v3133 = vxor.u32 %v3132, 2147483648
  %v3134 = vmul.f32 %v3133, 1.442695
  %v3135 = vpow.pop %v3134
  %v3136 = vadd.f32 %v3135, 1.0
  %v3137 = vrcp.pop %v3136
  %v3138 = vmul.f32 1.0, %v3137
  %3140 = vrot.lane.b32.xlu0 %v3129, 96
  %v3141 = vpop.permute.xlu0 %3140
  %v3143 = vmul.f32 %v3138, %v3141
  %3145 = vrot.lane.b32.xlu0 %v3143, 32
  %v3146 = vpop.permute.xlu0 %3145
  %v3148 = vadd.f32 %v3058, %v3146
  %v3149 = vtanh.pop %v3148
  %v3150 = vsub.f32 1.0, %v3138
  %3152 = vrot.lane.b32.xlu0 %v3149, 112
  %v3153 = vpop.permute.xlu0 %3152
  %v3155 = vmul.f32 %v3150, %v3153
  %v3156 = vmul.f32 %v3138, %v2944
  %v3157 = vadd.f32 %v3155, %v3156
  %3158 = vrot.lane.b32.xlu0 %v3047, 64
  %v3159 = vpop.permute.xlu0 %3158
  %v3160 = vsel %vm261, %v3159, 0
  %3162 = vmatprep.subr.mxu0 0.0
  %3163 = vmatpush1.msra.mxu0 0.0
  %3164 = vmatprep.subr.mxu0 0.0
  %3165 = vmatpush1.msra.mxu0 0.0
  %3166 = vmatprep.subr.mxu0 0.0
  %3167 = vmatpush1.msra.mxu0 0.0
  %3168 = vmatprep.subr.mxu0 0.0
  %3169 = vmatpush1.msra.mxu0 0.0
  %3170 = vmatprep.subr.mxu0 0.0
  %3171 = vmatpush1.msra.mxu0 0.0
  %3172 = vmatprep.subr.mxu0 0.0
  %3173 = vmatpush1.msra.mxu0 0.0
  %3174 = vmatprep.subr.mxu0 0.0
  %3175 = vmatpush1.msra.mxu0 0.0
  %3176 = vmatprep.subr.mxu0 0.0
  %3177 = vmatpush1.msra.mxu0 0.0
  %3178 = vmatprep.subr.mxu0 0.0
  %3179 = vmatpush1.msra.mxu0 0.0
  %3180 = vmatprep.subr.mxu0 0.0
  %3181 = vmatpush1.msra.mxu0 0.0
  %3182 = vmatprep.subr.mxu0 0.0
  %3183 = vmatpush1.msra.mxu0 0.0
  %3184 = vmatprep.subr.mxu0 0.0
  %3185 = vmatpush1.msra.mxu0 0.0
  %3186 = vmatprep.subr.mxu0 0.0
  %3187 = vmatpush1.msra.mxu0 0.0
  %3188 = vmatprep.subr.mxu0 0.0
  %3189 = vmatpush1.msra.mxu0 0.0
  %3190 = vmatprep.subr.mxu0 0.0
  %3191 = vmatpush1.msra.mxu0 %v1552
  %3192 = vmatprep.subr.mxu0 0.0
  %3193 = vmatpush1.msra.mxu0 %v1551
  %3194 = vmatprep.subr.mxu0 0.0
  %3195 = vmatpush2.msra.mxu0 0.0
  %3196 = vmatprep.subr.mxu0 0.0
  %3197 = vmatpush2.msra.mxu0 0.0
  %3198 = vmatprep.subr.mxu0 0.0
  %3199 = vmatpush2.msra.mxu0 0.0
  %3200 = vmatprep.subr.mxu0 0.0
  %3201 = vmatpush2.msra.mxu0 0.0
  %3202 = vmatprep.subr.mxu0 0.0
  %3203 = vmatpush2.msra.mxu0 0.0
  %3204 = vmatprep.subr.mxu0 0.0
  %3205 = vmatpush2.msra.mxu0 0.0
  %3206 = vmatprep.subr.mxu0 0.0
  %3207 = vmatpush2.msra.mxu0 0.0
  %3208 = vmatprep.subr.mxu0 0.0
  %3209 = vmatpush2.msra.mxu0 0.0
  %3210 = vmatprep.subr.mxu0 0.0
  %3211 = vmatpush2.msra.mxu0 0.0
  %3212 = vmatprep.subr.mxu0 0.0
  %3213 = vmatpush2.msra.mxu0 0.0
  %3214 = vmatprep.subr.mxu0 0.0
  %3215 = vmatpush2.msra.mxu0 0.0
  %3216 = vmatprep.subr.mxu0 0.0
  %3217 = vmatpush2.msra.mxu0 0.0
  %3218 = vmatprep.subr.mxu0 0.0
  %3219 = vmatpush2.msra.mxu0 0.0
  %3220 = vmatprep.subr.mxu0 0.0
  %3221 = vmatpush2.msra.mxu0 0.0
  %3222 = vmatprep.subr.mxu0 0.0
  %3223 = vmatpush2.msra.mxu0 0.0
  %3224 = vmatprep.subr.mxu0 0.0
  %3225 = vmatpush2.msra.mxu0 0.0
  %3226 = vmatprep.mubr.f32.mxu0 0.0
  %3227 = vmatmul.mubr.f32.gmra.mxu0 %v3160
  %v3228 = vpop.f32.mrf.mxu0
  %v3229 = vadd.f32 %v1667, %v3228
  %v3230 = vpop.f32.mrf.mxu0
  %3231 = vdwg.mxu0
  %3233 = vrot.lane.b32.xlu0 %v3229, 48
  %v3234 = vpop.permute.xlu0 %3233
  %v3236 = vadd.f32 %v3059, %v3234
  %v3237 = vxor.u32 %v3236, 2147483648
  %v3238 = vmul.f32 %v3237, 1.442695
  %v3239 = vpow.pop %v3238
  %v3240 = vadd.f32 %v3239, 1.0
  %v3241 = vrcp.pop %v3240
  %v3242 = vmul.f32 1.0, %v3241
  %3243 = vrot.lane.b32.xlu0 %v3229, 16
  %v3244 = vpop.permute.xlu0 %3243
  %v3246 = vmul.f32 %v3242, %v3244
  %3248 = vrot.lane.b32.xlu0 %v3246, 32
  %v3249 = vpop.permute.xlu0 %3248
  %v3251 = vadd.f32 %v3059, %v3249
  %v3252 = vtanh.pop %v3251
  %v3253 = vsub.f32 1.0, %v3242
  %3255 = vrot.lane.b32.xlu0 %v3252, 112
  %v3256 = vpop.permute.xlu0 %3255
  %v3258 = vmul.f32 %v3253, %v3256
  %v3259 = vmul.f32 %v3242, %v3047
  %v3260 = vadd.f32 %v3258, %v3259
  %3262 = vrot.lane.b32.xlu0 %v3157, 112
  %v3263 = vpop.permute.xlu0 %3262
  %3265 = vst.msk [vmem:[#allocation4 + $0xe] sm:$0x3] %vm1772, %v3263
  %3267 = vrot.lane.b32.xlu0 %v3260, 80
  %v3268 = vpop.permute.xlu0 %3267
  %3270 = vst.msk [vmem:[#allocation4] sm:$0x3] %vm1778, %v3268
  %v3271 = vld [vmem:[#allocation4] sm:$0xff]
  %v3272 = vld [vmem:[#allocation4 + $0x8] sm:$0xff]
  %v3273 = vld [vmem:[%s17] sm:$0xff]
  %v3274 = vld [vmem:[%s17 + $0x8] sm:$0xff]
  %v3275 = vld [vmem:[%s17 + $0x10] sm:$0xff]
  %v3276 = vld [vmem:[%s17 + $0x18] sm:$0xff]
  %v3277 = vld [vmem:[%s18] sm:$0x1]
  %v3279 = vlaneseq
  %v3280 = vshrl.u32 %v3279, 7
  %v3281 = vsub.s32 0, %v3280
  %v3282 = vrot.slane %v3277, %v3281
  %v3285 = vsel %vm175, %v3271, 0
  %v3288 = vsel %vm175, %v3272, 0
  %3290 = vmatprep.subr.mxu0 0.0
  %3291 = vmatpush1.msra.mxu0 0.0
  %3292 = vmatprep.subr.mxu0 0.0
  %3293 = vmatpush1.msra.mxu0 0.0
  %3294 = vmatprep.subr.mxu0 0.0
  %3295 = vmatpush1.msra.mxu0 0.0
  %3296 = vmatprep.subr.mxu0 0.0
  %3297 = vmatpush1.msra.mxu0 0.0
  %3298 = vmatprep.subr.mxu0 0.0
  %3299 = vmatpush1.msra.mxu0 0.0
  %3300 = vmatprep.subr.mxu0 0.0
  %3301 = vmatpush1.msra.mxu0 0.0
  %3302 = vmatprep.subr.mxu0 0.0
  %3303 = vmatpush1.msra.mxu0 0.0
  %3304 = vmatprep.subr.mxu0 0.0
  %3305 = vmatpush1.msra.mxu0 0.0
  %3306 = vmatprep.subr.mxu0 0.0
  %3307 = vmatpush1.msra.mxu0 0.0
  %3308 = vmatprep.subr.mxu0 0.0
  %3309 = vmatpush1.msra.mxu0 0.0
  %3310 = vmatprep.subr.mxu0 0.0
  %3311 = vmatpush1.msra.mxu0 0.0
  %3312 = vmatprep.subr.mxu0 0.0
  %3313 = vmatpush1.msra.mxu0 0.0
  %3314 = vmatprep.subr.mxu0 0.0
  %3315 = vmatpush1.msra.mxu0 %v3276
  %3316 = vmatprep.subr.mxu0 0.0
  %3317 = vmatpush1.msra.mxu0 %v3275
  %3318 = vmatprep.subr.mxu0 0.0
  %3319 = vmatpush1.msra.mxu0 %v3274
  %3320 = vmatprep.subr.mxu0 0.0
  %3321 = vmatpush1.msra.mxu0 %v3273
  %3322 = vmatprep.subr.mxu0 0.0
  %3323 = vmatpush2.msra.mxu0 0.0
  %3324 = vmatprep.subr.mxu0 0.0
  %3325 = vmatpush2.msra.mxu0 0.0
  %3326 = vmatprep.subr.mxu0 0.0
  %3327 = vmatpush2.msra.mxu0 0.0
  %3328 = vmatprep.subr.mxu0 0.0
  %3329 = vmatpush2.msra.mxu0 0.0
  %3330 = vmatprep.subr.mxu0 0.0
  %3331 = vmatpush2.msra.mxu0 0.0
  %3332 = vmatprep.subr.mxu0 0.0
  %3333 = vmatpush2.msra.mxu0 0.0
  %3334 = vmatprep.subr.mxu0 0.0
  %3335 = vmatpush2.msra.mxu0 0.0
  %3336 = vmatprep.subr.mxu0 0.0
  %3337 = vmatpush2.msra.mxu0 0.0
  %3338 = vmatprep.subr.mxu0 0.0
  %3339 = vmatpush2.msra.mxu0 0.0
  %3340 = vmatprep.subr.mxu0 0.0
  %3341 = vmatpush2.msra.mxu0 0.0
  %3342 = vmatprep.subr.mxu0 0.0
  %3343 = vmatpush2.msra.mxu0 0.0
  %3344 = vmatprep.subr.mxu0 0.0
  %3345 = vmatpush2.msra.mxu0 0.0
  %3346 = vmatprep.subr.mxu0 0.0
  %3347 = vmatpush2.msra.mxu0 0.0
  %3348 = vmatprep.subr.mxu0 0.0
  %3349 = vmatpush2.msra.mxu0 0.0
  %3350 = vmatprep.subr.mxu0 0.0
  %3351 = vmatpush2.msra.mxu0 0.0
  %3352 = vmatprep.subr.mxu0 0.0
  %3353 = vmatpush2.msra.mxu0 0.0
  %3354 = vmatprep.mubr.f32.mxu0 0.0
  %3355 = vmatmul.mubr.f32.gmra.mxu0 %v3285
  %v3356 = vpop.f32.mrf.mxu0
  %v3357 = vadd.f32 %v3282, %v3356
  %v3358 = vpop.f32.mrf.mxu0
  %3359 = vmatprep.mubr.f32.mxu0 0.0
  %3360 = vmatmul.mubr.f32.gmra.mxu0 %v3288
  %v3361 = vpop.f32.mrf.mxu0
  %v3362 = vadd.f32 %v3282, %v3361
  %v3363 = vpop.f32.mrf.mxu0
  %3364 = vdwg.mxu0
  %3365 = vst.msk [vmem:[%s21] sm:$0xff] %vm261, %v3357
  %3366 = vst.msk [vmem:[%s21 + $0x8] sm:$0xff] %vm261, %v3362
  %v3367 = vld [vmem:[%s19] sm:$0xff]
  %v3368 = vld [vmem:[%s19 + $0x8] sm:$0xff]
  %v3369 = vld [vmem:[%s20] sm:$0x1]
  %v3371 = vlaneseq
  %v3372 = vshrl.u32 %v3371, 7
  %v3373 = vsub.s32 0, %v3372
  %v3374 = vrot.slane %v3369, %v3373
  %v3377 = vsel %vm261, %v3357, 0
  %v3380 = vsel %vm261, %v3362, 0
  %3382 = vmatprep.subr.mxu0 0.0
  %3383 = vmatpush1.msra.mxu0 0.0
  %3384 = vmatprep.subr.mxu0 0.0
  %3385 = vmatpush1.msra.mxu0 0.0
  %3386 = vmatprep.subr.mxu0 0.0
  %3387 = vmatpush1.msra.mxu0 0.0
  %3388 = vmatprep.subr.mxu0 0.0
  %3389 = vmatpush1.msra.mxu0 0.0
  %3390 = vmatprep.subr.mxu0 0.0
  %3391 = vmatpush1.msra.mxu0 0.0
  %3392 = vmatprep.subr.mxu0 0.0
  %3393 = vmatpush1.msra.mxu0 0.0
  %3394 = vmatprep.subr.mxu0 0.0
  %3395 = vmatpush1.msra.mxu0 0.0
  %3396 = vmatprep.subr.mxu0 0.0
  %3397 = vmatpush1.msra.mxu0 0.0
  %3398 = vmatprep.subr.mxu0 0.0
  %3399 = vmatpush1.msra.mxu0 0.0
  %3400 = vmatprep.subr.mxu0 0.0
  %3401 = vmatpush1.msra.mxu0 0.0
  %3402 = vmatprep.subr.mxu0 0.0
  %3403 = vmatpush1.msra.mxu0 0.0
  %3404 = vmatprep.subr.mxu0 0.0
  %3405 = vmatpush1.msra.mxu0 0.0
  %3406 = vmatprep.subr.mxu0 0.0
  %3407 = vmatpush1.msra.mxu0 0.0
  %3408 = vmatprep.subr.mxu0 0.0
  %3409 = vmatpush1.msra.mxu0 0.0
  %3410 = vmatprep.subr.mxu0 0.0
  %3411 = vmatpush1.msra.mxu0 %v3368
  %3412 = vmatprep.subr.mxu0 0.0
  %3413 = vmatpush1.msra.mxu0 %v3367
  %3414 = vmatprep.subr.mxu0 0.0
  %3415 = vmatpush2.msra.mxu0 0.0
  %3416 = vmatprep.subr.mxu0 0.0
  %3417 = vmatpush2.msra.mxu0 0.0
  %3418 = vmatprep.subr.mxu0 0.0
  %3419 = vmatpush2.msra.mxu0 0.0
  %3420 = vmatprep.subr.mxu0 0.0
  %3421 = vmatpush2.msra.mxu0 0.0
  %3422 = vmatprep.subr.mxu0 0.0
  %3423 = vmatpush2.msra.mxu0 0.0
  %3424 = vmatprep.subr.mxu0 0.0
  %3425 = vmatpush2.msra.mxu0 0.0
  %3426 = vmatprep.subr.mxu0 0.0
  %3427 = vmatpush2.msra.mxu0 0.0
  %3428 = vmatprep.subr.mxu0 0.0
  %3429 = vmatpush2.msra.mxu0 0.0
  %3430 = vmatprep.subr.mxu0 0.0
  %3431 = vmatpush2.msra.mxu0 0.0
  %3432 = vmatprep.subr.mxu0 0.0
  %3433 = vmatpush2.msra.mxu0 0.0
  %3434 = vmatprep.subr.mxu0 0.0
  %3435 = vmatpush2.msra.mxu0 0.0
  %3436 = vmatprep.subr.mxu0 0.0
  %3437 = vmatpush2.msra.mxu0 0.0
  %3438 = vmatprep.subr.mxu0 0.0
  %3439 = vmatpush2.msra.mxu0 0.0
  %3440 = vmatprep.subr.mxu0 0.0
  %3441 = vmatpush2.msra.mxu0 0.0
  %3442 = vmatprep.subr.mxu0 0.0
  %3443 = vmatpush2.msra.mxu0 0.0
  %3444 = vmatprep.subr.mxu0 0.0
  %3445 = vmatpush2.msra.mxu0 0.0
  %3446 = vmatprep.mubr.f32.mxu0 0.0
  %3447 = vmatmul.mubr.f32.gmra.mxu0 %v3377
  %v3448 = vpop.f32.mrf.mxu0
  %v3449 = vadd.f32 %v3374, %v3448
  %v3450 = vpop.f32.mrf.mxu0
  %3451 = vmatprep.mubr.f32.mxu0 0.0
  %3452 = vmatmul.mubr.f32.gmra.mxu0 %v3380
  %v3453 = vpop.f32.mrf.mxu0
  %v3454 = vadd.f32 %v3374, %v3453
  %v3455 = vpop.f32.mrf.mxu0
  %3456 = vdwg.mxu0
  %3457 = vst.msk [vmem:[%s22] sm:$0xff] %vm261, %v3449
  %3458 = vst.msk [vmem:[%s22 + $0x8] sm:$0xff] %vm261, %v3454
  // Predicated region
  $region86: #{net2_forward.2} parent=0 // pred_check
    _
  $region87: #{net2_forward.2} parent=0 // pred_check_branch
    %3460 = sbr.rel (0) target = $region89
  $region88: #{net2_forward.2} parent=0 // pred_region
    _
  $region89: #{net2_forward.2} parent=0 // pred_fallthru
    _
  // Predicated region
  $region90: #{net2_forward.2} parent=0 // pred_check
    _
  $region91: #{net2_forward.2} parent=0 // pred_check_branch
    %3462 = sbr.rel (0) target = $region93
  $region92: #{net2_forward.2} parent=0 // pred_region
    _
  $region93: #{net2_forward.2} parent=0 // pred_fallthru
    _
  // Predicated region
  $region94: #{net2_forward.2} parent=0 // pred_check
    _
  $region95: #{net2_forward.2} parent=0 // pred_check_branch
    %3464 = sbr.rel (0) target = $region97
  $region96: #{net2_forward.2} parent=0 // pred_region
    _
  $region97: #{net2_forward.2} parent=0 // pred_fallthru
    _
  // Predicated region
  $region98: #{net2_forward.2} parent=0 // pred_check
    _
  $region99: #{net2_forward.2} parent=0 // pred_check_branch
    %3466 = sbr.rel (0) target = $region101
  $region100: #{net2_forward.2} parent=0 // pred_region
    _
  $region101: #{net2_forward.2} parent=0 // pred_fallthru
    _

</llo_original>
